<compile_context>
chip_gen: v5e
topology: v5e:2x2
jax: 0.10.0
libtpu: 0.0.40
codegen_flags: <defaults>
</compile_context>

<pallas_src>
import math

import jax
import jax.numpy as jnp
import numpy as np
from jax import lax
from jax.experimental import pallas as pl
from jax.experimental.pallas import tpu as pltpu

# ---- ConvEncoder hyper-parameters (module defaults, small example shapes) ----
BATCH = 2
IN_CH = 32                      # input_shape[0]
IN_LEN = 40                     # input_shape[-1]
LATENT = 32                     # latent_size
FILTER_SIZES = (9, 9, 10)
CHANNELS = (9, 9, 11)
FC_WIDTH = 512
CP = 128                        # conv channel dim padded to one lane group
BN_EPS = 1e-5

L1 = IN_LEN - (FILTER_SIZES[0] - 1)          # 32
L2 = L1 - (FILTER_SIZES[1] - 1)              # 24
L3 = L2 - (FILTER_SIZES[2] - 1)              # 15
FINAL_DENSE_WIDTH = L3 * CHANNELS[2]         # 165


# --------------------------------------------------------------------------
# Pallas kernel: whole ConvEncoder forward
# --------------------------------------------------------------------------
def conv_encoder_kernel(x_ref, w1_ref, b1_ref, w2_ref, b2_ref, w3_ref, b3_ref,
                        dw_ref, db_ref, g_ref, beta_ref, zw_ref, zb_ref, eps_ref,
                        z_ref, mu_ref, lv_ref):
    # x:  (B, IN_LEN, IN_CH)   channels-last
    # wN: (K, Cin[_pad], CP)   bN: (1, CP)         (Cout padded to 128 lanes)
    # dw: (L3, CP, FC_WIDTH)   db/g/beta: (1, FC_WIDTH)
    # zw: (FC_WIDTH, 2*LATENT) zb: (1, 2*LATENT)   eps: (B, LATENT)
    B = x_ref.shape[0]

    def conv_relu(a, w_ref_, b_ref_, lout, ksize):
        # a: (Lin, Cin)  ->  (lout, CP); per-tap MXU matmuls, lane-dense output.
        acc = jnp.dot(a[0:lout, :], w_ref_[0], preferred_element_type=jnp.float32)
        for k in range(1, ksize):
            acc = acc + jnp.dot(a[k:k + lout, :], w_ref_[k],
                                preferred_element_type=jnp.float32)
        return jnp.maximum(acc + b_ref_[...], 0.0)

    h_rows = []
    for bi in range(B):                                   # static (tiny) batch loop
        xb = x_ref[bi]                                    # (IN_LEN, IN_CH)
        a1 = conv_relu(xb, w1_ref, b1_ref, L1, FILTER_SIZES[0])   # (L1, CP)
        a2 = conv_relu(a1, w2_ref, b2_ref, L2, FILTER_SIZES[1])   # (L2, CP)
        a3 = conv_relu(a2, w3_ref, b3_ref, L3, FILTER_SIZES[2])   # (L3, CP)
        # dense as per-position matmuls (no in-kernel flatten/reshape needed)
        acc = jnp.dot(a3[0:1, :], dw_ref[0], preferred_element_type=jnp.float32)
        for l in range(1, L3):
            acc = acc + jnp.dot(a3[l:l + 1, :], dw_ref[l],
                                preferred_element_type=jnp.float32)
        h_rows.append(acc)                                # (1, FC_WIDTH)

    h = jnp.concatenate(h_rows, axis=0)                   # (B, FC_WIDTH)
    h = jnp.maximum(h + db_ref[...], 0.0)                 # dense + ReLU

    # Training-mode BatchNorm1d: per-feature stats over the batch, biased variance.
    mean = jnp.sum(h, axis=0, keepdims=True) / B
    xc = h - mean
    var = jnp.sum(xc * xc, axis=0, keepdims=True) / B
    hn = xc * lax.rsqrt(var + BN_EPS) * g_ref[...] + beta_ref[...]

    # Fused z_means / z_vars: one matmul, split on the lane axis.
    out = jnp.dot(hn, zw_ref[...], preferred_element_type=jnp.float32) + zb_ref[...]
    mu = out[:, 0:LATENT]
    lv = out[:, LATENT:2 * LATENT]

    # reparameterize (faithful to the module: mu * eps * std, multiplicative)
    std = jnp.exp(0.5 * lv)
    z_ref[...] = mu * eps_ref[...] * std
    mu_ref[...] = mu
    lv_ref[...] = lv


# --------------------------------------------------------------------------
# Wrapper
# --------------------------------------------------------------------------
def conv_encoder_forward(kp, x, eps):
    # x: (B, IN_CH, IN_LEN) exactly like the PyTorch module; transpose to
    # channels-last in plain JAX (layout glue) so conv matmuls are lane-dense.
    x_cl = jnp.transpose(x, (0, 2, 1)).astype(jnp.float32)       # (B, IN_LEN, IN_CH)

    vmem = pl.BlockSpec(memory_space=pltpu.MemorySpace.VMEM)
    out_shapes = (
        jax.ShapeDtypeStruct((x.shape[0], LATENT), jnp.float32),  # z
        jax.ShapeDtypeStruct((x.shape[0], LATENT), jnp.float32),  # mu
        jax.ShapeDtypeStruct((x.shape[0], LATENT), jnp.float32),  # logvar
    )
    z, mu, logvar = pl.pallas_call(
        conv_encoder_kernel,
        out_shape=out_shapes,
        in_specs=[vmem] * 14,
        out_specs=(vmem, vmem, vmem),
    )(x_cl, kp["w1"], kp["b1"], kp["w2"], kp["b2"], kp["w3"], kp["b3"],
      kp["dw"], kp["db"], kp["gamma"], kp["beta"], kp["zw"], kp["zb"], eps)
    return z, mu, logvar


# --------------------------------------------------------------------------
# Parameter init (PyTorch layouts) + packing into kernel layouts
# --------------------------------------------------------------------------
def init_pt_params(key):
    ks = iter(jax.random.split(key, 32))

    def u(shape, fan_in):
        bound = 1.0 / math.sqrt(fan_in)
        return jax.random.uniform(next(ks), shape, jnp.float32, -bound, bound)

    p = {}
    cins = (IN_CH,) + CHANNELS[:2]
    for i, (cin, cout, k) in enumerate(zip(cins, CHANNELS, FILTER_SIZES), start=1):
        p[f"w{i}"] = u((cout, cin, k), cin * k)          # Conv1d weight (Cout, Cin, K)
        p[f"b{i}"] = u((cout,), cin * k)
    p["dense_w"] = u((FC_WIDTH, FINAL_DENSE_WIDTH), FINAL_DENSE_WIDTH)
    p["dense_b"] = u((FC_WIDTH,), FINAL_DENSE_WIDTH)
    p["gamma"] = jnp.ones((FC_WIDTH,), jnp.float32)      # BatchNorm1d affine
    p["beta"] = jnp.zeros((FC_WIDTH,), jnp.float32)
    p["zm_w"] = u((LATENT, FC_WIDTH), FC_WIDTH)
    p["zm_b"] = u((LATENT,), FC_WIDTH)
    p["zv_w"] = u((LATENT, FC_WIDTH), FC_WIDTH)
    p["zv_b"] = u((LATENT,), FC_WIDTH)
    return p


def pack_params(pt):
    def pack_conv(w, b, cin_pad):
        cout, cin, _ = w.shape
        wk = jnp.transpose(w, (2, 1, 0))                                  # (K, Cin, Cout)
        wk = jnp.pad(wk, ((0, 0), (0, cin_pad - cin), (0, CP - cout)))    # lane-dense Cout
        bp = jnp.pad(b, (0, CP - cout)).reshape(1, CP)
        return wk, bp

    kp = {}
    kp["w1"], kp["b1"] = pack_conv(pt["w1"], pt["b1"], IN_CH)
    kp["w2"], kp["b2"] = pack_conv(pt["w2"], pt["b2"], CP)
    kp["w3"], kp["b3"] = pack_conv(pt["w3"], pt["b3"], CP)

    # dense weight: PyTorch flattens (B, C3, L3) channel-major; repack so the kernel's
    # channels-last, per-position contraction computes exactly the same linear map.
    dw = pt["dense_w"].reshape(FC_WIDTH, CHANNELS[2], L3)                 # (FC, C3, L3)
    dw = jnp.transpose(dw, (2, 1, 0))                                     # (L3, C3, FC)
    kp["dw"] = jnp.pad(dw, ((0, 0), (0, CP - CHANNELS[2]), (0, 0)))       # (L3, CP, FC)
    kp["db"] = pt["dense_b"].reshape(1, FC_WIDTH)
    kp["gamma"] = pt["gamma"].reshape(1, FC_WIDTH)
    kp["beta"] = pt["beta"].reshape(1, FC_WIDTH)

    # fused z_means / z_vars
    kp["zw"] = jnp.concatenate([pt["zm_w"].T, pt["zv_w"].T], axis=1)      # (FC, 2*LAT)
    kp["zb"] = jnp.concatenate([pt["zm_b"], pt["zv_b"]]).reshape(1, 2 * LATENT)
    return kp


# --------------------------------------------------------------------------
# Pure-JAX reference (mirrors the PyTorch module) for a correctness check
# --------------------------------------------------------------------------
def reference_forward(pt, x, eps):
    hi = lax.Precision.HIGHEST

    def conv1d(a, w, b):                     # a: (B, Cin, L), w: (Cout, Cin, K)
        k = w.shape[2]
        lout = a.shape[2] - k + 1
        out = jnp.zeros((a.shape[0], w.shape[0], lout), jnp.float32)
        for t in range(k):
            out = out + jnp.einsum("bcl,oc->bol", a[:, :, t:t + lout], w[:, :, t],
                                   precision=hi)
        return out + b[None, :, None]

    a = jnp.maximum(conv1d(x, pt["w1"], pt["b1"]), 0.0)
    a = jnp.maximum(conv1d(a, pt["w2"], pt["b2"]), 0.0)
    a = jnp.maximum(conv1d(a, pt["w3"], pt["b3"]), 0.0)
    flat = a.reshape(a.shape[0], -1)                                     # (B, 165)
    h = jnp.maximum(jnp.matmul(flat, pt["dense_w"].T, precision=hi) + pt["dense_b"], 0.0)
    mean = jnp.mean(h, axis=0, keepdims=True)
    var = jnp.mean((h - mean) ** 2, axis=0, keepdims=True)
    hn = (h - mean) / jnp.sqrt(var + BN_EPS) * pt["gamma"] + pt["beta"]
    mu = jnp.matmul(hn, pt["zm_w"].T, precision=hi) + pt["zm_b"]
    lv = jnp.matmul(hn, pt["zv_w"].T, precision=hi) + pt["zv_b"]
    std = jnp.exp(0.5 * lv)
    return mu * eps * std, mu, lv


# --------------------------------------------------------------------------
if __name__ == "__main__":
    root = jax.random.PRNGKey(0)
    k_param, k_x, k_eps = jax.random.split(root, 3)

    pt_params = init_pt_params(k_param)
    kparams = pack_params(pt_params)
    x = jax.random.normal(k_x, (BATCH, IN_CH, IN_LEN), jnp.float32)
    eps = jax.random.normal(k_eps, (BATCH, LATENT), jnp.float32)

    fwd = jax.jit(conv_encoder_forward)
    z, mu, logvar = fwd(kparams, x, eps)
    jax.block_until_ready((z, mu, logvar))

    assert z.shape == (BATCH, LATENT)
    assert mu.shape == (BATCH, LATENT) and logvar.shape == (BATCH, LATENT)

    z_ref, mu_ref, lv_ref = reference_forward(pt_params, x, eps)
    np.testing.assert_allclose(np.asarray(mu), np.asarray(mu_ref), atol=1e-2, rtol=1e-2)
    np.testing.assert_allclose(np.asarray(logvar), np.asarray(lv_ref), atol=1e-2, rtol=1e-2)
    np.testing.assert_allclose(np.asarray(z), np.asarray(z_ref), atol=1e-2, rtol=1e-2)

    print("KERNEL_OK")
</pallas_src>

<mosaic_0001>
module attributes {stable_mosaic.version = 11 : i64} {
  func.func @conv_encoder_kernel(%arg0: memref<2x40x32xf32, #tpu.memory_space<vmem>>, %arg1: memref<9x32x128xf32, #tpu.memory_space<vmem>>, %arg2: memref<1x128xf32, #tpu.memory_space<vmem>>, %arg3: memref<9x128x128xf32, #tpu.memory_space<vmem>>, %arg4: memref<1x128xf32, #tpu.memory_space<vmem>>, %arg5: memref<10x128x128xf32, #tpu.memory_space<vmem>>, %arg6: memref<1x128xf32, #tpu.memory_space<vmem>>, %arg7: memref<15x128x512xf32, #tpu.memory_space<vmem>>, %arg8: memref<1x512xf32, #tpu.memory_space<vmem>>, %arg9: memref<1x512xf32, #tpu.memory_space<vmem>>, %arg10: memref<1x512xf32, #tpu.memory_space<vmem>>, %arg11: memref<512x64xf32, #tpu.memory_space<vmem>>, %arg12: memref<1x64xf32, #tpu.memory_space<vmem>>, %arg13: memref<2x32xf32, #tpu.memory_space<vmem>>, %arg14: memref<2x32xf32, #tpu.memory_space<vmem>>, %arg15: memref<2x32xf32, #tpu.memory_space<vmem>>, %arg16: memref<2x32xf32, #tpu.memory_space<vmem>>) attributes {dimension_semantics = [], scalar_prefetch = 0 : i64, scratch_operands = 0 : i64, tpu.core_type = #tpu.core_type<tc>} {
    %c0 = arith.constant 0 : index
    %c0_0 = arith.constant 0 : index
    %c0_1 = arith.constant 0 : index
    %0 = vector.load %arg0[%c0, %c0_0, %c0_1] : memref<2x40x32xf32, #tpu.memory_space<vmem>>, vector<1x40x32xf32>
    %1 = vector.shape_cast %0 : vector<1x40x32xf32> to vector<40x32xf32>
    %2 = vector.extract_strided_slice %1 {offsets = [0, 0], sizes = [32, 32], strides = [1, 1]} : vector<40x32xf32> to vector<32x32xf32>
    %c0_2 = arith.constant 0 : index
    %c0_3 = arith.constant 0 : index
    %c0_4 = arith.constant 0 : index
    %3 = vector.load %arg1[%c0_2, %c0_3, %c0_4] : memref<9x32x128xf32, #tpu.memory_space<vmem>>, vector<1x32x128xf32>
    %4 = vector.shape_cast %3 : vector<1x32x128xf32> to vector<32x128xf32>
    %cst = arith.constant dense<0.000000e+00> : vector<32x128xf32>
    %5 = tpu.matmul %2, %4, %cst {dimension_numbers = #tpu.dot_dimension_numbers<[1], [0], [0], [1], [0, 0, 1, 1], [], []>} : vector<32x32xf32>, vector<32x128xf32>, vector<32x128xf32> -> vector<32x128xf32>
    %6 = vector.extract_strided_slice %1 {offsets = [1, 0], sizes = [32, 32], strides = [1, 1]} : vector<40x32xf32> to vector<32x32xf32>
    %c1 = arith.constant 1 : index
    %c0_5 = arith.constant 0 : index
    %c0_6 = arith.constant 0 : index
    %7 = vector.load %arg1[%c1, %c0_5, %c0_6] : memref<9x32x128xf32, #tpu.memory_space<vmem>>, vector<1x32x128xf32>
    %8 = vector.shape_cast %7 : vector<1x32x128xf32> to vector<32x128xf32>
    %cst_7 = arith.constant dense<0.000000e+00> : vector<32x128xf32>
    %9 = tpu.matmul %6, %8, %cst_7 {dimension_numbers = #tpu.dot_dimension_numbers<[1], [0], [0], [1], [0, 0, 1, 1], [], []>} : vector<32x32xf32>, vector<32x128xf32>, vector<32x128xf32> -> vector<32x128xf32>
    %10 = arith.addf %5, %9 : vector<32x128xf32>
    %11 = vector.extract_strided_slice %1 {offsets = [2, 0], sizes = [32, 32], strides = [1, 1]} : vector<40x32xf32> to vector<32x32xf32>
    %c2 = arith.constant 2 : index
    %c0_8 = arith.constant 0 : index
    %c0_9 = arith.constant 0 : index
    %12 = vector.load %arg1[%c2, %c0_8, %c0_9] : memref<9x32x128xf32, #tpu.memory_space<vmem>>, vector<1x32x128xf32>
    %13 = vector.shape_cast %12 : vector<1x32x128xf32> to vector<32x128xf32>
    %cst_10 = arith.constant dense<0.000000e+00> : vector<32x128xf32>
    %14 = tpu.matmul %11, %13, %cst_10 {dimension_numbers = #tpu.dot_dimension_numbers<[1], [0], [0], [1], [0, 0, 1, 1], [], []>} : vector<32x32xf32>, vector<32x128xf32>, vector<32x128xf32> -> vector<32x128xf32>
    %15 = arith.addf %10, %14 : vector<32x128xf32>
    %16 = vector.extract_strided_slice %1 {offsets = [3, 0], sizes = [32, 32], strides = [1, 1]} : vector<40x32xf32> to vector<32x32xf32>
    %c3 = arith.constant 3 : index
    %c0_11 = arith.constant 0 : index
    %c0_12 = arith.constant 0 : index
    %17 = vector.load %arg1[%c3, %c0_11, %c0_12] : memref<9x32x128xf32, #tpu.memory_space<vmem>>, vector<1x32x128xf32>
    %18 = vector.shape_cast %17 : vector<1x32x128xf32> to vector<32x128xf32>
    %cst_13 = arith.constant dense<0.000000e+00> : vector<32x128xf32>
    %19 = tpu.matmul %16, %18, %cst_13 {dimension_numbers = #tpu.dot_dimension_numbers<[1], [0], [0], [1], [0, 0, 1, 1], [], []>} : vector<32x32xf32>, vector<32x128xf32>, vector<32x128xf32> -> vector<32x128xf32>
    %20 = arith.addf %15, %19 : vector<32x128xf32>
    %21 = vector.extract_strided_slice %1 {offsets = [4, 0], sizes = [32, 32], strides = [1, 1]} : vector<40x32xf32> to vector<32x32xf32>
    %c4 = arith.constant 4 : index
    %c0_14 = arith.constant 0 : index
    %c0_15 = arith.constant 0 : index
    %22 = vector.load %arg1[%c4, %c0_14, %c0_15] : memref<9x32x128xf32, #tpu.memory_space<vmem>>, vector<1x32x128xf32>
    %23 = vector.shape_cast %22 : vector<1x32x128xf32> to vector<32x128xf32>
    %cst_16 = arith.constant dense<0.000000e+00> : vector<32x128xf32>
    %24 = tpu.matmul %21, %23, %cst_16 {dimension_numbers = #tpu.dot_dimension_numbers<[1], [0], [0], [1], [0, 0, 1, 1], [], []>} : vector<32x32xf32>, vector<32x128xf32>, vector<32x128xf32> -> vector<32x128xf32>
    %25 = arith.addf %20, %24 : vector<32x128xf32>
    %26 = vector.extract_strided_slice %1 {offsets = [5, 0], sizes = [32, 32], strides = [1, 1]} : vector<40x32xf32> to vector<32x32xf32>
    %c5 = arith.constant 5 : index
    %c0_17 = arith.constant 0 : index
    %c0_18 = arith.constant 0 : index
    %27 = vector.load %arg1[%c5, %c0_17, %c0_18] : memref<9x32x128xf32, #tpu.memory_space<vmem>>, vector<1x32x128xf32>
    %28 = vector.shape_cast %27 : vector<1x32x128xf32> to vector<32x128xf32>
    %cst_19 = arith.constant dense<0.000000e+00> : vector<32x128xf32>
    %29 = tpu.matmul %26, %28, %cst_19 {dimension_numbers = #tpu.dot_dimension_numbers<[1], [0], [0], [1], [0, 0, 1, 1], [], []>} : vector<32x32xf32>, vector<32x128xf32>, vector<32x128xf32> -> vector<32x128xf32>
    %30 = arith.addf %25, %29 : vector<32x128xf32>
    %31 = vector.extract_strided_slice %1 {offsets = [6, 0], sizes = [32, 32], strides = [1, 1]} : vector<40x32xf32> to vector<32x32xf32>
    %c6 = arith.constant 6 : index
    %c0_20 = arith.constant 0 : index
    %c0_21 = arith.constant 0 : index
    %32 = vector.load %arg1[%c6, %c0_20, %c0_21] : memref<9x32x128xf32, #tpu.memory_space<vmem>>, vector<1x32x128xf32>
    %33 = vector.shape_cast %32 : vector<1x32x128xf32> to vector<32x128xf32>
    %cst_22 = arith.constant dense<0.000000e+00> : vector<32x128xf32>
    %34 = tpu.matmul %31, %33, %cst_22 {dimension_numbers = #tpu.dot_dimension_numbers<[1], [0], [0], [1], [0, 0, 1, 1], [], []>} : vector<32x32xf32>, vector<32x128xf32>, vector<32x128xf32> -> vector<32x128xf32>
    %35 = arith.addf %30, %34 : vector<32x128xf32>
    %36 = vector.extract_strided_slice %1 {offsets = [7, 0], sizes = [32, 32], strides = [1, 1]} : vector<40x32xf32> to vector<32x32xf32>
    %c7 = arith.constant 7 : index
    %c0_23 = arith.constant 0 : index
    %c0_24 = arith.constant 0 : index
    %37 = vector.load %arg1[%c7, %c0_23, %c0_24] : memref<9x32x128xf32, #tpu.memory_space<vmem>>, vector<1x32x128xf32>
    %38 = vector.shape_cast %37 : vector<1x32x128xf32> to vector<32x128xf32>
    %cst_25 = arith.constant dense<0.000000e+00> : vector<32x128xf32>
    %39 = tpu.matmul %36, %38, %cst_25 {dimension_numbers = #tpu.dot_dimension_numbers<[1], [0], [0], [1], [0, 0, 1, 1], [], []>} : vector<32x32xf32>, vector<32x128xf32>, vector<32x128xf32> -> vector<32x128xf32>
    %40 = arith.addf %35, %39 : vector<32x128xf32>
    %41 = vector.extract_strided_slice %1 {offsets = [8, 0], sizes = [32, 32], strides = [1, 1]} : vector<40x32xf32> to vector<32x32xf32>
    %c8 = arith.constant 8 : index
    %c0_26 = arith.constant 0 : index
    %c0_27 = arith.constant 0 : index
    %42 = vector.load %arg1[%c8, %c0_26, %c0_27] : memref<9x32x128xf32, #tpu.memory_space<vmem>>, vector<1x32x128xf32>
    %43 = vector.shape_cast %42 : vector<1x32x128xf32> to vector<32x128xf32>
    %cst_28 = arith.constant dense<0.000000e+00> : vector<32x128xf32>
    %44 = tpu.matmul %41, %43, %cst_28 {dimension_numbers = #tpu.dot_dimension_numbers<[1], [0], [0], [1], [0, 0, 1, 1], [], []>} : vector<32x32xf32>, vector<32x128xf32>, vector<32x128xf32> -> vector<32x128xf32>
    %45 = arith.addf %40, %44 : vector<32x128xf32>
    %c0_29 = arith.constant 0 : index
    %c0_30 = arith.constant 0 : index
    %46 = vector.load %arg2[%c0_29, %c0_30] : memref<1x128xf32, #tpu.memory_space<vmem>>, vector<1x128xf32>
    %47 = vector.broadcast %46 : vector<1x128xf32> to vector<32x128xf32>
    %48 = arith.addf %45, %47 : vector<32x128xf32>
    %cst_31 = arith.constant 0.000000e+00 : f32
    %49 = vector.broadcast %cst_31 : f32 to vector<32x128xf32>
    %50 = arith.maximumf %48, %49 : vector<32x128xf32>
    %51 = vector.extract_strided_slice %50 {offsets = [0, 0], sizes = [24, 128], strides = [1, 1]} : vector<32x128xf32> to vector<24x128xf32>
    %c0_32 = arith.constant 0 : index
    %c0_33 = arith.constant 0 : index
    %c0_34 = arith.constant 0 : index
    %52 = vector.load %arg3[%c0_32, %c0_33, %c0_34] : memref<9x128x128xf32, #tpu.memory_space<vmem>>, vector<1x128x128xf32>
    %53 = vector.shape_cast %52 : vector<1x128x128xf32> to vector<128x128xf32>
    %cst_35 = arith.constant dense<0.000000e+00> : vector<24x128xf32>
    %54 = tpu.matmul %51, %53, %cst_35 {dimension_numbers = #tpu.dot_dimension_numbers<[1], [0], [0], [1], [0, 0, 1, 1], [], []>} : vector<24x128xf32>, vector<128x128xf32>, vector<24x128xf32> -> vector<24x128xf32>
    %55 = vector.extract_strided_slice %50 {offsets = [1, 0], sizes = [24, 128], strides = [1, 1]} : vector<32x128xf32> to vector<24x128xf32>
    %c1_36 = arith.constant 1 : index
    %c0_37 = arith.constant 0 : index
    %c0_38 = arith.constant 0 : index
    %56 = vector.load %arg3[%c1_36, %c0_37, %c0_38] : memref<9x128x128xf32, #tpu.memory_space<vmem>>, vector<1x128x128xf32>
    %57 = vector.shape_cast %56 : vector<1x128x128xf32> to vector<128x128xf32>
    %cst_39 = arith.constant dense<0.000000e+00> : vector<24x128xf32>
    %58 = tpu.matmul %55, %57, %cst_39 {dimension_numbers = #tpu.dot_dimension_numbers<[1], [0], [0], [1], [0, 0, 1, 1], [], []>} : vector<24x128xf32>, vector<128x128xf32>, vector<24x128xf32> -> vector<24x128xf32>
    %59 = arith.addf %54, %58 : vector<24x128xf32>
    %60 = vector.extract_strided_slice %50 {offsets = [2, 0], sizes = [24, 128], strides = [1, 1]} : vector<32x128xf32> to vector<24x128xf32>
    %c2_40 = arith.constant 2 : index
    %c0_41 = arith.constant 0 : index
    %c0_42 = arith.constant 0 : index
    %61 = vector.load %arg3[%c2_40, %c0_41, %c0_42] : memref<9x128x128xf32, #tpu.memory_space<vmem>>, vector<1x128x128xf32>
    %62 = vector.shape_cast %61 : vector<1x128x128xf32> to vector<128x128xf32>
    %cst_43 = arith.constant dense<0.000000e+00> : vector<24x128xf32>
    %63 = tpu.matmul %60, %62, %cst_43 {dimension_numbers = #tpu.dot_dimension_numbers<[1], [0], [0], [1], [0, 0, 1, 1], [], []>} : vector<24x128xf32>, vector<128x128xf32>, vector<24x128xf32> -> vector<24x128xf32>
    %64 = arith.addf %59, %63 : vector<24x128xf32>
    %65 = vector.extract_strided_slice %50 {offsets = [3, 0], sizes = [24, 128], strides = [1, 1]} : vector<32x128xf32> to vector<24x128xf32>
    %c3_44 = arith.constant 3 : index
    %c0_45 = arith.constant 0 : index
    %c0_46 = arith.constant 0 : index
    %66 = vector.load %arg3[%c3_44, %c0_45, %c0_46] : memref<9x128x128xf32, #tpu.memory_space<vmem>>, vector<1x128x128xf32>
    %67 = vector.shape_cast %66 : vector<1x128x128xf32> to vector<128x128xf32>
    %cst_47 = arith.constant dense<0.000000e+00> : vector<24x128xf32>
    %68 = tpu.matmul %65, %67, %cst_47 {dimension_numbers = #tpu.dot_dimension_numbers<[1], [0], [0], [1], [0, 0, 1, 1], [], []>} : vector<24x128xf32>, vector<128x128xf32>, vector<24x128xf32> -> vector<24x128xf32>
    %69 = arith.addf %64, %68 : vector<24x128xf32>
    %70 = vector.extract_strided_slice %50 {offsets = [4, 0], sizes = [24, 128], strides = [1, 1]} : vector<32x128xf32> to vector<24x128xf32>
    %c4_48 = arith.constant 4 : index
    %c0_49 = arith.constant 0 : index
    %c0_50 = arith.constant 0 : index
    %71 = vector.load %arg3[%c4_48, %c0_49, %c0_50] : memref<9x128x128xf32, #tpu.memory_space<vmem>>, vector<1x128x128xf32>
    %72 = vector.shape_cast %71 : vector<1x128x128xf32> to vector<128x128xf32>
    %cst_51 = arith.constant dense<0.000000e+00> : vector<24x128xf32>
    %73 = tpu.matmul %70, %72, %cst_51 {dimension_numbers = #tpu.dot_dimension_numbers<[1], [0], [0], [1], [0, 0, 1, 1], [], []>} : vector<24x128xf32>, vector<128x128xf32>, vector<24x128xf32> -> vector<24x128xf32>
    %74 = arith.addf %69, %73 : vector<24x128xf32>
    %75 = vector.extract_strided_slice %50 {offsets = [5, 0], sizes = [24, 128], strides = [1, 1]} : vector<32x128xf32> to vector<24x128xf32>
    %c5_52 = arith.constant 5 : index
    %c0_53 = arith.constant 0 : index
    %c0_54 = arith.constant 0 : index
    %76 = vector.load %arg3[%c5_52, %c0_53, %c0_54] : memref<9x128x128xf32, #tpu.memory_space<vmem>>, vector<1x128x128xf32>
    %77 = vector.shape_cast %76 : vector<1x128x128xf32> to vector<128x128xf32>
    %cst_55 = arith.constant dense<0.000000e+00> : vector<24x128xf32>
    %78 = tpu.matmul %75, %77, %cst_55 {dimension_numbers = #tpu.dot_dimension_numbers<[1], [0], [0], [1], [0, 0, 1, 1], [], []>} : vector<24x128xf32>, vector<128x128xf32>, vector<24x128xf32> -> vector<24x128xf32>
    %79 = arith.addf %74, %78 : vector<24x128xf32>
    %80 = vector.extract_strided_slice %50 {offsets = [6, 0], sizes = [24, 128], strides = [1, 1]} : vector<32x128xf32> to vector<24x128xf32>
    %c6_56 = arith.constant 6 : index
    %c0_57 = arith.constant 0 : index
    %c0_58 = arith.constant 0 : index
    %81 = vector.load %arg3[%c6_56, %c0_57, %c0_58] : memref<9x128x128xf32, #tpu.memory_space<vmem>>, vector<1x128x128xf32>
    %82 = vector.shape_cast %81 : vector<1x128x128xf32> to vector<128x128xf32>
    %cst_59 = arith.constant dense<0.000000e+00> : vector<24x128xf32>
    %83 = tpu.matmul %80, %82, %cst_59 {dimension_numbers = #tpu.dot_dimension_numbers<[1], [0], [0], [1], [0, 0, 1, 1], [], []>} : vector<24x128xf32>, vector<128x128xf32>, vector<24x128xf32> -> vector<24x128xf32>
    %84 = arith.addf %79, %83 : vector<24x128xf32>
    %85 = vector.extract_strided_slice %50 {offsets = [7, 0], sizes = [24, 128], strides = [1, 1]} : vector<32x128xf32> to vector<24x128xf32>
    %c7_60 = arith.constant 7 : index
    %c0_61 = arith.constant 0 : index
    %c0_62 = arith.constant 0 : index
    %86 = vector.load %arg3[%c7_60, %c0_61, %c0_62] : memref<9x128x128xf32, #tpu.memory_space<vmem>>, vector<1x128x128xf32>
    %87 = vector.shape_cast %86 : vector<1x128x128xf32> to vector<128x128xf32>
    %cst_63 = arith.constant dense<0.000000e+00> : vector<24x128xf32>
    %88 = tpu.matmul %85, %87, %cst_63 {dimension_numbers = #tpu.dot_dimension_numbers<[1], [0], [0], [1], [0, 0, 1, 1], [], []>} : vector<24x128xf32>, vector<128x128xf32>, vector<24x128xf32> -> vector<24x128xf32>
    %89 = arith.addf %84, %88 : vector<24x128xf32>
    %90 = vector.extract_strided_slice %50 {offsets = [8, 0], sizes = [24, 128], strides = [1, 1]} : vector<32x128xf32> to vector<24x128xf32>
    %c8_64 = arith.constant 8 : index
    %c0_65 = arith.constant 0 : index
    %c0_66 = arith.constant 0 : index
    %91 = vector.load %arg3[%c8_64, %c0_65, %c0_66] : memref<9x128x128xf32, #tpu.memory_space<vmem>>, vector<1x128x128xf32>
    %92 = vector.shape_cast %91 : vector<1x128x128xf32> to vector<128x128xf32>
    %cst_67 = arith.constant dense<0.000000e+00> : vector<24x128xf32>
    %93 = tpu.matmul %90, %92, %cst_67 {dimension_numbers = #tpu.dot_dimension_numbers<[1], [0], [0], [1], [0, 0, 1, 1], [], []>} : vector<24x128xf32>, vector<128x128xf32>, vector<24x128xf32> -> vector<24x128xf32>
    %94 = arith.addf %89, %93 : vector<24x128xf32>
    %c0_68 = arith.constant 0 : index
    %c0_69 = arith.constant 0 : index
    %95 = vector.load %arg4[%c0_68, %c0_69] : memref<1x128xf32, #tpu.memory_space<vmem>>, vector<1x128xf32>
    %96 = vector.broadcast %95 : vector<1x128xf32> to vector<24x128xf32>
    %97 = arith.addf %94, %96 : vector<24x128xf32>
    %cst_70 = arith.constant 0.000000e+00 : f32
    %98 = vector.broadcast %cst_70 : f32 to vector<24x128xf32>
    %99 = arith.maximumf %97, %98 : vector<24x128xf32>
    %100 = vector.extract_strided_slice %99 {offsets = [0, 0], sizes = [15, 128], strides = [1, 1]} : vector<24x128xf32> to vector<15x128xf32>
    %c0_71 = arith.constant 0 : index
    %c0_72 = arith.constant 0 : index
    %c0_73 = arith.constant 0 : index
    %101 = vector.load %arg5[%c0_71, %c0_72, %c0_73] : memref<10x128x128xf32, #tpu.memory_space<vmem>>, vector<1x128x128xf32>
    %102 = vector.shape_cast %101 : vector<1x128x128xf32> to vector<128x128xf32>
    %cst_74 = arith.constant dense<0.000000e+00> : vector<15x128xf32>
    %103 = tpu.matmul %100, %102, %cst_74 {dimension_numbers = #tpu.dot_dimension_numbers<[1], [0], [0], [1], [0, 0, 1, 1], [], []>} : vector<15x128xf32>, vector<128x128xf32>, vector<15x128xf32> -> vector<15x128xf32>
    %104 = vector.extract_strided_slice %99 {offsets = [1, 0], sizes = [15, 128], strides = [1, 1]} : vector<24x128xf32> to vector<15x128xf32>
    %c1_75 = arith.constant 1 : index
    %c0_76 = arith.constant 0 : index
    %c0_77 = arith.constant 0 : index
    %105 = vector.load %arg5[%c1_75, %c0_76, %c0_77] : memref<10x128x128xf32, #tpu.memory_space<vmem>>, vector<1x128x128xf32>
    %106 = vector.shape_cast %105 : vector<1x128x128xf32> to vector<128x128xf32>
    %cst_78 = arith.constant dense<0.000000e+00> : vector<15x128xf32>
    %107 = tpu.matmul %104, %106, %cst_78 {dimension_numbers = #tpu.dot_dimension_numbers<[1], [0], [0], [1], [0, 0, 1, 1], [], []>} : vector<15x128xf32>, vector<128x128xf32>, vector<15x128xf32> -> vector<15x128xf32>
    %108 = arith.addf %103, %107 : vector<15x128xf32>
    %109 = vector.extract_strided_slice %99 {offsets = [2, 0], sizes = [15, 128], strides = [1, 1]} : vector<24x128xf32> to vector<15x128xf32>
    %c2_79 = arith.constant 2 : index
    %c0_80 = arith.constant 0 : index
    %c0_81 = arith.constant 0 : index
    %110 = vector.load %arg5[%c2_79, %c0_80, %c0_81] : memref<10x128x128xf32, #tpu.memory_space<vmem>>, vector<1x128x128xf32>
    %111 = vector.shape_cast %110 : vector<1x128x128xf32> to vector<128x128xf32>
    %cst_82 = arith.constant dense<0.000000e+00> : vector<15x128xf32>
    %112 = tpu.matmul %109, %111, %cst_82 {dimension_numbers = #tpu.dot_dimension_numbers<[1], [0], [0], [1], [0, 0, 1, 1], [], []>} : vector<15x128xf32>, vector<128x128xf32>, vector<15x128xf32> -> vector<15x128xf32>
    %113 = arith.addf %108, %112 : vector<15x128xf32>
    %114 = vector.extract_strided_slice %99 {offsets = [3, 0], sizes = [15, 128], strides = [1, 1]} : vector<24x128xf32> to vector<15x128xf32>
    %c3_83 = arith.constant 3 : index
    %c0_84 = arith.constant 0 : index
    %c0_85 = arith.constant 0 : index
    %115 = vector.load %arg5[%c3_83, %c0_84, %c0_85] : memref<10x128x128xf32, #tpu.memory_space<vmem>>, vector<1x128x128xf32>
    %116 = vector.shape_cast %115 : vector<1x128x128xf32> to vector<128x128xf32>
    %cst_86 = arith.constant dense<0.000000e+00> : vector<15x128xf32>
    %117 = tpu.matmul %114, %116, %cst_86 {dimension_numbers = #tpu.dot_dimension_numbers<[1], [0], [0], [1], [0, 0, 1, 1], [], []>} : vector<15x128xf32>, vector<128x128xf32>, vector<15x128xf32> -> vector<15x128xf32>
    %118 = arith.addf %113, %117 : vector<15x128xf32>
    %119 = vector.extract_strided_slice %99 {offsets = [4, 0], sizes = [15, 128], strides = [1, 1]} : vector<24x128xf32> to vector<15x128xf32>
    %c4_87 = arith.constant 4 : index
    %c0_88 = arith.constant 0 : index
    %c0_89 = arith.constant 0 : index
    %120 = vector.load %arg5[%c4_87, %c0_88, %c0_89] : memref<10x128x128xf32, #tpu.memory_space<vmem>>, vector<1x128x128xf32>
    %121 = vector.shape_cast %120 : vector<1x128x128xf32> to vector<128x128xf32>
    %cst_90 = arith.constant dense<0.000000e+00> : vector<15x128xf32>
    %122 = tpu.matmul %119, %121, %cst_90 {dimension_numbers = #tpu.dot_dimension_numbers<[1], [0], [0], [1], [0, 0, 1, 1], [], []>} : vector<15x128xf32>, vector<128x128xf32>, vector<15x128xf32> -> vector<15x128xf32>
    %123 = arith.addf %118, %122 : vector<15x128xf32>
    %124 = vector.extract_strided_slice %99 {offsets = [5, 0], sizes = [15, 128], strides = [1, 1]} : vector<24x128xf32> to vector<15x128xf32>
    %c5_91 = arith.constant 5 : index
    %c0_92 = arith.constant 0 : index
    %c0_93 = arith.constant 0 : index
    %125 = vector.load %arg5[%c5_91, %c0_92, %c0_93] : memref<10x128x128xf32, #tpu.memory_space<vmem>>, vector<1x128x128xf32>
    %126 = vector.shape_cast %125 : vector<1x128x128xf32> to vector<128x128xf32>
    %cst_94 = arith.constant dense<0.000000e+00> : vector<15x128xf32>
    %127 = tpu.matmul %124, %126, %cst_94 {dimension_numbers = #tpu.dot_dimension_numbers<[1], [0], [0], [1], [0, 0, 1, 1], [], []>} : vector<15x128xf32>, vector<128x128xf32>, vector<15x128xf32> -> vector<15x128xf32>
    %128 = arith.addf %123, %127 : vector<15x128xf32>
    %129 = vector.extract_strided_slice %99 {offsets = [6, 0], sizes = [15, 128], strides = [1, 1]} : vector<24x128xf32> to vector<15x128xf32>
    %c6_95 = arith.constant 6 : index
    %c0_96 = arith.constant 0 : index
    %c0_97 = arith.constant 0 : index
    %130 = vector.load %arg5[%c6_95, %c0_96, %c0_97] : memref<10x128x128xf32, #tpu.memory_space<vmem>>, vector<1x128x128xf32>
    %131 = vector.shape_cast %130 : vector<1x128x128xf32> to vector<128x128xf32>
    %cst_98 = arith.constant dense<0.000000e+00> : vector<15x128xf32>
    %132 = tpu.matmul %129, %131, %cst_98 {dimension_numbers = #tpu.dot_dimension_numbers<[1], [0], [0], [1], [0, 0, 1, 1], [], []>} : vector<15x128xf32>, vector<128x128xf32>, vector<15x128xf32> -> vector<15x128xf32>
    %133 = arith.addf %128, %132 : vector<15x128xf32>
    %134 = vector.extract_strided_slice %99 {offsets = [7, 0], sizes = [15, 128], strides = [1, 1]} : vector<24x128xf32> to vector<15x128xf32>
    %c7_99 = arith.constant 7 : index
    %c0_100 = arith.constant 0 : index
    %c0_101 = arith.constant 0 : index
    %135 = vector.load %arg5[%c7_99, %c0_100, %c0_101] : memref<10x128x128xf32, #tpu.memory_space<vmem>>, vector<1x128x128xf32>
    %136 = vector.shape_cast %135 : vector<1x128x128xf32> to vector<128x128xf32>
    %cst_102 = arith.constant dense<0.000000e+00> : vector<15x128xf32>
    %137 = tpu.matmul %134, %136, %cst_102 {dimension_numbers = #tpu.dot_dimension_numbers<[1], [0], [0], [1], [0, 0, 1, 1], [], []>} : vector<15x128xf32>, vector<128x128xf32>, vector<15x128xf32> -> vector<15x128xf32>
    %138 = arith.addf %133, %137 : vector<15x128xf32>
    %139 = vector.extract_strided_slice %99 {offsets = [8, 0], sizes = [15, 128], strides = [1, 1]} : vector<24x128xf32> to vector<15x128xf32>
    %c8_103 = arith.constant 8 : index
    %c0_104 = arith.constant 0 : index
    %c0_105 = arith.constant 0 : index
    %140 = vector.load %arg5[%c8_103, %c0_104, %c0_105] : memref<10x128x128xf32, #tpu.memory_space<vmem>>, vector<1x128x128xf32>
    %141 = vector.shape_cast %140 : vector<1x128x128xf32> to vector<128x128xf32>
    %cst_106 = arith.constant dense<0.000000e+00> : vector<15x128xf32>
    %142 = tpu.matmul %139, %141, %cst_106 {dimension_numbers = #tpu.dot_dimension_numbers<[1], [0], [0], [1], [0, 0, 1, 1], [], []>} : vector<15x128xf32>, vector<128x128xf32>, vector<15x128xf32> -> vector<15x128xf32>
    %143 = arith.addf %138, %142 : vector<15x128xf32>
    %144 = vector.extract_strided_slice %99 {offsets = [9, 0], sizes = [15, 128], strides = [1, 1]} : vector<24x128xf32> to vector<15x128xf32>
    %c9 = arith.constant 9 : index
    %c0_107 = arith.constant 0 : index
    %c0_108 = arith.constant 0 : index
    %145 = vector.load %arg5[%c9, %c0_107, %c0_108] : memref<10x128x128xf32, #tpu.memory_space<vmem>>, vector<1x128x128xf32>
    %146 = vector.shape_cast %145 : vector<1x128x128xf32> to vector<128x128xf32>
    %cst_109 = arith.constant dense<0.000000e+00> : vector<15x128xf32>
    %147 = tpu.matmul %144, %146, %cst_109 {dimension_numbers = #tpu.dot_dimension_numbers<[1], [0], [0], [1], [0, 0, 1, 1], [], []>} : vector<15x128xf32>, vector<128x128xf32>, vector<15x128xf32> -> vector<15x128xf32>
    %148 = arith.addf %143, %147 : vector<15x128xf32>
    %c0_110 = arith.constant 0 : index
    %c0_111 = arith.constant 0 : index
    %149 = vector.load %arg6[%c0_110, %c0_111] : memref<1x128xf32, #tpu.memory_space<vmem>>, vector<1x128xf32>
    %150 = vector.broadcast %149 : vector<1x128xf32> to vector<15x128xf32>
    %151 = arith.addf %148, %150 : vector<15x128xf32>
    %cst_112 = arith.constant 0.000000e+00 : f32
    %152 = vector.broadcast %cst_112 : f32 to vector<15x128xf32>
    %153 = arith.maximumf %151, %152 : vector<15x128xf32>
    %154 = vector.extract_strided_slice %153 {offsets = [0, 0], sizes = [1, 128], strides = [1, 1]} : vector<15x128xf32> to vector<1x128xf32>
    %c0_113 = arith.constant 0 : index
    %c0_114 = arith.constant 0 : index
    %c0_115 = arith.constant 0 : index
    %155 = vector.load %arg7[%c0_113, %c0_114, %c0_115] : memref<15x128x512xf32, #tpu.memory_space<vmem>>, vector<1x128x512xf32>
    %156 = vector.shape_cast %155 : vector<1x128x512xf32> to vector<128x512xf32>
    %cst_116 = arith.constant dense<0.000000e+00> : vector<1x512xf32>
    %157 = tpu.matmul %154, %156, %cst_116 {dimension_numbers = #tpu.dot_dimension_numbers<[1], [0], [0], [1], [0, 0, 1, 1], [], []>} : vector<1x128xf32>, vector<128x512xf32>, vector<1x512xf32> -> vector<1x512xf32>
    %158 = vector.extract_strided_slice %153 {offsets = [1, 0], sizes = [1, 128], strides = [1, 1]} : vector<15x128xf32> to vector<1x128xf32>
    %c1_117 = arith.constant 1 : index
    %c0_118 = arith.constant 0 : index
    %c0_119 = arith.constant 0 : index
    %159 = vector.load %arg7[%c1_117, %c0_118, %c0_119] : memref<15x128x512xf32, #tpu.memory_space<vmem>>, vector<1x128x512xf32>
    %160 = vector.shape_cast %159 : vector<1x128x512xf32> to vector<128x512xf32>
    %cst_120 = arith.constant dense<0.000000e+00> : vector<1x512xf32>
    %161 = tpu.matmul %158, %160, %cst_120 {dimension_numbers = #tpu.dot_dimension_numbers<[1], [0], [0], [1], [0, 0, 1, 1], [], []>} : vector<1x128xf32>, vector<128x512xf32>, vector<1x512xf32> -> vector<1x512xf32>
    %162 = arith.addf %157, %161 : vector<1x512xf32>
    %163 = vector.extract_strided_slice %153 {offsets = [2, 0], sizes = [1, 128], strides = [1, 1]} : vector<15x128xf32> to vector<1x128xf32>
    %c2_121 = arith.constant 2 : index
    %c0_122 = arith.constant 0 : index
    %c0_123 = arith.constant 0 : index
    %164 = vector.load %arg7[%c2_121, %c0_122, %c0_123] : memref<15x128x512xf32, #tpu.memory_space<vmem>>, vector<1x128x512xf32>
    %165 = vector.shape_cast %164 : vector<1x128x512xf32> to vector<128x512xf32>
    %cst_124 = arith.constant dense<0.000000e+00> : vector<1x512xf32>
    %166 = tpu.matmul %163, %165, %cst_124 {dimension_numbers = #tpu.dot_dimension_numbers<[1], [0], [0], [1], [0, 0, 1, 1], [], []>} : vector<1x128xf32>, vector<128x512xf32>, vector<1x512xf32> -> vector<1x512xf32>
    %167 = arith.addf %162, %166 : vector<1x512xf32>
    %168 = vector.extract_strided_slice %153 {offsets = [3, 0], sizes = [1, 128], strides = [1, 1]} : vector<15x128xf32> to vector<1x128xf32>
    %c3_125 = arith.constant 3 : index
    %c0_126 = arith.constant 0 : index
    %c0_127 = arith.constant 0 : index
    %169 = vector.load %arg7[%c3_125, %c0_126, %c0_127] : memref<15x128x512xf32, #tpu.memory_space<vmem>>, vector<1x128x512xf32>
    %170 = vector.shape_cast %169 : vector<1x128x512xf32> to vector<128x512xf32>
    %cst_128 = arith.constant dense<0.000000e+00> : vector<1x512xf32>
    %171 = tpu.matmul %168, %170, %cst_128 {dimension_numbers = #tpu.dot_dimension_numbers<[1], [0], [0], [1], [0, 0, 1, 1], [], []>} : vector<1x128xf32>, vector<128x512xf32>, vector<1x512xf32> -> vector<1x512xf32>
    %172 = arith.addf %167, %171 : vector<1x512xf32>
    %173 = vector.extract_strided_slice %153 {offsets = [4, 0], sizes = [1, 128], strides = [1, 1]} : vector<15x128xf32> to vector<1x128xf32>
    %c4_129 = arith.constant 4 : index
    %c0_130 = arith.constant 0 : index
    %c0_131 = arith.constant 0 : index
    %174 = vector.load %arg7[%c4_129, %c0_130, %c0_131] : memref<15x128x512xf32, #tpu.memory_space<vmem>>, vector<1x128x512xf32>
    %175 = vector.shape_cast %174 : vector<1x128x512xf32> to vector<128x512xf32>
    %cst_132 = arith.constant dense<0.000000e+00> : vector<1x512xf32>
    %176 = tpu.matmul %173, %175, %cst_132 {dimension_numbers = #tpu.dot_dimension_numbers<[1], [0], [0], [1], [0, 0, 1, 1], [], []>} : vector<1x128xf32>, vector<128x512xf32>, vector<1x512xf32> -> vector<1x512xf32>
    %177 = arith.addf %172, %176 : vector<1x512xf32>
    %178 = vector.extract_strided_slice %153 {offsets = [5, 0], sizes = [1, 128], strides = [1, 1]} : vector<15x128xf32> to vector<1x128xf32>
    %c5_133 = arith.constant 5 : index
    %c0_134 = arith.constant 0 : index
    %c0_135 = arith.constant 0 : index
    %179 = vector.load %arg7[%c5_133, %c0_134, %c0_135] : memref<15x128x512xf32, #tpu.memory_space<vmem>>, vector<1x128x512xf32>
    %180 = vector.shape_cast %179 : vector<1x128x512xf32> to vector<128x512xf32>
    %cst_136 = arith.constant dense<0.000000e+00> : vector<1x512xf32>
    %181 = tpu.matmul %178, %180, %cst_136 {dimension_numbers = #tpu.dot_dimension_numbers<[1], [0], [0], [1], [0, 0, 1, 1], [], []>} : vector<1x128xf32>, vector<128x512xf32>, vector<1x512xf32> -> vector<1x512xf32>
    %182 = arith.addf %177, %181 : vector<1x512xf32>
    %183 = vector.extract_strided_slice %153 {offsets = [6, 0], sizes = [1, 128], strides = [1, 1]} : vector<15x128xf32> to vector<1x128xf32>
    %c6_137 = arith.constant 6 : index
    %c0_138 = arith.constant 0 : index
    %c0_139 = arith.constant 0 : index
    %184 = vector.load %arg7[%c6_137, %c0_138, %c0_139] : memref<15x128x512xf32, #tpu.memory_space<vmem>>, vector<1x128x512xf32>
    %185 = vector.shape_cast %184 : vector<1x128x512xf32> to vector<128x512xf32>
    %cst_140 = arith.constant dense<0.000000e+00> : vector<1x512xf32>
    %186 = tpu.matmul %183, %185, %cst_140 {dimension_numbers = #tpu.dot_dimension_numbers<[1], [0], [0], [1], [0, 0, 1, 1], [], []>} : vector<1x128xf32>, vector<128x512xf32>, vector<1x512xf32> -> vector<1x512xf32>
    %187 = arith.addf %182, %186 : vector<1x512xf32>
    %188 = vector.extract_strided_slice %153 {offsets = [7, 0], sizes = [1, 128], strides = [1, 1]} : vector<15x128xf32> to vector<1x128xf32>
    %c7_141 = arith.constant 7 : index
    %c0_142 = arith.constant 0 : index
    %c0_143 = arith.constant 0 : index
    %189 = vector.load %arg7[%c7_141, %c0_142, %c0_143] : memref<15x128x512xf32, #tpu.memory_space<vmem>>, vector<1x128x512xf32>
    %190 = vector.shape_cast %189 : vector<1x128x512xf32> to vector<128x512xf32>
    %cst_144 = arith.constant dense<0.000000e+00> : vector<1x512xf32>
    %191 = tpu.matmul %188, %190, %cst_144 {dimension_numbers = #tpu.dot_dimension_numbers<[1], [0], [0], [1], [0, 0, 1, 1], [], []>} : vector<1x128xf32>, vector<128x512xf32>, vector<1x512xf32> -> vector<1x512xf32>
    %192 = arith.addf %187, %191 : vector<1x512xf32>
    %193 = vector.extract_strided_slice %153 {offsets = [8, 0], sizes = [1, 128], strides = [1, 1]} : vector<15x128xf32> to vector<1x128xf32>
    %c8_145 = arith.constant 8 : index
    %c0_146 = arith.constant 0 : index
    %c0_147 = arith.constant 0 : index
    %194 = vector.load %arg7[%c8_145, %c0_146, %c0_147] : memref<15x128x512xf32, #tpu.memory_space<vmem>>, vector<1x128x512xf32>
    %195 = vector.shape_cast %194 : vector<1x128x512xf32> to vector<128x512xf32>
    %cst_148 = arith.constant dense<0.000000e+00> : vector<1x512xf32>
    %196 = tpu.matmul %193, %195, %cst_148 {dimension_numbers = #tpu.dot_dimension_numbers<[1], [0], [0], [1], [0, 0, 1, 1], [], []>} : vector<1x128xf32>, vector<128x512xf32>, vector<1x512xf32> -> vector<1x512xf32>
    %197 = arith.addf %192, %196 : vector<1x512xf32>
    %198 = vector.extract_strided_slice %153 {offsets = [9, 0], sizes = [1, 128], strides = [1, 1]} : vector<15x128xf32> to vector<1x128xf32>
    %c9_149 = arith.constant 9 : index
    %c0_150 = arith.constant 0 : index
    %c0_151 = arith.constant 0 : index
    %199 = vector.load %arg7[%c9_149, %c0_150, %c0_151] : memref<15x128x512xf32, #tpu.memory_space<vmem>>, vector<1x128x512xf32>
    %200 = vector.shape_cast %199 : vector<1x128x512xf32> to vector<128x512xf32>
    %cst_152 = arith.constant dense<0.000000e+00> : vector<1x512xf32>
    %201 = tpu.matmul %198, %200, %cst_152 {dimension_numbers = #tpu.dot_dimension_numbers<[1], [0], [0], [1], [0, 0, 1, 1], [], []>} : vector<1x128xf32>, vector<128x512xf32>, vector<1x512xf32> -> vector<1x512xf32>
    %202 = arith.addf %197, %201 : vector<1x512xf32>
    %203 = vector.extract_strided_slice %153 {offsets = [10, 0], sizes = [1, 128], strides = [1, 1]} : vector<15x128xf32> to vector<1x128xf32>
    %c10 = arith.constant 10 : index
    %c0_153 = arith.constant 0 : index
    %c0_154 = arith.constant 0 : index
    %204 = vector.load %arg7[%c10, %c0_153, %c0_154] : memref<15x128x512xf32, #tpu.memory_space<vmem>>, vector<1x128x512xf32>
    %205 = vector.shape_cast %204 : vector<1x128x512xf32> to vector<128x512xf32>
    %cst_155 = arith.constant dense<0.000000e+00> : vector<1x512xf32>
    %206 = tpu.matmul %203, %205, %cst_155 {dimension_numbers = #tpu.dot_dimension_numbers<[1], [0], [0], [1], [0, 0, 1, 1], [], []>} : vector<1x128xf32>, vector<128x512xf32>, vector<1x512xf32> -> vector<1x512xf32>
    %207 = arith.addf %202, %206 : vector<1x512xf32>
    %208 = vector.extract_strided_slice %153 {offsets = [11, 0], sizes = [1, 128], strides = [1, 1]} : vector<15x128xf32> to vector<1x128xf32>
    %c11 = arith.constant 11 : index
    %c0_156 = arith.constant 0 : index
    %c0_157 = arith.constant 0 : index
    %209 = vector.load %arg7[%c11, %c0_156, %c0_157] : memref<15x128x512xf32, #tpu.memory_space<vmem>>, vector<1x128x512xf32>
    %210 = vector.shape_cast %209 : vector<1x128x512xf32> to vector<128x512xf32>
    %cst_158 = arith.constant dense<0.000000e+00> : vector<1x512xf32>
    %211 = tpu.matmul %208, %210, %cst_158 {dimension_numbers = #tpu.dot_dimension_numbers<[1], [0], [0], [1], [0, 0, 1, 1], [], []>} : vector<1x128xf32>, vector<128x512xf32>, vector<1x512xf32> -> vector<1x512xf32>
    %212 = arith.addf %207, %211 : vector<1x512xf32>
    %213 = vector.extract_strided_slice %153 {offsets = [12, 0], sizes = [1, 128], strides = [1, 1]} : vector<15x128xf32> to vector<1x128xf32>
    %c12 = arith.constant 12 : index
    %c0_159 = arith.constant 0 : index
    %c0_160 = arith.constant 0 : index
    %214 = vector.load %arg7[%c12, %c0_159, %c0_160] : memref<15x128x512xf32, #tpu.memory_space<vmem>>, vector<1x128x512xf32>
    %215 = vector.shape_cast %214 : vector<1x128x512xf32> to vector<128x512xf32>
    %cst_161 = arith.constant dense<0.000000e+00> : vector<1x512xf32>
    %216 = tpu.matmul %213, %215, %cst_161 {dimension_numbers = #tpu.dot_dimension_numbers<[1], [0], [0], [1], [0, 0, 1, 1], [], []>} : vector<1x128xf32>, vector<128x512xf32>, vector<1x512xf32> -> vector<1x512xf32>
    %217 = arith.addf %212, %216 : vector<1x512xf32>
    %218 = vector.extract_strided_slice %153 {offsets = [13, 0], sizes = [1, 128], strides = [1, 1]} : vector<15x128xf32> to vector<1x128xf32>
    %c13 = arith.constant 13 : index
    %c0_162 = arith.constant 0 : index
    %c0_163 = arith.constant 0 : index
    %219 = vector.load %arg7[%c13, %c0_162, %c0_163] : memref<15x128x512xf32, #tpu.memory_space<vmem>>, vector<1x128x512xf32>
    %220 = vector.shape_cast %219 : vector<1x128x512xf32> to vector<128x512xf32>
    %cst_164 = arith.constant dense<0.000000e+00> : vector<1x512xf32>
    %221 = tpu.matmul %218, %220, %cst_164 {dimension_numbers = #tpu.dot_dimension_numbers<[1], [0], [0], [1], [0, 0, 1, 1], [], []>} : vector<1x128xf32>, vector<128x512xf32>, vector<1x512xf32> -> vector<1x512xf32>
    %222 = arith.addf %217, %221 : vector<1x512xf32>
    %223 = vector.extract_strided_slice %153 {offsets = [14, 0], sizes = [1, 128], strides = [1, 1]} : vector<15x128xf32> to vector<1x128xf32>
    %c14 = arith.constant 14 : index
    %c0_165 = arith.constant 0 : index
    %c0_166 = arith.constant 0 : index
    %224 = vector.load %arg7[%c14, %c0_165, %c0_166] : memref<15x128x512xf32, #tpu.memory_space<vmem>>, vector<1x128x512xf32>
    %225 = vector.shape_cast %224 : vector<1x128x512xf32> to vector<128x512xf32>
    %cst_167 = arith.constant dense<0.000000e+00> : vector<1x512xf32>
    %226 = tpu.matmul %223, %225, %cst_167 {dimension_numbers = #tpu.dot_dimension_numbers<[1], [0], [0], [1], [0, 0, 1, 1], [], []>} : vector<1x128xf32>, vector<128x512xf32>, vector<1x512xf32> -> vector<1x512xf32>
    %227 = arith.addf %222, %226 : vector<1x512xf32>
    %c1_168 = arith.constant 1 : index
    %c0_169 = arith.constant 0 : index
    %c0_170 = arith.constant 0 : index
    %228 = vector.load %arg0[%c1_168, %c0_169, %c0_170] : memref<2x40x32xf32, #tpu.memory_space<vmem>>, vector<1x40x32xf32>
    %229 = vector.shape_cast %228 : vector<1x40x32xf32> to vector<40x32xf32>
    %230 = vector.extract_strided_slice %229 {offsets = [0, 0], sizes = [32, 32], strides = [1, 1]} : vector<40x32xf32> to vector<32x32xf32>
    %c0_171 = arith.constant 0 : index
    %c0_172 = arith.constant 0 : index
    %c0_173 = arith.constant 0 : index
    %231 = vector.load %arg1[%c0_171, %c0_172, %c0_173] : memref<9x32x128xf32, #tpu.memory_space<vmem>>, vector<1x32x128xf32>
    %232 = vector.shape_cast %231 : vector<1x32x128xf32> to vector<32x128xf32>
    %cst_174 = arith.constant dense<0.000000e+00> : vector<32x128xf32>
    %233 = tpu.matmul %230, %232, %cst_174 {dimension_numbers = #tpu.dot_dimension_numbers<[1], [0], [0], [1], [0, 0, 1, 1], [], []>} : vector<32x32xf32>, vector<32x128xf32>, vector<32x128xf32> -> vector<32x128xf32>
    %234 = vector.extract_strided_slice %229 {offsets = [1, 0], sizes = [32, 32], strides = [1, 1]} : vector<40x32xf32> to vector<32x32xf32>
    %c1_175 = arith.constant 1 : index
    %c0_176 = arith.constant 0 : index
    %c0_177 = arith.constant 0 : index
    %235 = vector.load %arg1[%c1_175, %c0_176, %c0_177] : memref<9x32x128xf32, #tpu.memory_space<vmem>>, vector<1x32x128xf32>
    %236 = vector.shape_cast %235 : vector<1x32x128xf32> to vector<32x128xf32>
    %cst_178 = arith.constant dense<0.000000e+00> : vector<32x128xf32>
    %237 = tpu.matmul %234, %236, %cst_178 {dimension_numbers = #tpu.dot_dimension_numbers<[1], [0], [0], [1], [0, 0, 1, 1], [], []>} : vector<32x32xf32>, vector<32x128xf32>, vector<32x128xf32> -> vector<32x128xf32>
    %238 = arith.addf %233, %237 : vector<32x128xf32>
    %239 = vector.extract_strided_slice %229 {offsets = [2, 0], sizes = [32, 32], strides = [1, 1]} : vector<40x32xf32> to vector<32x32xf32>
    %c2_179 = arith.constant 2 : index
    %c0_180 = arith.constant 0 : index
    %c0_181 = arith.constant 0 : index
    %240 = vector.load %arg1[%c2_179, %c0_180, %c0_181] : memref<9x32x128xf32, #tpu.memory_space<vmem>>, vector<1x32x128xf32>
    %241 = vector.shape_cast %240 : vector<1x32x128xf32> to vector<32x128xf32>
    %cst_182 = arith.constant dense<0.000000e+00> : vector<32x128xf32>
    %242 = tpu.matmul %239, %241, %cst_182 {dimension_numbers = #tpu.dot_dimension_numbers<[1], [0], [0], [1], [0, 0, 1, 1], [], []>} : vector<32x32xf32>, vector<32x128xf32>, vector<32x128xf32> -> vector<32x128xf32>
    %243 = arith.addf %238, %242 : vector<32x128xf32>
    %244 = vector.extract_strided_slice %229 {offsets = [3, 0], sizes = [32, 32], strides = [1, 1]} : vector<40x32xf32> to vector<32x32xf32>
    %c3_183 = arith.constant 3 : index
    %c0_184 = arith.constant 0 : index
    %c0_185 = arith.constant 0 : index
    %245 = vector.load %arg1[%c3_183, %c0_184, %c0_185] : memref<9x32x128xf32, #tpu.memory_space<vmem>>, vector<1x32x128xf32>
    %246 = vector.shape_cast %245 : vector<1x32x128xf32> to vector<32x128xf32>
    %cst_186 = arith.constant dense<0.000000e+00> : vector<32x128xf32>
    %247 = tpu.matmul %244, %246, %cst_186 {dimension_numbers = #tpu.dot_dimension_numbers<[1], [0], [0], [1], [0, 0, 1, 1], [], []>} : vector<32x32xf32>, vector<32x128xf32>, vector<32x128xf32> -> vector<32x128xf32>
    %248 = arith.addf %243, %247 : vector<32x128xf32>
    %249 = vector.extract_strided_slice %229 {offsets = [4, 0], sizes = [32, 32], strides = [1, 1]} : vector<40x32xf32> to vector<32x32xf32>
    %c4_187 = arith.constant 4 : index
    %c0_188 = arith.constant 0 : index
    %c0_189 = arith.constant 0 : index
    %250 = vector.load %arg1[%c4_187, %c0_188, %c0_189] : memref<9x32x128xf32, #tpu.memory_space<vmem>>, vector<1x32x128xf32>
    %251 = vector.shape_cast %250 : vector<1x32x128xf32> to vector<32x128xf32>
    %cst_190 = arith.constant dense<0.000000e+00> : vector<32x128xf32>
    %252 = tpu.matmul %249, %251, %cst_190 {dimension_numbers = #tpu.dot_dimension_numbers<[1], [0], [0], [1], [0, 0, 1, 1], [], []>} : vector<32x32xf32>, vector<32x128xf32>, vector<32x128xf32> -> vector<32x128xf32>
    %253 = arith.addf %248, %252 : vector<32x128xf32>
    %254 = vector.extract_strided_slice %229 {offsets = [5, 0], sizes = [32, 32], strides = [1, 1]} : vector<40x32xf32> to vector<32x32xf32>
    %c5_191 = arith.constant 5 : index
    %c0_192 = arith.constant 0 : index
    %c0_193 = arith.constant 0 : index
    %255 = vector.load %arg1[%c5_191, %c0_192, %c0_193] : memref<9x32x128xf32, #tpu.memory_space<vmem>>, vector<1x32x128xf32>
    %256 = vector.shape_cast %255 : vector<1x32x128xf32> to vector<32x128xf32>
    %cst_194 = arith.constant dense<0.000000e+00> : vector<32x128xf32>
    %257 = tpu.matmul %254, %256, %cst_194 {dimension_numbers = #tpu.dot_dimension_numbers<[1], [0], [0], [1], [0, 0, 1, 1], [], []>} : vector<32x32xf32>, vector<32x128xf32>, vector<32x128xf32> -> vector<32x128xf32>
    %258 = arith.addf %253, %257 : vector<32x128xf32>
    %259 = vector.extract_strided_slice %229 {offsets = [6, 0], sizes = [32, 32], strides = [1, 1]} : vector<40x32xf32> to vector<32x32xf32>
    %c6_195 = arith.constant 6 : index
    %c0_196 = arith.constant 0 : index
    %c0_197 = arith.constant 0 : index
    %260 = vector.load %arg1[%c6_195, %c0_196, %c0_197] : memref<9x32x128xf32, #tpu.memory_space<vmem>>, vector<1x32x128xf32>
    %261 = vector.shape_cast %260 : vector<1x32x128xf32> to vector<32x128xf32>
    %cst_198 = arith.constant dense<0.000000e+00> : vector<32x128xf32>
    %262 = tpu.matmul %259, %261, %cst_198 {dimension_numbers = #tpu.dot_dimension_numbers<[1], [0], [0], [1], [0, 0, 1, 1], [], []>} : vector<32x32xf32>, vector<32x128xf32>, vector<32x128xf32> -> vector<32x128xf32>
    %263 = arith.addf %258, %262 : vector<32x128xf32>
    %264 = vector.extract_strided_slice %229 {offsets = [7, 0], sizes = [32, 32], strides = [1, 1]} : vector<40x32xf32> to vector<32x32xf32>
    %c7_199 = arith.constant 7 : index
    %c0_200 = arith.constant 0 : index
    %c0_201 = arith.constant 0 : index
    %265 = vector.load %arg1[%c7_199, %c0_200, %c0_201] : memref<9x32x128xf32, #tpu.memory_space<vmem>>, vector<1x32x128xf32>
    %266 = vector.shape_cast %265 : vector<1x32x128xf32> to vector<32x128xf32>
    %cst_202 = arith.constant dense<0.000000e+00> : vector<32x128xf32>
    %267 = tpu.matmul %264, %266, %cst_202 {dimension_numbers = #tpu.dot_dimension_numbers<[1], [0], [0], [1], [0, 0, 1, 1], [], []>} : vector<32x32xf32>, vector<32x128xf32>, vector<32x128xf32> -> vector<32x128xf32>
    %268 = arith.addf %263, %267 : vector<32x128xf32>
    %269 = vector.extract_strided_slice %229 {offsets = [8, 0], sizes = [32, 32], strides = [1, 1]} : vector<40x32xf32> to vector<32x32xf32>
    %c8_203 = arith.constant 8 : index
    %c0_204 = arith.constant 0 : index
    %c0_205 = arith.constant 0 : index
    %270 = vector.load %arg1[%c8_203, %c0_204, %c0_205] : memref<9x32x128xf32, #tpu.memory_space<vmem>>, vector<1x32x128xf32>
    %271 = vector.shape_cast %270 : vector<1x32x128xf32> to vector<32x128xf32>
    %cst_206 = arith.constant dense<0.000000e+00> : vector<32x128xf32>
    %272 = tpu.matmul %269, %271, %cst_206 {dimension_numbers = #tpu.dot_dimension_numbers<[1], [0], [0], [1], [0, 0, 1, 1], [], []>} : vector<32x32xf32>, vector<32x128xf32>, vector<32x128xf32> -> vector<32x128xf32>
    %273 = arith.addf %268, %272 : vector<32x128xf32>
    %c0_207 = arith.constant 0 : index
    %c0_208 = arith.constant 0 : index
    %274 = vector.load %arg2[%c0_207, %c0_208] : memref<1x128xf32, #tpu.memory_space<vmem>>, vector<1x128xf32>
    %275 = vector.broadcast %274 : vector<1x128xf32> to vector<32x128xf32>
    %276 = arith.addf %273, %275 : vector<32x128xf32>
    %cst_209 = arith.constant 0.000000e+00 : f32
    %277 = vector.broadcast %cst_209 : f32 to vector<32x128xf32>
    %278 = arith.maximumf %276, %277 : vector<32x128xf32>
    %279 = vector.extract_strided_slice %278 {offsets = [0, 0], sizes = [24, 128], strides = [1, 1]} : vector<32x128xf32> to vector<24x128xf32>
    %c0_210 = arith.constant 0 : index
    %c0_211 = arith.constant 0 : index
    %c0_212 = arith.constant 0 : index
    %280 = vector.load %arg3[%c0_210, %c0_211, %c0_212] : memref<9x128x128xf32, #tpu.memory_space<vmem>>, vector<1x128x128xf32>
    %281 = vector.shape_cast %280 : vector<1x128x128xf32> to vector<128x128xf32>
    %cst_213 = arith.constant dense<0.000000e+00> : vector<24x128xf32>
    %282 = tpu.matmul %279, %281, %cst_213 {dimension_numbers = #tpu.dot_dimension_numbers<[1], [0], [0], [1], [0, 0, 1, 1], [], []>} : vector<24x128xf32>, vector<128x128xf32>, vector<24x128xf32> -> vector<24x128xf32>
    %283 = vector.extract_strided_slice %278 {offsets = [1, 0], sizes = [24, 128], strides = [1, 1]} : vector<32x128xf32> to vector<24x128xf32>
    %c1_214 = arith.constant 1 : index
    %c0_215 = arith.constant 0 : index
    %c0_216 = arith.constant 0 : index
    %284 = vector.load %arg3[%c1_214, %c0_215, %c0_216] : memref<9x128x128xf32, #tpu.memory_space<vmem>>, vector<1x128x128xf32>
    %285 = vector.shape_cast %284 : vector<1x128x128xf32> to vector<128x128xf32>
    %cst_217 = arith.constant dense<0.000000e+00> : vector<24x128xf32>
    %286 = tpu.matmul %283, %285, %cst_217 {dimension_numbers = #tpu.dot_dimension_numbers<[1], [0], [0], [1], [0, 0, 1, 1], [], []>} : vector<24x128xf32>, vector<128x128xf32>, vector<24x128xf32> -> vector<24x128xf32>
    %287 = arith.addf %282, %286 : vector<24x128xf32>
    %288 = vector.extract_strided_slice %278 {offsets = [2, 0], sizes = [24, 128], strides = [1, 1]} : vector<32x128xf32> to vector<24x128xf32>
    %c2_218 = arith.constant 2 : index
    %c0_219 = arith.constant 0 : index
    %c0_220 = arith.constant 0 : index
    %289 = vector.load %arg3[%c2_218, %c0_219, %c0_220] : memref<9x128x128xf32, #tpu.memory_space<vmem>>, vector<1x128x128xf32>
    %290 = vector.shape_cast %289 : vector<1x128x128xf32> to vector<128x128xf32>
    %cst_221 = arith.constant dense<0.000000e+00> : vector<24x128xf32>
    %291 = tpu.matmul %288, %290, %cst_221 {dimension_numbers = #tpu.dot_dimension_numbers<[1], [0], [0], [1], [0, 0, 1, 1], [], []>} : vector<24x128xf32>, vector<128x128xf32>, vector<24x128xf32> -> vector<24x128xf32>
    %292 = arith.addf %287, %291 : vector<24x128xf32>
    %293 = vector.extract_strided_slice %278 {offsets = [3, 0], sizes = [24, 128], strides = [1, 1]} : vector<32x128xf32> to vector<24x128xf32>
    %c3_222 = arith.constant 3 : index
    %c0_223 = arith.constant 0 : index
    %c0_224 = arith.constant 0 : index
    %294 = vector.load %arg3[%c3_222, %c0_223, %c0_224] : memref<9x128x128xf32, #tpu.memory_space<vmem>>, vector<1x128x128xf32>
    %295 = vector.shape_cast %294 : vector<1x128x128xf32> to vector<128x128xf32>
    %cst_225 = arith.constant dense<0.000000e+00> : vector<24x128xf32>
    %296 = tpu.matmul %293, %295, %cst_225 {dimension_numbers = #tpu.dot_dimension_numbers<[1], [0], [0], [1], [0, 0, 1, 1], [], []>} : vector<24x128xf32>, vector<128x128xf32>, vector<24x128xf32> -> vector<24x128xf32>
    %297 = arith.addf %292, %296 : vector<24x128xf32>
    %298 = vector.extract_strided_slice %278 {offsets = [4, 0], sizes = [24, 128], strides = [1, 1]} : vector<32x128xf32> to vector<24x128xf32>
    %c4_226 = arith.constant 4 : index
    %c0_227 = arith.constant 0 : index
    %c0_228 = arith.constant 0 : index
    %299 = vector.load %arg3[%c4_226, %c0_227, %c0_228] : memref<9x128x128xf32, #tpu.memory_space<vmem>>, vector<1x128x128xf32>
    %300 = vector.shape_cast %299 : vector<1x128x128xf32> to vector<128x128xf32>
    %cst_229 = arith.constant dense<0.000000e+00> : vector<24x128xf32>
    %301 = tpu.matmul %298, %300, %cst_229 {dimension_numbers = #tpu.dot_dimension_numbers<[1], [0], [0], [1], [0, 0, 1, 1], [], []>} : vector<24x128xf32>, vector<128x128xf32>, vector<24x128xf32> -> vector<24x128xf32>
    %302 = arith.addf %297, %301 : vector<24x128xf32>
    %303 = vector.extract_strided_slice %278 {offsets = [5, 0], sizes = [24, 128], strides = [1, 1]} : vector<32x128xf32> to vector<24x128xf32>
    %c5_230 = arith.constant 5 : index
    %c0_231 = arith.constant 0 : index
    %c0_232 = arith.constant 0 : index
    %304 = vector.load %arg3[%c5_230, %c0_231, %c0_232] : memref<9x128x128xf32, #tpu.memory_space<vmem>>, vector<1x128x128xf32>
    %305 = vector.shape_cast %304 : vector<1x128x128xf32> to vector<128x128xf32>
    %cst_233 = arith.constant dense<0.000000e+00> : vector<24x128xf32>
    %306 = tpu.matmul %303, %305, %cst_233 {dimension_numbers = #tpu.dot_dimension_numbers<[1], [0], [0], [1], [0, 0, 1, 1], [], []>} : vector<24x128xf32>, vector<128x128xf32>, vector<24x128xf32> -> vector<24x128xf32>
    %307 = arith.addf %302, %306 : vector<24x128xf32>
    %308 = vector.extract_strided_slice %278 {offsets = [6, 0], sizes = [24, 128], strides = [1, 1]} : vector<32x128xf32> to vector<24x128xf32>
    %c6_234 = arith.constant 6 : index
    %c0_235 = arith.constant 0 : index
    %c0_236 = arith.constant 0 : index
    %309 = vector.load %arg3[%c6_234, %c0_235, %c0_236] : memref<9x128x128xf32, #tpu.memory_space<vmem>>, vector<1x128x128xf32>
    %310 = vector.shape_cast %309 : vector<1x128x128xf32> to vector<128x128xf32>
    %cst_237 = arith.constant dense<0.000000e+00> : vector<24x128xf32>
    %311 = tpu.matmul %308, %310, %cst_237 {dimension_numbers = #tpu.dot_dimension_numbers<[1], [0], [0], [1], [0, 0, 1, 1], [], []>} : vector<24x128xf32>, vector<128x128xf32>, vector<24x128xf32> -> vector<24x128xf32>
    %312 = arith.addf %307, %311 : vector<24x128xf32>
    %313 = vector.extract_strided_slice %278 {offsets = [7, 0], sizes = [24, 128], strides = [1, 1]} : vector<32x128xf32> to vector<24x128xf32>
    %c7_238 = arith.constant 7 : index
    %c0_239 = arith.constant 0 : index
    %c0_240 = arith.constant 0 : index
    %314 = vector.load %arg3[%c7_238, %c0_239, %c0_240] : memref<9x128x128xf32, #tpu.memory_space<vmem>>, vector<1x128x128xf32>
    %315 = vector.shape_cast %314 : vector<1x128x128xf32> to vector<128x128xf32>
    %cst_241 = arith.constant dense<0.000000e+00> : vector<24x128xf32>
    %316 = tpu.matmul %313, %315, %cst_241 {dimension_numbers = #tpu.dot_dimension_numbers<[1], [0], [0], [1], [0, 0, 1, 1], [], []>} : vector<24x128xf32>, vector<128x128xf32>, vector<24x128xf32> -> vector<24x128xf32>
    %317 = arith.addf %312, %316 : vector<24x128xf32>
    %318 = vector.extract_strided_slice %278 {offsets = [8, 0], sizes = [24, 128], strides = [1, 1]} : vector<32x128xf32> to vector<24x128xf32>
    %c8_242 = arith.constant 8 : index
    %c0_243 = arith.constant 0 : index
    %c0_244 = arith.constant 0 : index
    %319 = vector.load %arg3[%c8_242, %c0_243, %c0_244] : memref<9x128x128xf32, #tpu.memory_space<vmem>>, vector<1x128x128xf32>
    %320 = vector.shape_cast %319 : vector<1x128x128xf32> to vector<128x128xf32>
    %cst_245 = arith.constant dense<0.000000e+00> : vector<24x128xf32>
    %321 = tpu.matmul %318, %320, %cst_245 {dimension_numbers = #tpu.dot_dimension_numbers<[1], [0], [0], [1], [0, 0, 1, 1], [], []>} : vector<24x128xf32>, vector<128x128xf32>, vector<24x128xf32> -> vector<24x128xf32>
    %322 = arith.addf %317, %321 : vector<24x128xf32>
    %c0_246 = arith.constant 0 : index
    %c0_247 = arith.constant 0 : index
    %323 = vector.load %arg4[%c0_246, %c0_247] : memref<1x128xf32, #tpu.memory_space<vmem>>, vector<1x128xf32>
    %324 = vector.broadcast %323 : vector<1x128xf32> to vector<24x128xf32>
    %325 = arith.addf %322, %324 : vector<24x128xf32>
    %cst_248 = arith.constant 0.000000e+00 : f32
    %326 = vector.broadcast %cst_248 : f32 to vector<24x128xf32>
    %327 = arith.maximumf %325, %326 : vector<24x128xf32>
    %328 = vector.extract_strided_slice %327 {offsets = [0, 0], sizes = [15, 128], strides = [1, 1]} : vector<24x128xf32> to vector<15x128xf32>
    %c0_249 = arith.constant 0 : index
    %c0_250 = arith.constant 0 : index
    %c0_251 = arith.constant 0 : index
    %329 = vector.load %arg5[%c0_249, %c0_250, %c0_251] : memref<10x128x128xf32, #tpu.memory_space<vmem>>, vector<1x128x128xf32>
    %330 = vector.shape_cast %329 : vector<1x128x128xf32> to vector<128x128xf32>
    %cst_252 = arith.constant dense<0.000000e+00> : vector<15x128xf32>
    %331 = tpu.matmul %328, %330, %cst_252 {dimension_numbers = #tpu.dot_dimension_numbers<[1], [0], [0], [1], [0, 0, 1, 1], [], []>} : vector<15x128xf32>, vector<128x128xf32>, vector<15x128xf32> -> vector<15x128xf32>
    %332 = vector.extract_strided_slice %327 {offsets = [1, 0], sizes = [15, 128], strides = [1, 1]} : vector<24x128xf32> to vector<15x128xf32>
    %c1_253 = arith.constant 1 : index
    %c0_254 = arith.constant 0 : index
    %c0_255 = arith.constant 0 : index
    %333 = vector.load %arg5[%c1_253, %c0_254, %c0_255] : memref<10x128x128xf32, #tpu.memory_space<vmem>>, vector<1x128x128xf32>
    %334 = vector.shape_cast %333 : vector<1x128x128xf32> to vector<128x128xf32>
    %cst_256 = arith.constant dense<0.000000e+00> : vector<15x128xf32>
    %335 = tpu.matmul %332, %334, %cst_256 {dimension_numbers = #tpu.dot_dimension_numbers<[1], [0], [0], [1], [0, 0, 1, 1], [], []>} : vector<15x128xf32>, vector<128x128xf32>, vector<15x128xf32> -> vector<15x128xf32>
    %336 = arith.addf %331, %335 : vector<15x128xf32>
    %337 = vector.extract_strided_slice %327 {offsets = [2, 0], sizes = [15, 128], strides = [1, 1]} : vector<24x128xf32> to vector<15x128xf32>
    %c2_257 = arith.constant 2 : index
    %c0_258 = arith.constant 0 : index
    %c0_259 = arith.constant 0 : index
    %338 = vector.load %arg5[%c2_257, %c0_258, %c0_259] : memref<10x128x128xf32, #tpu.memory_space<vmem>>, vector<1x128x128xf32>
    %339 = vector.shape_cast %338 : vector<1x128x128xf32> to vector<128x128xf32>
    %cst_260 = arith.constant dense<0.000000e+00> : vector<15x128xf32>
    %340 = tpu.matmul %337, %339, %cst_260 {dimension_numbers = #tpu.dot_dimension_numbers<[1], [0], [0], [1], [0, 0, 1, 1], [], []>} : vector<15x128xf32>, vector<128x128xf32>, vector<15x128xf32> -> vector<15x128xf32>
    %341 = arith.addf %336, %340 : vector<15x128xf32>
    %342 = vector.extract_strided_slice %327 {offsets = [3, 0], sizes = [15, 128], strides = [1, 1]} : vector<24x128xf32> to vector<15x128xf32>
    %c3_261 = arith.constant 3 : index
    %c0_262 = arith.constant 0 : index
    %c0_263 = arith.constant 0 : index
    %343 = vector.load %arg5[%c3_261, %c0_262, %c0_263] : memref<10x128x128xf32, #tpu.memory_space<vmem>>, vector<1x128x128xf32>
    %344 = vector.shape_cast %343 : vector<1x128x128xf32> to vector<128x128xf32>
    %cst_264 = arith.constant dense<0.000000e+00> : vector<15x128xf32>
    %345 = tpu.matmul %342, %344, %cst_264 {dimension_numbers = #tpu.dot_dimension_numbers<[1], [0], [0], [1], [0, 0, 1, 1], [], []>} : vector<15x128xf32>, vector<128x128xf32>, vector<15x128xf32> -> vector<15x128xf32>
    %346 = arith.addf %341, %345 : vector<15x128xf32>
    %347 = vector.extract_strided_slice %327 {offsets = [4, 0], sizes = [15, 128], strides = [1, 1]} : vector<24x128xf32> to vector<15x128xf32>
    %c4_265 = arith.constant 4 : index
    %c0_266 = arith.constant 0 : index
    %c0_267 = arith.constant 0 : index
    %348 = vector.load %arg5[%c4_265, %c0_266, %c0_267] : memref<10x128x128xf32, #tpu.memory_space<vmem>>, vector<1x128x128xf32>
    %349 = vector.shape_cast %348 : vector<1x128x128xf32> to vector<128x128xf32>
    %cst_268 = arith.constant dense<0.000000e+00> : vector<15x128xf32>
    %350 = tpu.matmul %347, %349, %cst_268 {dimension_numbers = #tpu.dot_dimension_numbers<[1], [0], [0], [1], [0, 0, 1, 1], [], []>} : vector<15x128xf32>, vector<128x128xf32>, vector<15x128xf32> -> vector<15x128xf32>
    %351 = arith.addf %346, %350 : vector<15x128xf32>
    %352 = vector.extract_strided_slice %327 {offsets = [5, 0], sizes = [15, 128], strides = [1, 1]} : vector<24x128xf32> to vector<15x128xf32>
    %c5_269 = arith.constant 5 : index
    %c0_270 = arith.constant 0 : index
    %c0_271 = arith.constant 0 : index
    %353 = vector.load %arg5[%c5_269, %c0_270, %c0_271] : memref<10x128x128xf32, #tpu.memory_space<vmem>>, vector<1x128x128xf32>
    %354 = vector.shape_cast %353 : vector<1x128x128xf32> to vector<128x128xf32>
    %cst_272 = arith.constant dense<0.000000e+00> : vector<15x128xf32>
    %355 = tpu.matmul %352, %354, %cst_272 {dimension_numbers = #tpu.dot_dimension_numbers<[1], [0], [0], [1], [0, 0, 1, 1], [], []>} : vector<15x128xf32>, vector<128x128xf32>, vector<15x128xf32> -> vector<15x128xf32>
    %356 = arith.addf %351, %355 : vector<15x128xf32>
    %357 = vector.extract_strided_slice %327 {offsets = [6, 0], sizes = [15, 128], strides = [1, 1]} : vector<24x128xf32> to vector<15x128xf32>
    %c6_273 = arith.constant 6 : index
    %c0_274 = arith.constant 0 : index
    %c0_275 = arith.constant 0 : index
    %358 = vector.load %arg5[%c6_273, %c0_274, %c0_275] : memref<10x128x128xf32, #tpu.memory_space<vmem>>, vector<1x128x128xf32>
    %359 = vector.shape_cast %358 : vector<1x128x128xf32> to vector<128x128xf32>
    %cst_276 = arith.constant dense<0.000000e+00> : vector<15x128xf32>
    %360 = tpu.matmul %357, %359, %cst_276 {dimension_numbers = #tpu.dot_dimension_numbers<[1], [0], [0], [1], [0, 0, 1, 1], [], []>} : vector<15x128xf32>, vector<128x128xf32>, vector<15x128xf32> -> vector<15x128xf32>
    %361 = arith.addf %356, %360 : vector<15x128xf32>
    %362 = vector.extract_strided_slice %327 {offsets = [7, 0], sizes = [15, 128], strides = [1, 1]} : vector<24x128xf32> to vector<15x128xf32>
    %c7_277 = arith.constant 7 : index
    %c0_278 = arith.constant 0 : index
    %c0_279 = arith.constant 0 : index
    %363 = vector.load %arg5[%c7_277, %c0_278, %c0_279] : memref<10x128x128xf32, #tpu.memory_space<vmem>>, vector<1x128x128xf32>
    %364 = vector.shape_cast %363 : vector<1x128x128xf32> to vector<128x128xf32>
    %cst_280 = arith.constant dense<0.000000e+00> : vector<15x128xf32>
    %365 = tpu.matmul %362, %364, %cst_280 {dimension_numbers = #tpu.dot_dimension_numbers<[1], [0], [0], [1], [0, 0, 1, 1], [], []>} : vector<15x128xf32>, vector<128x128xf32>, vector<15x128xf32> -> vector<15x128xf32>
    %366 = arith.addf %361, %365 : vector<15x128xf32>
    %367 = vector.extract_strided_slice %327 {offsets = [8, 0], sizes = [15, 128], strides = [1, 1]} : vector<24x128xf32> to vector<15x128xf32>
    %c8_281 = arith.constant 8 : index
    %c0_282 = arith.constant 0 : index
    %c0_283 = arith.constant 0 : index
    %368 = vector.load %arg5[%c8_281, %c0_282, %c0_283] : memref<10x128x128xf32, #tpu.memory_space<vmem>>, vector<1x128x128xf32>
    %369 = vector.shape_cast %368 : vector<1x128x128xf32> to vector<128x128xf32>
    %cst_284 = arith.constant dense<0.000000e+00> : vector<15x128xf32>
    %370 = tpu.matmul %367, %369, %cst_284 {dimension_numbers = #tpu.dot_dimension_numbers<[1], [0], [0], [1], [0, 0, 1, 1], [], []>} : vector<15x128xf32>, vector<128x128xf32>, vector<15x128xf32> -> vector<15x128xf32>
    %371 = arith.addf %366, %370 : vector<15x128xf32>
    %372 = vector.extract_strided_slice %327 {offsets = [9, 0], sizes = [15, 128], strides = [1, 1]} : vector<24x128xf32> to vector<15x128xf32>
    %c9_285 = arith.constant 9 : index
    %c0_286 = arith.constant 0 : index
    %c0_287 = arith.constant 0 : index
    %373 = vector.load %arg5[%c9_285, %c0_286, %c0_287] : memref<10x128x128xf32, #tpu.memory_space<vmem>>, vector<1x128x128xf32>
    %374 = vector.shape_cast %373 : vector<1x128x128xf32> to vector<128x128xf32>
    %cst_288 = arith.constant dense<0.000000e+00> : vector<15x128xf32>
    %375 = tpu.matmul %372, %374, %cst_288 {dimension_numbers = #tpu.dot_dimension_numbers<[1], [0], [0], [1], [0, 0, 1, 1], [], []>} : vector<15x128xf32>, vector<128x128xf32>, vector<15x128xf32> -> vector<15x128xf32>
    %376 = arith.addf %371, %375 : vector<15x128xf32>
    %c0_289 = arith.constant 0 : index
    %c0_290 = arith.constant 0 : index
    %377 = vector.load %arg6[%c0_289, %c0_290] : memref<1x128xf32, #tpu.memory_space<vmem>>, vector<1x128xf32>
    %378 = vector.broadcast %377 : vector<1x128xf32> to vector<15x128xf32>
    %379 = arith.addf %376, %378 : vector<15x128xf32>
    %cst_291 = arith.constant 0.000000e+00 : f32
    %380 = vector.broadcast %cst_291 : f32 to vector<15x128xf32>
    %381 = arith.maximumf %379, %380 : vector<15x128xf32>
    %382 = vector.extract_strided_slice %381 {offsets = [0, 0], sizes = [1, 128], strides = [1, 1]} : vector<15x128xf32> to vector<1x128xf32>
    %c0_292 = arith.constant 0 : index
    %c0_293 = arith.constant 0 : index
    %c0_294 = arith.constant 0 : index
    %383 = vector.load %arg7[%c0_292, %c0_293, %c0_294] : memref<15x128x512xf32, #tpu.memory_space<vmem>>, vector<1x128x512xf32>
    %384 = vector.shape_cast %383 : vector<1x128x512xf32> to vector<128x512xf32>
    %cst_295 = arith.constant dense<0.000000e+00> : vector<1x512xf32>
    %385 = tpu.matmul %382, %384, %cst_295 {dimension_numbers = #tpu.dot_dimension_numbers<[1], [0], [0], [1], [0, 0, 1, 1], [], []>} : vector<1x128xf32>, vector<128x512xf32>, vector<1x512xf32> -> vector<1x512xf32>
    %386 = vector.extract_strided_slice %381 {offsets = [1, 0], sizes = [1, 128], strides = [1, 1]} : vector<15x128xf32> to vector<1x128xf32>
    %c1_296 = arith.constant 1 : index
    %c0_297 = arith.constant 0 : index
    %c0_298 = arith.constant 0 : index
    %387 = vector.load %arg7[%c1_296, %c0_297, %c0_298] : memref<15x128x512xf32, #tpu.memory_space<vmem>>, vector<1x128x512xf32>
    %388 = vector.shape_cast %387 : vector<1x128x512xf32> to vector<128x512xf32>
    %cst_299 = arith.constant dense<0.000000e+00> : vector<1x512xf32>
    %389 = tpu.matmul %386, %388, %cst_299 {dimension_numbers = #tpu.dot_dimension_numbers<[1], [0], [0], [1], [0, 0, 1, 1], [], []>} : vector<1x128xf32>, vector<128x512xf32>, vector<1x512xf32> -> vector<1x512xf32>
    %390 = arith.addf %385, %389 : vector<1x512xf32>
    %391 = vector.extract_strided_slice %381 {offsets = [2, 0], sizes = [1, 128], strides = [1, 1]} : vector<15x128xf32> to vector<1x128xf32>
    %c2_300 = arith.constant 2 : index
    %c0_301 = arith.constant 0 : index
    %c0_302 = arith.constant 0 : index
    %392 = vector.load %arg7[%c2_300, %c0_301, %c0_302] : memref<15x128x512xf32, #tpu.memory_space<vmem>>, vector<1x128x512xf32>
    %393 = vector.shape_cast %392 : vector<1x128x512xf32> to vector<128x512xf32>
    %cst_303 = arith.constant dense<0.000000e+00> : vector<1x512xf32>
    %394 = tpu.matmul %391, %393, %cst_303 {dimension_numbers = #tpu.dot_dimension_numbers<[1], [0], [0], [1], [0, 0, 1, 1], [], []>} : vector<1x128xf32>, vector<128x512xf32>, vector<1x512xf32> -> vector<1x512xf32>
    %395 = arith.addf %390, %394 : vector<1x512xf32>
    %396 = vector.extract_strided_slice %381 {offsets = [3, 0], sizes = [1, 128], strides = [1, 1]} : vector<15x128xf32> to vector<1x128xf32>
    %c3_304 = arith.constant 3 : index
    %c0_305 = arith.constant 0 : index
    %c0_306 = arith.constant 0 : index
    %397 = vector.load %arg7[%c3_304, %c0_305, %c0_306] : memref<15x128x512xf32, #tpu.memory_space<vmem>>, vector<1x128x512xf32>
    %398 = vector.shape_cast %397 : vector<1x128x512xf32> to vector<128x512xf32>
    %cst_307 = arith.constant dense<0.000000e+00> : vector<1x512xf32>
    %399 = tpu.matmul %396, %398, %cst_307 {dimension_numbers = #tpu.dot_dimension_numbers<[1], [0], [0], [1], [0, 0, 1, 1], [], []>} : vector<1x128xf32>, vector<128x512xf32>, vector<1x512xf32> -> vector<1x512xf32>
    %400 = arith.addf %395, %399 : vector<1x512xf32>
    %401 = vector.extract_strided_slice %381 {offsets = [4, 0], sizes = [1, 128], strides = [1, 1]} : vector<15x128xf32> to vector<1x128xf32>
    %c4_308 = arith.constant 4 : index
    %c0_309 = arith.constant 0 : index
    %c0_310 = arith.constant 0 : index
    %402 = vector.load %arg7[%c4_308, %c0_309, %c0_310] : memref<15x128x512xf32, #tpu.memory_space<vmem>>, vector<1x128x512xf32>
    %403 = vector.shape_cast %402 : vector<1x128x512xf32> to vector<128x512xf32>
    %cst_311 = arith.constant dense<0.000000e+00> : vector<1x512xf32>
    %404 = tpu.matmul %401, %403, %cst_311 {dimension_numbers = #tpu.dot_dimension_numbers<[1], [0], [0], [1], [0, 0, 1, 1], [], []>} : vector<1x128xf32>, vector<128x512xf32>, vector<1x512xf32> -> vector<1x512xf32>
    %405 = arith.addf %400, %404 : vector<1x512xf32>
    %406 = vector.extract_strided_slice %381 {offsets = [5, 0], sizes = [1, 128], strides = [1, 1]} : vector<15x128xf32> to vector<1x128xf32>
    %c5_312 = arith.constant 5 : index
    %c0_313 = arith.constant 0 : index
    %c0_314 = arith.constant 0 : index
    %407 = vector.load %arg7[%c5_312, %c0_313, %c0_314] : memref<15x128x512xf32, #tpu.memory_space<vmem>>, vector<1x128x512xf32>
    %408 = vector.shape_cast %407 : vector<1x128x512xf32> to vector<128x512xf32>
    %cst_315 = arith.constant dense<0.000000e+00> : vector<1x512xf32>
    %409 = tpu.matmul %406, %408, %cst_315 {dimension_numbers = #tpu.dot_dimension_numbers<[1], [0], [0], [1], [0, 0, 1, 1], [], []>} : vector<1x128xf32>, vector<128x512xf32>, vector<1x512xf32> -> vector<1x512xf32>
    %410 = arith.addf %405, %409 : vector<1x512xf32>
    %411 = vector.extract_strided_slice %381 {offsets = [6, 0], sizes = [1, 128], strides = [1, 1]} : vector<15x128xf32> to vector<1x128xf32>
    %c6_316 = arith.constant 6 : index
    %c0_317 = arith.constant 0 : index
    %c0_318 = arith.constant 0 : index
    %412 = vector.load %arg7[%c6_316, %c0_317, %c0_318] : memref<15x128x512xf32, #tpu.memory_space<vmem>>, vector<1x128x512xf32>
    %413 = vector.shape_cast %412 : vector<1x128x512xf32> to vector<128x512xf32>
    %cst_319 = arith.constant dense<0.000000e+00> : vector<1x512xf32>
    %414 = tpu.matmul %411, %413, %cst_319 {dimension_numbers = #tpu.dot_dimension_numbers<[1], [0], [0], [1], [0, 0, 1, 1], [], []>} : vector<1x128xf32>, vector<128x512xf32>, vector<1x512xf32> -> vector<1x512xf32>
    %415 = arith.addf %410, %414 : vector<1x512xf32>
    %416 = vector.extract_strided_slice %381 {offsets = [7, 0], sizes = [1, 128], strides = [1, 1]} : vector<15x128xf32> to vector<1x128xf32>
    %c7_320 = arith.constant 7 : index
    %c0_321 = arith.constant 0 : index
    %c0_322 = arith.constant 0 : index
    %417 = vector.load %arg7[%c7_320, %c0_321, %c0_322] : memref<15x128x512xf32, #tpu.memory_space<vmem>>, vector<1x128x512xf32>
    %418 = vector.shape_cast %417 : vector<1x128x512xf32> to vector<128x512xf32>
    %cst_323 = arith.constant dense<0.000000e+00> : vector<1x512xf32>
    %419 = tpu.matmul %416, %418, %cst_323 {dimension_numbers = #tpu.dot_dimension_numbers<[1], [0], [0], [1], [0, 0, 1, 1], [], []>} : vector<1x128xf32>, vector<128x512xf32>, vector<1x512xf32> -> vector<1x512xf32>
    %420 = arith.addf %415, %419 : vector<1x512xf32>
    %421 = vector.extract_strided_slice %381 {offsets = [8, 0], sizes = [1, 128], strides = [1, 1]} : vector<15x128xf32> to vector<1x128xf32>
    %c8_324 = arith.constant 8 : index
    %c0_325 = arith.constant 0 : index
    %c0_326 = arith.constant 0 : index
    %422 = vector.load %arg7[%c8_324, %c0_325, %c0_326] : memref<15x128x512xf32, #tpu.memory_space<vmem>>, vector<1x128x512xf32>
    %423 = vector.shape_cast %422 : vector<1x128x512xf32> to vector<128x512xf32>
    %cst_327 = arith.constant dense<0.000000e+00> : vector<1x512xf32>
    %424 = tpu.matmul %421, %423, %cst_327 {dimension_numbers = #tpu.dot_dimension_numbers<[1], [0], [0], [1], [0, 0, 1, 1], [], []>} : vector<1x128xf32>, vector<128x512xf32>, vector<1x512xf32> -> vector<1x512xf32>
    %425 = arith.addf %420, %424 : vector<1x512xf32>
    %426 = vector.extract_strided_slice %381 {offsets = [9, 0], sizes = [1, 128], strides = [1, 1]} : vector<15x128xf32> to vector<1x128xf32>
    %c9_328 = arith.constant 9 : index
    %c0_329 = arith.constant 0 : index
    %c0_330 = arith.constant 0 : index
    %427 = vector.load %arg7[%c9_328, %c0_329, %c0_330] : memref<15x128x512xf32, #tpu.memory_space<vmem>>, vector<1x128x512xf32>
    %428 = vector.shape_cast %427 : vector<1x128x512xf32> to vector<128x512xf32>
    %cst_331 = arith.constant dense<0.000000e+00> : vector<1x512xf32>
    %429 = tpu.matmul %426, %428, %cst_331 {dimension_numbers = #tpu.dot_dimension_numbers<[1], [0], [0], [1], [0, 0, 1, 1], [], []>} : vector<1x128xf32>, vector<128x512xf32>, vector<1x512xf32> -> vector<1x512xf32>
    %430 = arith.addf %425, %429 : vector<1x512xf32>
    %431 = vector.extract_strided_slice %381 {offsets = [10, 0], sizes = [1, 128], strides = [1, 1]} : vector<15x128xf32> to vector<1x128xf32>
    %c10_332 = arith.constant 10 : index
    %c0_333 = arith.constant 0 : index
    %c0_334 = arith.constant 0 : index
    %432 = vector.load %arg7[%c10_332, %c0_333, %c0_334] : memref<15x128x512xf32, #tpu.memory_space<vmem>>, vector<1x128x512xf32>
    %433 = vector.shape_cast %432 : vector<1x128x512xf32> to vector<128x512xf32>
    %cst_335 = arith.constant dense<0.000000e+00> : vector<1x512xf32>
    %434 = tpu.matmul %431, %433, %cst_335 {dimension_numbers = #tpu.dot_dimension_numbers<[1], [0], [0], [1], [0, 0, 1, 1], [], []>} : vector<1x128xf32>, vector<128x512xf32>, vector<1x512xf32> -> vector<1x512xf32>
    %435 = arith.addf %430, %434 : vector<1x512xf32>
    %436 = vector.extract_strided_slice %381 {offsets = [11, 0], sizes = [1, 128], strides = [1, 1]} : vector<15x128xf32> to vector<1x128xf32>
    %c11_336 = arith.constant 11 : index
    %c0_337 = arith.constant 0 : index
    %c0_338 = arith.constant 0 : index
    %437 = vector.load %arg7[%c11_336, %c0_337, %c0_338] : memref<15x128x512xf32, #tpu.memory_space<vmem>>, vector<1x128x512xf32>
    %438 = vector.shape_cast %437 : vector<1x128x512xf32> to vector<128x512xf32>
    %cst_339 = arith.constant dense<0.000000e+00> : vector<1x512xf32>
    %439 = tpu.matmul %436, %438, %cst_339 {dimension_numbers = #tpu.dot_dimension_numbers<[1], [0], [0], [1], [0, 0, 1, 1], [], []>} : vector<1x128xf32>, vector<128x512xf32>, vector<1x512xf32> -> vector<1x512xf32>
    %440 = arith.addf %435, %439 : vector<1x512xf32>
    %441 = vector.extract_strided_slice %381 {offsets = [12, 0], sizes = [1, 128], strides = [1, 1]} : vector<15x128xf32> to vector<1x128xf32>
    %c12_340 = arith.constant 12 : index
    %c0_341 = arith.constant 0 : index
    %c0_342 = arith.constant 0 : index
    %442 = vector.load %arg7[%c12_340, %c0_341, %c0_342] : memref<15x128x512xf32, #tpu.memory_space<vmem>>, vector<1x128x512xf32>
    %443 = vector.shape_cast %442 : vector<1x128x512xf32> to vector<128x512xf32>
    %cst_343 = arith.constant dense<0.000000e+00> : vector<1x512xf32>
    %444 = tpu.matmul %441, %443, %cst_343 {dimension_numbers = #tpu.dot_dimension_numbers<[1], [0], [0], [1], [0, 0, 1, 1], [], []>} : vector<1x128xf32>, vector<128x512xf32>, vector<1x512xf32> -> vector<1x512xf32>
    %445 = arith.addf %440, %444 : vector<1x512xf32>
    %446 = vector.extract_strided_slice %381 {offsets = [13, 0], sizes = [1, 128], strides = [1, 1]} : vector<15x128xf32> to vector<1x128xf32>
    %c13_344 = arith.constant 13 : index
    %c0_345 = arith.constant 0 : index
    %c0_346 = arith.constant 0 : index
    %447 = vector.load %arg7[%c13_344, %c0_345, %c0_346] : memref<15x128x512xf32, #tpu.memory_space<vmem>>, vector<1x128x512xf32>
    %448 = vector.shape_cast %447 : vector<1x128x512xf32> to vector<128x512xf32>
    %cst_347 = arith.constant dense<0.000000e+00> : vector<1x512xf32>
    %449 = tpu.matmul %446, %448, %cst_347 {dimension_numbers = #tpu.dot_dimension_numbers<[1], [0], [0], [1], [0, 0, 1, 1], [], []>} : vector<1x128xf32>, vector<128x512xf32>, vector<1x512xf32> -> vector<1x512xf32>
    %450 = arith.addf %445, %449 : vector<1x512xf32>
    %451 = vector.extract_strided_slice %381 {offsets = [14, 0], sizes = [1, 128], strides = [1, 1]} : vector<15x128xf32> to vector<1x128xf32>
    %c14_348 = arith.constant 14 : index
    %c0_349 = arith.constant 0 : index
    %c0_350 = arith.constant 0 : index
    %452 = vector.load %arg7[%c14_348, %c0_349, %c0_350] : memref<15x128x512xf32, #tpu.memory_space<vmem>>, vector<1x128x512xf32>
    %453 = vector.shape_cast %452 : vector<1x128x512xf32> to vector<128x512xf32>
    %cst_351 = arith.constant dense<0.000000e+00> : vector<1x512xf32>
    %454 = tpu.matmul %451, %453, %cst_351 {dimension_numbers = #tpu.dot_dimension_numbers<[1], [0], [0], [1], [0, 0, 1, 1], [], []>} : vector<1x128xf32>, vector<128x512xf32>, vector<1x512xf32> -> vector<1x512xf32>
    %455 = arith.addf %450, %454 : vector<1x512xf32>
    %456 = tpu.concatenate %227, %455 in 0 : vector<1x512xf32>, vector<1x512xf32> -> vector<2x512xf32>
    %c0_352 = arith.constant 0 : index
    %c0_353 = arith.constant 0 : index
    %457 = vector.load %arg8[%c0_352, %c0_353] : memref<1x512xf32, #tpu.memory_space<vmem>>, vector<1x512xf32>
    %458 = vector.broadcast %457 : vector<1x512xf32> to vector<2x512xf32>
    %459 = arith.addf %456, %458 : vector<2x512xf32>
    %cst_354 = arith.constant 0.000000e+00 : f32
    %460 = vector.broadcast %cst_354 : f32 to vector<2x512xf32>
    %461 = arith.maximumf %459, %460 : vector<2x512xf32>
    %cst_355 = arith.constant dense<0.000000e+00> : vector<512xf32>
    %462 = vector.multi_reduction <add>, %461, %cst_355 [0] : vector<2x512xf32> to vector<512xf32>
    %463 = vector.shape_cast %462 : vector<512xf32> to vector<1x512xf32>
    %cst_356 = arith.constant 2.000000e+00 : f32
    %464 = vector.broadcast %cst_356 : f32 to vector<1x512xf32>
    %465 = arith.divf %463, %464 : vector<1x512xf32>
    %466 = vector.broadcast %465 : vector<1x512xf32> to vector<2x512xf32>
    %467 = arith.subf %461, %466 : vector<2x512xf32>
    %468 = arith.mulf %467, %467 : vector<2x512xf32>
    %cst_357 = arith.constant dense<0.000000e+00> : vector<512xf32>
    %469 = vector.multi_reduction <add>, %468, %cst_357 [0] : vector<2x512xf32> to vector<512xf32>
    %470 = vector.shape_cast %469 : vector<512xf32> to vector<1x512xf32>
    %cst_358 = arith.constant 2.000000e+00 : f32
    %471 = vector.broadcast %cst_358 : f32 to vector<1x512xf32>
    %472 = arith.divf %470, %471 : vector<1x512xf32>
    %cst_359 = arith.constant 9.99999974E-6 : f32
    %473 = vector.broadcast %cst_359 : f32 to vector<1x512xf32>
    %474 = arith.addf %472, %473 : vector<1x512xf32>
    %475 = math.rsqrt %474 : vector<1x512xf32>
    %476 = vector.broadcast %475 : vector<1x512xf32> to vector<2x512xf32>
    %477 = arith.mulf %467, %476 : vector<2x512xf32>
    %c0_360 = arith.constant 0 : index
    %c0_361 = arith.constant 0 : index
    %478 = vector.load %arg9[%c0_360, %c0_361] : memref<1x512xf32, #tpu.memory_space<vmem>>, vector<1x512xf32>
    %479 = vector.broadcast %478 : vector<1x512xf32> to vector<2x512xf32>
    %480 = arith.mulf %477, %479 : vector<2x512xf32>
    %c0_362 = arith.constant 0 : index
    %c0_363 = arith.constant 0 : index
    %481 = vector.load %arg10[%c0_362, %c0_363] : memref<1x512xf32, #tpu.memory_space<vmem>>, vector<1x512xf32>
    %482 = vector.broadcast %481 : vector<1x512xf32> to vector<2x512xf32>
    %483 = arith.addf %480, %482 : vector<2x512xf32>
    %c0_364 = arith.constant 0 : index
    %c0_365 = arith.constant 0 : index
    %484 = vector.load %arg11[%c0_364, %c0_365] : memref<512x64xf32, #tpu.memory_space<vmem>>, vector<512x64xf32>
    %cst_366 = arith.constant dense<0.000000e+00> : vector<2x64xf32>
    %485 = tpu.matmul %483, %484, %cst_366 {dimension_numbers = #tpu.dot_dimension_numbers<[1], [0], [0], [1], [0, 0, 1, 1], [], []>} : vector<2x512xf32>, vector<512x64xf32>, vector<2x64xf32> -> vector<2x64xf32>
    %c0_367 = arith.constant 0 : index
    %c0_368 = arith.constant 0 : index
    %486 = vector.load %arg12[%c0_367, %c0_368] : memref<1x64xf32, #tpu.memory_space<vmem>>, vector<1x64xf32>
    %487 = vector.broadcast %486 : vector<1x64xf32> to vector<2x64xf32>
    %488 = arith.addf %485, %487 : vector<2x64xf32>
    %489 = vector.extract_strided_slice %488 {offsets = [0, 0], sizes = [2, 32], strides = [1, 1]} : vector<2x64xf32> to vector<2x32xf32>
    %490 = vector.extract_strided_slice %488 {offsets = [0, 32], sizes = [2, 32], strides = [1, 1]} : vector<2x64xf32> to vector<2x32xf32>
    %cst_369 = arith.constant 5.000000e-01 : f32
    %491 = vector.broadcast %cst_369 : f32 to vector<2x32xf32>
    %492 = arith.mulf %491, %490 : vector<2x32xf32>
    %493 = math.exp %492 : vector<2x32xf32>
    %c0_370 = arith.constant 0 : index
    %c0_371 = arith.constant 0 : index
    %494 = vector.load %arg13[%c0_370, %c0_371] : memref<2x32xf32, #tpu.memory_space<vmem>>, vector<2x32xf32>
    %495 = arith.mulf %489, %494 : vector<2x32xf32>
    %496 = arith.mulf %495, %493 : vector<2x32xf32>
    %c0_372 = arith.constant 0 : index
    %c0_373 = arith.constant 0 : index
    %497 = vector.load %arg14[%c0_372, %c0_373] : memref<2x32xf32, #tpu.memory_space<vmem>>, vector<2x32xf32>
    tpu.vector_store %arg14[%c0_372, %c0_373], %496 {strides = array<i32>} : memref<2x32xf32, #tpu.memory_space<vmem>>, vector<2x32xf32>,
    %c0_374 = arith.constant 0 : index
    %c0_375 = arith.constant 0 : index
    %498 = vector.load %arg15[%c0_374, %c0_375] : memref<2x32xf32, #tpu.memory_space<vmem>>, vector<2x32xf32>
    tpu.vector_store %arg15[%c0_374, %c0_375], %489 {strides = array<i32>} : memref<2x32xf32, #tpu.memory_space<vmem>>, vector<2x32xf32>,
    %c0_376 = arith.constant 0 : index
    %c0_377 = arith.constant 0 : index
    %499 = vector.load %arg16[%c0_376, %c0_377] : memref<2x32xf32, #tpu.memory_space<vmem>>, vector<2x32xf32>
    tpu.vector_store %arg16[%c0_376, %c0_377], %490 {strides = array<i32>} : memref<2x32xf32, #tpu.memory_space<vmem>>, vector<2x32xf32>,
    return
  }
}

</mosaic_0001>

<llo_original>
// kernel: conv_encoder_forward.1
$region0: #{conv_encoder_forward.1}
  #allocation0 [shape = 'u32[]', space=smem, size = 0x4, offset = 0x4, fixed_abs, tag = 'smem constant byte address 0x4 - core index']
  #allocation1 [shape = 'u32[72,128]{1,0:T(1,128)}', space=vmem, size = 0x9000, scoped, tag = 'internal scratch']
  %s0 = inlined_call_operand.vmem [shape: f32[2,40,32], index: 0, kind: input, shape index: {}]
  %s1 = inlined_call_operand.hbm [shape: f32[9,32,128], index: 1, kind: input, shape index: {}]
  %s2 = inlined_call_operand.hbm [shape: f32[1,128], index: 2, kind: input, shape index: {}]
  %s3 = inlined_call_operand.hbm [shape: f32[9,128,128], index: 3, kind: input, shape index: {}]
  %s4 = inlined_call_operand.hbm [shape: f32[1,128], index: 4, kind: input, shape index: {}]
  %s5 = inlined_call_operand.hbm [shape: f32[10,128,128], index: 5, kind: input, shape index: {}]
  %s6 = inlined_call_operand.hbm [shape: f32[1,128], index: 6, kind: input, shape index: {}]
  %s7 = inlined_call_operand.hbm [shape: f32[15,128,512], index: 7, kind: input, shape index: {}]
  %s8 = inlined_call_operand.hbm [shape: f32[1,512], index: 8, kind: input, shape index: {}]
  %s9 = inlined_call_operand.hbm [shape: f32[1,512], index: 9, kind: input, shape index: {}]
  %s10 = inlined_call_operand.hbm [shape: f32[1,512], index: 10, kind: input, shape index: {}]
  %s11 = inlined_call_operand.vmem [shape: f32[512,64], index: 11, kind: input, shape index: {}]
  %s12 = inlined_call_operand.hbm [shape: f32[1,64], index: 12, kind: input, shape index: {}]
  %s13 = inlined_call_operand.hbm [shape: f32[2,32], index: 13, kind: input, shape index: {}]
  %s14 = inlined_call_operand.hbm [shape: f32[2,32], index: 14, kind: output, shape index: {0}]
  %s15 = inlined_call_operand.hbm [shape: f32[2,32], index: 15, kind: output, shape index: {1}]
  %s16 = inlined_call_operand.hbm [shape: f32[2,32], index: 16, kind: output, shape index: {2}]
  %17 = xla_tuple %s14, %s15, %s16
  %s18 = sld [smem:[#allocation0]]
  $region130: #{conv_encoder_forward.1} parent=0
    _
  %s20 = ssub.s32 1, %s18
  %s21 = scalar_select 0, %s20, %s18
  $region1: #{conv_encoder_forward.1} parent=0
    #allocation2 [shape = 'u8[147456]{0}', space=vmem, size = 0x24000, scoped, tag = 'input window, operand 1, single buffered']
    #allocation3 [shape = 's32[1]{0}', space=sflag, size = 0x4, scoped, tag = 'scoped memory for conv_encoder_forward.1']
    #allocation4 [shape = 's32[1]{0}', space=sflag, size = 0x4, scoped, tag = 'scoped memory for conv_encoder_forward.1']
    #allocation5 [shape = 'u8[512]{0}', space=vmem, size = 0x400, scoped, tag = 'input window, operand 2, single buffered']
    #allocation6 [shape = 's32[1]{0}', space=sflag, size = 0x4, scoped, tag = 'scoped memory for conv_encoder_forward.1']
    #allocation7 [shape = 'u8[589824]{0}', space=vmem, size = 0x90000, scoped, tag = 'input window, operand 3, single buffered']
    #allocation8 [shape = 'u8[512]{0}', space=vmem, size = 0x400, scoped, tag = 'input window, operand 4, single buffered']
    #allocation9 [shape = 's32[1]{0}', space=sflag, size = 0x4, scoped, tag = 'scoped memory for conv_encoder_forward.1']
    #allocation10 [shape = 'u8[655360]{0}', space=vmem, size = 0xa0000, scoped, tag = 'input window, operand 5, single buffered']
    #allocation11 [shape = 'u8[512]{0}', space=vmem, size = 0x400, scoped, tag = 'input window, operand 6, single buffered']
    #allocation12 [shape = 's32[1]{0}', space=sflag, size = 0x4, scoped, tag = 'scoped memory for conv_encoder_forward.1']
    #allocation13 [shape = 'u8[3932160]{0}', space=vmem, size = 0x3c0000, scoped, tag = 'input window, operand 7, single buffered']
    #allocation14 [shape = 'u8[2048]{0}', space=vmem, size = 0x800, scoped, tag = 'input window, operand 8, single buffered']
    #allocation15 [shape = 's32[1]{0}', space=sflag, size = 0x4, scoped, tag = 'scoped memory for conv_encoder_forward.1']
    #allocation16 [shape = 'u8[2048]{0}', space=vmem, size = 0x800, scoped, tag = 'input window, operand 9, single buffered']
    #allocation17 [shape = 'u8[2048]{0}', space=vmem, size = 0x800, scoped, tag = 'input window, operand 10, single buffered']
    #allocation18 [shape = 's32[1]{0}', space=sflag, size = 0x4, scoped, tag = 'scoped memory for conv_encoder_forward.1']
    #allocation19 [shape = 'u8[512]{0}', space=vmem, size = 0x400, scoped, tag = 'input window, operand 12, single buffered']
    #allocation20 [shape = 'u8[1024]{0}', space=vmem, size = 0x400, scoped, tag = 'input window, operand 13, single buffered']
    #allocation21 [shape = 's32[1]{0}', space=sflag, size = 0x4, scoped, tag = 'scoped memory for conv_encoder_forward.1']
    #allocation22 [shape = 'u8[1024]{0}', space=vmem, size = 0x400, scoped, tag = 'output window, operand 0, single buffered']
    #allocation23 [shape = 'u8[1024]{0}', space=vmem, size = 0x400, scoped, tag = 'output window, operand 1, single buffered']
    #allocation24 [shape = 's32[1]{0}', space=sflag, size = 0x4, scoped, tag = 'scoped memory for conv_encoder_forward.1']
    #allocation25 [shape = 'u8[1024]{0}', space=vmem, size = 0x400, scoped, tag = 'output window, operand 2, single buffered']
    %22 = vsyncpa [#allocation3], 0
    %23 = vsyncpa [#allocation6], 0
    %24 = vsyncpa [#allocation9], 0
    %25 = vsyncpa [#allocation12], 0
    %26 = vsyncpa [#allocation15], 0
    %27 = vsyncpa [#allocation18], 0
    %28 = vsyncpa [#allocation21], 0
    %29 = vsyncpa [#allocation4], 0
    %30 = vsyncpa [#allocation24], 0
    // Predicated region
    $region2: #{conv_encoder_forward.1} parent=1 // pred_check
      _
    $region3: #{conv_encoder_forward.1} parent=1 // pred_check_branch
      %32 = sbr.rel (0) target = $region5
    $region4: #{conv_encoder_forward.1} parent=1 // pred_region
      _
    $region5: #{conv_encoder_forward.1} parent=1 // pred_fallthru
      _
    // Predicated region
    $region6: #{conv_encoder_forward.1} parent=1 // pred_check
      _
    $region7: #{conv_encoder_forward.1} parent=1 // pred_check_branch
      %34 = sbr.rel (0) target = $region9
    $region8: #{conv_encoder_forward.1} parent=1 // pred_region
      %36 = vsyncadd [#allocation3], 0
      %s37 = sshll.u32 %s1, 4
      %s38 = int_to_ptr.hbm [resolvable:$true] %s37
      %s39 = sshll.u32 [#allocation2], 4
      %s40 = int_to_ptr.vmem [resolvable:$true] %s39
      %45 = dma.hbm_to_vmem [thread:$0]  %s38, 4608, %s40, [#allocation3], 128, 128, 8
    $region9: #{conv_encoder_forward.1} parent=1 // pred_fallthru
      _
    // Predicated region
    $region10: #{conv_encoder_forward.1} parent=1 // pred_check
      _
    $region11: #{conv_encoder_forward.1} parent=1 // pred_check_branch
      %47 = sbr.rel (0) target = $region13
    $region12: #{conv_encoder_forward.1} parent=1 // pred_region
      %49 = vsyncadd [#allocation6], 0
      %s51 = sshll.u32 %s2, 4
      %s52 = int_to_ptr.hbm [resolvable:$true] %s51
      %s53 = sshll.u32 [#allocation5], 4
      %s54 = int_to_ptr.vmem [resolvable:$true] %s53
      %56 = dma.hbm_to_vmem [thread:$0]  %s52, 16, %s54, [#allocation6]
    $region13: #{conv_encoder_forward.1} parent=1 // pred_fallthru
      _
    // Predicated region
    $region14: #{conv_encoder_forward.1} parent=1 // pred_check
      _
    $region15: #{conv_encoder_forward.1} parent=1 // pred_check_branch
      %58 = sbr.rel (0) target = $region17
    $region16: #{conv_encoder_forward.1} parent=1 // pred_region
      %60 = vsyncadd [#allocation6], 0
      %s61 = sshll.u32 %s3, 4
      %s62 = int_to_ptr.hbm [resolvable:$true] %s61
      %s63 = sshll.u32 [#allocation7], 4
      %s64 = int_to_ptr.vmem [resolvable:$true] %s63
      %69 = dma.hbm_to_vmem [thread:$0]  %s62, 18432, %s64, [#allocation6], 128, 128, 8
    $region17: #{conv_encoder_forward.1} parent=1 // pred_fallthru
      _
    // Predicated region
    $region18: #{conv_encoder_forward.1} parent=1 // pred_check
      _
    $region19: #{conv_encoder_forward.1} parent=1 // pred_check_branch
      %71 = sbr.rel (0) target = $region21
    $region20: #{conv_encoder_forward.1} parent=1 // pred_region
      %73 = vsyncadd [#allocation9], 0
      %s75 = sshll.u32 %s4, 4
      %s76 = int_to_ptr.hbm [resolvable:$true] %s75
      %s77 = sshll.u32 [#allocation8], 4
      %s78 = int_to_ptr.vmem [resolvable:$true] %s77
      %80 = dma.hbm_to_vmem [thread:$0]  %s76, 16, %s78, [#allocation9]
    $region21: #{conv_encoder_forward.1} parent=1 // pred_fallthru
      _
    // Predicated region
    $region22: #{conv_encoder_forward.1} parent=1 // pred_check
      _
    $region23: #{conv_encoder_forward.1} parent=1 // pred_check_branch
      %82 = sbr.rel (0) target = $region25
    $region24: #{conv_encoder_forward.1} parent=1 // pred_region
      %84 = vsyncadd [#allocation9], 0
      %s85 = sshll.u32 %s5, 4
      %s86 = int_to_ptr.hbm [resolvable:$true] %s85
      %s87 = sshll.u32 [#allocation10], 4
      %s88 = int_to_ptr.vmem [resolvable:$true] %s87
      %93 = dma.hbm_to_vmem [thread:$0]  %s86, 20480, %s88, [#allocation9], 128, 128, 8
    $region25: #{conv_encoder_forward.1} parent=1 // pred_fallthru
      _
    // Predicated region
    $region26: #{conv_encoder_forward.1} parent=1 // pred_check
      _
    $region27: #{conv_encoder_forward.1} parent=1 // pred_check_branch
      %95 = sbr.rel (0) target = $region29
    $region28: #{conv_encoder_forward.1} parent=1 // pred_region
      %97 = vsyncadd [#allocation12], 0
      %s99 = sshll.u32 %s6, 4
      %s100 = int_to_ptr.hbm [resolvable:$true] %s99
      %s101 = sshll.u32 [#allocation11], 4
      %s102 = int_to_ptr.vmem [resolvable:$true] %s101
      %104 = dma.hbm_to_vmem [thread:$0]  %s100, 16, %s102, [#allocation12]
    $region29: #{conv_encoder_forward.1} parent=1 // pred_fallthru
      _
    // Predicated region
    $region30: #{conv_encoder_forward.1} parent=1 // pred_check
      _
    $region31: #{conv_encoder_forward.1} parent=1 // pred_check_branch
      %106 = sbr.rel (0) target = $region33
    $region32: #{conv_encoder_forward.1} parent=1 // pred_region
      %108 = vsyncadd [#allocation12], 0
      %s109 = sshll.u32 %s7, 4
      %s110 = int_to_ptr.hbm [resolvable:$true] %s109
      %s111 = sshll.u32 [#allocation13], 4
      %s112 = int_to_ptr.vmem [resolvable:$true] %s111
      %117 = dma.hbm_to_vmem [thread:$0]  %s110, 122880, %s112, [#allocation12], 512, 512, 32
    $region33: #{conv_encoder_forward.1} parent=1 // pred_fallthru
      _
    // Predicated region
    $region34: #{conv_encoder_forward.1} parent=1 // pred_check
      _
    $region35: #{conv_encoder_forward.1} parent=1 // pred_check_branch
      %119 = sbr.rel (0) target = $region37
    $region36: #{conv_encoder_forward.1} parent=1 // pred_region
      %121 = vsyncadd [#allocation15], 0
      %s123 = sshll.u32 %s8, 4
      %s124 = int_to_ptr.hbm [resolvable:$true] %s123
      %s125 = sshll.u32 [#allocation14], 4
      %s126 = int_to_ptr.vmem [resolvable:$true] %s125
      %128 = dma.hbm_to_vmem [thread:$0]  %s124, 64, %s126, [#allocation15]
    $region37: #{conv_encoder_forward.1} parent=1 // pred_fallthru
      _
    // Predicated region
    $region38: #{conv_encoder_forward.1} parent=1 // pred_check
      _
    $region39: #{conv_encoder_forward.1} parent=1 // pred_check_branch
      %130 = sbr.rel (0) target = $region41
    $region40: #{conv_encoder_forward.1} parent=1 // pred_region
      %132 = vsyncadd [#allocation15], 0
      %s134 = sshll.u32 %s9, 4
      %s135 = int_to_ptr.hbm [resolvable:$true] %s134
      %s136 = sshll.u32 [#allocation16], 4
      %s137 = int_to_ptr.vmem [resolvable:$true] %s136
      %139 = dma.hbm_to_vmem [thread:$0]  %s135, 64, %s137, [#allocation15]
    $region41: #{conv_encoder_forward.1} parent=1 // pred_fallthru
      _
    // Predicated region
    $region42: #{conv_encoder_forward.1} parent=1 // pred_check
      _
    $region43: #{conv_encoder_forward.1} parent=1 // pred_check_branch
      %141 = sbr.rel (0) target = $region45
    $region44: #{conv_encoder_forward.1} parent=1 // pred_region
      %143 = vsyncadd [#allocation18], 0
      %s145 = sshll.u32 %s10, 4
      %s146 = int_to_ptr.hbm [resolvable:$true] %s145
      %s147 = sshll.u32 [#allocation17], 4
      %s148 = int_to_ptr.vmem [resolvable:$true] %s147
      %150 = dma.hbm_to_vmem [thread:$0]  %s146, 64, %s148, [#allocation18]
    $region45: #{conv_encoder_forward.1} parent=1 // pred_fallthru
      _
    // Predicated region
    $region46: #{conv_encoder_forward.1} parent=1 // pred_check
      _
    $region47: #{conv_encoder_forward.1} parent=1 // pred_check_branch
      %152 = sbr.rel (0) target = $region49
    $region48: #{conv_encoder_forward.1} parent=1 // pred_region
      _
    $region49: #{conv_encoder_forward.1} parent=1 // pred_fallthru
      _
    // Predicated region
    $region50: #{conv_encoder_forward.1} parent=1 // pred_check
      _
    $region51: #{conv_encoder_forward.1} parent=1 // pred_check_branch
      %154 = sbr.rel (0) target = $region53
    $region52: #{conv_encoder_forward.1} parent=1 // pred_region
      %156 = vsyncadd [#allocation18], 0
      %s158 = sshll.u32 %s12, 4
      %s159 = int_to_ptr.hbm [resolvable:$true] %s158
      %s160 = sshll.u32 [#allocation19], 4
      %s161 = int_to_ptr.vmem [resolvable:$true] %s160
      %163 = dma.hbm_to_vmem [thread:$0]  %s159, 16, %s161, [#allocation18]
    $region53: #{conv_encoder_forward.1} parent=1 // pred_fallthru
      _
    // Predicated region
    $region54: #{conv_encoder_forward.1} parent=1 // pred_check
      _
    $region55: #{conv_encoder_forward.1} parent=1 // pred_check_branch
      %165 = sbr.rel (0) target = $region57
    $region56: #{conv_encoder_forward.1} parent=1 // pred_region
      %167 = vsyncadd [#allocation21], 0
      %s169 = sshll.u32 %s13, 4
      %s170 = int_to_ptr.hbm [resolvable:$true] %s169
      %s171 = sshll.u32 [#allocation20], 4
      %s172 = int_to_ptr.vmem [resolvable:$true] %s171
      %174 = dma.hbm_to_vmem [thread:$0]  %s170, 32, %s172, [#allocation21]
    $region57: #{conv_encoder_forward.1} parent=1 // pred_fallthru
      _
    // Predicated region
    $region58: #{conv_encoder_forward.1} parent=1 // pred_check
      _
    $region59: #{conv_encoder_forward.1} parent=1 // pred_check_branch
      %176 = sbr.rel (0) target = $region61
    $region60: #{conv_encoder_forward.1} parent=1 // pred_region
      %178 = dma.done [#allocation3], 4608
    $region61: #{conv_encoder_forward.1} parent=1 // pred_fallthru
      _
    // Predicated region
    $region62: #{conv_encoder_forward.1} parent=1 // pred_check
      _
    $region63: #{conv_encoder_forward.1} parent=1 // pred_check_branch
      %180 = sbr.rel (0) target = $region65
    $region64: #{conv_encoder_forward.1} parent=1 // pred_region
      %182 = dma.done [#allocation6], 16
    $region65: #{conv_encoder_forward.1} parent=1 // pred_fallthru
      _
    // Predicated region
    $region66: #{conv_encoder_forward.1} parent=1 // pred_check
      _
    $region67: #{conv_encoder_forward.1} parent=1 // pred_check_branch
      %184 = sbr.rel (0) target = $region69
    $region68: #{conv_encoder_forward.1} parent=1 // pred_region
      %186 = dma.done [#allocation6], 18432
    $region69: #{conv_encoder_forward.1} parent=1 // pred_fallthru
      _
    // Predicated region
    $region70: #{conv_encoder_forward.1} parent=1 // pred_check
      _
    $region71: #{conv_encoder_forward.1} parent=1 // pred_check_branch
      %188 = sbr.rel (0) target = $region73
    $region72: #{conv_encoder_forward.1} parent=1 // pred_region
      %190 = dma.done [#allocation9], 16
    $region73: #{conv_encoder_forward.1} parent=1 // pred_fallthru
      _
    // Predicated region
    $region74: #{conv_encoder_forward.1} parent=1 // pred_check
      _
    $region75: #{conv_encoder_forward.1} parent=1 // pred_check_branch
      %192 = sbr.rel (0) target = $region77
    $region76: #{conv_encoder_forward.1} parent=1 // pred_region
      %194 = dma.done [#allocation9], 20480
    $region77: #{conv_encoder_forward.1} parent=1 // pred_fallthru
      _
    // Predicated region
    $region78: #{conv_encoder_forward.1} parent=1 // pred_check
      _
    $region79: #{conv_encoder_forward.1} parent=1 // pred_check_branch
      %196 = sbr.rel (0) target = $region81
    $region80: #{conv_encoder_forward.1} parent=1 // pred_region
      %198 = dma.done [#allocation12], 16
    $region81: #{conv_encoder_forward.1} parent=1 // pred_fallthru
      _
    // Predicated region
    $region82: #{conv_encoder_forward.1} parent=1 // pred_check
      _
    $region83: #{conv_encoder_forward.1} parent=1 // pred_check_branch
      %200 = sbr.rel (0) target = $region85
    $region84: #{conv_encoder_forward.1} parent=1 // pred_region
      %202 = dma.done [#allocation12], 122880
    $region85: #{conv_encoder_forward.1} parent=1 // pred_fallthru
      _
    // Predicated region
    $region86: #{conv_encoder_forward.1} parent=1 // pred_check
      _
    $region87: #{conv_encoder_forward.1} parent=1 // pred_check_branch
      %204 = sbr.rel (0) target = $region89
    $region88: #{conv_encoder_forward.1} parent=1 // pred_region
      %206 = dma.done [#allocation15], 64
    $region89: #{conv_encoder_forward.1} parent=1 // pred_fallthru
      _
    // Predicated region
    $region90: #{conv_encoder_forward.1} parent=1 // pred_check
      _
    $region91: #{conv_encoder_forward.1} parent=1 // pred_check_branch
      %208 = sbr.rel (0) target = $region93
    $region92: #{conv_encoder_forward.1} parent=1 // pred_region
      %210 = dma.done [#allocation15], 64
    $region93: #{conv_encoder_forward.1} parent=1 // pred_fallthru
      _
    // Predicated region
    $region94: #{conv_encoder_forward.1} parent=1 // pred_check
      _
    $region95: #{conv_encoder_forward.1} parent=1 // pred_check_branch
      %212 = sbr.rel (0) target = $region97
    $region96: #{conv_encoder_forward.1} parent=1 // pred_region
      %214 = dma.done [#allocation18], 64
    $region97: #{conv_encoder_forward.1} parent=1 // pred_fallthru
      _
    // Predicated region
    $region98: #{conv_encoder_forward.1} parent=1 // pred_check
      _
    $region99: #{conv_encoder_forward.1} parent=1 // pred_check_branch
      %216 = sbr.rel (0) target = $region101
    $region100: #{conv_encoder_forward.1} parent=1 // pred_region
      %218 = dma.done [#allocation18], 16
    $region101: #{conv_encoder_forward.1} parent=1 // pred_fallthru
      _
    // Predicated region
    $region102: #{conv_encoder_forward.1} parent=1 // pred_check
      _
    $region103: #{conv_encoder_forward.1} parent=1 // pred_check_branch
      %220 = sbr.rel (0) target = $region105
    $region104: #{conv_encoder_forward.1} parent=1 // pred_region
      %222 = dma.done [#allocation21], 32
    $region105: #{conv_encoder_forward.1} parent=1 // pred_fallthru
      _
    %v223 = vld [vmem:[%s0] sm:$0xff]
    %v224 = vld [vmem:[%s0 + $0x8] sm:$0xff]
    %v225 = vld [vmem:[%s0 + $0x10] sm:$0xff]
    %v226 = vld [vmem:[%s0 + $0x18] sm:$0xff]
    %v227 = vld [vmem:[%s0 + $0x20] sm:$0xff]
    %v228 = vld [vmem:[#allocation2] sm:$0xff]
    %v229 = vld [vmem:[#allocation2 + $0x8] sm:$0xff]
    %v230 = vld [vmem:[#allocation2 + $0x10] sm:$0xff]
    %v231 = vld [vmem:[#allocation2 + $0x18] sm:$0xff]
    %s232 = scalar_lea.vmem [#allocation2], 32
    %v233 = vld [vmem:[%s232] sm:$0xff]
    %v234 = vld [vmem:[%s232 + $0x8] sm:$0xff]
    %v235 = vld [vmem:[%s232 + $0x10] sm:$0xff]
    %v236 = vld [vmem:[%s232 + $0x18] sm:$0xff]
    %vm242 = vcmask 1046528
    %v243 = vrot.slane %v223, 1
    %v244 = vrot.slane %v224, 1
    %v245 = vsel %vm242, %v243, %v244
    %v246 = vrot.slane %v225, 1
    %v247 = vsel %vm242, %v244, %v246
    %v248 = vrot.slane %v226, 1
    %v249 = vsel %vm242, %v246, %v248
    %v250 = vrot.slane %v227, 1
    %v251 = vsel %vm242, %v248, %v250
    %vm252 = vcmask 261120
    %v253 = vsel %vm252, %v245, 0
    %v255 = vsel %vm252, %v247, 0
    %v257 = vsel %vm252, %v249, 0
    %v259 = vsel %vm252, %v251, 0
    %261 = vmatpush.msra.mxu0 0.0
    %262 = vmatpush.msra.mxu0 0.0
    %263 = vmatpush.msra.mxu0 0.0
    %264 = vmatpush.msra.mxu0 0.0
    %265 = vmatpush.msra.mxu0 0.0
    %266 = vmatpush.msra.mxu0 0.0
    %267 = vmatpush.msra.mxu0 0.0
    %268 = vmatpush.msra.mxu0 0.0
    %269 = vmatpush.msra.mxu0 0.0
    %270 = vmatpush.msra.mxu0 0.0
    %271 = vmatpush.msra.mxu0 0.0
    %272 = vmatpush.msra.mxu0 0.0
    %273 = vmatpush.msra.mxu0 %v236
    %274 = vmatpush.msra.mxu0 %v235
    %275 = vmatpush.msra.mxu0 %v234
    %276 = vmatpush.msra.mxu0 %v233
    %277 = vmatmul.f32.gmra.mxu0 %v253
    %v278 = vpop.f32.mrf.mxu0
    %v279 = vadd.f32 0.0, %v278
    %280 = vmatmul.f32.gmra.mxu0 %v255
    %v281 = vpop.f32.mrf.mxu0
    %v282 = vadd.f32 0.0, %v281
    %283 = vmatmul.f32.gmra.mxu0 %v257
    %v284 = vpop.f32.mrf.mxu0
    %v285 = vadd.f32 0.0, %v284
    %286 = vmatmul.f32.gmra.mxu0 %v259
    %v287 = vpop.f32.mrf.mxu0
    %v288 = vadd.f32 0.0, %v287
    %289 = vdwg.mxu0
    %v290 = vsel %vm252, %v223, 0
    %v292 = vsel %vm252, %v224, 0
    %v294 = vsel %vm252, %v225, 0
    %v296 = vsel %vm252, %v226, 0
    %298 = vmatpush.msra.mxu0 0.0
    %299 = vmatpush.msra.mxu0 0.0
    %300 = vmatpush.msra.mxu0 0.0
    %301 = vmatpush.msra.mxu0 0.0
    %302 = vmatpush.msra.mxu0 0.0
    %303 = vmatpush.msra.mxu0 0.0
    %304 = vmatpush.msra.mxu0 0.0
    %305 = vmatpush.msra.mxu0 0.0
    %306 = vmatpush.msra.mxu0 0.0
    %307 = vmatpush.msra.mxu0 0.0
    %308 = vmatpush.msra.mxu0 0.0
    %309 = vmatpush.msra.mxu0 0.0
    %310 = vmatpush.msra.mxu0 %v231
    %311 = vmatpush.msra.mxu0 %v230
    %312 = vmatpush.msra.mxu0 %v229
    %313 = vmatpush.msra.mxu0 %v228
    %314 = vmatmul.f32.gmra.mxu0 %v290
    %v315 = vpop.f32.mrf.mxu0
    %v316 = vadd.f32 %v279, %v315
    %317 = vmatmul.f32.gmra.mxu0 %v292
    %v318 = vpop.f32.mrf.mxu0
    %v319 = vadd.f32 %v282, %v318
    %320 = vmatmul.f32.gmra.mxu0 %v294
    %v321 = vpop.f32.mrf.mxu0
    %v322 = vadd.f32 %v285, %v321
    %323 = vmatmul.f32.gmra.mxu0 %v296
    %v324 = vpop.f32.mrf.mxu0
    %v325 = vadd.f32 %v288, %v324
    %326 = vdwg.mxu0
    %s327 = scalar_lea.vmem [#allocation2], 64
    %v328 = vld [vmem:[%s327] sm:$0xff]
    %v329 = vld [vmem:[%s327 + $0x8] sm:$0xff]
    %v330 = vld [vmem:[%s327 + $0x10] sm:$0xff]
    %v331 = vld [vmem:[%s327 + $0x18] sm:$0xff]
    %vm332 = vcmask 1045504
    %v333 = vrot.slane %v223, 2
    %v334 = vrot.slane %v224, 2
    %v335 = vsel %vm332, %v333, %v334
    %v336 = vrot.slane %v225, 2
    %v337 = vsel %vm332, %v334, %v336
    %v338 = vrot.slane %v226, 2
    %v339 = vsel %vm332, %v336, %v338
    %v340 = vrot.slane %v227, 2
    %v341 = vsel %vm332, %v338, %v340
    %v342 = vsel %vm252, %v335, 0
    %v344 = vsel %vm252, %v337, 0
    %v346 = vsel %vm252, %v339, 0
    %v348 = vsel %vm252, %v341, 0
    %350 = vmatpush.msra.mxu0 0.0
    %351 = vmatpush.msra.mxu0 0.0
    %352 = vmatpush.msra.mxu0 0.0
    %353 = vmatpush.msra.mxu0 0.0
    %354 = vmatpush.msra.mxu0 0.0
    %355 = vmatpush.msra.mxu0 0.0
    %356 = vmatpush.msra.mxu0 0.0
    %357 = vmatpush.msra.mxu0 0.0
    %358 = vmatpush.msra.mxu0 0.0
    %359 = vmatpush.msra.mxu0 0.0
    %360 = vmatpush.msra.mxu0 0.0
    %361 = vmatpush.msra.mxu0 0.0
    %362 = vmatpush.msra.mxu0 %v331
    %363 = vmatpush.msra.mxu0 %v330
    %364 = vmatpush.msra.mxu0 %v329
    %365 = vmatpush.msra.mxu0 %v328
    %366 = vmatmul.f32.gmra.mxu0 %v342
    %v367 = vpop.f32.mrf.mxu0
    %v368 = vadd.f32 0.0, %v367
    %369 = vmatmul.f32.gmra.mxu0 %v344
    %v370 = vpop.f32.mrf.mxu0
    %v371 = vadd.f32 0.0, %v370
    %372 = vmatmul.f32.gmra.mxu0 %v346
    %v373 = vpop.f32.mrf.mxu0
    %v374 = vadd.f32 0.0, %v373
    %375 = vmatmul.f32.gmra.mxu0 %v348
    %v376 = vpop.f32.mrf.mxu0
    %v377 = vadd.f32 0.0, %v376
    %378 = vdwg.mxu0
    %v379 = vadd.f32 %v316, %v368
    %v380 = vadd.f32 %v319, %v371
    %v381 = vadd.f32 %v322, %v374
    %v382 = vadd.f32 %v325, %v377
    %s383 = scalar_lea.vmem [#allocation2], 96
    %v384 = vld [vmem:[%s383] sm:$0xff]
    %v385 = vld [vmem:[%s383 + $0x8] sm:$0xff]
    %v386 = vld [vmem:[%s383 + $0x10] sm:$0xff]
    %v387 = vld [vmem:[%s383 + $0x18] sm:$0xff]
    %vm388 = vcmask 1044480
    %v389 = vrot.slane %v223, 3
    %v390 = vrot.slane %v224, 3
    %v391 = vsel %vm388, %v389, %v390
    %v392 = vrot.slane %v225, 3
    %v393 = vsel %vm388, %v390, %v392
    %v394 = vrot.slane %v226, 3
    %v395 = vsel %vm388, %v392, %v394
    %v396 = vrot.slane %v227, 3
    %v397 = vsel %vm388, %v394, %v396
    %v398 = vsel %vm252, %v391, 0
    %v400 = vsel %vm252, %v393, 0
    %v402 = vsel %vm252, %v395, 0
    %v404 = vsel %vm252, %v397, 0
    %406 = vmatpush.msra.mxu0 0.0
    %407 = vmatpush.msra.mxu0 0.0
    %408 = vmatpush.msra.mxu0 0.0
    %409 = vmatpush.msra.mxu0 0.0
    %410 = vmatpush.msra.mxu0 0.0
    %411 = vmatpush.msra.mxu0 0.0
    %412 = vmatpush.msra.mxu0 0.0
    %413 = vmatpush.msra.mxu0 0.0
    %414 = vmatpush.msra.mxu0 0.0
    %415 = vmatpush.msra.mxu0 0.0
    %416 = vmatpush.msra.mxu0 0.0
    %417 = vmatpush.msra.mxu0 0.0
    %418 = vmatpush.msra.mxu0 %v387
    %419 = vmatpush.msra.mxu0 %v386
    %420 = vmatpush.msra.mxu0 %v385
    %421 = vmatpush.msra.mxu0 %v384
    %422 = vmatmul.f32.gmra.mxu0 %v398
    %v423 = vpop.f32.mrf.mxu0
    %v424 = vadd.f32 0.0, %v423
    %425 = vmatmul.f32.gmra.mxu0 %v400
    %v426 = vpop.f32.mrf.mxu0
    %v427 = vadd.f32 0.0, %v426
    %428 = vmatmul.f32.gmra.mxu0 %v402
    %v429 = vpop.f32.mrf.mxu0
    %v430 = vadd.f32 0.0, %v429
    %431 = vmatmul.f32.gmra.mxu0 %v404
    %v432 = vpop.f32.mrf.mxu0
    %v433 = vadd.f32 0.0, %v432
    %434 = vdwg.mxu0
    %v435 = vadd.f32 %v379, %v424
    %v436 = vadd.f32 %v380, %v427
    %v437 = vadd.f32 %v381, %v430
    %v438 = vadd.f32 %v382, %v433
    %s439 = scalar_lea.vmem [#allocation2], 128
    %v440 = vld [vmem:[%s439] sm:$0xff]
    %v441 = vld [vmem:[%s439 + $0x8] sm:$0xff]
    %v442 = vld [vmem:[%s439 + $0x10] sm:$0xff]
    %v443 = vld [vmem:[%s439 + $0x18] sm:$0xff]
    %vm444 = vcmask 1043456
    %v445 = vrot.slane %v223, 4
    %v446 = vrot.slane %v224, 4
    %v447 = vsel %vm444, %v445, %v446
    %v448 = vrot.slane %v225, 4
    %v449 = vsel %vm444, %v446, %v448
    %v450 = vrot.slane %v226, 4
    %v451 = vsel %vm444, %v448, %v450
    %v452 = vrot.slane %v227, 4
    %v453 = vsel %vm444, %v450, %v452
    %v454 = vsel %vm252, %v447, 0
    %v456 = vsel %vm252, %v449, 0
    %v458 = vsel %vm252, %v451, 0
    %v460 = vsel %vm252, %v453, 0
    %462 = vmatpush.msra.mxu0 0.0
    %463 = vmatpush.msra.mxu0 0.0
    %464 = vmatpush.msra.mxu0 0.0
    %465 = vmatpush.msra.mxu0 0.0
    %466 = vmatpush.msra.mxu0 0.0
    %467 = vmatpush.msra.mxu0 0.0
    %468 = vmatpush.msra.mxu0 0.0
    %469 = vmatpush.msra.mxu0 0.0
    %470 = vmatpush.msra.mxu0 0.0
    %471 = vmatpush.msra.mxu0 0.0
    %472 = vmatpush.msra.mxu0 0.0
    %473 = vmatpush.msra.mxu0 0.0
    %474 = vmatpush.msra.mxu0 %v443
    %475 = vmatpush.msra.mxu0 %v442
    %476 = vmatpush.msra.mxu0 %v441
    %477 = vmatpush.msra.mxu0 %v440
    %478 = vmatmul.f32.gmra.mxu0 %v454
    %v479 = vpop.f32.mrf.mxu0
    %v480 = vadd.f32 0.0, %v479
    %481 = vmatmul.f32.gmra.mxu0 %v456
    %v482 = vpop.f32.mrf.mxu0
    %v483 = vadd.f32 0.0, %v482
    %484 = vmatmul.f32.gmra.mxu0 %v458
    %v485 = vpop.f32.mrf.mxu0
    %v486 = vadd.f32 0.0, %v485
    %487 = vmatmul.f32.gmra.mxu0 %v460
    %v488 = vpop.f32.mrf.mxu0
    %v489 = vadd.f32 0.0, %v488
    %490 = vdwg.mxu0
    %v491 = vadd.f32 %v435, %v480
    %v492 = vadd.f32 %v436, %v483
    %v493 = vadd.f32 %v437, %v486
    %v494 = vadd.f32 %v438, %v489
    %s495 = scalar_lea.vmem [#allocation2], 160
    %v496 = vld [vmem:[%s495] sm:$0xff]
    %v497 = vld [vmem:[%s495 + $0x8] sm:$0xff]
    %v498 = vld [vmem:[%s495 + $0x10] sm:$0xff]
    %v499 = vld [vmem:[%s495 + $0x18] sm:$0xff]
    %vm500 = vcmask 1042432
    %v501 = vrot.slane %v223, 5
    %v502 = vrot.slane %v224, 5
    %v503 = vsel %vm500, %v501, %v502
    %v504 = vrot.slane %v225, 5
    %v505 = vsel %vm500, %v502, %v504
    %v506 = vrot.slane %v226, 5
    %v507 = vsel %vm500, %v504, %v506
    %v508 = vrot.slane %v227, 5
    %v509 = vsel %vm500, %v506, %v508
    %v510 = vsel %vm252, %v503, 0
    %v512 = vsel %vm252, %v505, 0
    %v514 = vsel %vm252, %v507, 0
    %v516 = vsel %vm252, %v509, 0
    %518 = vmatpush.msra.mxu0 0.0
    %519 = vmatpush.msra.mxu0 0.0
    %520 = vmatpush.msra.mxu0 0.0
    %521 = vmatpush.msra.mxu0 0.0
    %522 = vmatpush.msra.mxu0 0.0
    %523 = vmatpush.msra.mxu0 0.0
    %524 = vmatpush.msra.mxu0 0.0
    %525 = vmatpush.msra.mxu0 0.0
    %526 = vmatpush.msra.mxu0 0.0
    %527 = vmatpush.msra.mxu0 0.0
    %528 = vmatpush.msra.mxu0 0.0
    %529 = vmatpush.msra.mxu0 0.0
    %530 = vmatpush.msra.mxu0 %v499
    %531 = vmatpush.msra.mxu0 %v498
    %532 = vmatpush.msra.mxu0 %v497
    %533 = vmatpush.msra.mxu0 %v496
    %534 = vmatmul.f32.gmra.mxu0 %v510
    %v535 = vpop.f32.mrf.mxu0
    %v536 = vadd.f32 0.0, %v535
    %537 = vmatmul.f32.gmra.mxu0 %v512
    %v538 = vpop.f32.mrf.mxu0
    %v539 = vadd.f32 0.0, %v538
    %540 = vmatmul.f32.gmra.mxu0 %v514
    %v541 = vpop.f32.mrf.mxu0
    %v542 = vadd.f32 0.0, %v541
    %543 = vmatmul.f32.gmra.mxu0 %v516
    %v544 = vpop.f32.mrf.mxu0
    %v545 = vadd.f32 0.0, %v544
    %546 = vdwg.mxu0
    %v547 = vadd.f32 %v491, %v536
    %v548 = vadd.f32 %v492, %v539
    %v549 = vadd.f32 %v493, %v542
    %v550 = vadd.f32 %v494, %v545
    %s551 = scalar_lea.vmem [#allocation2], 192
    %v552 = vld [vmem:[%s551] sm:$0xff]
    %v553 = vld [vmem:[%s551 + $0x8] sm:$0xff]
    %v554 = vld [vmem:[%s551 + $0x10] sm:$0xff]
    %v555 = vld [vmem:[%s551 + $0x18] sm:$0xff]
    %vm556 = vcmask 1041408
    %v557 = vrot.slane %v223, 6
    %v558 = vrot.slane %v224, 6
    %v559 = vsel %vm556, %v557, %v558
    %v560 = vrot.slane %v225, 6
    %v561 = vsel %vm556, %v558, %v560
    %v562 = vrot.slane %v226, 6
    %v563 = vsel %vm556, %v560, %v562
    %v564 = vrot.slane %v227, 6
    %v565 = vsel %vm556, %v562, %v564
    %v566 = vsel %vm252, %v559, 0
    %v568 = vsel %vm252, %v561, 0
    %v570 = vsel %vm252, %v563, 0
    %v572 = vsel %vm252, %v565, 0
    %574 = vmatpush.msra.mxu0 0.0
    %575 = vmatpush.msra.mxu0 0.0
    %576 = vmatpush.msra.mxu0 0.0
    %577 = vmatpush.msra.mxu0 0.0
    %578 = vmatpush.msra.mxu0 0.0
    %579 = vmatpush.msra.mxu0 0.0
    %580 = vmatpush.msra.mxu0 0.0
    %581 = vmatpush.msra.mxu0 0.0
    %582 = vmatpush.msra.mxu0 0.0
    %583 = vmatpush.msra.mxu0 0.0
    %584 = vmatpush.msra.mxu0 0.0
    %585 = vmatpush.msra.mxu0 0.0
    %586 = vmatpush.msra.mxu0 %v555
    %587 = vmatpush.msra.mxu0 %v554
    %588 = vmatpush.msra.mxu0 %v553
    %589 = vmatpush.msra.mxu0 %v552
    %590 = vmatmul.f32.gmra.mxu0 %v566
    %v591 = vpop.f32.mrf.mxu0
    %v592 = vadd.f32 0.0, %v591
    %593 = vmatmul.f32.gmra.mxu0 %v568
    %v594 = vpop.f32.mrf.mxu0
    %v595 = vadd.f32 0.0, %v594
    %596 = vmatmul.f32.gmra.mxu0 %v570
    %v597 = vpop.f32.mrf.mxu0
    %v598 = vadd.f32 0.0, %v597
    %599 = vmatmul.f32.gmra.mxu0 %v572
    %v600 = vpop.f32.mrf.mxu0
    %v601 = vadd.f32 0.0, %v600
    %602 = vdwg.mxu0
    %v603 = vadd.f32 %v547, %v592
    %v604 = vadd.f32 %v548, %v595
    %v605 = vadd.f32 %v549, %v598
    %v606 = vadd.f32 %v550, %v601
    %s607 = scalar_lea.vmem [#allocation2], 224
    %v608 = vld [vmem:[%s607] sm:$0xff]
    %v609 = vld [vmem:[%s607 + $0x8] sm:$0xff]
    %v610 = vld [vmem:[%s607 + $0x10] sm:$0xff]
    %v611 = vld [vmem:[%s607 + $0x18] sm:$0xff]
    %vm612 = vcmask 1040384
    %v613 = vrot.slane %v223, 7
    %v614 = vrot.slane %v224, 7
    %v615 = vsel %vm612, %v613, %v614
    %v616 = vrot.slane %v225, 7
    %v617 = vsel %vm612, %v614, %v616
    %v618 = vrot.slane %v226, 7
    %v619 = vsel %vm612, %v616, %v618
    %v620 = vrot.slane %v227, 7
    %v621 = vsel %vm612, %v618, %v620
    %v622 = vsel %vm252, %v615, 0
    %v624 = vsel %vm252, %v617, 0
    %v626 = vsel %vm252, %v619, 0
    %v628 = vsel %vm252, %v621, 0
    %630 = vmatpush.msra.mxu0 0.0
    %631 = vmatpush.msra.mxu0 0.0
    %632 = vmatpush.msra.mxu0 0.0
    %633 = vmatpush.msra.mxu0 0.0
    %634 = vmatpush.msra.mxu0 0.0
    %635 = vmatpush.msra.mxu0 0.0
    %636 = vmatpush.msra.mxu0 0.0
    %637 = vmatpush.msra.mxu0 0.0
    %638 = vmatpush.msra.mxu0 0.0
    %639 = vmatpush.msra.mxu0 0.0
    %640 = vmatpush.msra.mxu0 0.0
    %641 = vmatpush.msra.mxu0 0.0
    %642 = vmatpush.msra.mxu0 %v611
    %643 = vmatpush.msra.mxu0 %v610
    %644 = vmatpush.msra.mxu0 %v609
    %645 = vmatpush.msra.mxu0 %v608
    %646 = vmatmul.f32.gmra.mxu0 %v622
    %v647 = vpop.f32.mrf.mxu0
    %v648 = vadd.f32 0.0, %v647
    %649 = vmatmul.f32.gmra.mxu0 %v624
    %v650 = vpop.f32.mrf.mxu0
    %v651 = vadd.f32 0.0, %v650
    %652 = vmatmul.f32.gmra.mxu0 %v626
    %v653 = vpop.f32.mrf.mxu0
    %v654 = vadd.f32 0.0, %v653
    %655 = vmatmul.f32.gmra.mxu0 %v628
    %v656 = vpop.f32.mrf.mxu0
    %v657 = vadd.f32 0.0, %v656
    %658 = vdwg.mxu0
    %v659 = vadd.f32 %v603, %v648
    %v660 = vadd.f32 %v604, %v651
    %v661 = vadd.f32 %v605, %v654
    %v662 = vadd.f32 %v606, %v657
    %s663 = scalar_lea.vmem [#allocation2], 256
    %v664 = vld [vmem:[%s663] sm:$0xff]
    %v665 = vld [vmem:[%s663 + $0x8] sm:$0xff]
    %v666 = vld [vmem:[%s663 + $0x10] sm:$0xff]
    %v667 = vld [vmem:[%s663 + $0x18] sm:$0xff]
    %v668 = vsel %vm252, %v227, 0
    %670 = vmatpush.msra.mxu0 0.0
    %671 = vmatpush.msra.mxu0 0.0
    %672 = vmatpush.msra.mxu0 0.0
    %673 = vmatpush.msra.mxu0 0.0
    %674 = vmatpush.msra.mxu0 0.0
    %675 = vmatpush.msra.mxu0 0.0
    %676 = vmatpush.msra.mxu0 0.0
    %677 = vmatpush.msra.mxu0 0.0
    %678 = vmatpush.msra.mxu0 0.0
    %679 = vmatpush.msra.mxu0 0.0
    %680 = vmatpush.msra.mxu0 0.0
    %681 = vmatpush.msra.mxu0 0.0
    %682 = vmatpush.msra.mxu0 %v667
    %683 = vmatpush.msra.mxu0 %v666
    %684 = vmatpush.msra.mxu0 %v665
    %685 = vmatpush.msra.mxu0 %v664
    %686 = vmatmul.f32.gmra.mxu0 %v292
    %v687 = vpop.f32.mrf.mxu0
    %v688 = vadd.f32 0.0, %v687
    %689 = vmatmul.f32.gmra.mxu0 %v294
    %v690 = vpop.f32.mrf.mxu0
    %v691 = vadd.f32 0.0, %v690
    %692 = vmatmul.f32.gmra.mxu0 %v296
    %v693 = vpop.f32.mrf.mxu0
    %v694 = vadd.f32 0.0, %v693
    %695 = vmatmul.f32.gmra.mxu0 %v668
    %v696 = vpop.f32.mrf.mxu0
    %v697 = vadd.f32 0.0, %v696
    %698 = vdwg.mxu0
    %v699 = vadd.f32 %v659, %v688
    %v700 = vadd.f32 %v660, %v691
    %v701 = vadd.f32 %v661, %v694
    %v702 = vadd.f32 %v662, %v697
    %v703 = vld [vmem:[#allocation5] sm:$0x1]
    %v705 = vperm.slane %v703, 0
    %v707 = vadd.f32 %v699, %v705
    %v708 = vadd.f32 %v700, %v705
    %v709 = vadd.f32 %v701, %v705
    %v710 = vadd.f32 %v702, %v705
    %v711 = vmax.f32 %v707, 0.0
    %v712 = vmax.f32 %v708, 0.0
    %v713 = vmax.f32 %v709, 0.0
    %v714 = vmax.f32 %v710, 0.0
    %v715 = vld [vmem:[#allocation7] sm:$0xff]
    %v716 = vld [vmem:[#allocation7 + $0x8] sm:$0xff]
    %v717 = vld [vmem:[#allocation7 + $0x10] sm:$0xff]
    %v718 = vld [vmem:[#allocation7 + $0x18] sm:$0xff]
    %v719 = vld [vmem:[#allocation7 + $0x20] sm:$0xff]
    %v720 = vld [vmem:[#allocation7 + $0x28] sm:$0xff]
    %v721 = vld [vmem:[#allocation7 + $0x30] sm:$0xff]
    %v722 = vld [vmem:[#allocation7 + $0x38] sm:$0xff]
    %v723 = vld [vmem:[#allocation7 + $0x40] sm:$0xff]
    %v724 = vld [vmem:[#allocation7 + $0x48] sm:$0xff]
    %v725 = vld [vmem:[#allocation7 + $0x50] sm:$0xff]
    %v726 = vld [vmem:[#allocation7 + $0x58] sm:$0xff]
    %v727 = vld [vmem:[#allocation7 + $0x60] sm:$0xff]
    %v728 = vld [vmem:[#allocation7 + $0x68] sm:$0xff]
    %v729 = vld [vmem:[#allocation7 + $0x70] sm:$0xff]
    %v730 = vld [vmem:[#allocation7 + $0x78] sm:$0xff]
    %s731 = scalar_lea.vmem [#allocation7], 128
    %v732 = vld [vmem:[%s731] sm:$0xff]
    %v733 = vld [vmem:[%s731 + $0x8] sm:$0xff]
    %v734 = vld [vmem:[%s731 + $0x10] sm:$0xff]
    %v735 = vld [vmem:[%s731 + $0x18] sm:$0xff]
    %v736 = vld [vmem:[%s731 + $0x20] sm:$0xff]
    %v737 = vld [vmem:[%s731 + $0x28] sm:$0xff]
    %v738 = vld [vmem:[%s731 + $0x30] sm:$0xff]
    %v739 = vld [vmem:[%s731 + $0x38] sm:$0xff]
    %v740 = vld [vmem:[%s731 + $0x40] sm:$0xff]
    %v741 = vld [vmem:[%s731 + $0x48] sm:$0xff]
    %v742 = vld [vmem:[%s731 + $0x50] sm:$0xff]
    %v743 = vld [vmem:[%s731 + $0x58] sm:$0xff]
    %v744 = vld [vmem:[%s731 + $0x60] sm:$0xff]
    %v745 = vld [vmem:[%s731 + $0x68] sm:$0xff]
    %v746 = vld [vmem:[%s731 + $0x70] sm:$0xff]
    %v747 = vld [vmem:[%s731 + $0x78] sm:$0xff]
    %v752 = vrot.slane %v711, 1
    %v753 = vrot.slane %v712, 1
    %v754 = vsel %vm242, %v752, %v753
    %v755 = vrot.slane %v713, 1
    %v756 = vsel %vm242, %v753, %v755
    %v757 = vrot.slane %v714, 1
    %v758 = vsel %vm242, %v755, %v757
    %762 = vmatpush.msra.mxu0 %v747
    %763 = vmatpush.msra.mxu0 %v746
    %764 = vmatpush.msra.mxu0 %v745
    %765 = vmatpush.msra.mxu0 %v744
    %766 = vmatpush.msra.mxu0 %v743
    %767 = vmatpush.msra.mxu0 %v742
    %768 = vmatpush.msra.mxu0 %v741
    %769 = vmatpush.msra.mxu0 %v740
    %770 = vmatpush.msra.mxu0 %v739
    %771 = vmatpush.msra.mxu0 %v738
    %772 = vmatpush.msra.mxu0 %v737
    %773 = vmatpush.msra.mxu0 %v736
    %774 = vmatpush.msra.mxu0 %v735
    %775 = vmatpush.msra.mxu0 %v734
    %776 = vmatpush.msra.mxu0 %v733
    %777 = vmatpush.msra.mxu0 %v732
    %778 = vmatmul.f32.gmra.mxu0 %v754
    %v779 = vpop.f32.mrf.mxu0
    %v780 = vadd.f32 0.0, %v779
    %781 = vmatmul.f32.gmra.mxu0 %v756
    %v782 = vpop.f32.mrf.mxu0
    %v783 = vadd.f32 0.0, %v782
    %784 = vmatmul.f32.gmra.mxu0 %v758
    %v785 = vpop.f32.mrf.mxu0
    %v786 = vadd.f32 0.0, %v785
    %787 = vdwg.mxu0
    %788 = vmatpush.msra.mxu0 %v730
    %789 = vmatpush.msra.mxu0 %v729
    %790 = vmatpush.msra.mxu0 %v728
    %791 = vmatpush.msra.mxu0 %v727
    %792 = vmatpush.msra.mxu0 %v726
    %793 = vmatpush.msra.mxu0 %v725
    %794 = vmatpush.msra.mxu0 %v724
    %795 = vmatpush.msra.mxu0 %v723
    %796 = vmatpush.msra.mxu0 %v722
    %797 = vmatpush.msra.mxu0 %v721
    %798 = vmatpush.msra.mxu0 %v720
    %799 = vmatpush.msra.mxu0 %v719
    %800 = vmatpush.msra.mxu0 %v718
    %801 = vmatpush.msra.mxu0 %v717
    %802 = vmatpush.msra.mxu0 %v716
    %803 = vmatpush.msra.mxu0 %v715
    %804 = vmatmul.f32.gmra.mxu0 %v711
    %v805 = vpop.f32.mrf.mxu0
    %v806 = vadd.f32 %v780, %v805
    %807 = vmatmul.f32.gmra.mxu0 %v712
    %v808 = vpop.f32.mrf.mxu0
    %v809 = vadd.f32 %v783, %v808
    %810 = vmatmul.f32.gmra.mxu0 %v713
    %v811 = vpop.f32.mrf.mxu0
    %v812 = vadd.f32 %v786, %v811
    %813 = vdwg.mxu0
    %s814 = scalar_lea.vmem [#allocation7], 256
    %v815 = vld [vmem:[%s814] sm:$0xff]
    %v816 = vld [vmem:[%s814 + $0x8] sm:$0xff]
    %v817 = vld [vmem:[%s814 + $0x10] sm:$0xff]
    %v818 = vld [vmem:[%s814 + $0x18] sm:$0xff]
    %v819 = vld [vmem:[%s814 + $0x20] sm:$0xff]
    %v820 = vld [vmem:[%s814 + $0x28] sm:$0xff]
    %v821 = vld [vmem:[%s814 + $0x30] sm:$0xff]
    %v822 = vld [vmem:[%s814 + $0x38] sm:$0xff]
    %v823 = vld [vmem:[%s814 + $0x40] sm:$0xff]
    %v824 = vld [vmem:[%s814 + $0x48] sm:$0xff]
    %v825 = vld [vmem:[%s814 + $0x50] sm:$0xff]
    %v826 = vld [vmem:[%s814 + $0x58] sm:$0xff]
    %v827 = vld [vmem:[%s814 + $0x60] sm:$0xff]
    %v828 = vld [vmem:[%s814 + $0x68] sm:$0xff]
    %v829 = vld [vmem:[%s814 + $0x70] sm:$0xff]
    %v830 = vld [vmem:[%s814 + $0x78] sm:$0xff]
    %v831 = vrot.slane %v711, 2
    %v832 = vrot.slane %v712, 2
    %v833 = vsel %vm332, %v831, %v832
    %v834 = vrot.slane %v713, 2
    %v835 = vsel %vm332, %v832, %v834
    %v836 = vrot.slane %v714, 2
    %v837 = vsel %vm332, %v834, %v836
    %841 = vmatpush.msra.mxu0 %v830
    %842 = vmatpush.msra.mxu0 %v829
    %843 = vmatpush.msra.mxu0 %v828
    %844 = vmatpush.msra.mxu0 %v827
    %845 = vmatpush.msra.mxu0 %v826
    %846 = vmatpush.msra.mxu0 %v825
    %847 = vmatpush.msra.mxu0 %v824
    %848 = vmatpush.msra.mxu0 %v823
    %849 = vmatpush.msra.mxu0 %v822
    %850 = vmatpush.msra.mxu0 %v821
    %851 = vmatpush.msra.mxu0 %v820
    %852 = vmatpush.msra.mxu0 %v819
    %853 = vmatpush.msra.mxu0 %v818
    %854 = vmatpush.msra.mxu0 %v817
    %855 = vmatpush.msra.mxu0 %v816
    %856 = vmatpush.msra.mxu0 %v815
    %857 = vmatmul.f32.gmra.mxu0 %v833
    %v858 = vpop.f32.mrf.mxu0
    %v859 = vadd.f32 0.0, %v858
    %860 = vmatmul.f32.gmra.mxu0 %v835
    %v861 = vpop.f32.mrf.mxu0
    %v862 = vadd.f32 0.0, %v861
    %863 = vmatmul.f32.gmra.mxu0 %v837
    %v864 = vpop.f32.mrf.mxu0
    %v865 = vadd.f32 0.0, %v864
    %866 = vdwg.mxu0
    %v867 = vadd.f32 %v806, %v859
    %v868 = vadd.f32 %v809, %v862
    %v869 = vadd.f32 %v812, %v865
    %s870 = scalar_lea.vmem [#allocation7], 384
    %v871 = vld [vmem:[%s870] sm:$0xff]
    %v872 = vld [vmem:[%s870 + $0x8] sm:$0xff]
    %v873 = vld [vmem:[%s870 + $0x10] sm:$0xff]
    %v874 = vld [vmem:[%s870 + $0x18] sm:$0xff]
    %v875 = vld [vmem:[%s870 + $0x20] sm:$0xff]
    %v876 = vld [vmem:[%s870 + $0x28] sm:$0xff]
    %v877 = vld [vmem:[%s870 + $0x30] sm:$0xff]
    %v878 = vld [vmem:[%s870 + $0x38] sm:$0xff]
    %v879 = vld [vmem:[%s870 + $0x40] sm:$0xff]
    %v880 = vld [vmem:[%s870 + $0x48] sm:$0xff]
    %v881 = vld [vmem:[%s870 + $0x50] sm:$0xff]
    %v882 = vld [vmem:[%s870 + $0x58] sm:$0xff]
    %v883 = vld [vmem:[%s870 + $0x60] sm:$0xff]
    %v884 = vld [vmem:[%s870 + $0x68] sm:$0xff]
    %v885 = vld [vmem:[%s870 + $0x70] sm:$0xff]
    %v886 = vld [vmem:[%s870 + $0x78] sm:$0xff]
    %v887 = vrot.slane %v711, 3
    %v888 = vrot.slane %v712, 3
    %v889 = vsel %vm388, %v887, %v888
    %v890 = vrot.slane %v713, 3
    %v891 = vsel %vm388, %v888, %v890
    %v892 = vrot.slane %v714, 3
    %v893 = vsel %vm388, %v890, %v892
    %897 = vmatpush.msra.mxu0 %v886
    %898 = vmatpush.msra.mxu0 %v885
    %899 = vmatpush.msra.mxu0 %v884
    %900 = vmatpush.msra.mxu0 %v883
    %901 = vmatpush.msra.mxu0 %v882
    %902 = vmatpush.msra.mxu0 %v881
    %903 = vmatpush.msra.mxu0 %v880
    %904 = vmatpush.msra.mxu0 %v879
    %905 = vmatpush.msra.mxu0 %v878
    %906 = vmatpush.msra.mxu0 %v877
    %907 = vmatpush.msra.mxu0 %v876
    %908 = vmatpush.msra.mxu0 %v875
    %909 = vmatpush.msra.mxu0 %v874
    %910 = vmatpush.msra.mxu0 %v873
    %911 = vmatpush.msra.mxu0 %v872
    %912 = vmatpush.msra.mxu0 %v871
    %913 = vmatmul.f32.gmra.mxu0 %v889
    %v914 = vpop.f32.mrf.mxu0
    %v915 = vadd.f32 0.0, %v914
    %916 = vmatmul.f32.gmra.mxu0 %v891
    %v917 = vpop.f32.mrf.mxu0
    %v918 = vadd.f32 0.0, %v917
    %919 = vmatmul.f32.gmra.mxu0 %v893
    %v920 = vpop.f32.mrf.mxu0
    %v921 = vadd.f32 0.0, %v920
    %922 = vdwg.mxu0
    %v923 = vadd.f32 %v867, %v915
    %v924 = vadd.f32 %v868, %v918
    %v925 = vadd.f32 %v869, %v921
    %s926 = scalar_lea.vmem [#allocation7], 512
    %v927 = vld [vmem:[%s926] sm:$0xff]
    %v928 = vld [vmem:[%s926 + $0x8] sm:$0xff]
    %v929 = vld [vmem:[%s926 + $0x10] sm:$0xff]
    %v930 = vld [vmem:[%s926 + $0x18] sm:$0xff]
    %v931 = vld [vmem:[%s926 + $0x20] sm:$0xff]
    %v932 = vld [vmem:[%s926 + $0x28] sm:$0xff]
    %v933 = vld [vmem:[%s926 + $0x30] sm:$0xff]
    %v934 = vld [vmem:[%s926 + $0x38] sm:$0xff]
    %v935 = vld [vmem:[%s926 + $0x40] sm:$0xff]
    %v936 = vld [vmem:[%s926 + $0x48] sm:$0xff]
    %v937 = vld [vmem:[%s926 + $0x50] sm:$0xff]
    %v938 = vld [vmem:[%s926 + $0x58] sm:$0xff]
    %v939 = vld [vmem:[%s926 + $0x60] sm:$0xff]
    %v940 = vld [vmem:[%s926 + $0x68] sm:$0xff]
    %v941 = vld [vmem:[%s926 + $0x70] sm:$0xff]
    %v942 = vld [vmem:[%s926 + $0x78] sm:$0xff]
    %v943 = vrot.slane %v711, 4
    %v944 = vrot.slane %v712, 4
    %v945 = vsel %vm444, %v943, %v944
    %v946 = vrot.slane %v713, 4
    %v947 = vsel %vm444, %v944, %v946
    %v948 = vrot.slane %v714, 4
    %v949 = vsel %vm444, %v946, %v948
    %953 = vmatpush.msra.mxu0 %v942
    %954 = vmatpush.msra.mxu0 %v941
    %955 = vmatpush.msra.mxu0 %v940
    %956 = vmatpush.msra.mxu0 %v939
    %957 = vmatpush.msra.mxu0 %v938
    %958 = vmatpush.msra.mxu0 %v937
    %959 = vmatpush.msra.mxu0 %v936
    %960 = vmatpush.msra.mxu0 %v935
    %961 = vmatpush.msra.mxu0 %v934
    %962 = vmatpush.msra.mxu0 %v933
    %963 = vmatpush.msra.mxu0 %v932
    %964 = vmatpush.msra.mxu0 %v931
    %965 = vmatpush.msra.mxu0 %v930
    %966 = vmatpush.msra.mxu0 %v929
    %967 = vmatpush.msra.mxu0 %v928
    %968 = vmatpush.msra.mxu0 %v927
    %969 = vmatmul.f32.gmra.mxu0 %v945
    %v970 = vpop.f32.mrf.mxu0
    %v971 = vadd.f32 0.0, %v970
    %972 = vmatmul.f32.gmra.mxu0 %v947
    %v973 = vpop.f32.mrf.mxu0
    %v974 = vadd.f32 0.0, %v973
    %975 = vmatmul.f32.gmra.mxu0 %v949
    %v976 = vpop.f32.mrf.mxu0
    %v977 = vadd.f32 0.0, %v976
    %978 = vdwg.mxu0
    %v979 = vadd.f32 %v923, %v971
    %v980 = vadd.f32 %v924, %v974
    %v981 = vadd.f32 %v925, %v977
    %s982 = scalar_lea.vmem [#allocation7], 640
    %v983 = vld [vmem:[%s982] sm:$0xff]
    %v984 = vld [vmem:[%s982 + $0x8] sm:$0xff]
    %v985 = vld [vmem:[%s982 + $0x10] sm:$0xff]
    %v986 = vld [vmem:[%s982 + $0x18] sm:$0xff]
    %v987 = vld [vmem:[%s982 + $0x20] sm:$0xff]
    %v988 = vld [vmem:[%s982 + $0x28] sm:$0xff]
    %v989 = vld [vmem:[%s982 + $0x30] sm:$0xff]
    %v990 = vld [vmem:[%s982 + $0x38] sm:$0xff]
    %v991 = vld [vmem:[%s982 + $0x40] sm:$0xff]
    %v992 = vld [vmem:[%s982 + $0x48] sm:$0xff]
    %v993 = vld [vmem:[%s982 + $0x50] sm:$0xff]
    %v994 = vld [vmem:[%s982 + $0x58] sm:$0xff]
    %v995 = vld [vmem:[%s982 + $0x60] sm:$0xff]
    %v996 = vld [vmem:[%s982 + $0x68] sm:$0xff]
    %v997 = vld [vmem:[%s982 + $0x70] sm:$0xff]
    %v998 = vld [vmem:[%s982 + $0x78] sm:$0xff]
    %v999 = vrot.slane %v711, 5
    %v1000 = vrot.slane %v712, 5
    %v1001 = vsel %vm500, %v999, %v1000
    %v1002 = vrot.slane %v713, 5
    %v1003 = vsel %vm500, %v1000, %v1002
    %v1004 = vrot.slane %v714, 5
    %v1005 = vsel %vm500, %v1002, %v1004
    %1009 = vmatpush.msra.mxu0 %v998
    %1010 = vmatpush.msra.mxu0 %v997
    %1011 = vmatpush.msra.mxu0 %v996
    %1012 = vmatpush.msra.mxu0 %v995
    %1013 = vmatpush.msra.mxu0 %v994
    %1014 = vmatpush.msra.mxu0 %v993
    %1015 = vmatpush.msra.mxu0 %v992
    %1016 = vmatpush.msra.mxu0 %v991
    %1017 = vmatpush.msra.mxu0 %v990
    %1018 = vmatpush.msra.mxu0 %v989
    %1019 = vmatpush.msra.mxu0 %v988
    %1020 = vmatpush.msra.mxu0 %v987
    %1021 = vmatpush.msra.mxu0 %v986
    %1022 = vmatpush.msra.mxu0 %v985
    %1023 = vmatpush.msra.mxu0 %v984
    %1024 = vmatpush.msra.mxu0 %v983
    %1025 = vmatmul.f32.gmra.mxu0 %v1001
    %v1026 = vpop.f32.mrf.mxu0
    %v1027 = vadd.f32 0.0, %v1026
    %1028 = vmatmul.f32.gmra.mxu0 %v1003
    %v1029 = vpop.f32.mrf.mxu0
    %v1030 = vadd.f32 0.0, %v1029
    %1031 = vmatmul.f32.gmra.mxu0 %v1005
    %v1032 = vpop.f32.mrf.mxu0
    %v1033 = vadd.f32 0.0, %v1032
    %1034 = vdwg.mxu0
    %v1035 = vadd.f32 %v979, %v1027
    %v1036 = vadd.f32 %v980, %v1030
    %v1037 = vadd.f32 %v981, %v1033
    %s1038 = scalar_lea.vmem [#allocation7], 768
    %v1039 = vld [vmem:[%s1038] sm:$0xff]
    %v1040 = vld [vmem:[%s1038 + $0x8] sm:$0xff]
    %v1041 = vld [vmem:[%s1038 + $0x10] sm:$0xff]
    %v1042 = vld [vmem:[%s1038 + $0x18] sm:$0xff]
    %v1043 = vld [vmem:[%s1038 + $0x20] sm:$0xff]
    %v1044 = vld [vmem:[%s1038 + $0x28] sm:$0xff]
    %v1045 = vld [vmem:[%s1038 + $0x30] sm:$0xff]
    %v1046 = vld [vmem:[%s1038 + $0x38] sm:$0xff]
    %v1047 = vld [vmem:[%s1038 + $0x40] sm:$0xff]
    %v1048 = vld [vmem:[%s1038 + $0x48] sm:$0xff]
    %v1049 = vld [vmem:[%s1038 + $0x50] sm:$0xff]
    %v1050 = vld [vmem:[%s1038 + $0x58] sm:$0xff]
    %v1051 = vld [vmem:[%s1038 + $0x60] sm:$0xff]
    %v1052 = vld [vmem:[%s1038 + $0x68] sm:$0xff]
    %v1053 = vld [vmem:[%s1038 + $0x70] sm:$0xff]
    %v1054 = vld [vmem:[%s1038 + $0x78] sm:$0xff]
    %v1055 = vrot.slane %v711, 6
    %v1056 = vrot.slane %v712, 6
    %v1057 = vsel %vm556, %v1055, %v1056
    %v1058 = vrot.slane %v713, 6
    %v1059 = vsel %vm556, %v1056, %v1058
    %v1060 = vrot.slane %v714, 6
    %v1061 = vsel %vm556, %v1058, %v1060
    %1065 = vmatpush.msra.mxu0 %v1054
    %1066 = vmatpush.msra.mxu0 %v1053
    %1067 = vmatpush.msra.mxu0 %v1052
    %1068 = vmatpush.msra.mxu0 %v1051
    %1069 = vmatpush.msra.mxu0 %v1050
    %1070 = vmatpush.msra.mxu0 %v1049
    %1071 = vmatpush.msra.mxu0 %v1048
    %1072 = vmatpush.msra.mxu0 %v1047
    %1073 = vmatpush.msra.mxu0 %v1046
    %1074 = vmatpush.msra.mxu0 %v1045
    %1075 = vmatpush.msra.mxu0 %v1044
    %1076 = vmatpush.msra.mxu0 %v1043
    %1077 = vmatpush.msra.mxu0 %v1042
    %1078 = vmatpush.msra.mxu0 %v1041
    %1079 = vmatpush.msra.mxu0 %v1040
    %1080 = vmatpush.msra.mxu0 %v1039
    %1081 = vmatmul.f32.gmra.mxu0 %v1057
    %v1082 = vpop.f32.mrf.mxu0
    %v1083 = vadd.f32 0.0, %v1082
    %1084 = vmatmul.f32.gmra.mxu0 %v1059
    %v1085 = vpop.f32.mrf.mxu0
    %v1086 = vadd.f32 0.0, %v1085
    %1087 = vmatmul.f32.gmra.mxu0 %v1061
    %v1088 = vpop.f32.mrf.mxu0
    %v1089 = vadd.f32 0.0, %v1088
    %1090 = vdwg.mxu0
    %v1091 = vadd.f32 %v1035, %v1083
    %v1092 = vadd.f32 %v1036, %v1086
    %v1093 = vadd.f32 %v1037, %v1089
    %s1094 = scalar_lea.vmem [#allocation7], 896
    %v1095 = vld [vmem:[%s1094] sm:$0xff]
    %v1096 = vld [vmem:[%s1094 + $0x8] sm:$0xff]
    %v1097 = vld [vmem:[%s1094 + $0x10] sm:$0xff]
    %v1098 = vld [vmem:[%s1094 + $0x18] sm:$0xff]
    %v1099 = vld [vmem:[%s1094 + $0x20] sm:$0xff]
    %v1100 = vld [vmem:[%s1094 + $0x28] sm:$0xff]
    %v1101 = vld [vmem:[%s1094 + $0x30] sm:$0xff]
    %v1102 = vld [vmem:[%s1094 + $0x38] sm:$0xff]
    %v1103 = vld [vmem:[%s1094 + $0x40] sm:$0xff]
    %v1104 = vld [vmem:[%s1094 + $0x48] sm:$0xff]
    %v1105 = vld [vmem:[%s1094 + $0x50] sm:$0xff]
    %v1106 = vld [vmem:[%s1094 + $0x58] sm:$0xff]
    %v1107 = vld [vmem:[%s1094 + $0x60] sm:$0xff]
    %v1108 = vld [vmem:[%s1094 + $0x68] sm:$0xff]
    %v1109 = vld [vmem:[%s1094 + $0x70] sm:$0xff]
    %v1110 = vld [vmem:[%s1094 + $0x78] sm:$0xff]
    %v1111 = vrot.slane %v711, 7
    %v1112 = vrot.slane %v712, 7
    %v1113 = vsel %vm612, %v1111, %v1112
    %v1114 = vrot.slane %v713, 7
    %v1115 = vsel %vm612, %v1112, %v1114
    %v1116 = vrot.slane %v714, 7
    %v1117 = vsel %vm612, %v1114, %v1116
    %1121 = vmatpush.msra.mxu0 %v1110
    %1122 = vmatpush.msra.mxu0 %v1109
    %1123 = vmatpush.msra.mxu0 %v1108
    %1124 = vmatpush.msra.mxu0 %v1107
    %1125 = vmatpush.msra.mxu0 %v1106
    %1126 = vmatpush.msra.mxu0 %v1105
    %1127 = vmatpush.msra.mxu0 %v1104
    %1128 = vmatpush.msra.mxu0 %v1103
    %1129 = vmatpush.msra.mxu0 %v1102
    %1130 = vmatpush.msra.mxu0 %v1101
    %1131 = vmatpush.msra.mxu0 %v1100
    %1132 = vmatpush.msra.mxu0 %v1099
    %1133 = vmatpush.msra.mxu0 %v1098
    %1134 = vmatpush.msra.mxu0 %v1097
    %1135 = vmatpush.msra.mxu0 %v1096
    %1136 = vmatpush.msra.mxu0 %v1095
    %1137 = vmatmul.f32.gmra.mxu0 %v1113
    %v1138 = vpop.f32.mrf.mxu0
    %v1139 = vadd.f32 0.0, %v1138
    %1140 = vmatmul.f32.gmra.mxu0 %v1115
    %v1141 = vpop.f32.mrf.mxu0
    %v1142 = vadd.f32 0.0, %v1141
    %1143 = vmatmul.f32.gmra.mxu0 %v1117
    %v1144 = vpop.f32.mrf.mxu0
    %v1145 = vadd.f32 0.0, %v1144
    %1146 = vdwg.mxu0
    %v1147 = vadd.f32 %v1091, %v1139
    %v1148 = vadd.f32 %v1092, %v1142
    %v1149 = vadd.f32 %v1093, %v1145
    %s1150 = scalar_lea.vmem [#allocation7], 1024
    %v1151 = vld [vmem:[%s1150] sm:$0xff]
    %v1152 = vld [vmem:[%s1150 + $0x8] sm:$0xff]
    %v1153 = vld [vmem:[%s1150 + $0x10] sm:$0xff]
    %v1154 = vld [vmem:[%s1150 + $0x18] sm:$0xff]
    %v1155 = vld [vmem:[%s1150 + $0x20] sm:$0xff]
    %v1156 = vld [vmem:[%s1150 + $0x28] sm:$0xff]
    %v1157 = vld [vmem:[%s1150 + $0x30] sm:$0xff]
    %v1158 = vld [vmem:[%s1150 + $0x38] sm:$0xff]
    %v1159 = vld [vmem:[%s1150 + $0x40] sm:$0xff]
    %v1160 = vld [vmem:[%s1150 + $0x48] sm:$0xff]
    %v1161 = vld [vmem:[%s1150 + $0x50] sm:$0xff]
    %v1162 = vld [vmem:[%s1150 + $0x58] sm:$0xff]
    %v1163 = vld [vmem:[%s1150 + $0x60] sm:$0xff]
    %v1164 = vld [vmem:[%s1150 + $0x68] sm:$0xff]
    %v1165 = vld [vmem:[%s1150 + $0x70] sm:$0xff]
    %v1166 = vld [vmem:[%s1150 + $0x78] sm:$0xff]
    %1167 = vmatpush.msra.mxu0 %v1166
    %1168 = vmatpush.msra.mxu0 %v1165
    %1169 = vmatpush.msra.mxu0 %v1164
    %1170 = vmatpush.msra.mxu0 %v1163
    %1171 = vmatpush.msra.mxu0 %v1162
    %1172 = vmatpush.msra.mxu0 %v1161
    %1173 = vmatpush.msra.mxu0 %v1160
    %1174 = vmatpush.msra.mxu0 %v1159
    %1175 = vmatpush.msra.mxu0 %v1158
    %1176 = vmatpush.msra.mxu0 %v1157
    %1177 = vmatpush.msra.mxu0 %v1156
    %1178 = vmatpush.msra.mxu0 %v1155
    %1179 = vmatpush.msra.mxu0 %v1154
    %1180 = vmatpush.msra.mxu0 %v1153
    %1181 = vmatpush.msra.mxu0 %v1152
    %1182 = vmatpush.msra.mxu0 %v1151
    %1183 = vmatmul.f32.gmra.mxu0 %v712
    %v1184 = vpop.f32.mrf.mxu0
    %v1185 = vadd.f32 0.0, %v1184
    %1186 = vmatmul.f32.gmra.mxu0 %v713
    %v1187 = vpop.f32.mrf.mxu0
    %v1188 = vadd.f32 0.0, %v1187
    %1189 = vmatmul.f32.gmra.mxu0 %v714
    %v1190 = vpop.f32.mrf.mxu0
    %v1191 = vadd.f32 0.0, %v1190
    %1192 = vdwg.mxu0
    %v1193 = vadd.f32 %v1147, %v1185
    %v1194 = vadd.f32 %v1148, %v1188
    %v1195 = vadd.f32 %v1149, %v1191
    %v1196 = vld [vmem:[#allocation8] sm:$0x1]
    %v1198 = vperm.slane %v1196, 0
    %v1200 = vadd.f32 %v1193, %v1198
    %v1201 = vadd.f32 %v1194, %v1198
    %v1202 = vadd.f32 %v1195, %v1198
    %v1203 = vmax.f32 %v1200, 0.0
    %v1204 = vmax.f32 %v1201, 0.0
    %v1205 = vmax.f32 %v1202, 0.0
    %v1206 = vld [vmem:[#allocation10] sm:$0xff]
    %v1207 = vld [vmem:[#allocation10 + $0x8] sm:$0xff]
    %v1208 = vld [vmem:[#allocation10 + $0x10] sm:$0xff]
    %v1209 = vld [vmem:[#allocation10 + $0x18] sm:$0xff]
    %v1210 = vld [vmem:[#allocation10 + $0x20] sm:$0xff]
    %v1211 = vld [vmem:[#allocation10 + $0x28] sm:$0xff]
    %v1212 = vld [vmem:[#allocation10 + $0x30] sm:$0xff]
    %v1213 = vld [vmem:[#allocation10 + $0x38] sm:$0xff]
    %v1214 = vld [vmem:[#allocation10 + $0x40] sm:$0xff]
    %v1215 = vld [vmem:[#allocation10 + $0x48] sm:$0xff]
    %v1216 = vld [vmem:[#allocation10 + $0x50] sm:$0xff]
    %v1217 = vld [vmem:[#allocation10 + $0x58] sm:$0xff]
    %v1218 = vld [vmem:[#allocation10 + $0x60] sm:$0xff]
    %v1219 = vld [vmem:[#allocation10 + $0x68] sm:$0xff]
    %v1220 = vld [vmem:[#allocation10 + $0x70] sm:$0xff]
    %v1221 = vld [vmem:[#allocation10 + $0x78] sm:$0xff]
    %s1222 = scalar_lea.vmem [#allocation10], 128
    %v1223 = vld [vmem:[%s1222] sm:$0xff]
    %v1224 = vld [vmem:[%s1222 + $0x8] sm:$0xff]
    %v1225 = vld [vmem:[%s1222 + $0x10] sm:$0xff]
    %v1226 = vld [vmem:[%s1222 + $0x18] sm:$0xff]
    %v1227 = vld [vmem:[%s1222 + $0x20] sm:$0xff]
    %v1228 = vld [vmem:[%s1222 + $0x28] sm:$0xff]
    %v1229 = vld [vmem:[%s1222 + $0x30] sm:$0xff]
    %v1230 = vld [vmem:[%s1222 + $0x38] sm:$0xff]
    %v1231 = vld [vmem:[%s1222 + $0x40] sm:$0xff]
    %v1232 = vld [vmem:[%s1222 + $0x48] sm:$0xff]
    %v1233 = vld [vmem:[%s1222 + $0x50] sm:$0xff]
    %v1234 = vld [vmem:[%s1222 + $0x58] sm:$0xff]
    %v1235 = vld [vmem:[%s1222 + $0x60] sm:$0xff]
    %v1236 = vld [vmem:[%s1222 + $0x68] sm:$0xff]
    %v1237 = vld [vmem:[%s1222 + $0x70] sm:$0xff]
    %v1238 = vld [vmem:[%s1222 + $0x78] sm:$0xff]
    %v1241 = vrot.slane %v1203, 1
    %v1242 = vrot.slane %v1204, 1
    %v1243 = vsel %vm242, %v1241, %v1242
    %1246 = vmatpush.msra.mxu0 %v1238
    %1247 = vmatpush.msra.mxu0 %v1237
    %1248 = vmatpush.msra.mxu0 %v1236
    %1249 = vmatpush.msra.mxu0 %v1235
    %1250 = vmatpush.msra.mxu0 %v1234
    %1251 = vmatpush.msra.mxu0 %v1233
    %1252 = vmatpush.msra.mxu0 %v1232
    %1253 = vmatpush.msra.mxu0 %v1231
    %1254 = vmatpush.msra.mxu0 %v1230
    %1255 = vmatpush.msra.mxu0 %v1229
    %1256 = vmatpush.msra.mxu0 %v1228
    %1257 = vmatpush.msra.mxu0 %v1227
    %1258 = vmatpush.msra.mxu0 %v1226
    %1259 = vmatpush.msra.mxu0 %v1225
    %1260 = vmatpush.msra.mxu0 %v1224
    %1261 = vmatpush.msra.mxu0 %v1223
    %1262 = vmatmul.f32.gmra.mxu0 %v1243
    %v1263 = vpop.f32.mrf.mxu0
    %v1264 = vadd.f32 0.0, %v1263
    %1265 = vmatmul.f32.gmra.mxu0 %v1242
    %v1266 = vpop.f32.mrf.mxu0
    %v1267 = vadd.f32 0.0, %v1266
    %1268 = vdwg.mxu0
    %1269 = vmatpush.msra.mxu0 %v1221
    %1270 = vmatpush.msra.mxu0 %v1220
    %1271 = vmatpush.msra.mxu0 %v1219
    %1272 = vmatpush.msra.mxu0 %v1218
    %1273 = vmatpush.msra.mxu0 %v1217
    %1274 = vmatpush.msra.mxu0 %v1216
    %1275 = vmatpush.msra.mxu0 %v1215
    %1276 = vmatpush.msra.mxu0 %v1214
    %1277 = vmatpush.msra.mxu0 %v1213
    %1278 = vmatpush.msra.mxu0 %v1212
    %1279 = vmatpush.msra.mxu0 %v1211
    %1280 = vmatpush.msra.mxu0 %v1210
    %1281 = vmatpush.msra.mxu0 %v1209
    %1282 = vmatpush.msra.mxu0 %v1208
    %1283 = vmatpush.msra.mxu0 %v1207
    %1284 = vmatpush.msra.mxu0 %v1206
    %1285 = vmatmul.f32.gmra.mxu0 %v1203
    %v1286 = vpop.f32.mrf.mxu0
    %v1287 = vadd.f32 %v1264, %v1286
    %1288 = vmatmul.f32.gmra.mxu0 %v1204
    %v1289 = vpop.f32.mrf.mxu0
    %v1290 = vadd.f32 %v1267, %v1289
    %1291 = vdwg.mxu0
    %s1292 = scalar_lea.vmem [#allocation10], 256
    %v1293 = vld [vmem:[%s1292] sm:$0xff]
    %v1294 = vld [vmem:[%s1292 + $0x8] sm:$0xff]
    %v1295 = vld [vmem:[%s1292 + $0x10] sm:$0xff]
    %v1296 = vld [vmem:[%s1292 + $0x18] sm:$0xff]
    %v1297 = vld [vmem:[%s1292 + $0x20] sm:$0xff]
    %v1298 = vld [vmem:[%s1292 + $0x28] sm:$0xff]
    %v1299 = vld [vmem:[%s1292 + $0x30] sm:$0xff]
    %v1300 = vld [vmem:[%s1292 + $0x38] sm:$0xff]
    %v1301 = vld [vmem:[%s1292 + $0x40] sm:$0xff]
    %v1302 = vld [vmem:[%s1292 + $0x48] sm:$0xff]
    %v1303 = vld [vmem:[%s1292 + $0x50] sm:$0xff]
    %v1304 = vld [vmem:[%s1292 + $0x58] sm:$0xff]
    %v1305 = vld [vmem:[%s1292 + $0x60] sm:$0xff]
    %v1306 = vld [vmem:[%s1292 + $0x68] sm:$0xff]
    %v1307 = vld [vmem:[%s1292 + $0x70] sm:$0xff]
    %v1308 = vld [vmem:[%s1292 + $0x78] sm:$0xff]
    %v1310 = vrot.slane %v1203, 2
    %v1311 = vrot.slane %v1204, 2
    %v1312 = vsel %vm332, %v1310, %v1311
    %v1313 = vrot.slane %v1205, 2
    %v1314 = vsel %vm332, %v1311, %v1313
    %1317 = vmatpush.msra.mxu0 %v1308
    %1318 = vmatpush.msra.mxu0 %v1307
    %1319 = vmatpush.msra.mxu0 %v1306
    %1320 = vmatpush.msra.mxu0 %v1305
    %1321 = vmatpush.msra.mxu0 %v1304
    %1322 = vmatpush.msra.mxu0 %v1303
    %1323 = vmatpush.msra.mxu0 %v1302
    %1324 = vmatpush.msra.mxu0 %v1301
    %1325 = vmatpush.msra.mxu0 %v1300
    %1326 = vmatpush.msra.mxu0 %v1299
    %1327 = vmatpush.msra.mxu0 %v1298
    %1328 = vmatpush.msra.mxu0 %v1297
    %1329 = vmatpush.msra.mxu0 %v1296
    %1330 = vmatpush.msra.mxu0 %v1295
    %1331 = vmatpush.msra.mxu0 %v1294
    %1332 = vmatpush.msra.mxu0 %v1293
    %1333 = vmatmul.f32.gmra.mxu0 %v1312
    %v1334 = vpop.f32.mrf.mxu0
    %v1335 = vadd.f32 0.0, %v1334
    %1336 = vmatmul.f32.gmra.mxu0 %v1314
    %v1337 = vpop.f32.mrf.mxu0
    %v1338 = vadd.f32 0.0, %v1337
    %1339 = vdwg.mxu0
    %v1340 = vadd.f32 %v1287, %v1335
    %v1341 = vadd.f32 %v1290, %v1338
    %s1342 = scalar_lea.vmem [#allocation10], 384
    %v1343 = vld [vmem:[%s1342] sm:$0xff]
    %v1344 = vld [vmem:[%s1342 + $0x8] sm:$0xff]
    %v1345 = vld [vmem:[%s1342 + $0x10] sm:$0xff]
    %v1346 = vld [vmem:[%s1342 + $0x18] sm:$0xff]
    %v1347 = vld [vmem:[%s1342 + $0x20] sm:$0xff]
    %v1348 = vld [vmem:[%s1342 + $0x28] sm:$0xff]
    %v1349 = vld [vmem:[%s1342 + $0x30] sm:$0xff]
    %v1350 = vld [vmem:[%s1342 + $0x38] sm:$0xff]
    %v1351 = vld [vmem:[%s1342 + $0x40] sm:$0xff]
    %v1352 = vld [vmem:[%s1342 + $0x48] sm:$0xff]
    %v1353 = vld [vmem:[%s1342 + $0x50] sm:$0xff]
    %v1354 = vld [vmem:[%s1342 + $0x58] sm:$0xff]
    %v1355 = vld [vmem:[%s1342 + $0x60] sm:$0xff]
    %v1356 = vld [vmem:[%s1342 + $0x68] sm:$0xff]
    %v1357 = vld [vmem:[%s1342 + $0x70] sm:$0xff]
    %v1358 = vld [vmem:[%s1342 + $0x78] sm:$0xff]
    %v1359 = vrot.slane %v1203, 3
    %v1360 = vrot.slane %v1204, 3
    %v1361 = vsel %vm388, %v1359, %v1360
    %v1362 = vrot.slane %v1205, 3
    %v1363 = vsel %vm388, %v1360, %v1362
    %1366 = vmatpush.msra.mxu0 %v1358
    %1367 = vmatpush.msra.mxu0 %v1357
    %1368 = vmatpush.msra.mxu0 %v1356
    %1369 = vmatpush.msra.mxu0 %v1355
    %1370 = vmatpush.msra.mxu0 %v1354
    %1371 = vmatpush.msra.mxu0 %v1353
    %1372 = vmatpush.msra.mxu0 %v1352
    %1373 = vmatpush.msra.mxu0 %v1351
    %1374 = vmatpush.msra.mxu0 %v1350
    %1375 = vmatpush.msra.mxu0 %v1349
    %1376 = vmatpush.msra.mxu0 %v1348
    %1377 = vmatpush.msra.mxu0 %v1347
    %1378 = vmatpush.msra.mxu0 %v1346
    %1379 = vmatpush.msra.mxu0 %v1345
    %1380 = vmatpush.msra.mxu0 %v1344
    %1381 = vmatpush.msra.mxu0 %v1343
    %1382 = vmatmul.f32.gmra.mxu0 %v1361
    %v1383 = vpop.f32.mrf.mxu0
    %v1384 = vadd.f32 0.0, %v1383
    %1385 = vmatmul.f32.gmra.mxu0 %v1363
    %v1386 = vpop.f32.mrf.mxu0
    %v1387 = vadd.f32 0.0, %v1386
    %1388 = vdwg.mxu0
    %v1389 = vadd.f32 %v1340, %v1384
    %v1390 = vadd.f32 %v1341, %v1387
    %s1391 = scalar_lea.vmem [#allocation10], 512
    %v1392 = vld [vmem:[%s1391] sm:$0xff]
    %v1393 = vld [vmem:[%s1391 + $0x8] sm:$0xff]
    %v1394 = vld [vmem:[%s1391 + $0x10] sm:$0xff]
    %v1395 = vld [vmem:[%s1391 + $0x18] sm:$0xff]
    %v1396 = vld [vmem:[%s1391 + $0x20] sm:$0xff]
    %v1397 = vld [vmem:[%s1391 + $0x28] sm:$0xff]
    %v1398 = vld [vmem:[%s1391 + $0x30] sm:$0xff]
    %v1399 = vld [vmem:[%s1391 + $0x38] sm:$0xff]
    %v1400 = vld [vmem:[%s1391 + $0x40] sm:$0xff]
    %v1401 = vld [vmem:[%s1391 + $0x48] sm:$0xff]
    %v1402 = vld [vmem:[%s1391 + $0x50] sm:$0xff]
    %v1403 = vld [vmem:[%s1391 + $0x58] sm:$0xff]
    %v1404 = vld [vmem:[%s1391 + $0x60] sm:$0xff]
    %v1405 = vld [vmem:[%s1391 + $0x68] sm:$0xff]
    %v1406 = vld [vmem:[%s1391 + $0x70] sm:$0xff]
    %v1407 = vld [vmem:[%s1391 + $0x78] sm:$0xff]
    %v1408 = vrot.slane %v1203, 4
    %v1409 = vrot.slane %v1204, 4
    %v1410 = vsel %vm444, %v1408, %v1409
    %v1411 = vrot.slane %v1205, 4
    %v1412 = vsel %vm444, %v1409, %v1411
    %1415 = vmatpush.msra.mxu0 %v1407
    %1416 = vmatpush.msra.mxu0 %v1406
    %1417 = vmatpush.msra.mxu0 %v1405
    %1418 = vmatpush.msra.mxu0 %v1404
    %1419 = vmatpush.msra.mxu0 %v1403
    %1420 = vmatpush.msra.mxu0 %v1402
    %1421 = vmatpush.msra.mxu0 %v1401
    %1422 = vmatpush.msra.mxu0 %v1400
    %1423 = vmatpush.msra.mxu0 %v1399
    %1424 = vmatpush.msra.mxu0 %v1398
    %1425 = vmatpush.msra.mxu0 %v1397
    %1426 = vmatpush.msra.mxu0 %v1396
    %1427 = vmatpush.msra.mxu0 %v1395
    %1428 = vmatpush.msra.mxu0 %v1394
    %1429 = vmatpush.msra.mxu0 %v1393
    %1430 = vmatpush.msra.mxu0 %v1392
    %1431 = vmatmul.f32.gmra.mxu0 %v1410
    %v1432 = vpop.f32.mrf.mxu0
    %v1433 = vadd.f32 0.0, %v1432
    %1434 = vmatmul.f32.gmra.mxu0 %v1412
    %v1435 = vpop.f32.mrf.mxu0
    %v1436 = vadd.f32 0.0, %v1435
    %1437 = vdwg.mxu0
    %v1438 = vadd.f32 %v1389, %v1433
    %v1439 = vadd.f32 %v1390, %v1436
    %s1440 = scalar_lea.vmem [#allocation10], 640
    %v1441 = vld [vmem:[%s1440] sm:$0xff]
    %v1442 = vld [vmem:[%s1440 + $0x8] sm:$0xff]
    %v1443 = vld [vmem:[%s1440 + $0x10] sm:$0xff]
    %v1444 = vld [vmem:[%s1440 + $0x18] sm:$0xff]
    %v1445 = vld [vmem:[%s1440 + $0x20] sm:$0xff]
    %v1446 = vld [vmem:[%s1440 + $0x28] sm:$0xff]
    %v1447 = vld [vmem:[%s1440 + $0x30] sm:$0xff]
    %v1448 = vld [vmem:[%s1440 + $0x38] sm:$0xff]
    %v1449 = vld [vmem:[%s1440 + $0x40] sm:$0xff]
    %v1450 = vld [vmem:[%s1440 + $0x48] sm:$0xff]
    %v1451 = vld [vmem:[%s1440 + $0x50] sm:$0xff]
    %v1452 = vld [vmem:[%s1440 + $0x58] sm:$0xff]
    %v1453 = vld [vmem:[%s1440 + $0x60] sm:$0xff]
    %v1454 = vld [vmem:[%s1440 + $0x68] sm:$0xff]
    %v1455 = vld [vmem:[%s1440 + $0x70] sm:$0xff]
    %v1456 = vld [vmem:[%s1440 + $0x78] sm:$0xff]
    %v1457 = vrot.slane %v1203, 5
    %v1458 = vrot.slane %v1204, 5
    %v1459 = vsel %vm500, %v1457, %v1458
    %v1460 = vrot.slane %v1205, 5
    %v1461 = vsel %vm500, %v1458, %v1460
    %1464 = vmatpush.msra.mxu0 %v1456
    %1465 = vmatpush.msra.mxu0 %v1455
    %1466 = vmatpush.msra.mxu0 %v1454
    %1467 = vmatpush.msra.mxu0 %v1453
    %1468 = vmatpush.msra.mxu0 %v1452
    %1469 = vmatpush.msra.mxu0 %v1451
    %1470 = vmatpush.msra.mxu0 %v1450
    %1471 = vmatpush.msra.mxu0 %v1449
    %1472 = vmatpush.msra.mxu0 %v1448
    %1473 = vmatpush.msra.mxu0 %v1447
    %1474 = vmatpush.msra.mxu0 %v1446
    %1475 = vmatpush.msra.mxu0 %v1445
    %1476 = vmatpush.msra.mxu0 %v1444
    %1477 = vmatpush.msra.mxu0 %v1443
    %1478 = vmatpush.msra.mxu0 %v1442
    %1479 = vmatpush.msra.mxu0 %v1441
    %1480 = vmatmul.f32.gmra.mxu0 %v1459
    %v1481 = vpop.f32.mrf.mxu0
    %v1482 = vadd.f32 0.0, %v1481
    %1483 = vmatmul.f32.gmra.mxu0 %v1461
    %v1484 = vpop.f32.mrf.mxu0
    %v1485 = vadd.f32 0.0, %v1484
    %1486 = vdwg.mxu0
    %v1487 = vadd.f32 %v1438, %v1482
    %v1488 = vadd.f32 %v1439, %v1485
    %s1489 = scalar_lea.vmem [#allocation10], 768
    %v1490 = vld [vmem:[%s1489] sm:$0xff]
    %v1491 = vld [vmem:[%s1489 + $0x8] sm:$0xff]
    %v1492 = vld [vmem:[%s1489 + $0x10] sm:$0xff]
    %v1493 = vld [vmem:[%s1489 + $0x18] sm:$0xff]
    %v1494 = vld [vmem:[%s1489 + $0x20] sm:$0xff]
    %v1495 = vld [vmem:[%s1489 + $0x28] sm:$0xff]
    %v1496 = vld [vmem:[%s1489 + $0x30] sm:$0xff]
    %v1497 = vld [vmem:[%s1489 + $0x38] sm:$0xff]
    %v1498 = vld [vmem:[%s1489 + $0x40] sm:$0xff]
    %v1499 = vld [vmem:[%s1489 + $0x48] sm:$0xff]
    %v1500 = vld [vmem:[%s1489 + $0x50] sm:$0xff]
    %v1501 = vld [vmem:[%s1489 + $0x58] sm:$0xff]
    %v1502 = vld [vmem:[%s1489 + $0x60] sm:$0xff]
    %v1503 = vld [vmem:[%s1489 + $0x68] sm:$0xff]
    %v1504 = vld [vmem:[%s1489 + $0x70] sm:$0xff]
    %v1505 = vld [vmem:[%s1489 + $0x78] sm:$0xff]
    %v1506 = vrot.slane %v1203, 6
    %v1507 = vrot.slane %v1204, 6
    %v1508 = vsel %vm556, %v1506, %v1507
    %v1509 = vrot.slane %v1205, 6
    %v1510 = vsel %vm556, %v1507, %v1509
    %1513 = vmatpush.msra.mxu0 %v1505
    %1514 = vmatpush.msra.mxu0 %v1504
    %1515 = vmatpush.msra.mxu0 %v1503
    %1516 = vmatpush.msra.mxu0 %v1502
    %1517 = vmatpush.msra.mxu0 %v1501
    %1518 = vmatpush.msra.mxu0 %v1500
    %1519 = vmatpush.msra.mxu0 %v1499
    %1520 = vmatpush.msra.mxu0 %v1498
    %1521 = vmatpush.msra.mxu0 %v1497
    %1522 = vmatpush.msra.mxu0 %v1496
    %1523 = vmatpush.msra.mxu0 %v1495
    %1524 = vmatpush.msra.mxu0 %v1494
    %1525 = vmatpush.msra.mxu0 %v1493
    %1526 = vmatpush.msra.mxu0 %v1492
    %1527 = vmatpush.msra.mxu0 %v1491
    %1528 = vmatpush.msra.mxu0 %v1490
    %1529 = vmatmul.f32.gmra.mxu0 %v1508
    %v1530 = vpop.f32.mrf.mxu0
    %v1531 = vadd.f32 0.0, %v1530
    %1532 = vmatmul.f32.gmra.mxu0 %v1510
    %v1533 = vpop.f32.mrf.mxu0
    %v1534 = vadd.f32 0.0, %v1533
    %1535 = vdwg.mxu0
    %v1536 = vadd.f32 %v1487, %v1531
    %v1537 = vadd.f32 %v1488, %v1534
    %s1538 = scalar_lea.vmem [#allocation10], 896
    %v1539 = vld [vmem:[%s1538] sm:$0xff]
    %v1540 = vld [vmem:[%s1538 + $0x8] sm:$0xff]
    %v1541 = vld [vmem:[%s1538 + $0x10] sm:$0xff]
    %v1542 = vld [vmem:[%s1538 + $0x18] sm:$0xff]
    %v1543 = vld [vmem:[%s1538 + $0x20] sm:$0xff]
    %v1544 = vld [vmem:[%s1538 + $0x28] sm:$0xff]
    %v1545 = vld [vmem:[%s1538 + $0x30] sm:$0xff]
    %v1546 = vld [vmem:[%s1538 + $0x38] sm:$0xff]
    %v1547 = vld [vmem:[%s1538 + $0x40] sm:$0xff]
    %v1548 = vld [vmem:[%s1538 + $0x48] sm:$0xff]
    %v1549 = vld [vmem:[%s1538 + $0x50] sm:$0xff]
    %v1550 = vld [vmem:[%s1538 + $0x58] sm:$0xff]
    %v1551 = vld [vmem:[%s1538 + $0x60] sm:$0xff]
    %v1552 = vld [vmem:[%s1538 + $0x68] sm:$0xff]
    %v1553 = vld [vmem:[%s1538 + $0x70] sm:$0xff]
    %v1554 = vld [vmem:[%s1538 + $0x78] sm:$0xff]
    %v1555 = vrot.slane %v1203, 7
    %v1556 = vrot.slane %v1204, 7
    %v1557 = vsel %vm612, %v1555, %v1556
    %v1558 = vrot.slane %v1205, 7
    %v1559 = vsel %vm612, %v1556, %v1558
    %1562 = vmatpush.msra.mxu0 %v1554
    %1563 = vmatpush.msra.mxu0 %v1553
    %1564 = vmatpush.msra.mxu0 %v1552
    %1565 = vmatpush.msra.mxu0 %v1551
    %1566 = vmatpush.msra.mxu0 %v1550
    %1567 = vmatpush.msra.mxu0 %v1549
    %1568 = vmatpush.msra.mxu0 %v1548
    %1569 = vmatpush.msra.mxu0 %v1547
    %1570 = vmatpush.msra.mxu0 %v1546
    %1571 = vmatpush.msra.mxu0 %v1545
    %1572 = vmatpush.msra.mxu0 %v1544
    %1573 = vmatpush.msra.mxu0 %v1543
    %1574 = vmatpush.msra.mxu0 %v1542
    %1575 = vmatpush.msra.mxu0 %v1541
    %1576 = vmatpush.msra.mxu0 %v1540
    %1577 = vmatpush.msra.mxu0 %v1539
    %1578 = vmatmul.f32.gmra.mxu0 %v1557
    %v1579 = vpop.f32.mrf.mxu0
    %v1580 = vadd.f32 0.0, %v1579
    %1581 = vmatmul.f32.gmra.mxu0 %v1559
    %v1582 = vpop.f32.mrf.mxu0
    %v1583 = vadd.f32 0.0, %v1582
    %1584 = vdwg.mxu0
    %v1585 = vadd.f32 %v1536, %v1580
    %v1586 = vadd.f32 %v1537, %v1583
    %s1587 = scalar_lea.vmem [#allocation10], 1024
    %v1588 = vld [vmem:[%s1587] sm:$0xff]
    %v1589 = vld [vmem:[%s1587 + $0x8] sm:$0xff]
    %v1590 = vld [vmem:[%s1587 + $0x10] sm:$0xff]
    %v1591 = vld [vmem:[%s1587 + $0x18] sm:$0xff]
    %v1592 = vld [vmem:[%s1587 + $0x20] sm:$0xff]
    %v1593 = vld [vmem:[%s1587 + $0x28] sm:$0xff]
    %v1594 = vld [vmem:[%s1587 + $0x30] sm:$0xff]
    %v1595 = vld [vmem:[%s1587 + $0x38] sm:$0xff]
    %v1596 = vld [vmem:[%s1587 + $0x40] sm:$0xff]
    %v1597 = vld [vmem:[%s1587 + $0x48] sm:$0xff]
    %v1598 = vld [vmem:[%s1587 + $0x50] sm:$0xff]
    %v1599 = vld [vmem:[%s1587 + $0x58] sm:$0xff]
    %v1600 = vld [vmem:[%s1587 + $0x60] sm:$0xff]
    %v1601 = vld [vmem:[%s1587 + $0x68] sm:$0xff]
    %v1602 = vld [vmem:[%s1587 + $0x70] sm:$0xff]
    %v1603 = vld [vmem:[%s1587 + $0x78] sm:$0xff]
    %1604 = vmatpush.msra.mxu0 %v1603
    %1605 = vmatpush.msra.mxu0 %v1602
    %1606 = vmatpush.msra.mxu0 %v1601
    %1607 = vmatpush.msra.mxu0 %v1600
    %1608 = vmatpush.msra.mxu0 %v1599
    %1609 = vmatpush.msra.mxu0 %v1598
    %1610 = vmatpush.msra.mxu0 %v1597
    %1611 = vmatpush.msra.mxu0 %v1596
    %1612 = vmatpush.msra.mxu0 %v1595
    %1613 = vmatpush.msra.mxu0 %v1594
    %1614 = vmatpush.msra.mxu0 %v1593
    %1615 = vmatpush.msra.mxu0 %v1592
    %1616 = vmatpush.msra.mxu0 %v1591
    %1617 = vmatpush.msra.mxu0 %v1590
    %1618 = vmatpush.msra.mxu0 %v1589
    %1619 = vmatpush.msra.mxu0 %v1588
    %1620 = vmatmul.f32.gmra.mxu0 %v1204
    %v1621 = vpop.f32.mrf.mxu0
    %v1622 = vadd.f32 0.0, %v1621
    %1623 = vmatmul.f32.gmra.mxu0 %v1205
    %v1624 = vpop.f32.mrf.mxu0
    %v1625 = vadd.f32 0.0, %v1624
    %1626 = vdwg.mxu0
    %v1627 = vadd.f32 %v1585, %v1622
    %v1628 = vadd.f32 %v1586, %v1625
    %s1629 = scalar_lea.vmem [#allocation10], 1152
    %v1630 = vld [vmem:[%s1629] sm:$0xff]
    %v1631 = vld [vmem:[%s1629 + $0x8] sm:$0xff]
    %v1632 = vld [vmem:[%s1629 + $0x10] sm:$0xff]
    %v1633 = vld [vmem:[%s1629 + $0x18] sm:$0xff]
    %v1634 = vld [vmem:[%s1629 + $0x20] sm:$0xff]
    %v1635 = vld [vmem:[%s1629 + $0x28] sm:$0xff]
    %v1636 = vld [vmem:[%s1629 + $0x30] sm:$0xff]
    %v1637 = vld [vmem:[%s1629 + $0x38] sm:$0xff]
    %v1638 = vld [vmem:[%s1629 + $0x40] sm:$0xff]
    %v1639 = vld [vmem:[%s1629 + $0x48] sm:$0xff]
    %v1640 = vld [vmem:[%s1629 + $0x50] sm:$0xff]
    %v1641 = vld [vmem:[%s1629 + $0x58] sm:$0xff]
    %v1642 = vld [vmem:[%s1629 + $0x60] sm:$0xff]
    %v1643 = vld [vmem:[%s1629 + $0x68] sm:$0xff]
    %v1644 = vld [vmem:[%s1629 + $0x70] sm:$0xff]
    %v1645 = vld [vmem:[%s1629 + $0x78] sm:$0xff]
    %v1646 = vrot.slane %v1205, 1
    %v1647 = vsel %vm242, %v1242, %v1646
    %1650 = vmatpush.msra.mxu0 %v1645
    %1651 = vmatpush.msra.mxu0 %v1644
    %1652 = vmatpush.msra.mxu0 %v1643
    %1653 = vmatpush.msra.mxu0 %v1642
    %1654 = vmatpush.msra.mxu0 %v1641
    %1655 = vmatpush.msra.mxu0 %v1640
    %1656 = vmatpush.msra.mxu0 %v1639
    %1657 = vmatpush.msra.mxu0 %v1638
    %1658 = vmatpush.msra.mxu0 %v1637
    %1659 = vmatpush.msra.mxu0 %v1636
    %1660 = vmatpush.msra.mxu0 %v1635
    %1661 = vmatpush.msra.mxu0 %v1634
    %1662 = vmatpush.msra.mxu0 %v1633
    %1663 = vmatpush.msra.mxu0 %v1632
    %1664 = vmatpush.msra.mxu0 %v1631
    %1665 = vmatpush.msra.mxu0 %v1630
    %1666 = vmatmul.f32.gmra.mxu0 %v1647
    %v1667 = vpop.f32.mrf.mxu0
    %v1668 = vadd.f32 0.0, %v1667
    %1669 = vmatmul.f32.gmra.mxu0 %v1646
    %v1670 = vpop.f32.mrf.mxu0
    %v1671 = vadd.f32 0.0, %v1670
    %1672 = vdwg.mxu0
    %v1673 = vadd.f32 %v1627, %v1668
    %v1674 = vadd.f32 %v1628, %v1671
    %v1675 = vld [vmem:[#allocation11] sm:$0x1]
    %v1677 = vperm.slane %v1675, 0
    %v1679 = vadd.f32 %v1673, %v1677
    %v1680 = vadd.f32 %v1674, %v1677
    %v1681 = vmax.f32 %v1679, 0.0
    %v1682 = vmax.f32 %v1680, 0.0
    %v1683 = vld [vmem:[#allocation13] sm:$0xff]
    %v1684 = vld [vmem:[#allocation13 + $0x8] sm:$0xff]
    %v1685 = vld [vmem:[#allocation13 + $0x10] sm:$0xff]
    %v1686 = vld [vmem:[#allocation13 + $0x18] sm:$0xff]
    %v1687 = vld [vmem:[#allocation13 + $0x20] sm:$0xff]
    %v1688 = vld [vmem:[#allocation13 + $0x28] sm:$0xff]
    %v1689 = vld [vmem:[#allocation13 + $0x30] sm:$0xff]
    %v1690 = vld [vmem:[#allocation13 + $0x38] sm:$0xff]
    %v1691 = vld [vmem:[#allocation13 + $0x40] sm:$0xff]
    %v1692 = vld [vmem:[#allocation13 + $0x48] sm:$0xff]
    %v1693 = vld [vmem:[#allocation13 + $0x50] sm:$0xff]
    %v1694 = vld [vmem:[#allocation13 + $0x58] sm:$0xff]
    %v1695 = vld [vmem:[#allocation13 + $0x60] sm:$0xff]
    %v1696 = vld [vmem:[#allocation13 + $0x68] sm:$0xff]
    %v1697 = vld [vmem:[#allocation13 + $0x70] sm:$0xff]
    %v1698 = vld [vmem:[#allocation13 + $0x78] sm:$0xff]
    %v1699 = vld [vmem:[#allocation13 + $0x80] sm:$0xff]
    %v1700 = vld [vmem:[#allocation13 + $0x88] sm:$0xff]
    %v1701 = vld [vmem:[#allocation13 + $0x90] sm:$0xff]
    %v1702 = vld [vmem:[#allocation13 + $0x98] sm:$0xff]
    %v1703 = vld [vmem:[#allocation13 + $0xa0] sm:$0xff]
    %v1704 = vld [vmem:[#allocation13 + $0xa8] sm:$0xff]
    %v1705 = vld [vmem:[#allocation13 + $0xb0] sm:$0xff]
    %v1706 = vld [vmem:[#allocation13 + $0xb8] sm:$0xff]
    %v1707 = vld [vmem:[#allocation13 + $0xc0] sm:$0xff]
    %v1708 = vld [vmem:[#allocation13 + $0xc8] sm:$0xff]
    %v1709 = vld [vmem:[#allocation13 + $0xd0] sm:$0xff]
    %v1710 = vld [vmem:[#allocation13 + $0xd8] sm:$0xff]
    %v1711 = vld [vmem:[#allocation13 + $0xe0] sm:$0xff]
    %v1712 = vld [vmem:[#allocation13 + $0xe8] sm:$0xff]
    %v1713 = vld [vmem:[#allocation13 + $0xf0] sm:$0xff]
    %v1714 = vld [vmem:[#allocation13 + $0xf8] sm:$0xff]
    %v1715 = vld [vmem:[#allocation13 + $0x100] sm:$0xff]
    %v1716 = vld [vmem:[#allocation13 + $0x108] sm:$0xff]
    %v1717 = vld [vmem:[#allocation13 + $0x110] sm:$0xff]
    %v1718 = vld [vmem:[#allocation13 + $0x118] sm:$0xff]
    %v1719 = vld [vmem:[#allocation13 + $0x120] sm:$0xff]
    %v1720 = vld [vmem:[#allocation13 + $0x128] sm:$0xff]
    %v1721 = vld [vmem:[#allocation13 + $0x130] sm:$0xff]
    %v1722 = vld [vmem:[#allocation13 + $0x138] sm:$0xff]
    %v1723 = vld [vmem:[#allocation13 + $0x140] sm:$0xff]
    %v1724 = vld [vmem:[#allocation13 + $0x148] sm:$0xff]
    %v1725 = vld [vmem:[#allocation13 + $0x150] sm:$0xff]
    %v1726 = vld [vmem:[#allocation13 + $0x158] sm:$0xff]
    %v1727 = vld [vmem:[#allocation13 + $0x160] sm:$0xff]
    %v1728 = vld [vmem:[#allocation13 + $0x168] sm:$0xff]
    %v1729 = vld [vmem:[#allocation13 + $0x170] sm:$0xff]
    %v1730 = vld [vmem:[#allocation13 + $0x178] sm:$0xff]
    %v1731 = vld [vmem:[#allocation13 + $0x180] sm:$0xff]
    %v1732 = vld [vmem:[#allocation13 + $0x188] sm:$0xff]
    %v1733 = vld [vmem:[#allocation13 + $0x190] sm:$0xff]
    %v1734 = vld [vmem:[#allocation13 + $0x198] sm:$0xff]
    %v1735 = vld [vmem:[#allocation13 + $0x1a0] sm:$0xff]
    %v1736 = vld [vmem:[#allocation13 + $0x1a8] sm:$0xff]
    %v1737 = vld [vmem:[#allocation13 + $0x1b0] sm:$0xff]
    %v1738 = vld [vmem:[#allocation13 + $0x1b8] sm:$0xff]
    %v1739 = vld [vmem:[#allocation13 + $0x1c0] sm:$0xff]
    %v1740 = vld [vmem:[#allocation13 + $0x1c8] sm:$0xff]
    %v1741 = vld [vmem:[#allocation13 + $0x1d0] sm:$0xff]
    %v1742 = vld [vmem:[#allocation13 + $0x1d8] sm:$0xff]
    %v1743 = vld [vmem:[#allocation13 + $0x1e0] sm:$0xff]
    %v1744 = vld [vmem:[#allocation13 + $0x1e8] sm:$0xff]
    %v1745 = vld [vmem:[#allocation13 + $0x1f0] sm:$0xff]
    %v1746 = vld [vmem:[#allocation13 + $0x1f8] sm:$0xff]
    %s1747 = scalar_lea.vmem [#allocation13], 512
    %v1748 = vld [vmem:[%s1747] sm:$0xff]
    %v1749 = vld [vmem:[%s1747 + $0x8] sm:$0xff]
    %v1750 = vld [vmem:[%s1747 + $0x10] sm:$0xff]
    %v1751 = vld [vmem:[%s1747 + $0x18] sm:$0xff]
    %v1752 = vld [vmem:[%s1747 + $0x20] sm:$0xff]
    %v1753 = vld [vmem:[%s1747 + $0x28] sm:$0xff]
    %v1754 = vld [vmem:[%s1747 + $0x30] sm:$0xff]
    %v1755 = vld [vmem:[%s1747 + $0x38] sm:$0xff]
    %v1756 = vld [vmem:[%s1747 + $0x40] sm:$0xff]
    %v1757 = vld [vmem:[%s1747 + $0x48] sm:$0xff]
    %v1758 = vld [vmem:[%s1747 + $0x50] sm:$0xff]
    %v1759 = vld [vmem:[%s1747 + $0x58] sm:$0xff]
    %v1760 = vld [vmem:[%s1747 + $0x60] sm:$0xff]
    %v1761 = vld [vmem:[%s1747 + $0x68] sm:$0xff]
    %v1762 = vld [vmem:[%s1747 + $0x70] sm:$0xff]
    %v1763 = vld [vmem:[%s1747 + $0x78] sm:$0xff]
    %v1764 = vld [vmem:[%s1747 + $0x80] sm:$0xff]
    %v1765 = vld [vmem:[%s1747 + $0x88] sm:$0xff]
    %v1766 = vld [vmem:[%s1747 + $0x90] sm:$0xff]
    %v1767 = vld [vmem:[%s1747 + $0x98] sm:$0xff]
    %v1768 = vld [vmem:[%s1747 + $0xa0] sm:$0xff]
    %v1769 = vld [vmem:[%s1747 + $0xa8] sm:$0xff]
    %v1770 = vld [vmem:[%s1747 + $0xb0] sm:$0xff]
    %v1771 = vld [vmem:[%s1747 + $0xb8] sm:$0xff]
    %v1772 = vld [vmem:[%s1747 + $0xc0] sm:$0xff]
    %v1773 = vld [vmem:[%s1747 + $0xc8] sm:$0xff]
    %v1774 = vld [vmem:[%s1747 + $0xd0] sm:$0xff]
    %v1775 = vld [vmem:[%s1747 + $0xd8] sm:$0xff]
    %v1776 = vld [vmem:[%s1747 + $0xe0] sm:$0xff]
    %v1777 = vld [vmem:[%s1747 + $0xe8] sm:$0xff]
    %v1778 = vld [vmem:[%s1747 + $0xf0] sm:$0xff]
    %v1779 = vld [vmem:[%s1747 + $0xf8] sm:$0xff]
    %v1780 = vld [vmem:[%s1747 + $0x100] sm:$0xff]
    %v1781 = vld [vmem:[%s1747 + $0x108] sm:$0xff]
    %v1782 = vld [vmem:[%s1747 + $0x110] sm:$0xff]
    %v1783 = vld [vmem:[%s1747 + $0x118] sm:$0xff]
    %v1784 = vld [vmem:[%s1747 + $0x120] sm:$0xff]
    %v1785 = vld [vmem:[%s1747 + $0x128] sm:$0xff]
    %v1786 = vld [vmem:[%s1747 + $0x130] sm:$0xff]
    %v1787 = vld [vmem:[%s1747 + $0x138] sm:$0xff]
    %v1788 = vld [vmem:[%s1747 + $0x140] sm:$0xff]
    %v1789 = vld [vmem:[%s1747 + $0x148] sm:$0xff]
    %v1790 = vld [vmem:[%s1747 + $0x150] sm:$0xff]
    %v1791 = vld [vmem:[%s1747 + $0x158] sm:$0xff]
    %v1792 = vld [vmem:[%s1747 + $0x160] sm:$0xff]
    %v1793 = vld [vmem:[%s1747 + $0x168] sm:$0xff]
    %v1794 = vld [vmem:[%s1747 + $0x170] sm:$0xff]
    %v1795 = vld [vmem:[%s1747 + $0x178] sm:$0xff]
    %v1796 = vld [vmem:[%s1747 + $0x180] sm:$0xff]
    %v1797 = vld [vmem:[%s1747 + $0x188] sm:$0xff]
    %v1798 = vld [vmem:[%s1747 + $0x190] sm:$0xff]
    %v1799 = vld [vmem:[%s1747 + $0x198] sm:$0xff]
    %v1800 = vld [vmem:[%s1747 + $0x1a0] sm:$0xff]
    %v1801 = vld [vmem:[%s1747 + $0x1a8] sm:$0xff]
    %v1802 = vld [vmem:[%s1747 + $0x1b0] sm:$0xff]
    %v1803 = vld [vmem:[%s1747 + $0x1b8] sm:$0xff]
    %v1804 = vld [vmem:[%s1747 + $0x1c0] sm:$0xff]
    %v1805 = vld [vmem:[%s1747 + $0x1c8] sm:$0xff]
    %v1806 = vld [vmem:[%s1747 + $0x1d0] sm:$0xff]
    %v1807 = vld [vmem:[%s1747 + $0x1d8] sm:$0xff]
    %v1808 = vld [vmem:[%s1747 + $0x1e0] sm:$0xff]
    %v1809 = vld [vmem:[%s1747 + $0x1e8] sm:$0xff]
    %v1810 = vld [vmem:[%s1747 + $0x1f0] sm:$0xff]
    %v1811 = vld [vmem:[%s1747 + $0x1f8] sm:$0xff]
    %v1813 = vrot.slane %v1681, 1
    %1815 = vmatpush.msra.mxu0 %v1808
    %1816 = vmatpush.msra.mxu0 %v1804
    %1817 = vmatpush.msra.mxu0 %v1800
    %1818 = vmatpush.msra.mxu0 %v1796
    %1819 = vmatpush.msra.mxu0 %v1792
    %1820 = vmatpush.msra.mxu0 %v1788
    %1821 = vmatpush.msra.mxu0 %v1784
    %1822 = vmatpush.msra.mxu0 %v1780
    %1823 = vmatpush.msra.mxu0 %v1776
    %1824 = vmatpush.msra.mxu0 %v1772
    %1825 = vmatpush.msra.mxu0 %v1768
    %1826 = vmatpush.msra.mxu0 %v1764
    %1827 = vmatpush.msra.mxu0 %v1760
    %1828 = vmatpush.msra.mxu0 %v1756
    %1829 = vmatpush.msra.mxu0 %v1752
    %1830 = vmatpush.msra.mxu0 %v1748
    %1831 = vmatmul.f32.gmra.mxu0 %v1813
    %v1832 = vpop.f32.mrf.mxu0
    %v1833 = vadd.f32 0.0, %v1832
    %1834 = vdwg.mxu0
    %1835 = vmatpush.msra.mxu0 %v1809
    %1836 = vmatpush.msra.mxu0 %v1805
    %1837 = vmatpush.msra.mxu0 %v1801
    %1838 = vmatpush.msra.mxu0 %v1797
    %1839 = vmatpush.msra.mxu0 %v1793
    %1840 = vmatpush.msra.mxu0 %v1789
    %1841 = vmatpush.msra.mxu0 %v1785
    %1842 = vmatpush.msra.mxu0 %v1781
    %1843 = vmatpush.msra.mxu0 %v1777
    %1844 = vmatpush.msra.mxu0 %v1773
    %1845 = vmatpush.msra.mxu0 %v1769
    %1846 = vmatpush.msra.mxu0 %v1765
    %1847 = vmatpush.msra.mxu0 %v1761
    %1848 = vmatpush.msra.mxu0 %v1757
    %1849 = vmatpush.msra.mxu0 %v1753
    %1850 = vmatpush.msra.mxu0 %v1749
    %1851 = vmatmul.f32.gmra.mxu0 %v1813
    %v1852 = vpop.f32.mrf.mxu0
    %v1853 = vadd.f32 0.0, %v1852
    %1854 = vdwg.mxu0
    %1855 = vmatpush.msra.mxu0 %v1810
    %1856 = vmatpush.msra.mxu0 %v1806
    %1857 = vmatpush.msra.mxu0 %v1802
    %1858 = vmatpush.msra.mxu0 %v1798
    %1859 = vmatpush.msra.mxu0 %v1794
    %1860 = vmatpush.msra.mxu0 %v1790
    %1861 = vmatpush.msra.mxu0 %v1786
    %1862 = vmatpush.msra.mxu0 %v1782
    %1863 = vmatpush.msra.mxu0 %v1778
    %1864 = vmatpush.msra.mxu0 %v1774
    %1865 = vmatpush.msra.mxu0 %v1770
    %1866 = vmatpush.msra.mxu0 %v1766
    %1867 = vmatpush.msra.mxu0 %v1762
    %1868 = vmatpush.msra.mxu0 %v1758
    %1869 = vmatpush.msra.mxu0 %v1754
    %1870 = vmatpush.msra.mxu0 %v1750
    %1871 = vmatmul.f32.gmra.mxu0 %v1813
    %v1872 = vpop.f32.mrf.mxu0
    %v1873 = vadd.f32 0.0, %v1872
    %1874 = vdwg.mxu0
    %1875 = vmatpush.msra.mxu0 %v1811
    %1876 = vmatpush.msra.mxu0 %v1807
    %1877 = vmatpush.msra.mxu0 %v1803
    %1878 = vmatpush.msra.mxu0 %v1799
    %1879 = vmatpush.msra.mxu0 %v1795
    %1880 = vmatpush.msra.mxu0 %v1791
    %1881 = vmatpush.msra.mxu0 %v1787
    %1882 = vmatpush.msra.mxu0 %v1783
    %1883 = vmatpush.msra.mxu0 %v1779
    %1884 = vmatpush.msra.mxu0 %v1775
    %1885 = vmatpush.msra.mxu0 %v1771
    %1886 = vmatpush.msra.mxu0 %v1767
    %1887 = vmatpush.msra.mxu0 %v1763
    %1888 = vmatpush.msra.mxu0 %v1759
    %1889 = vmatpush.msra.mxu0 %v1755
    %1890 = vmatpush.msra.mxu0 %v1751
    %1891 = vmatmul.f32.gmra.mxu0 %v1813
    %v1892 = vpop.f32.mrf.mxu0
    %v1893 = vadd.f32 0.0, %v1892
    %1894 = vdwg.mxu0
    %1895 = vmatpush.msra.mxu0 %v1743
    %1896 = vmatpush.msra.mxu0 %v1739
    %1897 = vmatpush.msra.mxu0 %v1735
    %1898 = vmatpush.msra.mxu0 %v1731
    %1899 = vmatpush.msra.mxu0 %v1727
    %1900 = vmatpush.msra.mxu0 %v1723
    %1901 = vmatpush.msra.mxu0 %v1719
    %1902 = vmatpush.msra.mxu0 %v1715
    %1903 = vmatpush.msra.mxu0 %v1711
    %1904 = vmatpush.msra.mxu0 %v1707
    %1905 = vmatpush.msra.mxu0 %v1703
    %1906 = vmatpush.msra.mxu0 %v1699
    %1907 = vmatpush.msra.mxu0 %v1695
    %1908 = vmatpush.msra.mxu0 %v1691
    %1909 = vmatpush.msra.mxu0 %v1687
    %1910 = vmatpush.msra.mxu0 %v1683
    %1911 = vmatmul.f32.gmra.mxu0 %v1681
    %v1912 = vpop.f32.mrf.mxu0
    %v1913 = vadd.f32 %v1833, %v1912
    %1914 = vdwg.mxu0
    %1915 = vmatpush.msra.mxu0 %v1744
    %1916 = vmatpush.msra.mxu0 %v1740
    %1917 = vmatpush.msra.mxu0 %v1736
    %1918 = vmatpush.msra.mxu0 %v1732
    %1919 = vmatpush.msra.mxu0 %v1728
    %1920 = vmatpush.msra.mxu0 %v1724
    %1921 = vmatpush.msra.mxu0 %v1720
    %1922 = vmatpush.msra.mxu0 %v1716
    %1923 = vmatpush.msra.mxu0 %v1712
    %1924 = vmatpush.msra.mxu0 %v1708
    %1925 = vmatpush.msra.mxu0 %v1704
    %1926 = vmatpush.msra.mxu0 %v1700
    %1927 = vmatpush.msra.mxu0 %v1696
    %1928 = vmatpush.msra.mxu0 %v1692
    %1929 = vmatpush.msra.mxu0 %v1688
    %1930 = vmatpush.msra.mxu0 %v1684
    %1931 = vmatmul.f32.gmra.mxu0 %v1681
    %v1932 = vpop.f32.mrf.mxu0
    %v1933 = vadd.f32 %v1853, %v1932
    %1934 = vdwg.mxu0
    %1935 = vmatpush.msra.mxu0 %v1745
    %1936 = vmatpush.msra.mxu0 %v1741
    %1937 = vmatpush.msra.mxu0 %v1737
    %1938 = vmatpush.msra.mxu0 %v1733
    %1939 = vmatpush.msra.mxu0 %v1729
    %1940 = vmatpush.msra.mxu0 %v1725
    %1941 = vmatpush.msra.mxu0 %v1721
    %1942 = vmatpush.msra.mxu0 %v1717
    %1943 = vmatpush.msra.mxu0 %v1713
    %1944 = vmatpush.msra.mxu0 %v1709
    %1945 = vmatpush.msra.mxu0 %v1705
    %1946 = vmatpush.msra.mxu0 %v1701
    %1947 = vmatpush.msra.mxu0 %v1697
    %1948 = vmatpush.msra.mxu0 %v1693
    %1949 = vmatpush.msra.mxu0 %v1689
    %1950 = vmatpush.msra.mxu0 %v1685
    %1951 = vmatmul.f32.gmra.mxu0 %v1681
    %v1952 = vpop.f32.mrf.mxu0
    %v1953 = vadd.f32 %v1873, %v1952
    %1954 = vdwg.mxu0
    %1955 = vmatpush.msra.mxu0 %v1746
    %1956 = vmatpush.msra.mxu0 %v1742
    %1957 = vmatpush.msra.mxu0 %v1738
    %1958 = vmatpush.msra.mxu0 %v1734
    %1959 = vmatpush.msra.mxu0 %v1730
    %1960 = vmatpush.msra.mxu0 %v1726
    %1961 = vmatpush.msra.mxu0 %v1722
    %1962 = vmatpush.msra.mxu0 %v1718
    %1963 = vmatpush.msra.mxu0 %v1714
    %1964 = vmatpush.msra.mxu0 %v1710
    %1965 = vmatpush.msra.mxu0 %v1706
    %1966 = vmatpush.msra.mxu0 %v1702
    %1967 = vmatpush.msra.mxu0 %v1698
    %1968 = vmatpush.msra.mxu0 %v1694
    %1969 = vmatpush.msra.mxu0 %v1690
    %1970 = vmatpush.msra.mxu0 %v1686
    %1971 = vmatmul.f32.gmra.mxu0 %v1681
    %v1972 = vpop.f32.mrf.mxu0
    %v1973 = vadd.f32 %v1893, %v1972
    %1974 = vdwg.mxu0
    %s1975 = scalar_lea.vmem [#allocation13], 1024
    %v1976 = vld [vmem:[%s1975] sm:$0xff]
    %v1977 = vld [vmem:[%s1975 + $0x8] sm:$0xff]
    %v1978 = vld [vmem:[%s1975 + $0x10] sm:$0xff]
    %v1979 = vld [vmem:[%s1975 + $0x18] sm:$0xff]
    %v1980 = vld [vmem:[%s1975 + $0x20] sm:$0xff]
    %v1981 = vld [vmem:[%s1975 + $0x28] sm:$0xff]
    %v1982 = vld [vmem:[%s1975 + $0x30] sm:$0xff]
    %v1983 = vld [vmem:[%s1975 + $0x38] sm:$0xff]
    %v1984 = vld [vmem:[%s1975 + $0x40] sm:$0xff]
    %v1985 = vld [vmem:[%s1975 + $0x48] sm:$0xff]
    %v1986 = vld [vmem:[%s1975 + $0x50] sm:$0xff]
    %v1987 = vld [vmem:[%s1975 + $0x58] sm:$0xff]
    %v1988 = vld [vmem:[%s1975 + $0x60] sm:$0xff]
    %v1989 = vld [vmem:[%s1975 + $0x68] sm:$0xff]
    %v1990 = vld [vmem:[%s1975 + $0x70] sm:$0xff]
    %v1991 = vld [vmem:[%s1975 + $0x78] sm:$0xff]
    %v1992 = vld [vmem:[%s1975 + $0x80] sm:$0xff]
    %v1993 = vld [vmem:[%s1975 + $0x88] sm:$0xff]
    %v1994 = vld [vmem:[%s1975 + $0x90] sm:$0xff]
    %v1995 = vld [vmem:[%s1975 + $0x98] sm:$0xff]
    %v1996 = vld [vmem:[%s1975 + $0xa0] sm:$0xff]
    %v1997 = vld [vmem:[%s1975 + $0xa8] sm:$0xff]
    %v1998 = vld [vmem:[%s1975 + $0xb0] sm:$0xff]
    %v1999 = vld [vmem:[%s1975 + $0xb8] sm:$0xff]
    %v2000 = vld [vmem:[%s1975 + $0xc0] sm:$0xff]
    %v2001 = vld [vmem:[%s1975 + $0xc8] sm:$0xff]
    %v2002 = vld [vmem:[%s1975 + $0xd0] sm:$0xff]
    %v2003 = vld [vmem:[%s1975 + $0xd8] sm:$0xff]
    %v2004 = vld [vmem:[%s1975 + $0xe0] sm:$0xff]
    %v2005 = vld [vmem:[%s1975 + $0xe8] sm:$0xff]
    %v2006 = vld [vmem:[%s1975 + $0xf0] sm:$0xff]
    %v2007 = vld [vmem:[%s1975 + $0xf8] sm:$0xff]
    %v2008 = vld [vmem:[%s1975 + $0x100] sm:$0xff]
    %v2009 = vld [vmem:[%s1975 + $0x108] sm:$0xff]
    %v2010 = vld [vmem:[%s1975 + $0x110] sm:$0xff]
    %v2011 = vld [vmem:[%s1975 + $0x118] sm:$0xff]
    %v2012 = vld [vmem:[%s1975 + $0x120] sm:$0xff]
    %v2013 = vld [vmem:[%s1975 + $0x128] sm:$0xff]
    %v2014 = vld [vmem:[%s1975 + $0x130] sm:$0xff]
    %v2015 = vld [vmem:[%s1975 + $0x138] sm:$0xff]
    %v2016 = vld [vmem:[%s1975 + $0x140] sm:$0xff]
    %v2017 = vld [vmem:[%s1975 + $0x148] sm:$0xff]
    %v2018 = vld [vmem:[%s1975 + $0x150] sm:$0xff]
    %v2019 = vld [vmem:[%s1975 + $0x158] sm:$0xff]
    %v2020 = vld [vmem:[%s1975 + $0x160] sm:$0xff]
    %v2021 = vld [vmem:[%s1975 + $0x168] sm:$0xff]
    %v2022 = vld [vmem:[%s1975 + $0x170] sm:$0xff]
    %v2023 = vld [vmem:[%s1975 + $0x178] sm:$0xff]
    %v2024 = vld [vmem:[%s1975 + $0x180] sm:$0xff]
    %v2025 = vld [vmem:[%s1975 + $0x188] sm:$0xff]
    %v2026 = vld [vmem:[%s1975 + $0x190] sm:$0xff]
    %v2027 = vld [vmem:[%s1975 + $0x198] sm:$0xff]
    %v2028 = vld [vmem:[%s1975 + $0x1a0] sm:$0xff]
    %v2029 = vld [vmem:[%s1975 + $0x1a8] sm:$0xff]
    %v2030 = vld [vmem:[%s1975 + $0x1b0] sm:$0xff]
    %v2031 = vld [vmem:[%s1975 + $0x1b8] sm:$0xff]
    %v2032 = vld [vmem:[%s1975 + $0x1c0] sm:$0xff]
    %v2033 = vld [vmem:[%s1975 + $0x1c8] sm:$0xff]
    %v2034 = vld [vmem:[%s1975 + $0x1d0] sm:$0xff]
    %v2035 = vld [vmem:[%s1975 + $0x1d8] sm:$0xff]
    %v2036 = vld [vmem:[%s1975 + $0x1e0] sm:$0xff]
    %v2037 = vld [vmem:[%s1975 + $0x1e8] sm:$0xff]
    %v2038 = vld [vmem:[%s1975 + $0x1f0] sm:$0xff]
    %v2039 = vld [vmem:[%s1975 + $0x1f8] sm:$0xff]
    %v2040 = vrot.slane %v1681, 2
    %2042 = vmatpush.msra.mxu0 %v2036
    %2043 = vmatpush.msra.mxu0 %v2032
    %2044 = vmatpush.msra.mxu0 %v2028
    %2045 = vmatpush.msra.mxu0 %v2024
    %2046 = vmatpush.msra.mxu0 %v2020
    %2047 = vmatpush.msra.mxu0 %v2016
    %2048 = vmatpush.msra.mxu0 %v2012
    %2049 = vmatpush.msra.mxu0 %v2008
    %2050 = vmatpush.msra.mxu0 %v2004
    %2051 = vmatpush.msra.mxu0 %v2000
    %2052 = vmatpush.msra.mxu0 %v1996
    %2053 = vmatpush.msra.mxu0 %v1992
    %2054 = vmatpush.msra.mxu0 %v1988
    %2055 = vmatpush.msra.mxu0 %v1984
    %2056 = vmatpush.msra.mxu0 %v1980
    %2057 = vmatpush.msra.mxu0 %v1976
    %2058 = vmatmul.f32.gmra.mxu0 %v2040
    %v2059 = vpop.f32.mrf.mxu0
    %v2060 = vadd.f32 0.0, %v2059
    %2061 = vdwg.mxu0
    %2062 = vmatpush.msra.mxu0 %v2037
    %2063 = vmatpush.msra.mxu0 %v2033
    %2064 = vmatpush.msra.mxu0 %v2029
    %2065 = vmatpush.msra.mxu0 %v2025
    %2066 = vmatpush.msra.mxu0 %v2021
    %2067 = vmatpush.msra.mxu0 %v2017
    %2068 = vmatpush.msra.mxu0 %v2013
    %2069 = vmatpush.msra.mxu0 %v2009
    %2070 = vmatpush.msra.mxu0 %v2005
    %2071 = vmatpush.msra.mxu0 %v2001
    %2072 = vmatpush.msra.mxu0 %v1997
    %2073 = vmatpush.msra.mxu0 %v1993
    %2074 = vmatpush.msra.mxu0 %v1989
    %2075 = vmatpush.msra.mxu0 %v1985
    %2076 = vmatpush.msra.mxu0 %v1981
    %2077 = vmatpush.msra.mxu0 %v1977
    %2078 = vmatmul.f32.gmra.mxu0 %v2040
    %v2079 = vpop.f32.mrf.mxu0
    %v2080 = vadd.f32 0.0, %v2079
    %2081 = vdwg.mxu0
    %2082 = vmatpush.msra.mxu0 %v2038
    %2083 = vmatpush.msra.mxu0 %v2034
    %2084 = vmatpush.msra.mxu0 %v2030
    %2085 = vmatpush.msra.mxu0 %v2026
    %2086 = vmatpush.msra.mxu0 %v2022
    %2087 = vmatpush.msra.mxu0 %v2018
    %2088 = vmatpush.msra.mxu0 %v2014
    %2089 = vmatpush.msra.mxu0 %v2010
    %2090 = vmatpush.msra.mxu0 %v2006
    %2091 = vmatpush.msra.mxu0 %v2002
    %2092 = vmatpush.msra.mxu0 %v1998
    %2093 = vmatpush.msra.mxu0 %v1994
    %2094 = vmatpush.msra.mxu0 %v1990
    %2095 = vmatpush.msra.mxu0 %v1986
    %2096 = vmatpush.msra.mxu0 %v1982
    %2097 = vmatpush.msra.mxu0 %v1978
    %2098 = vmatmul.f32.gmra.mxu0 %v2040
    %v2099 = vpop.f32.mrf.mxu0
    %v2100 = vadd.f32 0.0, %v2099
    %2101 = vdwg.mxu0
    %2102 = vmatpush.msra.mxu0 %v2039
    %2103 = vmatpush.msra.mxu0 %v2035
    %2104 = vmatpush.msra.mxu0 %v2031
    %2105 = vmatpush.msra.mxu0 %v2027
    %2106 = vmatpush.msra.mxu0 %v2023
    %2107 = vmatpush.msra.mxu0 %v2019
    %2108 = vmatpush.msra.mxu0 %v2015
    %2109 = vmatpush.msra.mxu0 %v2011
    %2110 = vmatpush.msra.mxu0 %v2007
    %2111 = vmatpush.msra.mxu0 %v2003
    %2112 = vmatpush.msra.mxu0 %v1999
    %2113 = vmatpush.msra.mxu0 %v1995
    %2114 = vmatpush.msra.mxu0 %v1991
    %2115 = vmatpush.msra.mxu0 %v1987
    %2116 = vmatpush.msra.mxu0 %v1983
    %2117 = vmatpush.msra.mxu0 %v1979
    %2118 = vmatmul.f32.gmra.mxu0 %v2040
    %v2119 = vpop.f32.mrf.mxu0
    %v2120 = vadd.f32 0.0, %v2119
    %2121 = vdwg.mxu0
    %v2122 = vadd.f32 %v1913, %v2060
    %v2123 = vadd.f32 %v1933, %v2080
    %v2124 = vadd.f32 %v1953, %v2100
    %v2125 = vadd.f32 %v1973, %v2120
    %s2126 = scalar_lea.vmem [#allocation13], 1536
    %v2127 = vld [vmem:[%s2126] sm:$0xff]
    %v2128 = vld [vmem:[%s2126 + $0x8] sm:$0xff]
    %v2129 = vld [vmem:[%s2126 + $0x10] sm:$0xff]
    %v2130 = vld [vmem:[%s2126 + $0x18] sm:$0xff]
    %v2131 = vld [vmem:[%s2126 + $0x20] sm:$0xff]
    %v2132 = vld [vmem:[%s2126 + $0x28] sm:$0xff]
    %v2133 = vld [vmem:[%s2126 + $0x30] sm:$0xff]
    %v2134 = vld [vmem:[%s2126 + $0x38] sm:$0xff]
    %v2135 = vld [vmem:[%s2126 + $0x40] sm:$0xff]
    %v2136 = vld [vmem:[%s2126 + $0x48] sm:$0xff]
    %v2137 = vld [vmem:[%s2126 + $0x50] sm:$0xff]
    %v2138 = vld [vmem:[%s2126 + $0x58] sm:$0xff]
    %v2139 = vld [vmem:[%s2126 + $0x60] sm:$0xff]
    %v2140 = vld [vmem:[%s2126 + $0x68] sm:$0xff]
    %v2141 = vld [vmem:[%s2126 + $0x70] sm:$0xff]
    %v2142 = vld [vmem:[%s2126 + $0x78] sm:$0xff]
    %v2143 = vld [vmem:[%s2126 + $0x80] sm:$0xff]
    %v2144 = vld [vmem:[%s2126 + $0x88] sm:$0xff]
    %v2145 = vld [vmem:[%s2126 + $0x90] sm:$0xff]
    %v2146 = vld [vmem:[%s2126 + $0x98] sm:$0xff]
    %v2147 = vld [vmem:[%s2126 + $0xa0] sm:$0xff]
    %v2148 = vld [vmem:[%s2126 + $0xa8] sm:$0xff]
    %v2149 = vld [vmem:[%s2126 + $0xb0] sm:$0xff]
    %v2150 = vld [vmem:[%s2126 + $0xb8] sm:$0xff]
    %v2151 = vld [vmem:[%s2126 + $0xc0] sm:$0xff]
    %v2152 = vld [vmem:[%s2126 + $0xc8] sm:$0xff]
    %v2153 = vld [vmem:[%s2126 + $0xd0] sm:$0xff]
    %v2154 = vld [vmem:[%s2126 + $0xd8] sm:$0xff]
    %v2155 = vld [vmem:[%s2126 + $0xe0] sm:$0xff]
    %v2156 = vld [vmem:[%s2126 + $0xe8] sm:$0xff]
    %v2157 = vld [vmem:[%s2126 + $0xf0] sm:$0xff]
    %v2158 = vld [vmem:[%s2126 + $0xf8] sm:$0xff]
    %v2159 = vld [vmem:[%s2126 + $0x100] sm:$0xff]
    %v2160 = vld [vmem:[%s2126 + $0x108] sm:$0xff]
    %v2161 = vld [vmem:[%s2126 + $0x110] sm:$0xff]
    %v2162 = vld [vmem:[%s2126 + $0x118] sm:$0xff]
    %v2163 = vld [vmem:[%s2126 + $0x120] sm:$0xff]
    %v2164 = vld [vmem:[%s2126 + $0x128] sm:$0xff]
    %v2165 = vld [vmem:[%s2126 + $0x130] sm:$0xff]
    %v2166 = vld [vmem:[%s2126 + $0x138] sm:$0xff]
    %v2167 = vld [vmem:[%s2126 + $0x140] sm:$0xff]
    %v2168 = vld [vmem:[%s2126 + $0x148] sm:$0xff]
    %v2169 = vld [vmem:[%s2126 + $0x150] sm:$0xff]
    %v2170 = vld [vmem:[%s2126 + $0x158] sm:$0xff]
    %v2171 = vld [vmem:[%s2126 + $0x160] sm:$0xff]
    %v2172 = vld [vmem:[%s2126 + $0x168] sm:$0xff]
    %v2173 = vld [vmem:[%s2126 + $0x170] sm:$0xff]
    %v2174 = vld [vmem:[%s2126 + $0x178] sm:$0xff]
    %v2175 = vld [vmem:[%s2126 + $0x180] sm:$0xff]
    %v2176 = vld [vmem:[%s2126 + $0x188] sm:$0xff]
    %v2177 = vld [vmem:[%s2126 + $0x190] sm:$0xff]
    %v2178 = vld [vmem:[%s2126 + $0x198] sm:$0xff]
    %v2179 = vld [vmem:[%s2126 + $0x1a0] sm:$0xff]
    %v2180 = vld [vmem:[%s2126 + $0x1a8] sm:$0xff]
    %v2181 = vld [vmem:[%s2126 + $0x1b0] sm:$0xff]
    %v2182 = vld [vmem:[%s2126 + $0x1b8] sm:$0xff]
    %v2183 = vld [vmem:[%s2126 + $0x1c0] sm:$0xff]
    %v2184 = vld [vmem:[%s2126 + $0x1c8] sm:$0xff]
    %v2185 = vld [vmem:[%s2126 + $0x1d0] sm:$0xff]
    %v2186 = vld [vmem:[%s2126 + $0x1d8] sm:$0xff]
    %v2187 = vld [vmem:[%s2126 + $0x1e0] sm:$0xff]
    %v2188 = vld [vmem:[%s2126 + $0x1e8] sm:$0xff]
    %v2189 = vld [vmem:[%s2126 + $0x1f0] sm:$0xff]
    %v2190 = vld [vmem:[%s2126 + $0x1f8] sm:$0xff]
    %v2191 = vrot.slane %v1681, 3
    %2193 = vmatpush.msra.mxu0 %v2187
    %2194 = vmatpush.msra.mxu0 %v2183
    %2195 = vmatpush.msra.mxu0 %v2179
    %2196 = vmatpush.msra.mxu0 %v2175
    %2197 = vmatpush.msra.mxu0 %v2171
    %2198 = vmatpush.msra.mxu0 %v2167
    %2199 = vmatpush.msra.mxu0 %v2163
    %2200 = vmatpush.msra.mxu0 %v2159
    %2201 = vmatpush.msra.mxu0 %v2155
    %2202 = vmatpush.msra.mxu0 %v2151
    %2203 = vmatpush.msra.mxu0 %v2147
    %2204 = vmatpush.msra.mxu0 %v2143
    %2205 = vmatpush.msra.mxu0 %v2139
    %2206 = vmatpush.msra.mxu0 %v2135
    %2207 = vmatpush.msra.mxu0 %v2131
    %2208 = vmatpush.msra.mxu0 %v2127
    %2209 = vmatmul.f32.gmra.mxu0 %v2191
    %v2210 = vpop.f32.mrf.mxu0
    %v2211 = vadd.f32 0.0, %v2210
    %2212 = vdwg.mxu0
    %2213 = vmatpush.msra.mxu0 %v2188
    %2214 = vmatpush.msra.mxu0 %v2184
    %2215 = vmatpush.msra.mxu0 %v2180
    %2216 = vmatpush.msra.mxu0 %v2176
    %2217 = vmatpush.msra.mxu0 %v2172
    %2218 = vmatpush.msra.mxu0 %v2168
    %2219 = vmatpush.msra.mxu0 %v2164
    %2220 = vmatpush.msra.mxu0 %v2160
    %2221 = vmatpush.msra.mxu0 %v2156
    %2222 = vmatpush.msra.mxu0 %v2152
    %2223 = vmatpush.msra.mxu0 %v2148
    %2224 = vmatpush.msra.mxu0 %v2144
    %2225 = vmatpush.msra.mxu0 %v2140
    %2226 = vmatpush.msra.mxu0 %v2136
    %2227 = vmatpush.msra.mxu0 %v2132
    %2228 = vmatpush.msra.mxu0 %v2128
    %2229 = vmatmul.f32.gmra.mxu0 %v2191
    %v2230 = vpop.f32.mrf.mxu0
    %v2231 = vadd.f32 0.0, %v2230
    %2232 = vdwg.mxu0
    %2233 = vmatpush.msra.mxu0 %v2189
    %2234 = vmatpush.msra.mxu0 %v2185
    %2235 = vmatpush.msra.mxu0 %v2181
    %2236 = vmatpush.msra.mxu0 %v2177
    %2237 = vmatpush.msra.mxu0 %v2173
    %2238 = vmatpush.msra.mxu0 %v2169
    %2239 = vmatpush.msra.mxu0 %v2165
    %2240 = vmatpush.msra.mxu0 %v2161
    %2241 = vmatpush.msra.mxu0 %v2157
    %2242 = vmatpush.msra.mxu0 %v2153
    %2243 = vmatpush.msra.mxu0 %v2149
    %2244 = vmatpush.msra.mxu0 %v2145
    %2245 = vmatpush.msra.mxu0 %v2141
    %2246 = vmatpush.msra.mxu0 %v2137
    %2247 = vmatpush.msra.mxu0 %v2133
    %2248 = vmatpush.msra.mxu0 %v2129
    %2249 = vmatmul.f32.gmra.mxu0 %v2191
    %v2250 = vpop.f32.mrf.mxu0
    %v2251 = vadd.f32 0.0, %v2250
    %2252 = vdwg.mxu0
    %2253 = vmatpush.msra.mxu0 %v2190
    %2254 = vmatpush.msra.mxu0 %v2186
    %2255 = vmatpush.msra.mxu0 %v2182
    %2256 = vmatpush.msra.mxu0 %v2178
    %2257 = vmatpush.msra.mxu0 %v2174
    %2258 = vmatpush.msra.mxu0 %v2170
    %2259 = vmatpush.msra.mxu0 %v2166
    %2260 = vmatpush.msra.mxu0 %v2162
    %2261 = vmatpush.msra.mxu0 %v2158
    %2262 = vmatpush.msra.mxu0 %v2154
    %2263 = vmatpush.msra.mxu0 %v2150
    %2264 = vmatpush.msra.mxu0 %v2146
    %2265 = vmatpush.msra.mxu0 %v2142
    %2266 = vmatpush.msra.mxu0 %v2138
    %2267 = vmatpush.msra.mxu0 %v2134
    %2268 = vmatpush.msra.mxu0 %v2130
    %2269 = vmatmul.f32.gmra.mxu0 %v2191
    %v2270 = vpop.f32.mrf.mxu0
    %v2271 = vadd.f32 0.0, %v2270
    %2272 = vdwg.mxu0
    %v2273 = vadd.f32 %v2122, %v2211
    %v2274 = vadd.f32 %v2123, %v2231
    %v2275 = vadd.f32 %v2124, %v2251
    %v2276 = vadd.f32 %v2125, %v2271
    %s2277 = scalar_lea.vmem [#allocation13], 2048
    %v2278 = vld [vmem:[%s2277] sm:$0xff]
    %v2279 = vld [vmem:[%s2277 + $0x8] sm:$0xff]
    %v2280 = vld [vmem:[%s2277 + $0x10] sm:$0xff]
    %v2281 = vld [vmem:[%s2277 + $0x18] sm:$0xff]
    %v2282 = vld [vmem:[%s2277 + $0x20] sm:$0xff]
    %v2283 = vld [vmem:[%s2277 + $0x28] sm:$0xff]
    %v2284 = vld [vmem:[%s2277 + $0x30] sm:$0xff]
    %v2285 = vld [vmem:[%s2277 + $0x38] sm:$0xff]
    %v2286 = vld [vmem:[%s2277 + $0x40] sm:$0xff]
    %v2287 = vld [vmem:[%s2277 + $0x48] sm:$0xff]
    %v2288 = vld [vmem:[%s2277 + $0x50] sm:$0xff]
    %v2289 = vld [vmem:[%s2277 + $0x58] sm:$0xff]
    %v2290 = vld [vmem:[%s2277 + $0x60] sm:$0xff]
    %v2291 = vld [vmem:[%s2277 + $0x68] sm:$0xff]
    %v2292 = vld [vmem:[%s2277 + $0x70] sm:$0xff]
    %v2293 = vld [vmem:[%s2277 + $0x78] sm:$0xff]
    %v2294 = vld [vmem:[%s2277 + $0x80] sm:$0xff]
    %v2295 = vld [vmem:[%s2277 + $0x88] sm:$0xff]
    %v2296 = vld [vmem:[%s2277 + $0x90] sm:$0xff]
    %v2297 = vld [vmem:[%s2277 + $0x98] sm:$0xff]
    %v2298 = vld [vmem:[%s2277 + $0xa0] sm:$0xff]
    %v2299 = vld [vmem:[%s2277 + $0xa8] sm:$0xff]
    %v2300 = vld [vmem:[%s2277 + $0xb0] sm:$0xff]
    %v2301 = vld [vmem:[%s2277 + $0xb8] sm:$0xff]
    %v2302 = vld [vmem:[%s2277 + $0xc0] sm:$0xff]
    %v2303 = vld [vmem:[%s2277 + $0xc8] sm:$0xff]
    %v2304 = vld [vmem:[%s2277 + $0xd0] sm:$0xff]
    %v2305 = vld [vmem:[%s2277 + $0xd8] sm:$0xff]
    %v2306 = vld [vmem:[%s2277 + $0xe0] sm:$0xff]
    %v2307 = vld [vmem:[%s2277 + $0xe8] sm:$0xff]
    %v2308 = vld [vmem:[%s2277 + $0xf0] sm:$0xff]
    %v2309 = vld [vmem:[%s2277 + $0xf8] sm:$0xff]
    %v2310 = vld [vmem:[%s2277 + $0x100] sm:$0xff]
    %v2311 = vld [vmem:[%s2277 + $0x108] sm:$0xff]
    %v2312 = vld [vmem:[%s2277 + $0x110] sm:$0xff]
    %v2313 = vld [vmem:[%s2277 + $0x118] sm:$0xff]
    %v2314 = vld [vmem:[%s2277 + $0x120] sm:$0xff]
    %v2315 = vld [vmem:[%s2277 + $0x128] sm:$0xff]
    %v2316 = vld [vmem:[%s2277 + $0x130] sm:$0xff]
    %v2317 = vld [vmem:[%s2277 + $0x138] sm:$0xff]
    %v2318 = vld [vmem:[%s2277 + $0x140] sm:$0xff]
    %v2319 = vld [vmem:[%s2277 + $0x148] sm:$0xff]
    %v2320 = vld [vmem:[%s2277 + $0x150] sm:$0xff]
    %v2321 = vld [vmem:[%s2277 + $0x158] sm:$0xff]
    %v2322 = vld [vmem:[%s2277 + $0x160] sm:$0xff]
    %v2323 = vld [vmem:[%s2277 + $0x168] sm:$0xff]
    %v2324 = vld [vmem:[%s2277 + $0x170] sm:$0xff]
    %v2325 = vld [vmem:[%s2277 + $0x178] sm:$0xff]
    %v2326 = vld [vmem:[%s2277 + $0x180] sm:$0xff]
    %v2327 = vld [vmem:[%s2277 + $0x188] sm:$0xff]
    %v2328 = vld [vmem:[%s2277 + $0x190] sm:$0xff]
    %v2329 = vld [vmem:[%s2277 + $0x198] sm:$0xff]
    %v2330 = vld [vmem:[%s2277 + $0x1a0] sm:$0xff]
    %v2331 = vld [vmem:[%s2277 + $0x1a8] sm:$0xff]
    %v2332 = vld [vmem:[%s2277 + $0x1b0] sm:$0xff]
    %v2333 = vld [vmem:[%s2277 + $0x1b8] sm:$0xff]
    %v2334 = vld [vmem:[%s2277 + $0x1c0] sm:$0xff]
    %v2335 = vld [vmem:[%s2277 + $0x1c8] sm:$0xff]
    %v2336 = vld [vmem:[%s2277 + $0x1d0] sm:$0xff]
    %v2337 = vld [vmem:[%s2277 + $0x1d8] sm:$0xff]
    %v2338 = vld [vmem:[%s2277 + $0x1e0] sm:$0xff]
    %v2339 = vld [vmem:[%s2277 + $0x1e8] sm:$0xff]
    %v2340 = vld [vmem:[%s2277 + $0x1f0] sm:$0xff]
    %v2341 = vld [vmem:[%s2277 + $0x1f8] sm:$0xff]
    %v2342 = vrot.slane %v1681, 4
    %2344 = vmatpush.msra.mxu0 %v2338
    %2345 = vmatpush.msra.mxu0 %v2334
    %2346 = vmatpush.msra.mxu0 %v2330
    %2347 = vmatpush.msra.mxu0 %v2326
    %2348 = vmatpush.msra.mxu0 %v2322
    %2349 = vmatpush.msra.mxu0 %v2318
    %2350 = vmatpush.msra.mxu0 %v2314
    %2351 = vmatpush.msra.mxu0 %v2310
    %2352 = vmatpush.msra.mxu0 %v2306
    %2353 = vmatpush.msra.mxu0 %v2302
    %2354 = vmatpush.msra.mxu0 %v2298
    %2355 = vmatpush.msra.mxu0 %v2294
    %2356 = vmatpush.msra.mxu0 %v2290
    %2357 = vmatpush.msra.mxu0 %v2286
    %2358 = vmatpush.msra.mxu0 %v2282
    %2359 = vmatpush.msra.mxu0 %v2278
    %2360 = vmatmul.f32.gmra.mxu0 %v2342
    %v2361 = vpop.f32.mrf.mxu0
    %v2362 = vadd.f32 0.0, %v2361
    %2363 = vdwg.mxu0
    %2364 = vmatpush.msra.mxu0 %v2339
    %2365 = vmatpush.msra.mxu0 %v2335
    %2366 = vmatpush.msra.mxu0 %v2331
    %2367 = vmatpush.msra.mxu0 %v2327
    %2368 = vmatpush.msra.mxu0 %v2323
    %2369 = vmatpush.msra.mxu0 %v2319
    %2370 = vmatpush.msra.mxu0 %v2315
    %2371 = vmatpush.msra.mxu0 %v2311
    %2372 = vmatpush.msra.mxu0 %v2307
    %2373 = vmatpush.msra.mxu0 %v2303
    %2374 = vmatpush.msra.mxu0 %v2299
    %2375 = vmatpush.msra.mxu0 %v2295
    %2376 = vmatpush.msra.mxu0 %v2291
    %2377 = vmatpush.msra.mxu0 %v2287
    %2378 = vmatpush.msra.mxu0 %v2283
    %2379 = vmatpush.msra.mxu0 %v2279
    %2380 = vmatmul.f32.gmra.mxu0 %v2342
    %v2381 = vpop.f32.mrf.mxu0
    %v2382 = vadd.f32 0.0, %v2381
    %2383 = vdwg.mxu0
    %2384 = vmatpush.msra.mxu0 %v2340
    %2385 = vmatpush.msra.mxu0 %v2336
    %2386 = vmatpush.msra.mxu0 %v2332
    %2387 = vmatpush.msra.mxu0 %v2328
    %2388 = vmatpush.msra.mxu0 %v2324
    %2389 = vmatpush.msra.mxu0 %v2320
    %2390 = vmatpush.msra.mxu0 %v2316
    %2391 = vmatpush.msra.mxu0 %v2312
    %2392 = vmatpush.msra.mxu0 %v2308
    %2393 = vmatpush.msra.mxu0 %v2304
    %2394 = vmatpush.msra.mxu0 %v2300
    %2395 = vmatpush.msra.mxu0 %v2296
    %2396 = vmatpush.msra.mxu0 %v2292
    %2397 = vmatpush.msra.mxu0 %v2288
    %2398 = vmatpush.msra.mxu0 %v2284
    %2399 = vmatpush.msra.mxu0 %v2280
    %2400 = vmatmul.f32.gmra.mxu0 %v2342
    %v2401 = vpop.f32.mrf.mxu0
    %v2402 = vadd.f32 0.0, %v2401
    %2403 = vdwg.mxu0
    %2404 = vmatpush.msra.mxu0 %v2341
    %2405 = vmatpush.msra.mxu0 %v2337
    %2406 = vmatpush.msra.mxu0 %v2333
    %2407 = vmatpush.msra.mxu0 %v2329
    %2408 = vmatpush.msra.mxu0 %v2325
    %2409 = vmatpush.msra.mxu0 %v2321
    %2410 = vmatpush.msra.mxu0 %v2317
    %2411 = vmatpush.msra.mxu0 %v2313
    %2412 = vmatpush.msra.mxu0 %v2309
    %2413 = vmatpush.msra.mxu0 %v2305
    %2414 = vmatpush.msra.mxu0 %v2301
    %2415 = vmatpush.msra.mxu0 %v2297
    %2416 = vmatpush.msra.mxu0 %v2293
    %2417 = vmatpush.msra.mxu0 %v2289
    %2418 = vmatpush.msra.mxu0 %v2285
    %2419 = vmatpush.msra.mxu0 %v2281
    %2420 = vmatmul.f32.gmra.mxu0 %v2342
    %v2421 = vpop.f32.mrf.mxu0
    %v2422 = vadd.f32 0.0, %v2421
    %2423 = vdwg.mxu0
    %v2424 = vadd.f32 %v2273, %v2362
    %v2425 = vadd.f32 %v2274, %v2382
    %v2426 = vadd.f32 %v2275, %v2402
    %v2427 = vadd.f32 %v2276, %v2422
    %s2428 = scalar_lea.vmem [#allocation13], 2560
    %v2429 = vld [vmem:[%s2428] sm:$0xff]
    %v2430 = vld [vmem:[%s2428 + $0x8] sm:$0xff]
    %v2431 = vld [vmem:[%s2428 + $0x10] sm:$0xff]
    %v2432 = vld [vmem:[%s2428 + $0x18] sm:$0xff]
    %v2433 = vld [vmem:[%s2428 + $0x20] sm:$0xff]
    %v2434 = vld [vmem:[%s2428 + $0x28] sm:$0xff]
    %v2435 = vld [vmem:[%s2428 + $0x30] sm:$0xff]
    %v2436 = vld [vmem:[%s2428 + $0x38] sm:$0xff]
    %v2437 = vld [vmem:[%s2428 + $0x40] sm:$0xff]
    %v2438 = vld [vmem:[%s2428 + $0x48] sm:$0xff]
    %v2439 = vld [vmem:[%s2428 + $0x50] sm:$0xff]
    %v2440 = vld [vmem:[%s2428 + $0x58] sm:$0xff]
    %v2441 = vld [vmem:[%s2428 + $0x60] sm:$0xff]
    %v2442 = vld [vmem:[%s2428 + $0x68] sm:$0xff]
    %v2443 = vld [vmem:[%s2428 + $0x70] sm:$0xff]
    %v2444 = vld [vmem:[%s2428 + $0x78] sm:$0xff]
    %v2445 = vld [vmem:[%s2428 + $0x80] sm:$0xff]
    %v2446 = vld [vmem:[%s2428 + $0x88] sm:$0xff]
    %v2447 = vld [vmem:[%s2428 + $0x90] sm:$0xff]
    %v2448 = vld [vmem:[%s2428 + $0x98] sm:$0xff]
    %v2449 = vld [vmem:[%s2428 + $0xa0] sm:$0xff]
    %v2450 = vld [vmem:[%s2428 + $0xa8] sm:$0xff]
    %v2451 = vld [vmem:[%s2428 + $0xb0] sm:$0xff]
    %v2452 = vld [vmem:[%s2428 + $0xb8] sm:$0xff]
    %v2453 = vld [vmem:[%s2428 + $0xc0] sm:$0xff]
    %v2454 = vld [vmem:[%s2428 + $0xc8] sm:$0xff]
    %v2455 = vld [vmem:[%s2428 + $0xd0] sm:$0xff]
    %v2456 = vld [vmem:[%s2428 + $0xd8] sm:$0xff]
    %v2457 = vld [vmem:[%s2428 + $0xe0] sm:$0xff]
    %v2458 = vld [vmem:[%s2428 + $0xe8] sm:$0xff]
    %v2459 = vld [vmem:[%s2428 + $0xf0] sm:$0xff]
    %v2460 = vld [vmem:[%s2428 + $0xf8] sm:$0xff]
    %v2461 = vld [vmem:[%s2428 + $0x100] sm:$0xff]
    %v2462 = vld [vmem:[%s2428 + $0x108] sm:$0xff]
    %v2463 = vld [vmem:[%s2428 + $0x110] sm:$0xff]
    %v2464 = vld [vmem:[%s2428 + $0x118] sm:$0xff]
    %v2465 = vld [vmem:[%s2428 + $0x120] sm:$0xff]
    %v2466 = vld [vmem:[%s2428 + $0x128] sm:$0xff]
    %v2467 = vld [vmem:[%s2428 + $0x130] sm:$0xff]
    %v2468 = vld [vmem:[%s2428 + $0x138] sm:$0xff]
    %v2469 = vld [vmem:[%s2428 + $0x140] sm:$0xff]
    %v2470 = vld [vmem:[%s2428 + $0x148] sm:$0xff]
    %v2471 = vld [vmem:[%s2428 + $0x150] sm:$0xff]
    %v2472 = vld [vmem:[%s2428 + $0x158] sm:$0xff]
    %v2473 = vld [vmem:[%s2428 + $0x160] sm:$0xff]
    %v2474 = vld [vmem:[%s2428 + $0x168] sm:$0xff]
    %v2475 = vld [vmem:[%s2428 + $0x170] sm:$0xff]
    %v2476 = vld [vmem:[%s2428 + $0x178] sm:$0xff]
    %v2477 = vld [vmem:[%s2428 + $0x180] sm:$0xff]
    %v2478 = vld [vmem:[%s2428 + $0x188] sm:$0xff]
    %v2479 = vld [vmem:[%s2428 + $0x190] sm:$0xff]
    %v2480 = vld [vmem:[%s2428 + $0x198] sm:$0xff]
    %v2481 = vld [vmem:[%s2428 + $0x1a0] sm:$0xff]
    %v2482 = vld [vmem:[%s2428 + $0x1a8] sm:$0xff]
    %v2483 = vld [vmem:[%s2428 + $0x1b0] sm:$0xff]
    %v2484 = vld [vmem:[%s2428 + $0x1b8] sm:$0xff]
    %v2485 = vld [vmem:[%s2428 + $0x1c0] sm:$0xff]
    %v2486 = vld [vmem:[%s2428 + $0x1c8] sm:$0xff]
    %v2487 = vld [vmem:[%s2428 + $0x1d0] sm:$0xff]
    %v2488 = vld [vmem:[%s2428 + $0x1d8] sm:$0xff]
    %v2489 = vld [vmem:[%s2428 + $0x1e0] sm:$0xff]
    %v2490 = vld [vmem:[%s2428 + $0x1e8] sm:$0xff]
    %v2491 = vld [vmem:[%s2428 + $0x1f0] sm:$0xff]
    %v2492 = vld [vmem:[%s2428 + $0x1f8] sm:$0xff]
    %v2493 = vrot.slane %v1681, 5
    %2495 = vmatpush.msra.mxu0 %v2489
    %2496 = vmatpush.msra.mxu0 %v2485
    %2497 = vmatpush.msra.mxu0 %v2481
    %2498 = vmatpush.msra.mxu0 %v2477
    %2499 = vmatpush.msra.mxu0 %v2473
    %2500 = vmatpush.msra.mxu0 %v2469
    %2501 = vmatpush.msra.mxu0 %v2465
    %2502 = vmatpush.msra.mxu0 %v2461
    %2503 = vmatpush.msra.mxu0 %v2457
    %2504 = vmatpush.msra.mxu0 %v2453
    %2505 = vmatpush.msra.mxu0 %v2449
    %2506 = vmatpush.msra.mxu0 %v2445
    %2507 = vmatpush.msra.mxu0 %v2441
    %2508 = vmatpush.msra.mxu0 %v2437
    %2509 = vmatpush.msra.mxu0 %v2433
    %2510 = vmatpush.msra.mxu0 %v2429
    %2511 = vmatmul.f32.gmra.mxu0 %v2493
    %v2512 = vpop.f32.mrf.mxu0
    %v2513 = vadd.f32 0.0, %v2512
    %2514 = vdwg.mxu0
    %2515 = vmatpush.msra.mxu0 %v2490
    %2516 = vmatpush.msra.mxu0 %v2486
    %2517 = vmatpush.msra.mxu0 %v2482
    %2518 = vmatpush.msra.mxu0 %v2478
    %2519 = vmatpush.msra.mxu0 %v2474
    %2520 = vmatpush.msra.mxu0 %v2470
    %2521 = vmatpush.msra.mxu0 %v2466
    %2522 = vmatpush.msra.mxu0 %v2462
    %2523 = vmatpush.msra.mxu0 %v2458
    %2524 = vmatpush.msra.mxu0 %v2454
    %2525 = vmatpush.msra.mxu0 %v2450
    %2526 = vmatpush.msra.mxu0 %v2446
    %2527 = vmatpush.msra.mxu0 %v2442
    %2528 = vmatpush.msra.mxu0 %v2438
    %2529 = vmatpush.msra.mxu0 %v2434
    %2530 = vmatpush.msra.mxu0 %v2430
    %2531 = vmatmul.f32.gmra.mxu0 %v2493
    %v2532 = vpop.f32.mrf.mxu0
    %v2533 = vadd.f32 0.0, %v2532
    %2534 = vdwg.mxu0
    %2535 = vmatpush.msra.mxu0 %v2491
    %2536 = vmatpush.msra.mxu0 %v2487
    %2537 = vmatpush.msra.mxu0 %v2483
    %2538 = vmatpush.msra.mxu0 %v2479
    %2539 = vmatpush.msra.mxu0 %v2475
    %2540 = vmatpush.msra.mxu0 %v2471
    %2541 = vmatpush.msra.mxu0 %v2467
    %2542 = vmatpush.msra.mxu0 %v2463
    %2543 = vmatpush.msra.mxu0 %v2459
    %2544 = vmatpush.msra.mxu0 %v2455
    %2545 = vmatpush.msra.mxu0 %v2451
    %2546 = vmatpush.msra.mxu0 %v2447
    %2547 = vmatpush.msra.mxu0 %v2443
    %2548 = vmatpush.msra.mxu0 %v2439
    %2549 = vmatpush.msra.mxu0 %v2435
    %2550 = vmatpush.msra.mxu0 %v2431
    %2551 = vmatmul.f32.gmra.mxu0 %v2493
    %v2552 = vpop.f32.mrf.mxu0
    %v2553 = vadd.f32 0.0, %v2552
    %2554 = vdwg.mxu0
    %2555 = vmatpush.msra.mxu0 %v2492
    %2556 = vmatpush.msra.mxu0 %v2488
    %2557 = vmatpush.msra.mxu0 %v2484
    %2558 = vmatpush.msra.mxu0 %v2480
    %2559 = vmatpush.msra.mxu0 %v2476
    %2560 = vmatpush.msra.mxu0 %v2472
    %2561 = vmatpush.msra.mxu0 %v2468
    %2562 = vmatpush.msra.mxu0 %v2464
    %2563 = vmatpush.msra.mxu0 %v2460
    %2564 = vmatpush.msra.mxu0 %v2456
    %2565 = vmatpush.msra.mxu0 %v2452
    %2566 = vmatpush.msra.mxu0 %v2448
    %2567 = vmatpush.msra.mxu0 %v2444
    %2568 = vmatpush.msra.mxu0 %v2440
    %2569 = vmatpush.msra.mxu0 %v2436
    %2570 = vmatpush.msra.mxu0 %v2432
    %2571 = vmatmul.f32.gmra.mxu0 %v2493
    %v2572 = vpop.f32.mrf.mxu0
    %v2573 = vadd.f32 0.0, %v2572
    %2574 = vdwg.mxu0
    %v2575 = vadd.f32 %v2424, %v2513
    %v2576 = vadd.f32 %v2425, %v2533
    %v2577 = vadd.f32 %v2426, %v2553
    %v2578 = vadd.f32 %v2427, %v2573
    %s2579 = scalar_lea.vmem [#allocation13], 3072
    %v2580 = vld [vmem:[%s2579] sm:$0xff]
    %v2581 = vld [vmem:[%s2579 + $0x8] sm:$0xff]
    %v2582 = vld [vmem:[%s2579 + $0x10] sm:$0xff]
    %v2583 = vld [vmem:[%s2579 + $0x18] sm:$0xff]
    %v2584 = vld [vmem:[%s2579 + $0x20] sm:$0xff]
    %v2585 = vld [vmem:[%s2579 + $0x28] sm:$0xff]
    %v2586 = vld [vmem:[%s2579 + $0x30] sm:$0xff]
    %v2587 = vld [vmem:[%s2579 + $0x38] sm:$0xff]
    %v2588 = vld [vmem:[%s2579 + $0x40] sm:$0xff]
    %v2589 = vld [vmem:[%s2579 + $0x48] sm:$0xff]
    %v2590 = vld [vmem:[%s2579 + $0x50] sm:$0xff]
    %v2591 = vld [vmem:[%s2579 + $0x58] sm:$0xff]
    %v2592 = vld [vmem:[%s2579 + $0x60] sm:$0xff]
    %v2593 = vld [vmem:[%s2579 + $0x68] sm:$0xff]
    %v2594 = vld [vmem:[%s2579 + $0x70] sm:$0xff]
    %v2595 = vld [vmem:[%s2579 + $0x78] sm:$0xff]
    %v2596 = vld [vmem:[%s2579 + $0x80] sm:$0xff]
    %v2597 = vld [vmem:[%s2579 + $0x88] sm:$0xff]
    %v2598 = vld [vmem:[%s2579 + $0x90] sm:$0xff]
    %v2599 = vld [vmem:[%s2579 + $0x98] sm:$0xff]
    %v2600 = vld [vmem:[%s2579 + $0xa0] sm:$0xff]
    %v2601 = vld [vmem:[%s2579 + $0xa8] sm:$0xff]
    %v2602 = vld [vmem:[%s2579 + $0xb0] sm:$0xff]
    %v2603 = vld [vmem:[%s2579 + $0xb8] sm:$0xff]
    %v2604 = vld [vmem:[%s2579 + $0xc0] sm:$0xff]
    %v2605 = vld [vmem:[%s2579 + $0xc8] sm:$0xff]
    %v2606 = vld [vmem:[%s2579 + $0xd0] sm:$0xff]
    %v2607 = vld [vmem:[%s2579 + $0xd8] sm:$0xff]
    %v2608 = vld [vmem:[%s2579 + $0xe0] sm:$0xff]
    %v2609 = vld [vmem:[%s2579 + $0xe8] sm:$0xff]
    %v2610 = vld [vmem:[%s2579 + $0xf0] sm:$0xff]
    %v2611 = vld [vmem:[%s2579 + $0xf8] sm:$0xff]
    %v2612 = vld [vmem:[%s2579 + $0x100] sm:$0xff]
    %v2613 = vld [vmem:[%s2579 + $0x108] sm:$0xff]
    %v2614 = vld [vmem:[%s2579 + $0x110] sm:$0xff]
    %v2615 = vld [vmem:[%s2579 + $0x118] sm:$0xff]
    %v2616 = vld [vmem:[%s2579 + $0x120] sm:$0xff]
    %v2617 = vld [vmem:[%s2579 + $0x128] sm:$0xff]
    %v2618 = vld [vmem:[%s2579 + $0x130] sm:$0xff]
    %v2619 = vld [vmem:[%s2579 + $0x138] sm:$0xff]
    %v2620 = vld [vmem:[%s2579 + $0x140] sm:$0xff]
    %v2621 = vld [vmem:[%s2579 + $0x148] sm:$0xff]
    %v2622 = vld [vmem:[%s2579 + $0x150] sm:$0xff]
    %v2623 = vld [vmem:[%s2579 + $0x158] sm:$0xff]
    %v2624 = vld [vmem:[%s2579 + $0x160] sm:$0xff]
    %v2625 = vld [vmem:[%s2579 + $0x168] sm:$0xff]
    %v2626 = vld [vmem:[%s2579 + $0x170] sm:$0xff]
    %v2627 = vld [vmem:[%s2579 + $0x178] sm:$0xff]
    %v2628 = vld [vmem:[%s2579 + $0x180] sm:$0xff]
    %v2629 = vld [vmem:[%s2579 + $0x188] sm:$0xff]
    %v2630 = vld [vmem:[%s2579 + $0x190] sm:$0xff]
    %v2631 = vld [vmem:[%s2579 + $0x198] sm:$0xff]
    %v2632 = vld [vmem:[%s2579 + $0x1a0] sm:$0xff]
    %v2633 = vld [vmem:[%s2579 + $0x1a8] sm:$0xff]
    %v2634 = vld [vmem:[%s2579 + $0x1b0] sm:$0xff]
    %v2635 = vld [vmem:[%s2579 + $0x1b8] sm:$0xff]
    %v2636 = vld [vmem:[%s2579 + $0x1c0] sm:$0xff]
    %v2637 = vld [vmem:[%s2579 + $0x1c8] sm:$0xff]
    %v2638 = vld [vmem:[%s2579 + $0x1d0] sm:$0xff]
    %v2639 = vld [vmem:[%s2579 + $0x1d8] sm:$0xff]
    %v2640 = vld [vmem:[%s2579 + $0x1e0] sm:$0xff]
    %v2641 = vld [vmem:[%s2579 + $0x1e8] sm:$0xff]
    %v2642 = vld [vmem:[%s2579 + $0x1f0] sm:$0xff]
    %v2643 = vld [vmem:[%s2579 + $0x1f8] sm:$0xff]
    %v2644 = vrot.slane %v1681, 6
    %2646 = vmatpush.msra.mxu0 %v2640
    %2647 = vmatpush.msra.mxu0 %v2636
    %2648 = vmatpush.msra.mxu0 %v2632
    %2649 = vmatpush.msra.mxu0 %v2628
    %2650 = vmatpush.msra.mxu0 %v2624
    %2651 = vmatpush.msra.mxu0 %v2620
    %2652 = vmatpush.msra.mxu0 %v2616
    %2653 = vmatpush.msra.mxu0 %v2612
    %2654 = vmatpush.msra.mxu0 %v2608
    %2655 = vmatpush.msra.mxu0 %v2604
    %2656 = vmatpush.msra.mxu0 %v2600
    %2657 = vmatpush.msra.mxu0 %v2596
    %2658 = vmatpush.msra.mxu0 %v2592
    %2659 = vmatpush.msra.mxu0 %v2588
    %2660 = vmatpush.msra.mxu0 %v2584
    %2661 = vmatpush.msra.mxu0 %v2580
    %2662 = vmatmul.f32.gmra.mxu0 %v2644
    %v2663 = vpop.f32.mrf.mxu0
    %v2664 = vadd.f32 0.0, %v2663
    %2665 = vdwg.mxu0
    %2666 = vmatpush.msra.mxu0 %v2641
    %2667 = vmatpush.msra.mxu0 %v2637
    %2668 = vmatpush.msra.mxu0 %v2633
    %2669 = vmatpush.msra.mxu0 %v2629
    %2670 = vmatpush.msra.mxu0 %v2625
    %2671 = vmatpush.msra.mxu0 %v2621
    %2672 = vmatpush.msra.mxu0 %v2617
    %2673 = vmatpush.msra.mxu0 %v2613
    %2674 = vmatpush.msra.mxu0 %v2609
    %2675 = vmatpush.msra.mxu0 %v2605
    %2676 = vmatpush.msra.mxu0 %v2601
    %2677 = vmatpush.msra.mxu0 %v2597
    %2678 = vmatpush.msra.mxu0 %v2593
    %2679 = vmatpush.msra.mxu0 %v2589
    %2680 = vmatpush.msra.mxu0 %v2585
    %2681 = vmatpush.msra.mxu0 %v2581
    %2682 = vmatmul.f32.gmra.mxu0 %v2644
    %v2683 = vpop.f32.mrf.mxu0
    %v2684 = vadd.f32 0.0, %v2683
    %2685 = vdwg.mxu0
    %2686 = vmatpush.msra.mxu0 %v2642
    %2687 = vmatpush.msra.mxu0 %v2638
    %2688 = vmatpush.msra.mxu0 %v2634
    %2689 = vmatpush.msra.mxu0 %v2630
    %2690 = vmatpush.msra.mxu0 %v2626
    %2691 = vmatpush.msra.mxu0 %v2622
    %2692 = vmatpush.msra.mxu0 %v2618
    %2693 = vmatpush.msra.mxu0 %v2614
    %2694 = vmatpush.msra.mxu0 %v2610
    %2695 = vmatpush.msra.mxu0 %v2606
    %2696 = vmatpush.msra.mxu0 %v2602
    %2697 = vmatpush.msra.mxu0 %v2598
    %2698 = vmatpush.msra.mxu0 %v2594
    %2699 = vmatpush.msra.mxu0 %v2590
    %2700 = vmatpush.msra.mxu0 %v2586
    %2701 = vmatpush.msra.mxu0 %v2582
    %2702 = vmatmul.f32.gmra.mxu0 %v2644
    %v2703 = vpop.f32.mrf.mxu0
    %v2704 = vadd.f32 0.0, %v2703
    %2705 = vdwg.mxu0
    %2706 = vmatpush.msra.mxu0 %v2643
    %2707 = vmatpush.msra.mxu0 %v2639
    %2708 = vmatpush.msra.mxu0 %v2635
    %2709 = vmatpush.msra.mxu0 %v2631
    %2710 = vmatpush.msra.mxu0 %v2627
    %2711 = vmatpush.msra.mxu0 %v2623
    %2712 = vmatpush.msra.mxu0 %v2619
    %2713 = vmatpush.msra.mxu0 %v2615
    %2714 = vmatpush.msra.mxu0 %v2611
    %2715 = vmatpush.msra.mxu0 %v2607
    %2716 = vmatpush.msra.mxu0 %v2603
    %2717 = vmatpush.msra.mxu0 %v2599
    %2718 = vmatpush.msra.mxu0 %v2595
    %2719 = vmatpush.msra.mxu0 %v2591
    %2720 = vmatpush.msra.mxu0 %v2587
    %2721 = vmatpush.msra.mxu0 %v2583
    %2722 = vmatmul.f32.gmra.mxu0 %v2644
    %v2723 = vpop.f32.mrf.mxu0
    %v2724 = vadd.f32 0.0, %v2723
    %2725 = vdwg.mxu0
    %v2726 = vadd.f32 %v2575, %v2664
    %v2727 = vadd.f32 %v2576, %v2684
    %v2728 = vadd.f32 %v2577, %v2704
    %v2729 = vadd.f32 %v2578, %v2724
    %s2730 = scalar_lea.vmem [#allocation13], 3584
    %v2731 = vld [vmem:[%s2730] sm:$0xff]
    %v2732 = vld [vmem:[%s2730 + $0x8] sm:$0xff]
    %v2733 = vld [vmem:[%s2730 + $0x10] sm:$0xff]
    %v2734 = vld [vmem:[%s2730 + $0x18] sm:$0xff]
    %v2735 = vld [vmem:[%s2730 + $0x20] sm:$0xff]
    %v2736 = vld [vmem:[%s2730 + $0x28] sm:$0xff]
    %v2737 = vld [vmem:[%s2730 + $0x30] sm:$0xff]
    %v2738 = vld [vmem:[%s2730 + $0x38] sm:$0xff]
    %v2739 = vld [vmem:[%s2730 + $0x40] sm:$0xff]
    %v2740 = vld [vmem:[%s2730 + $0x48] sm:$0xff]
    %v2741 = vld [vmem:[%s2730 + $0x50] sm:$0xff]
    %v2742 = vld [vmem:[%s2730 + $0x58] sm:$0xff]
    %v2743 = vld [vmem:[%s2730 + $0x60] sm:$0xff]
    %v2744 = vld [vmem:[%s2730 + $0x68] sm:$0xff]
    %v2745 = vld [vmem:[%s2730 + $0x70] sm:$0xff]
    %v2746 = vld [vmem:[%s2730 + $0x78] sm:$0xff]
    %v2747 = vld [vmem:[%s2730 + $0x80] sm:$0xff]
    %v2748 = vld [vmem:[%s2730 + $0x88] sm:$0xff]
    %v2749 = vld [vmem:[%s2730 + $0x90] sm:$0xff]
    %v2750 = vld [vmem:[%s2730 + $0x98] sm:$0xff]
    %v2751 = vld [vmem:[%s2730 + $0xa0] sm:$0xff]
    %v2752 = vld [vmem:[%s2730 + $0xa8] sm:$0xff]
    %v2753 = vld [vmem:[%s2730 + $0xb0] sm:$0xff]
    %v2754 = vld [vmem:[%s2730 + $0xb8] sm:$0xff]
    %v2755 = vld [vmem:[%s2730 + $0xc0] sm:$0xff]
    %v2756 = vld [vmem:[%s2730 + $0xc8] sm:$0xff]
    %v2757 = vld [vmem:[%s2730 + $0xd0] sm:$0xff]
    %v2758 = vld [vmem:[%s2730 + $0xd8] sm:$0xff]
    %v2759 = vld [vmem:[%s2730 + $0xe0] sm:$0xff]
    %v2760 = vld [vmem:[%s2730 + $0xe8] sm:$0xff]
    %v2761 = vld [vmem:[%s2730 + $0xf0] sm:$0xff]
    %v2762 = vld [vmem:[%s2730 + $0xf8] sm:$0xff]
    %v2763 = vld [vmem:[%s2730 + $0x100] sm:$0xff]
    %v2764 = vld [vmem:[%s2730 + $0x108] sm:$0xff]
    %v2765 = vld [vmem:[%s2730 + $0x110] sm:$0xff]
    %v2766 = vld [vmem:[%s2730 + $0x118] sm:$0xff]
    %v2767 = vld [vmem:[%s2730 + $0x120] sm:$0xff]
    %v2768 = vld [vmem:[%s2730 + $0x128] sm:$0xff]
    %v2769 = vld [vmem:[%s2730 + $0x130] sm:$0xff]
    %v2770 = vld [vmem:[%s2730 + $0x138] sm:$0xff]
    %v2771 = vld [vmem:[%s2730 + $0x140] sm:$0xff]
    %v2772 = vld [vmem:[%s2730 + $0x148] sm:$0xff]
    %v2773 = vld [vmem:[%s2730 + $0x150] sm:$0xff]
    %v2774 = vld [vmem:[%s2730 + $0x158] sm:$0xff]
    %v2775 = vld [vmem:[%s2730 + $0x160] sm:$0xff]
    %v2776 = vld [vmem:[%s2730 + $0x168] sm:$0xff]
    %v2777 = vld [vmem:[%s2730 + $0x170] sm:$0xff]
    %v2778 = vld [vmem:[%s2730 + $0x178] sm:$0xff]
    %v2779 = vld [vmem:[%s2730 + $0x180] sm:$0xff]
    %v2780 = vld [vmem:[%s2730 + $0x188] sm:$0xff]
    %v2781 = vld [vmem:[%s2730 + $0x190] sm:$0xff]
    %v2782 = vld [vmem:[%s2730 + $0x198] sm:$0xff]
    %v2783 = vld [vmem:[%s2730 + $0x1a0] sm:$0xff]
    %v2784 = vld [vmem:[%s2730 + $0x1a8] sm:$0xff]
    %v2785 = vld [vmem:[%s2730 + $0x1b0] sm:$0xff]
    %v2786 = vld [vmem:[%s2730 + $0x1b8] sm:$0xff]
    %v2787 = vld [vmem:[%s2730 + $0x1c0] sm:$0xff]
    %v2788 = vld [vmem:[%s2730 + $0x1c8] sm:$0xff]
    %v2789 = vld [vmem:[%s2730 + $0x1d0] sm:$0xff]
    %v2790 = vld [vmem:[%s2730 + $0x1d8] sm:$0xff]
    %v2791 = vld [vmem:[%s2730 + $0x1e0] sm:$0xff]
    %v2792 = vld [vmem:[%s2730 + $0x1e8] sm:$0xff]
    %v2793 = vld [vmem:[%s2730 + $0x1f0] sm:$0xff]
    %v2794 = vld [vmem:[%s2730 + $0x1f8] sm:$0xff]
    %v2795 = vrot.slane %v1681, 7
    %2797 = vmatpush.msra.mxu0 %v2791
    %2798 = vmatpush.msra.mxu0 %v2787
    %2799 = vmatpush.msra.mxu0 %v2783
    %2800 = vmatpush.msra.mxu0 %v2779
    %2801 = vmatpush.msra.mxu0 %v2775
    %2802 = vmatpush.msra.mxu0 %v2771
    %2803 = vmatpush.msra.mxu0 %v2767
    %2804 = vmatpush.msra.mxu0 %v2763
    %2805 = vmatpush.msra.mxu0 %v2759
    %2806 = vmatpush.msra.mxu0 %v2755
    %2807 = vmatpush.msra.mxu0 %v2751
    %2808 = vmatpush.msra.mxu0 %v2747
    %2809 = vmatpush.msra.mxu0 %v2743
    %2810 = vmatpush.msra.mxu0 %v2739
    %2811 = vmatpush.msra.mxu0 %v2735
    %2812 = vmatpush.msra.mxu0 %v2731
    %2813 = vmatmul.f32.gmra.mxu0 %v2795
    %v2814 = vpop.f32.mrf.mxu0
    %v2815 = vadd.f32 0.0, %v2814
    %2816 = vdwg.mxu0
    %2817 = vmatpush.msra.mxu0 %v2792
    %2818 = vmatpush.msra.mxu0 %v2788
    %2819 = vmatpush.msra.mxu0 %v2784
    %2820 = vmatpush.msra.mxu0 %v2780
    %2821 = vmatpush.msra.mxu0 %v2776
    %2822 = vmatpush.msra.mxu0 %v2772
    %2823 = vmatpush.msra.mxu0 %v2768
    %2824 = vmatpush.msra.mxu0 %v2764
    %2825 = vmatpush.msra.mxu0 %v2760
    %2826 = vmatpush.msra.mxu0 %v2756
    %2827 = vmatpush.msra.mxu0 %v2752
    %2828 = vmatpush.msra.mxu0 %v2748
    %2829 = vmatpush.msra.mxu0 %v2744
    %2830 = vmatpush.msra.mxu0 %v2740
    %2831 = vmatpush.msra.mxu0 %v2736
    %2832 = vmatpush.msra.mxu0 %v2732
    %2833 = vmatmul.f32.gmra.mxu0 %v2795
    %v2834 = vpop.f32.mrf.mxu0
    %v2835 = vadd.f32 0.0, %v2834
    %2836 = vdwg.mxu0
    %2837 = vmatpush.msra.mxu0 %v2793
    %2838 = vmatpush.msra.mxu0 %v2789
    %2839 = vmatpush.msra.mxu0 %v2785
    %2840 = vmatpush.msra.mxu0 %v2781
    %2841 = vmatpush.msra.mxu0 %v2777
    %2842 = vmatpush.msra.mxu0 %v2773
    %2843 = vmatpush.msra.mxu0 %v2769
    %2844 = vmatpush.msra.mxu0 %v2765
    %2845 = vmatpush.msra.mxu0 %v2761
    %2846 = vmatpush.msra.mxu0 %v2757
    %2847 = vmatpush.msra.mxu0 %v2753
    %2848 = vmatpush.msra.mxu0 %v2749
    %2849 = vmatpush.msra.mxu0 %v2745
    %2850 = vmatpush.msra.mxu0 %v2741
    %2851 = vmatpush.msra.mxu0 %v2737
    %2852 = vmatpush.msra.mxu0 %v2733
    %2853 = vmatmul.f32.gmra.mxu0 %v2795
    %v2854 = vpop.f32.mrf.mxu0
    %v2855 = vadd.f32 0.0, %v2854
    %2856 = vdwg.mxu0
    %2857 = vmatpush.msra.mxu0 %v2794
    %2858 = vmatpush.msra.mxu0 %v2790
    %2859 = vmatpush.msra.mxu0 %v2786
    %2860 = vmatpush.msra.mxu0 %v2782
    %2861 = vmatpush.msra.mxu0 %v2778
    %2862 = vmatpush.msra.mxu0 %v2774
    %2863 = vmatpush.msra.mxu0 %v2770
    %2864 = vmatpush.msra.mxu0 %v2766
    %2865 = vmatpush.msra.mxu0 %v2762
    %2866 = vmatpush.msra.mxu0 %v2758
    %2867 = vmatpush.msra.mxu0 %v2754
    %2868 = vmatpush.msra.mxu0 %v2750
    %2869 = vmatpush.msra.mxu0 %v2746
    %2870 = vmatpush.msra.mxu0 %v2742
    %2871 = vmatpush.msra.mxu0 %v2738
    %2872 = vmatpush.msra.mxu0 %v2734
    %2873 = vmatmul.f32.gmra.mxu0 %v2795
    %v2874 = vpop.f32.mrf.mxu0
    %v2875 = vadd.f32 0.0, %v2874
    %2876 = vdwg.mxu0
    %v2877 = vadd.f32 %v2726, %v2815
    %v2878 = vadd.f32 %v2727, %v2835
    %v2879 = vadd.f32 %v2728, %v2855
    %v2880 = vadd.f32 %v2729, %v2875
    %s2881 = scalar_lea.vmem [#allocation13], 4096
    %v2882 = vld [vmem:[%s2881] sm:$0xff]
    %v2883 = vld [vmem:[%s2881 + $0x8] sm:$0xff]
    %v2884 = vld [vmem:[%s2881 + $0x10] sm:$0xff]
    %v2885 = vld [vmem:[%s2881 + $0x18] sm:$0xff]
    %v2886 = vld [vmem:[%s2881 + $0x20] sm:$0xff]
    %v2887 = vld [vmem:[%s2881 + $0x28] sm:$0xff]
    %v2888 = vld [vmem:[%s2881 + $0x30] sm:$0xff]
    %v2889 = vld [vmem:[%s2881 + $0x38] sm:$0xff]
    %v2890 = vld [vmem:[%s2881 + $0x40] sm:$0xff]
    %v2891 = vld [vmem:[%s2881 + $0x48] sm:$0xff]
    %v2892 = vld [vmem:[%s2881 + $0x50] sm:$0xff]
    %v2893 = vld [vmem:[%s2881 + $0x58] sm:$0xff]
    %v2894 = vld [vmem:[%s2881 + $0x60] sm:$0xff]
    %v2895 = vld [vmem:[%s2881 + $0x68] sm:$0xff]
    %v2896 = vld [vmem:[%s2881 + $0x70] sm:$0xff]
    %v2897 = vld [vmem:[%s2881 + $0x78] sm:$0xff]
    %v2898 = vld [vmem:[%s2881 + $0x80] sm:$0xff]
    %v2899 = vld [vmem:[%s2881 + $0x88] sm:$0xff]
    %v2900 = vld [vmem:[%s2881 + $0x90] sm:$0xff]
    %v2901 = vld [vmem:[%s2881 + $0x98] sm:$0xff]
    %v2902 = vld [vmem:[%s2881 + $0xa0] sm:$0xff]
    %v2903 = vld [vmem:[%s2881 + $0xa8] sm:$0xff]
    %v2904 = vld [vmem:[%s2881 + $0xb0] sm:$0xff]
    %v2905 = vld [vmem:[%s2881 + $0xb8] sm:$0xff]
    %v2906 = vld [vmem:[%s2881 + $0xc0] sm:$0xff]
    %v2907 = vld [vmem:[%s2881 + $0xc8] sm:$0xff]
    %v2908 = vld [vmem:[%s2881 + $0xd0] sm:$0xff]
    %v2909 = vld [vmem:[%s2881 + $0xd8] sm:$0xff]
    %v2910 = vld [vmem:[%s2881 + $0xe0] sm:$0xff]
    %v2911 = vld [vmem:[%s2881 + $0xe8] sm:$0xff]
    %v2912 = vld [vmem:[%s2881 + $0xf0] sm:$0xff]
    %v2913 = vld [vmem:[%s2881 + $0xf8] sm:$0xff]
    %v2914 = vld [vmem:[%s2881 + $0x100] sm:$0xff]
    %v2915 = vld [vmem:[%s2881 + $0x108] sm:$0xff]
    %v2916 = vld [vmem:[%s2881 + $0x110] sm:$0xff]
    %v2917 = vld [vmem:[%s2881 + $0x118] sm:$0xff]
    %v2918 = vld [vmem:[%s2881 + $0x120] sm:$0xff]
    %v2919 = vld [vmem:[%s2881 + $0x128] sm:$0xff]
    %v2920 = vld [vmem:[%s2881 + $0x130] sm:$0xff]
    %v2921 = vld [vmem:[%s2881 + $0x138] sm:$0xff]
    %v2922 = vld [vmem:[%s2881 + $0x140] sm:$0xff]
    %v2923 = vld [vmem:[%s2881 + $0x148] sm:$0xff]
    %v2924 = vld [vmem:[%s2881 + $0x150] sm:$0xff]
    %v2925 = vld [vmem:[%s2881 + $0x158] sm:$0xff]
    %v2926 = vld [vmem:[%s2881 + $0x160] sm:$0xff]
    %v2927 = vld [vmem:[%s2881 + $0x168] sm:$0xff]
    %v2928 = vld [vmem:[%s2881 + $0x170] sm:$0xff]
    %v2929 = vld [vmem:[%s2881 + $0x178] sm:$0xff]
    %v2930 = vld [vmem:[%s2881 + $0x180] sm:$0xff]
    %v2931 = vld [vmem:[%s2881 + $0x188] sm:$0xff]
    %v2932 = vld [vmem:[%s2881 + $0x190] sm:$0xff]
    %v2933 = vld [vmem:[%s2881 + $0x198] sm:$0xff]
    %v2934 = vld [vmem:[%s2881 + $0x1a0] sm:$0xff]
    %v2935 = vld [vmem:[%s2881 + $0x1a8] sm:$0xff]
    %v2936 = vld [vmem:[%s2881 + $0x1b0] sm:$0xff]
    %v2937 = vld [vmem:[%s2881 + $0x1b8] sm:$0xff]
    %v2938 = vld [vmem:[%s2881 + $0x1c0] sm:$0xff]
    %v2939 = vld [vmem:[%s2881 + $0x1c8] sm:$0xff]
    %v2940 = vld [vmem:[%s2881 + $0x1d0] sm:$0xff]
    %v2941 = vld [vmem:[%s2881 + $0x1d8] sm:$0xff]
    %v2942 = vld [vmem:[%s2881 + $0x1e0] sm:$0xff]
    %v2943 = vld [vmem:[%s2881 + $0x1e8] sm:$0xff]
    %v2944 = vld [vmem:[%s2881 + $0x1f0] sm:$0xff]
    %v2945 = vld [vmem:[%s2881 + $0x1f8] sm:$0xff]
    %2946 = vmatpush.msra.mxu0 %v2942
    %2947 = vmatpush.msra.mxu0 %v2938
    %2948 = vmatpush.msra.mxu0 %v2934
    %2949 = vmatpush.msra.mxu0 %v2930
    %2950 = vmatpush.msra.mxu0 %v2926
    %2951 = vmatpush.msra.mxu0 %v2922
    %2952 = vmatpush.msra.mxu0 %v2918
    %2953 = vmatpush.msra.mxu0 %v2914
    %2954 = vmatpush.msra.mxu0 %v2910
    %2955 = vmatpush.msra.mxu0 %v2906
    %2956 = vmatpush.msra.mxu0 %v2902
    %2957 = vmatpush.msra.mxu0 %v2898
    %2958 = vmatpush.msra.mxu0 %v2894
    %2959 = vmatpush.msra.mxu0 %v2890
    %2960 = vmatpush.msra.mxu0 %v2886
    %2961 = vmatpush.msra.mxu0 %v2882
    %2962 = vmatmul.f32.gmra.mxu0 %v1682
    %v2963 = vpop.f32.mrf.mxu0
    %v2964 = vadd.f32 0.0, %v2963
    %2965 = vdwg.mxu0
    %2966 = vmatpush.msra.mxu0 %v2943
    %2967 = vmatpush.msra.mxu0 %v2939
    %2968 = vmatpush.msra.mxu0 %v2935
    %2969 = vmatpush.msra.mxu0 %v2931
    %2970 = vmatpush.msra.mxu0 %v2927
    %2971 = vmatpush.msra.mxu0 %v2923
    %2972 = vmatpush.msra.mxu0 %v2919
    %2973 = vmatpush.msra.mxu0 %v2915
    %2974 = vmatpush.msra.mxu0 %v2911
    %2975 = vmatpush.msra.mxu0 %v2907
    %2976 = vmatpush.msra.mxu0 %v2903
    %2977 = vmatpush.msra.mxu0 %v2899
    %2978 = vmatpush.msra.mxu0 %v2895
    %2979 = vmatpush.msra.mxu0 %v2891
    %2980 = vmatpush.msra.mxu0 %v2887
    %2981 = vmatpush.msra.mxu0 %v2883
    %2982 = vmatmul.f32.gmra.mxu0 %v1682
    %v2983 = vpop.f32.mrf.mxu0
    %v2984 = vadd.f32 0.0, %v2983
    %2985 = vdwg.mxu0
    %2986 = vmatpush.msra.mxu0 %v2944
    %2987 = vmatpush.msra.mxu0 %v2940
    %2988 = vmatpush.msra.mxu0 %v2936
    %2989 = vmatpush.msra.mxu0 %v2932
    %2990 = vmatpush.msra.mxu0 %v2928
    %2991 = vmatpush.msra.mxu0 %v2924
    %2992 = vmatpush.msra.mxu0 %v2920
    %2993 = vmatpush.msra.mxu0 %v2916
    %2994 = vmatpush.msra.mxu0 %v2912
    %2995 = vmatpush.msra.mxu0 %v2908
    %2996 = vmatpush.msra.mxu0 %v2904
    %2997 = vmatpush.msra.mxu0 %v2900
    %2998 = vmatpush.msra.mxu0 %v2896
    %2999 = vmatpush.msra.mxu0 %v2892
    %3000 = vmatpush.msra.mxu0 %v2888
    %3001 = vmatpush.msra.mxu0 %v2884
    %3002 = vmatmul.f32.gmra.mxu0 %v1682
    %v3003 = vpop.f32.mrf.mxu0
    %v3004 = vadd.f32 0.0, %v3003
    %3005 = vdwg.mxu0
    %3006 = vmatpush.msra.mxu0 %v2945
    %3007 = vmatpush.msra.mxu0 %v2941
    %3008 = vmatpush.msra.mxu0 %v2937
    %3009 = vmatpush.msra.mxu0 %v2933
    %3010 = vmatpush.msra.mxu0 %v2929
    %3011 = vmatpush.msra.mxu0 %v2925
    %3012 = vmatpush.msra.mxu0 %v2921
    %3013 = vmatpush.msra.mxu0 %v2917
    %3014 = vmatpush.msra.mxu0 %v2913
    %3015 = vmatpush.msra.mxu0 %v2909
    %3016 = vmatpush.msra.mxu0 %v2905
    %3017 = vmatpush.msra.mxu0 %v2901
    %3018 = vmatpush.msra.mxu0 %v2897
    %3019 = vmatpush.msra.mxu0 %v2893
    %3020 = vmatpush.msra.mxu0 %v2889
    %3021 = vmatpush.msra.mxu0 %v2885
    %3022 = vmatmul.f32.gmra.mxu0 %v1682
    %v3023 = vpop.f32.mrf.mxu0
    %v3024 = vadd.f32 0.0, %v3023
    %3025 = vdwg.mxu0
    %v3026 = vadd.f32 %v2877, %v2964
    %v3027 = vadd.f32 %v2878, %v2984
    %v3028 = vadd.f32 %v2879, %v3004
    %v3029 = vadd.f32 %v2880, %v3024
    %s3030 = scalar_lea.vmem [#allocation13], 4608
    %v3031 = vld [vmem:[%s3030] sm:$0xff]
    %v3032 = vld [vmem:[%s3030 + $0x8] sm:$0xff]
    %v3033 = vld [vmem:[%s3030 + $0x10] sm:$0xff]
    %v3034 = vld [vmem:[%s3030 + $0x18] sm:$0xff]
    %v3035 = vld [vmem:[%s3030 + $0x20] sm:$0xff]
    %v3036 = vld [vmem:[%s3030 + $0x28] sm:$0xff]
    %v3037 = vld [vmem:[%s3030 + $0x30] sm:$0xff]
    %v3038 = vld [vmem:[%s3030 + $0x38] sm:$0xff]
    %v3039 = vld [vmem:[%s3030 + $0x40] sm:$0xff]
    %v3040 = vld [vmem:[%s3030 + $0x48] sm:$0xff]
    %v3041 = vld [vmem:[%s3030 + $0x50] sm:$0xff]
    %v3042 = vld [vmem:[%s3030 + $0x58] sm:$0xff]
    %v3043 = vld [vmem:[%s3030 + $0x60] sm:$0xff]
    %v3044 = vld [vmem:[%s3030 + $0x68] sm:$0xff]
    %v3045 = vld [vmem:[%s3030 + $0x70] sm:$0xff]
    %v3046 = vld [vmem:[%s3030 + $0x78] sm:$0xff]
    %v3047 = vld [vmem:[%s3030 + $0x80] sm:$0xff]
    %v3048 = vld [vmem:[%s3030 + $0x88] sm:$0xff]
    %v3049 = vld [vmem:[%s3030 + $0x90] sm:$0xff]
    %v3050 = vld [vmem:[%s3030 + $0x98] sm:$0xff]
    %v3051 = vld [vmem:[%s3030 + $0xa0] sm:$0xff]
    %v3052 = vld [vmem:[%s3030 + $0xa8] sm:$0xff]
    %v3053 = vld [vmem:[%s3030 + $0xb0] sm:$0xff]
    %v3054 = vld [vmem:[%s3030 + $0xb8] sm:$0xff]
    %v3055 = vld [vmem:[%s3030 + $0xc0] sm:$0xff]
    %v3056 = vld [vmem:[%s3030 + $0xc8] sm:$0xff]
    %v3057 = vld [vmem:[%s3030 + $0xd0] sm:$0xff]
    %v3058 = vld [vmem:[%s3030 + $0xd8] sm:$0xff]
    %v3059 = vld [vmem:[%s3030 + $0xe0] sm:$0xff]
    %v3060 = vld [vmem:[%s3030 + $0xe8] sm:$0xff]
    %v3061 = vld [vmem:[%s3030 + $0xf0] sm:$0xff]
    %v3062 = vld [vmem:[%s3030 + $0xf8] sm:$0xff]
    %v3063 = vld [vmem:[%s3030 + $0x100] sm:$0xff]
    %v3064 = vld [vmem:[%s3030 + $0x108] sm:$0xff]
    %v3065 = vld [vmem:[%s3030 + $0x110] sm:$0xff]
    %v3066 = vld [vmem:[%s3030 + $0x118] sm:$0xff]
    %v3067 = vld [vmem:[%s3030 + $0x120] sm:$0xff]
    %v3068 = vld [vmem:[%s3030 + $0x128] sm:$0xff]
    %v3069 = vld [vmem:[%s3030 + $0x130] sm:$0xff]
    %v3070 = vld [vmem:[%s3030 + $0x138] sm:$0xff]
    %v3071 = vld [vmem:[%s3030 + $0x140] sm:$0xff]
    %v3072 = vld [vmem:[%s3030 + $0x148] sm:$0xff]
    %v3073 = vld [vmem:[%s3030 + $0x150] sm:$0xff]
    %v3074 = vld [vmem:[%s3030 + $0x158] sm:$0xff]
    %v3075 = vld [vmem:[%s3030 + $0x160] sm:$0xff]
    %v3076 = vld [vmem:[%s3030 + $0x168] sm:$0xff]
    %v3077 = vld [vmem:[%s3030 + $0x170] sm:$0xff]
    %v3078 = vld [vmem:[%s3030 + $0x178] sm:$0xff]
    %v3079 = vld [vmem:[%s3030 + $0x180] sm:$0xff]
    %v3080 = vld [vmem:[%s3030 + $0x188] sm:$0xff]
    %v3081 = vld [vmem:[%s3030 + $0x190] sm:$0xff]
    %v3082 = vld [vmem:[%s3030 + $0x198] sm:$0xff]
    %v3083 = vld [vmem:[%s3030 + $0x1a0] sm:$0xff]
    %v3084 = vld [vmem:[%s3030 + $0x1a8] sm:$0xff]
    %v3085 = vld [vmem:[%s3030 + $0x1b0] sm:$0xff]
    %v3086 = vld [vmem:[%s3030 + $0x1b8] sm:$0xff]
    %v3087 = vld [vmem:[%s3030 + $0x1c0] sm:$0xff]
    %v3088 = vld [vmem:[%s3030 + $0x1c8] sm:$0xff]
    %v3089 = vld [vmem:[%s3030 + $0x1d0] sm:$0xff]
    %v3090 = vld [vmem:[%s3030 + $0x1d8] sm:$0xff]
    %v3091 = vld [vmem:[%s3030 + $0x1e0] sm:$0xff]
    %v3092 = vld [vmem:[%s3030 + $0x1e8] sm:$0xff]
    %v3093 = vld [vmem:[%s3030 + $0x1f0] sm:$0xff]
    %v3094 = vld [vmem:[%s3030 + $0x1f8] sm:$0xff]
    %v3096 = vrot.slane %v1682, 1
    %3098 = vmatpush.msra.mxu0 %v3091
    %3099 = vmatpush.msra.mxu0 %v3087
    %3100 = vmatpush.msra.mxu0 %v3083
    %3101 = vmatpush.msra.mxu0 %v3079
    %3102 = vmatpush.msra.mxu0 %v3075
    %3103 = vmatpush.msra.mxu0 %v3071
    %3104 = vmatpush.msra.mxu0 %v3067
    %3105 = vmatpush.msra.mxu0 %v3063
    %3106 = vmatpush.msra.mxu0 %v3059
    %3107 = vmatpush.msra.mxu0 %v3055
    %3108 = vmatpush.msra.mxu0 %v3051
    %3109 = vmatpush.msra.mxu0 %v3047
    %3110 = vmatpush.msra.mxu0 %v3043
    %3111 = vmatpush.msra.mxu0 %v3039
    %3112 = vmatpush.msra.mxu0 %v3035
    %3113 = vmatpush.msra.mxu0 %v3031
    %3114 = vmatmul.f32.gmra.mxu0 %v3096
    %v3115 = vpop.f32.mrf.mxu0
    %v3116 = vadd.f32 0.0, %v3115
    %3117 = vdwg.mxu0
    %3118 = vmatpush.msra.mxu0 %v3092
    %3119 = vmatpush.msra.mxu0 %v3088
    %3120 = vmatpush.msra.mxu0 %v3084
    %3121 = vmatpush.msra.mxu0 %v3080
    %3122 = vmatpush.msra.mxu0 %v3076
    %3123 = vmatpush.msra.mxu0 %v3072
    %3124 = vmatpush.msra.mxu0 %v3068
    %3125 = vmatpush.msra.mxu0 %v3064
    %3126 = vmatpush.msra.mxu0 %v3060
    %3127 = vmatpush.msra.mxu0 %v3056
    %3128 = vmatpush.msra.mxu0 %v3052
    %3129 = vmatpush.msra.mxu0 %v3048
    %3130 = vmatpush.msra.mxu0 %v3044
    %3131 = vmatpush.msra.mxu0 %v3040
    %3132 = vmatpush.msra.mxu0 %v3036
    %3133 = vmatpush.msra.mxu0 %v3032
    %3134 = vmatmul.f32.gmra.mxu0 %v3096
    %v3135 = vpop.f32.mrf.mxu0
    %v3136 = vadd.f32 0.0, %v3135
    %3137 = vdwg.mxu0
    %3138 = vmatpush.msra.mxu0 %v3093
    %3139 = vmatpush.msra.mxu0 %v3089
    %3140 = vmatpush.msra.mxu0 %v3085
    %3141 = vmatpush.msra.mxu0 %v3081
    %3142 = vmatpush.msra.mxu0 %v3077
    %3143 = vmatpush.msra.mxu0 %v3073
    %3144 = vmatpush.msra.mxu0 %v3069
    %3145 = vmatpush.msra.mxu0 %v3065
    %3146 = vmatpush.msra.mxu0 %v3061
    %3147 = vmatpush.msra.mxu0 %v3057
    %3148 = vmatpush.msra.mxu0 %v3053
    %3149 = vmatpush.msra.mxu0 %v3049
    %3150 = vmatpush.msra.mxu0 %v3045
    %3151 = vmatpush.msra.mxu0 %v3041
    %3152 = vmatpush.msra.mxu0 %v3037
    %3153 = vmatpush.msra.mxu0 %v3033
    %3154 = vmatmul.f32.gmra.mxu0 %v3096
    %v3155 = vpop.f32.mrf.mxu0
    %v3156 = vadd.f32 0.0, %v3155
    %3157 = vdwg.mxu0
    %3158 = vmatpush.msra.mxu0 %v3094
    %3159 = vmatpush.msra.mxu0 %v3090
    %3160 = vmatpush.msra.mxu0 %v3086
    %3161 = vmatpush.msra.mxu0 %v3082
    %3162 = vmatpush.msra.mxu0 %v3078
    %3163 = vmatpush.msra.mxu0 %v3074
    %3164 = vmatpush.msra.mxu0 %v3070
    %3165 = vmatpush.msra.mxu0 %v3066
    %3166 = vmatpush.msra.mxu0 %v3062
    %3167 = vmatpush.msra.mxu0 %v3058
    %3168 = vmatpush.msra.mxu0 %v3054
    %3169 = vmatpush.msra.mxu0 %v3050
    %3170 = vmatpush.msra.mxu0 %v3046
    %3171 = vmatpush.msra.mxu0 %v3042
    %3172 = vmatpush.msra.mxu0 %v3038
    %3173 = vmatpush.msra.mxu0 %v3034
    %3174 = vmatmul.f32.gmra.mxu0 %v3096
    %v3175 = vpop.f32.mrf.mxu0
    %v3176 = vadd.f32 0.0, %v3175
    %3177 = vdwg.mxu0
    %v3178 = vadd.f32 %v3026, %v3116
    %v3179 = vadd.f32 %v3027, %v3136
    %v3180 = vadd.f32 %v3028, %v3156
    %v3181 = vadd.f32 %v3029, %v3176
    %s3182 = scalar_lea.vmem [#allocation13], 5120
    %v3183 = vld [vmem:[%s3182] sm:$0xff]
    %v3184 = vld [vmem:[%s3182 + $0x8] sm:$0xff]
    %v3185 = vld [vmem:[%s3182 + $0x10] sm:$0xff]
    %v3186 = vld [vmem:[%s3182 + $0x18] sm:$0xff]
    %v3187 = vld [vmem:[%s3182 + $0x20] sm:$0xff]
    %v3188 = vld [vmem:[%s3182 + $0x28] sm:$0xff]
    %v3189 = vld [vmem:[%s3182 + $0x30] sm:$0xff]
    %v3190 = vld [vmem:[%s3182 + $0x38] sm:$0xff]
    %v3191 = vld [vmem:[%s3182 + $0x40] sm:$0xff]
    %v3192 = vld [vmem:[%s3182 + $0x48] sm:$0xff]
    %v3193 = vld [vmem:[%s3182 + $0x50] sm:$0xff]
    %v3194 = vld [vmem:[%s3182 + $0x58] sm:$0xff]
    %v3195 = vld [vmem:[%s3182 + $0x60] sm:$0xff]
    %v3196 = vld [vmem:[%s3182 + $0x68] sm:$0xff]
    %v3197 = vld [vmem:[%s3182 + $0x70] sm:$0xff]
    %v3198 = vld [vmem:[%s3182 + $0x78] sm:$0xff]
    %v3199 = vld [vmem:[%s3182 + $0x80] sm:$0xff]
    %v3200 = vld [vmem:[%s3182 + $0x88] sm:$0xff]
    %v3201 = vld [vmem:[%s3182 + $0x90] sm:$0xff]
    %v3202 = vld [vmem:[%s3182 + $0x98] sm:$0xff]
    %v3203 = vld [vmem:[%s3182 + $0xa0] sm:$0xff]
    %v3204 = vld [vmem:[%s3182 + $0xa8] sm:$0xff]
    %v3205 = vld [vmem:[%s3182 + $0xb0] sm:$0xff]
    %v3206 = vld [vmem:[%s3182 + $0xb8] sm:$0xff]
    %v3207 = vld [vmem:[%s3182 + $0xc0] sm:$0xff]
    %v3208 = vld [vmem:[%s3182 + $0xc8] sm:$0xff]
    %v3209 = vld [vmem:[%s3182 + $0xd0] sm:$0xff]
    %v3210 = vld [vmem:[%s3182 + $0xd8] sm:$0xff]
    %v3211 = vld [vmem:[%s3182 + $0xe0] sm:$0xff]
    %v3212 = vld [vmem:[%s3182 + $0xe8] sm:$0xff]
    %v3213 = vld [vmem:[%s3182 + $0xf0] sm:$0xff]
    %v3214 = vld [vmem:[%s3182 + $0xf8] sm:$0xff]
    %v3215 = vld [vmem:[%s3182 + $0x100] sm:$0xff]
    %v3216 = vld [vmem:[%s3182 + $0x108] sm:$0xff]
    %v3217 = vld [vmem:[%s3182 + $0x110] sm:$0xff]
    %v3218 = vld [vmem:[%s3182 + $0x118] sm:$0xff]
    %v3219 = vld [vmem:[%s3182 + $0x120] sm:$0xff]
    %v3220 = vld [vmem:[%s3182 + $0x128] sm:$0xff]
    %v3221 = vld [vmem:[%s3182 + $0x130] sm:$0xff]
    %v3222 = vld [vmem:[%s3182 + $0x138] sm:$0xff]
    %v3223 = vld [vmem:[%s3182 + $0x140] sm:$0xff]
    %v3224 = vld [vmem:[%s3182 + $0x148] sm:$0xff]
    %v3225 = vld [vmem:[%s3182 + $0x150] sm:$0xff]
    %v3226 = vld [vmem:[%s3182 + $0x158] sm:$0xff]
    %v3227 = vld [vmem:[%s3182 + $0x160] sm:$0xff]
    %v3228 = vld [vmem:[%s3182 + $0x168] sm:$0xff]
    %v3229 = vld [vmem:[%s3182 + $0x170] sm:$0xff]
    %v3230 = vld [vmem:[%s3182 + $0x178] sm:$0xff]
    %v3231 = vld [vmem:[%s3182 + $0x180] sm:$0xff]
    %v3232 = vld [vmem:[%s3182 + $0x188] sm:$0xff]
    %v3233 = vld [vmem:[%s3182 + $0x190] sm:$0xff]
    %v3234 = vld [vmem:[%s3182 + $0x198] sm:$0xff]
    %v3235 = vld [vmem:[%s3182 + $0x1a0] sm:$0xff]
    %v3236 = vld [vmem:[%s3182 + $0x1a8] sm:$0xff]
    %v3237 = vld [vmem:[%s3182 + $0x1b0] sm:$0xff]
    %v3238 = vld [vmem:[%s3182 + $0x1b8] sm:$0xff]
    %v3239 = vld [vmem:[%s3182 + $0x1c0] sm:$0xff]
    %v3240 = vld [vmem:[%s3182 + $0x1c8] sm:$0xff]
    %v3241 = vld [vmem:[%s3182 + $0x1d0] sm:$0xff]
    %v3242 = vld [vmem:[%s3182 + $0x1d8] sm:$0xff]
    %v3243 = vld [vmem:[%s3182 + $0x1e0] sm:$0xff]
    %v3244 = vld [vmem:[%s3182 + $0x1e8] sm:$0xff]
    %v3245 = vld [vmem:[%s3182 + $0x1f0] sm:$0xff]
    %v3246 = vld [vmem:[%s3182 + $0x1f8] sm:$0xff]
    %v3247 = vrot.slane %v1682, 2
    %3249 = vmatpush.msra.mxu0 %v3243
    %3250 = vmatpush.msra.mxu0 %v3239
    %3251 = vmatpush.msra.mxu0 %v3235
    %3252 = vmatpush.msra.mxu0 %v3231
    %3253 = vmatpush.msra.mxu0 %v3227
    %3254 = vmatpush.msra.mxu0 %v3223
    %3255 = vmatpush.msra.mxu0 %v3219
    %3256 = vmatpush.msra.mxu0 %v3215
    %3257 = vmatpush.msra.mxu0 %v3211
    %3258 = vmatpush.msra.mxu0 %v3207
    %3259 = vmatpush.msra.mxu0 %v3203
    %3260 = vmatpush.msra.mxu0 %v3199
    %3261 = vmatpush.msra.mxu0 %v3195
    %3262 = vmatpush.msra.mxu0 %v3191
    %3263 = vmatpush.msra.mxu0 %v3187
    %3264 = vmatpush.msra.mxu0 %v3183
    %3265 = vmatmul.f32.gmra.mxu0 %v3247
    %v3266 = vpop.f32.mrf.mxu0
    %v3267 = vadd.f32 0.0, %v3266
    %3268 = vdwg.mxu0
    %3269 = vmatpush.msra.mxu0 %v3244
    %3270 = vmatpush.msra.mxu0 %v3240
    %3271 = vmatpush.msra.mxu0 %v3236
    %3272 = vmatpush.msra.mxu0 %v3232
    %3273 = vmatpush.msra.mxu0 %v3228
    %3274 = vmatpush.msra.mxu0 %v3224
    %3275 = vmatpush.msra.mxu0 %v3220
    %3276 = vmatpush.msra.mxu0 %v3216
    %3277 = vmatpush.msra.mxu0 %v3212
    %3278 = vmatpush.msra.mxu0 %v3208
    %3279 = vmatpush.msra.mxu0 %v3204
    %3280 = vmatpush.msra.mxu0 %v3200
    %3281 = vmatpush.msra.mxu0 %v3196
    %3282 = vmatpush.msra.mxu0 %v3192
    %3283 = vmatpush.msra.mxu0 %v3188
    %3284 = vmatpush.msra.mxu0 %v3184
    %3285 = vmatmul.f32.gmra.mxu0 %v3247
    %v3286 = vpop.f32.mrf.mxu0
    %v3287 = vadd.f32 0.0, %v3286
    %3288 = vdwg.mxu0
    %3289 = vmatpush.msra.mxu0 %v3245
    %3290 = vmatpush.msra.mxu0 %v3241
    %3291 = vmatpush.msra.mxu0 %v3237
    %3292 = vmatpush.msra.mxu0 %v3233
    %3293 = vmatpush.msra.mxu0 %v3229
    %3294 = vmatpush.msra.mxu0 %v3225
    %3295 = vmatpush.msra.mxu0 %v3221
    %3296 = vmatpush.msra.mxu0 %v3217
    %3297 = vmatpush.msra.mxu0 %v3213
    %3298 = vmatpush.msra.mxu0 %v3209
    %3299 = vmatpush.msra.mxu0 %v3205
    %3300 = vmatpush.msra.mxu0 %v3201
    %3301 = vmatpush.msra.mxu0 %v3197
    %3302 = vmatpush.msra.mxu0 %v3193
    %3303 = vmatpush.msra.mxu0 %v3189
    %3304 = vmatpush.msra.mxu0 %v3185
    %3305 = vmatmul.f32.gmra.mxu0 %v3247
    %v3306 = vpop.f32.mrf.mxu0
    %v3307 = vadd.f32 0.0, %v3306
    %3308 = vdwg.mxu0
    %3309 = vmatpush.msra.mxu0 %v3246
    %3310 = vmatpush.msra.mxu0 %v3242
    %3311 = vmatpush.msra.mxu0 %v3238
    %3312 = vmatpush.msra.mxu0 %v3234
    %3313 = vmatpush.msra.mxu0 %v3230
    %3314 = vmatpush.msra.mxu0 %v3226
    %3315 = vmatpush.msra.mxu0 %v3222
    %3316 = vmatpush.msra.mxu0 %v3218
    %3317 = vmatpush.msra.mxu0 %v3214
    %3318 = vmatpush.msra.mxu0 %v3210
    %3319 = vmatpush.msra.mxu0 %v3206
    %3320 = vmatpush.msra.mxu0 %v3202
    %3321 = vmatpush.msra.mxu0 %v3198
    %3322 = vmatpush.msra.mxu0 %v3194
    %3323 = vmatpush.msra.mxu0 %v3190
    %3324 = vmatpush.msra.mxu0 %v3186
    %3325 = vmatmul.f32.gmra.mxu0 %v3247
    %v3326 = vpop.f32.mrf.mxu0
    %v3327 = vadd.f32 0.0, %v3326
    %3328 = vdwg.mxu0
    %v3329 = vadd.f32 %v3178, %v3267
    %v3330 = vadd.f32 %v3179, %v3287
    %v3331 = vadd.f32 %v3180, %v3307
    %v3332 = vadd.f32 %v3181, %v3327
    %s3333 = scalar_lea.vmem [#allocation13], 5632
    %v3334 = vld [vmem:[%s3333] sm:$0xff]
    %v3335 = vld [vmem:[%s3333 + $0x8] sm:$0xff]
    %v3336 = vld [vmem:[%s3333 + $0x10] sm:$0xff]
    %v3337 = vld [vmem:[%s3333 + $0x18] sm:$0xff]
    %v3338 = vld [vmem:[%s3333 + $0x20] sm:$0xff]
    %v3339 = vld [vmem:[%s3333 + $0x28] sm:$0xff]
    %v3340 = vld [vmem:[%s3333 + $0x30] sm:$0xff]
    %v3341 = vld [vmem:[%s3333 + $0x38] sm:$0xff]
    %v3342 = vld [vmem:[%s3333 + $0x40] sm:$0xff]
    %v3343 = vld [vmem:[%s3333 + $0x48] sm:$0xff]
    %v3344 = vld [vmem:[%s3333 + $0x50] sm:$0xff]
    %v3345 = vld [vmem:[%s3333 + $0x58] sm:$0xff]
    %v3346 = vld [vmem:[%s3333 + $0x60] sm:$0xff]
    %v3347 = vld [vmem:[%s3333 + $0x68] sm:$0xff]
    %v3348 = vld [vmem:[%s3333 + $0x70] sm:$0xff]
    %v3349 = vld [vmem:[%s3333 + $0x78] sm:$0xff]
    %v3350 = vld [vmem:[%s3333 + $0x80] sm:$0xff]
    %v3351 = vld [vmem:[%s3333 + $0x88] sm:$0xff]
    %v3352 = vld [vmem:[%s3333 + $0x90] sm:$0xff]
    %v3353 = vld [vmem:[%s3333 + $0x98] sm:$0xff]
    %v3354 = vld [vmem:[%s3333 + $0xa0] sm:$0xff]
    %v3355 = vld [vmem:[%s3333 + $0xa8] sm:$0xff]
    %v3356 = vld [vmem:[%s3333 + $0xb0] sm:$0xff]
    %v3357 = vld [vmem:[%s3333 + $0xb8] sm:$0xff]
    %v3358 = vld [vmem:[%s3333 + $0xc0] sm:$0xff]
    %v3359 = vld [vmem:[%s3333 + $0xc8] sm:$0xff]
    %v3360 = vld [vmem:[%s3333 + $0xd0] sm:$0xff]
    %v3361 = vld [vmem:[%s3333 + $0xd8] sm:$0xff]
    %v3362 = vld [vmem:[%s3333 + $0xe0] sm:$0xff]
    %v3363 = vld [vmem:[%s3333 + $0xe8] sm:$0xff]
    %v3364 = vld [vmem:[%s3333 + $0xf0] sm:$0xff]
    %v3365 = vld [vmem:[%s3333 + $0xf8] sm:$0xff]
    %v3366 = vld [vmem:[%s3333 + $0x100] sm:$0xff]
    %v3367 = vld [vmem:[%s3333 + $0x108] sm:$0xff]
    %v3368 = vld [vmem:[%s3333 + $0x110] sm:$0xff]
    %v3369 = vld [vmem:[%s3333 + $0x118] sm:$0xff]
    %v3370 = vld [vmem:[%s3333 + $0x120] sm:$0xff]
    %v3371 = vld [vmem:[%s3333 + $0x128] sm:$0xff]
    %v3372 = vld [vmem:[%s3333 + $0x130] sm:$0xff]
    %v3373 = vld [vmem:[%s3333 + $0x138] sm:$0xff]
    %v3374 = vld [vmem:[%s3333 + $0x140] sm:$0xff]
    %v3375 = vld [vmem:[%s3333 + $0x148] sm:$0xff]
    %v3376 = vld [vmem:[%s3333 + $0x150] sm:$0xff]
    %v3377 = vld [vmem:[%s3333 + $0x158] sm:$0xff]
    %v3378 = vld [vmem:[%s3333 + $0x160] sm:$0xff]
    %v3379 = vld [vmem:[%s3333 + $0x168] sm:$0xff]
    %v3380 = vld [vmem:[%s3333 + $0x170] sm:$0xff]
    %v3381 = vld [vmem:[%s3333 + $0x178] sm:$0xff]
    %v3382 = vld [vmem:[%s3333 + $0x180] sm:$0xff]
    %v3383 = vld [vmem:[%s3333 + $0x188] sm:$0xff]
    %v3384 = vld [vmem:[%s3333 + $0x190] sm:$0xff]
    %v3385 = vld [vmem:[%s3333 + $0x198] sm:$0xff]
    %v3386 = vld [vmem:[%s3333 + $0x1a0] sm:$0xff]
    %v3387 = vld [vmem:[%s3333 + $0x1a8] sm:$0xff]
    %v3388 = vld [vmem:[%s3333 + $0x1b0] sm:$0xff]
    %v3389 = vld [vmem:[%s3333 + $0x1b8] sm:$0xff]
    %v3390 = vld [vmem:[%s3333 + $0x1c0] sm:$0xff]
    %v3391 = vld [vmem:[%s3333 + $0x1c8] sm:$0xff]
    %v3392 = vld [vmem:[%s3333 + $0x1d0] sm:$0xff]
    %v3393 = vld [vmem:[%s3333 + $0x1d8] sm:$0xff]
    %v3394 = vld [vmem:[%s3333 + $0x1e0] sm:$0xff]
    %v3395 = vld [vmem:[%s3333 + $0x1e8] sm:$0xff]
    %v3396 = vld [vmem:[%s3333 + $0x1f0] sm:$0xff]
    %v3397 = vld [vmem:[%s3333 + $0x1f8] sm:$0xff]
    %v3398 = vrot.slane %v1682, 3
    %3400 = vmatpush.msra.mxu0 %v3394
    %3401 = vmatpush.msra.mxu0 %v3390
    %3402 = vmatpush.msra.mxu0 %v3386
    %3403 = vmatpush.msra.mxu0 %v3382
    %3404 = vmatpush.msra.mxu0 %v3378
    %3405 = vmatpush.msra.mxu0 %v3374
    %3406 = vmatpush.msra.mxu0 %v3370
    %3407 = vmatpush.msra.mxu0 %v3366
    %3408 = vmatpush.msra.mxu0 %v3362
    %3409 = vmatpush.msra.mxu0 %v3358
    %3410 = vmatpush.msra.mxu0 %v3354
    %3411 = vmatpush.msra.mxu0 %v3350
    %3412 = vmatpush.msra.mxu0 %v3346
    %3413 = vmatpush.msra.mxu0 %v3342
    %3414 = vmatpush.msra.mxu0 %v3338
    %3415 = vmatpush.msra.mxu0 %v3334
    %3416 = vmatmul.f32.gmra.mxu0 %v3398
    %v3417 = vpop.f32.mrf.mxu0
    %v3418 = vadd.f32 0.0, %v3417
    %3419 = vdwg.mxu0
    %3420 = vmatpush.msra.mxu0 %v3395
    %3421 = vmatpush.msra.mxu0 %v3391
    %3422 = vmatpush.msra.mxu0 %v3387
    %3423 = vmatpush.msra.mxu0 %v3383
    %3424 = vmatpush.msra.mxu0 %v3379
    %3425 = vmatpush.msra.mxu0 %v3375
    %3426 = vmatpush.msra.mxu0 %v3371
    %3427 = vmatpush.msra.mxu0 %v3367
    %3428 = vmatpush.msra.mxu0 %v3363
    %3429 = vmatpush.msra.mxu0 %v3359
    %3430 = vmatpush.msra.mxu0 %v3355
    %3431 = vmatpush.msra.mxu0 %v3351
    %3432 = vmatpush.msra.mxu0 %v3347
    %3433 = vmatpush.msra.mxu0 %v3343
    %3434 = vmatpush.msra.mxu0 %v3339
    %3435 = vmatpush.msra.mxu0 %v3335
    %3436 = vmatmul.f32.gmra.mxu0 %v3398
    %v3437 = vpop.f32.mrf.mxu0
    %v3438 = vadd.f32 0.0, %v3437
    %3439 = vdwg.mxu0
    %3440 = vmatpush.msra.mxu0 %v3396
    %3441 = vmatpush.msra.mxu0 %v3392
    %3442 = vmatpush.msra.mxu0 %v3388
    %3443 = vmatpush.msra.mxu0 %v3384
    %3444 = vmatpush.msra.mxu0 %v3380
    %3445 = vmatpush.msra.mxu0 %v3376
    %3446 = vmatpush.msra.mxu0 %v3372
    %3447 = vmatpush.msra.mxu0 %v3368
    %3448 = vmatpush.msra.mxu0 %v3364
    %3449 = vmatpush.msra.mxu0 %v3360
    %3450 = vmatpush.msra.mxu0 %v3356
    %3451 = vmatpush.msra.mxu0 %v3352
    %3452 = vmatpush.msra.mxu0 %v3348
    %3453 = vmatpush.msra.mxu0 %v3344
    %3454 = vmatpush.msra.mxu0 %v3340
    %3455 = vmatpush.msra.mxu0 %v3336
    %3456 = vmatmul.f32.gmra.mxu0 %v3398
    %v3457 = vpop.f32.mrf.mxu0
    %v3458 = vadd.f32 0.0, %v3457
    %3459 = vdwg.mxu0
    %3460 = vmatpush.msra.mxu0 %v3397
    %3461 = vmatpush.msra.mxu0 %v3393
    %3462 = vmatpush.msra.mxu0 %v3389
    %3463 = vmatpush.msra.mxu0 %v3385
    %3464 = vmatpush.msra.mxu0 %v3381
    %3465 = vmatpush.msra.mxu0 %v3377
    %3466 = vmatpush.msra.mxu0 %v3373
    %3467 = vmatpush.msra.mxu0 %v3369
    %3468 = vmatpush.msra.mxu0 %v3365
    %3469 = vmatpush.msra.mxu0 %v3361
    %3470 = vmatpush.msra.mxu0 %v3357
    %3471 = vmatpush.msra.mxu0 %v3353
    %3472 = vmatpush.msra.mxu0 %v3349
    %3473 = vmatpush.msra.mxu0 %v3345
    %3474 = vmatpush.msra.mxu0 %v3341
    %3475 = vmatpush.msra.mxu0 %v3337
    %3476 = vmatmul.f32.gmra.mxu0 %v3398
    %v3477 = vpop.f32.mrf.mxu0
    %v3478 = vadd.f32 0.0, %v3477
    %3479 = vdwg.mxu0
    %v3480 = vadd.f32 %v3329, %v3418
    %v3481 = vadd.f32 %v3330, %v3438
    %v3482 = vadd.f32 %v3331, %v3458
    %v3483 = vadd.f32 %v3332, %v3478
    %s3484 = scalar_lea.vmem [#allocation13], 6144
    %v3485 = vld [vmem:[%s3484] sm:$0xff]
    %v3486 = vld [vmem:[%s3484 + $0x8] sm:$0xff]
    %v3487 = vld [vmem:[%s3484 + $0x10] sm:$0xff]
    %v3488 = vld [vmem:[%s3484 + $0x18] sm:$0xff]
    %v3489 = vld [vmem:[%s3484 + $0x20] sm:$0xff]
    %v3490 = vld [vmem:[%s3484 + $0x28] sm:$0xff]
    %v3491 = vld [vmem:[%s3484 + $0x30] sm:$0xff]
    %v3492 = vld [vmem:[%s3484 + $0x38] sm:$0xff]
    %v3493 = vld [vmem:[%s3484 + $0x40] sm:$0xff]
    %v3494 = vld [vmem:[%s3484 + $0x48] sm:$0xff]
    %v3495 = vld [vmem:[%s3484 + $0x50] sm:$0xff]
    %v3496 = vld [vmem:[%s3484 + $0x58] sm:$0xff]
    %v3497 = vld [vmem:[%s3484 + $0x60] sm:$0xff]
    %v3498 = vld [vmem:[%s3484 + $0x68] sm:$0xff]
    %v3499 = vld [vmem:[%s3484 + $0x70] sm:$0xff]
    %v3500 = vld [vmem:[%s3484 + $0x78] sm:$0xff]
    %v3501 = vld [vmem:[%s3484 + $0x80] sm:$0xff]
    %v3502 = vld [vmem:[%s3484 + $0x88] sm:$0xff]
    %v3503 = vld [vmem:[%s3484 + $0x90] sm:$0xff]
    %v3504 = vld [vmem:[%s3484 + $0x98] sm:$0xff]
    %v3505 = vld [vmem:[%s3484 + $0xa0] sm:$0xff]
    %v3506 = vld [vmem:[%s3484 + $0xa8] sm:$0xff]
    %v3507 = vld [vmem:[%s3484 + $0xb0] sm:$0xff]
    %v3508 = vld [vmem:[%s3484 + $0xb8] sm:$0xff]
    %v3509 = vld [vmem:[%s3484 + $0xc0] sm:$0xff]
    %v3510 = vld [vmem:[%s3484 + $0xc8] sm:$0xff]
    %v3511 = vld [vmem:[%s3484 + $0xd0] sm:$0xff]
    %v3512 = vld [vmem:[%s3484 + $0xd8] sm:$0xff]
    %v3513 = vld [vmem:[%s3484 + $0xe0] sm:$0xff]
    %v3514 = vld [vmem:[%s3484 + $0xe8] sm:$0xff]
    %v3515 = vld [vmem:[%s3484 + $0xf0] sm:$0xff]
    %v3516 = vld [vmem:[%s3484 + $0xf8] sm:$0xff]
    %v3517 = vld [vmem:[%s3484 + $0x100] sm:$0xff]
    %v3518 = vld [vmem:[%s3484 + $0x108] sm:$0xff]
    %v3519 = vld [vmem:[%s3484 + $0x110] sm:$0xff]
    %v3520 = vld [vmem:[%s3484 + $0x118] sm:$0xff]
    %v3521 = vld [vmem:[%s3484 + $0x120] sm:$0xff]
    %v3522 = vld [vmem:[%s3484 + $0x128] sm:$0xff]
    %v3523 = vld [vmem:[%s3484 + $0x130] sm:$0xff]
    %v3524 = vld [vmem:[%s3484 + $0x138] sm:$0xff]
    %v3525 = vld [vmem:[%s3484 + $0x140] sm:$0xff]
    %v3526 = vld [vmem:[%s3484 + $0x148] sm:$0xff]
    %v3527 = vld [vmem:[%s3484 + $0x150] sm:$0xff]
    %v3528 = vld [vmem:[%s3484 + $0x158] sm:$0xff]
    %v3529 = vld [vmem:[%s3484 + $0x160] sm:$0xff]
    %v3530 = vld [vmem:[%s3484 + $0x168] sm:$0xff]
    %v3531 = vld [vmem:[%s3484 + $0x170] sm:$0xff]
    %v3532 = vld [vmem:[%s3484 + $0x178] sm:$0xff]
    %v3533 = vld [vmem:[%s3484 + $0x180] sm:$0xff]
    %v3534 = vld [vmem:[%s3484 + $0x188] sm:$0xff]
    %v3535 = vld [vmem:[%s3484 + $0x190] sm:$0xff]
    %v3536 = vld [vmem:[%s3484 + $0x198] sm:$0xff]
    %v3537 = vld [vmem:[%s3484 + $0x1a0] sm:$0xff]
    %v3538 = vld [vmem:[%s3484 + $0x1a8] sm:$0xff]
    %v3539 = vld [vmem:[%s3484 + $0x1b0] sm:$0xff]
    %v3540 = vld [vmem:[%s3484 + $0x1b8] sm:$0xff]
    %v3541 = vld [vmem:[%s3484 + $0x1c0] sm:$0xff]
    %v3542 = vld [vmem:[%s3484 + $0x1c8] sm:$0xff]
    %v3543 = vld [vmem:[%s3484 + $0x1d0] sm:$0xff]
    %v3544 = vld [vmem:[%s3484 + $0x1d8] sm:$0xff]
    %v3545 = vld [vmem:[%s3484 + $0x1e0] sm:$0xff]
    %v3546 = vld [vmem:[%s3484 + $0x1e8] sm:$0xff]
    %v3547 = vld [vmem:[%s3484 + $0x1f0] sm:$0xff]
    %v3548 = vld [vmem:[%s3484 + $0x1f8] sm:$0xff]
    %v3549 = vrot.slane %v1682, 4
    %3551 = vmatpush.msra.mxu0 %v3545
    %3552 = vmatpush.msra.mxu0 %v3541
    %3553 = vmatpush.msra.mxu0 %v3537
    %3554 = vmatpush.msra.mxu0 %v3533
    %3555 = vmatpush.msra.mxu0 %v3529
    %3556 = vmatpush.msra.mxu0 %v3525
    %3557 = vmatpush.msra.mxu0 %v3521
    %3558 = vmatpush.msra.mxu0 %v3517
    %3559 = vmatpush.msra.mxu0 %v3513
    %3560 = vmatpush.msra.mxu0 %v3509
    %3561 = vmatpush.msra.mxu0 %v3505
    %3562 = vmatpush.msra.mxu0 %v3501
    %3563 = vmatpush.msra.mxu0 %v3497
    %3564 = vmatpush.msra.mxu0 %v3493
    %3565 = vmatpush.msra.mxu0 %v3489
    %3566 = vmatpush.msra.mxu0 %v3485
    %3567 = vmatmul.f32.gmra.mxu0 %v3549
    %v3568 = vpop.f32.mrf.mxu0
    %v3569 = vadd.f32 0.0, %v3568
    %3570 = vdwg.mxu0
    %3571 = vmatpush.msra.mxu0 %v3546
    %3572 = vmatpush.msra.mxu0 %v3542
    %3573 = vmatpush.msra.mxu0 %v3538
    %3574 = vmatpush.msra.mxu0 %v3534
    %3575 = vmatpush.msra.mxu0 %v3530
    %3576 = vmatpush.msra.mxu0 %v3526
    %3577 = vmatpush.msra.mxu0 %v3522
    %3578 = vmatpush.msra.mxu0 %v3518
    %3579 = vmatpush.msra.mxu0 %v3514
    %3580 = vmatpush.msra.mxu0 %v3510
    %3581 = vmatpush.msra.mxu0 %v3506
    %3582 = vmatpush.msra.mxu0 %v3502
    %3583 = vmatpush.msra.mxu0 %v3498
    %3584 = vmatpush.msra.mxu0 %v3494
    %3585 = vmatpush.msra.mxu0 %v3490
    %3586 = vmatpush.msra.mxu0 %v3486
    %3587 = vmatmul.f32.gmra.mxu0 %v3549
    %v3588 = vpop.f32.mrf.mxu0
    %v3589 = vadd.f32 0.0, %v3588
    %3590 = vdwg.mxu0
    %3591 = vmatpush.msra.mxu0 %v3547
    %3592 = vmatpush.msra.mxu0 %v3543
    %3593 = vmatpush.msra.mxu0 %v3539
    %3594 = vmatpush.msra.mxu0 %v3535
    %3595 = vmatpush.msra.mxu0 %v3531
    %3596 = vmatpush.msra.mxu0 %v3527
    %3597 = vmatpush.msra.mxu0 %v3523
    %3598 = vmatpush.msra.mxu0 %v3519
    %3599 = vmatpush.msra.mxu0 %v3515
    %3600 = vmatpush.msra.mxu0 %v3511
    %3601 = vmatpush.msra.mxu0 %v3507
    %3602 = vmatpush.msra.mxu0 %v3503
    %3603 = vmatpush.msra.mxu0 %v3499
    %3604 = vmatpush.msra.mxu0 %v3495
    %3605 = vmatpush.msra.mxu0 %v3491
    %3606 = vmatpush.msra.mxu0 %v3487
    %3607 = vmatmul.f32.gmra.mxu0 %v3549
    %v3608 = vpop.f32.mrf.mxu0
    %v3609 = vadd.f32 0.0, %v3608
    %3610 = vdwg.mxu0
    %3611 = vmatpush.msra.mxu0 %v3548
    %3612 = vmatpush.msra.mxu0 %v3544
    %3613 = vmatpush.msra.mxu0 %v3540
    %3614 = vmatpush.msra.mxu0 %v3536
    %3615 = vmatpush.msra.mxu0 %v3532
    %3616 = vmatpush.msra.mxu0 %v3528
    %3617 = vmatpush.msra.mxu0 %v3524
    %3618 = vmatpush.msra.mxu0 %v3520
    %3619 = vmatpush.msra.mxu0 %v3516
    %3620 = vmatpush.msra.mxu0 %v3512
    %3621 = vmatpush.msra.mxu0 %v3508
    %3622 = vmatpush.msra.mxu0 %v3504
    %3623 = vmatpush.msra.mxu0 %v3500
    %3624 = vmatpush.msra.mxu0 %v3496
    %3625 = vmatpush.msra.mxu0 %v3492
    %3626 = vmatpush.msra.mxu0 %v3488
    %3627 = vmatmul.f32.gmra.mxu0 %v3549
    %v3628 = vpop.f32.mrf.mxu0
    %v3629 = vadd.f32 0.0, %v3628
    %3630 = vdwg.mxu0
    %v3631 = vadd.f32 %v3480, %v3569
    %v3632 = vadd.f32 %v3481, %v3589
    %v3633 = vadd.f32 %v3482, %v3609
    %v3634 = vadd.f32 %v3483, %v3629
    %s3635 = scalar_lea.vmem [#allocation13], 6656
    %v3636 = vld [vmem:[%s3635] sm:$0xff]
    %v3637 = vld [vmem:[%s3635 + $0x8] sm:$0xff]
    %v3638 = vld [vmem:[%s3635 + $0x10] sm:$0xff]
    %v3639 = vld [vmem:[%s3635 + $0x18] sm:$0xff]
    %v3640 = vld [vmem:[%s3635 + $0x20] sm:$0xff]
    %v3641 = vld [vmem:[%s3635 + $0x28] sm:$0xff]
    %v3642 = vld [vmem:[%s3635 + $0x30] sm:$0xff]
    %v3643 = vld [vmem:[%s3635 + $0x38] sm:$0xff]
    %v3644 = vld [vmem:[%s3635 + $0x40] sm:$0xff]
    %v3645 = vld [vmem:[%s3635 + $0x48] sm:$0xff]
    %v3646 = vld [vmem:[%s3635 + $0x50] sm:$0xff]
    %v3647 = vld [vmem:[%s3635 + $0x58] sm:$0xff]
    %v3648 = vld [vmem:[%s3635 + $0x60] sm:$0xff]
    %v3649 = vld [vmem:[%s3635 + $0x68] sm:$0xff]
    %v3650 = vld [vmem:[%s3635 + $0x70] sm:$0xff]
    %v3651 = vld [vmem:[%s3635 + $0x78] sm:$0xff]
    %v3652 = vld [vmem:[%s3635 + $0x80] sm:$0xff]
    %v3653 = vld [vmem:[%s3635 + $0x88] sm:$0xff]
    %v3654 = vld [vmem:[%s3635 + $0x90] sm:$0xff]
    %v3655 = vld [vmem:[%s3635 + $0x98] sm:$0xff]
    %v3656 = vld [vmem:[%s3635 + $0xa0] sm:$0xff]
    %v3657 = vld [vmem:[%s3635 + $0xa8] sm:$0xff]
    %v3658 = vld [vmem:[%s3635 + $0xb0] sm:$0xff]
    %v3659 = vld [vmem:[%s3635 + $0xb8] sm:$0xff]
    %v3660 = vld [vmem:[%s3635 + $0xc0] sm:$0xff]
    %v3661 = vld [vmem:[%s3635 + $0xc8] sm:$0xff]
    %v3662 = vld [vmem:[%s3635 + $0xd0] sm:$0xff]
    %v3663 = vld [vmem:[%s3635 + $0xd8] sm:$0xff]
    %v3664 = vld [vmem:[%s3635 + $0xe0] sm:$0xff]
    %v3665 = vld [vmem:[%s3635 + $0xe8] sm:$0xff]
    %v3666 = vld [vmem:[%s3635 + $0xf0] sm:$0xff]
    %v3667 = vld [vmem:[%s3635 + $0xf8] sm:$0xff]
    %v3668 = vld [vmem:[%s3635 + $0x100] sm:$0xff]
    %v3669 = vld [vmem:[%s3635 + $0x108] sm:$0xff]
    %v3670 = vld [vmem:[%s3635 + $0x110] sm:$0xff]
    %v3671 = vld [vmem:[%s3635 + $0x118] sm:$0xff]
    %v3672 = vld [vmem:[%s3635 + $0x120] sm:$0xff]
    %v3673 = vld [vmem:[%s3635 + $0x128] sm:$0xff]
    %v3674 = vld [vmem:[%s3635 + $0x130] sm:$0xff]
    %v3675 = vld [vmem:[%s3635 + $0x138] sm:$0xff]
    %v3676 = vld [vmem:[%s3635 + $0x140] sm:$0xff]
    %v3677 = vld [vmem:[%s3635 + $0x148] sm:$0xff]
    %v3678 = vld [vmem:[%s3635 + $0x150] sm:$0xff]
    %v3679 = vld [vmem:[%s3635 + $0x158] sm:$0xff]
    %v3680 = vld [vmem:[%s3635 + $0x160] sm:$0xff]
    %v3681 = vld [vmem:[%s3635 + $0x168] sm:$0xff]
    %v3682 = vld [vmem:[%s3635 + $0x170] sm:$0xff]
    %v3683 = vld [vmem:[%s3635 + $0x178] sm:$0xff]
    %v3684 = vld [vmem:[%s3635 + $0x180] sm:$0xff]
    %v3685 = vld [vmem:[%s3635 + $0x188] sm:$0xff]
    %v3686 = vld [vmem:[%s3635 + $0x190] sm:$0xff]
    %v3687 = vld [vmem:[%s3635 + $0x198] sm:$0xff]
    %v3688 = vld [vmem:[%s3635 + $0x1a0] sm:$0xff]
    %v3689 = vld [vmem:[%s3635 + $0x1a8] sm:$0xff]
    %v3690 = vld [vmem:[%s3635 + $0x1b0] sm:$0xff]
    %v3691 = vld [vmem:[%s3635 + $0x1b8] sm:$0xff]
    %v3692 = vld [vmem:[%s3635 + $0x1c0] sm:$0xff]
    %v3693 = vld [vmem:[%s3635 + $0x1c8] sm:$0xff]
    %v3694 = vld [vmem:[%s3635 + $0x1d0] sm:$0xff]
    %v3695 = vld [vmem:[%s3635 + $0x1d8] sm:$0xff]
    %v3696 = vld [vmem:[%s3635 + $0x1e0] sm:$0xff]
    %v3697 = vld [vmem:[%s3635 + $0x1e8] sm:$0xff]
    %v3698 = vld [vmem:[%s3635 + $0x1f0] sm:$0xff]
    %v3699 = vld [vmem:[%s3635 + $0x1f8] sm:$0xff]
    %v3700 = vrot.slane %v1682, 5
    %3702 = vmatpush.msra.mxu0 %v3696
    %3703 = vmatpush.msra.mxu0 %v3692
    %3704 = vmatpush.msra.mxu0 %v3688
    %3705 = vmatpush.msra.mxu0 %v3684
    %3706 = vmatpush.msra.mxu0 %v3680
    %3707 = vmatpush.msra.mxu0 %v3676
    %3708 = vmatpush.msra.mxu0 %v3672
    %3709 = vmatpush.msra.mxu0 %v3668
    %3710 = vmatpush.msra.mxu0 %v3664
    %3711 = vmatpush.msra.mxu0 %v3660
    %3712 = vmatpush.msra.mxu0 %v3656
    %3713 = vmatpush.msra.mxu0 %v3652
    %3714 = vmatpush.msra.mxu0 %v3648
    %3715 = vmatpush.msra.mxu0 %v3644
    %3716 = vmatpush.msra.mxu0 %v3640
    %3717 = vmatpush.msra.mxu0 %v3636
    %3718 = vmatmul.f32.gmra.mxu0 %v3700
    %v3719 = vpop.f32.mrf.mxu0
    %v3720 = vadd.f32 0.0, %v3719
    %3721 = vdwg.mxu0
    %3722 = vmatpush.msra.mxu0 %v3697
    %3723 = vmatpush.msra.mxu0 %v3693
    %3724 = vmatpush.msra.mxu0 %v3689
    %3725 = vmatpush.msra.mxu0 %v3685
    %3726 = vmatpush.msra.mxu0 %v3681
    %3727 = vmatpush.msra.mxu0 %v3677
    %3728 = vmatpush.msra.mxu0 %v3673
    %3729 = vmatpush.msra.mxu0 %v3669
    %3730 = vmatpush.msra.mxu0 %v3665
    %3731 = vmatpush.msra.mxu0 %v3661
    %3732 = vmatpush.msra.mxu0 %v3657
    %3733 = vmatpush.msra.mxu0 %v3653
    %3734 = vmatpush.msra.mxu0 %v3649
    %3735 = vmatpush.msra.mxu0 %v3645
    %3736 = vmatpush.msra.mxu0 %v3641
    %3737 = vmatpush.msra.mxu0 %v3637
    %3738 = vmatmul.f32.gmra.mxu0 %v3700
    %v3739 = vpop.f32.mrf.mxu0
    %v3740 = vadd.f32 0.0, %v3739
    %3741 = vdwg.mxu0
    %3742 = vmatpush.msra.mxu0 %v3698
    %3743 = vmatpush.msra.mxu0 %v3694
    %3744 = vmatpush.msra.mxu0 %v3690
    %3745 = vmatpush.msra.mxu0 %v3686
    %3746 = vmatpush.msra.mxu0 %v3682
    %3747 = vmatpush.msra.mxu0 %v3678
    %3748 = vmatpush.msra.mxu0 %v3674
    %3749 = vmatpush.msra.mxu0 %v3670
    %3750 = vmatpush.msra.mxu0 %v3666
    %3751 = vmatpush.msra.mxu0 %v3662
    %3752 = vmatpush.msra.mxu0 %v3658
    %3753 = vmatpush.msra.mxu0 %v3654
    %3754 = vmatpush.msra.mxu0 %v3650
    %3755 = vmatpush.msra.mxu0 %v3646
    %3756 = vmatpush.msra.mxu0 %v3642
    %3757 = vmatpush.msra.mxu0 %v3638
    %3758 = vmatmul.f32.gmra.mxu0 %v3700
    %v3759 = vpop.f32.mrf.mxu0
    %v3760 = vadd.f32 0.0, %v3759
    %3761 = vdwg.mxu0
    %3762 = vmatpush.msra.mxu0 %v3699
    %3763 = vmatpush.msra.mxu0 %v3695
    %3764 = vmatpush.msra.mxu0 %v3691
    %3765 = vmatpush.msra.mxu0 %v3687
    %3766 = vmatpush.msra.mxu0 %v3683
    %3767 = vmatpush.msra.mxu0 %v3679
    %3768 = vmatpush.msra.mxu0 %v3675
    %3769 = vmatpush.msra.mxu0 %v3671
    %3770 = vmatpush.msra.mxu0 %v3667
    %3771 = vmatpush.msra.mxu0 %v3663
    %3772 = vmatpush.msra.mxu0 %v3659
    %3773 = vmatpush.msra.mxu0 %v3655
    %3774 = vmatpush.msra.mxu0 %v3651
    %3775 = vmatpush.msra.mxu0 %v3647
    %3776 = vmatpush.msra.mxu0 %v3643
    %3777 = vmatpush.msra.mxu0 %v3639
    %3778 = vmatmul.f32.gmra.mxu0 %v3700
    %v3779 = vpop.f32.mrf.mxu0
    %v3780 = vadd.f32 0.0, %v3779
    %3781 = vdwg.mxu0
    %v3782 = vadd.f32 %v3631, %v3720
    %v3783 = vadd.f32 %v3632, %v3740
    %v3784 = vadd.f32 %v3633, %v3760
    %v3785 = vadd.f32 %v3634, %v3780
    %s3786 = scalar_lea.vmem [#allocation13], 7168
    %v3787 = vld [vmem:[%s3786] sm:$0xff]
    %v3788 = vld [vmem:[%s3786 + $0x8] sm:$0xff]
    %v3789 = vld [vmem:[%s3786 + $0x10] sm:$0xff]
    %v3790 = vld [vmem:[%s3786 + $0x18] sm:$0xff]
    %v3791 = vld [vmem:[%s3786 + $0x20] sm:$0xff]
    %v3792 = vld [vmem:[%s3786 + $0x28] sm:$0xff]
    %v3793 = vld [vmem:[%s3786 + $0x30] sm:$0xff]
    %v3794 = vld [vmem:[%s3786 + $0x38] sm:$0xff]
    %v3795 = vld [vmem:[%s3786 + $0x40] sm:$0xff]
    %v3796 = vld [vmem:[%s3786 + $0x48] sm:$0xff]
    %v3797 = vld [vmem:[%s3786 + $0x50] sm:$0xff]
    %v3798 = vld [vmem:[%s3786 + $0x58] sm:$0xff]
    %v3799 = vld [vmem:[%s3786 + $0x60] sm:$0xff]
    %v3800 = vld [vmem:[%s3786 + $0x68] sm:$0xff]
    %v3801 = vld [vmem:[%s3786 + $0x70] sm:$0xff]
    %v3802 = vld [vmem:[%s3786 + $0x78] sm:$0xff]
    %v3803 = vld [vmem:[%s3786 + $0x80] sm:$0xff]
    %v3804 = vld [vmem:[%s3786 + $0x88] sm:$0xff]
    %v3805 = vld [vmem:[%s3786 + $0x90] sm:$0xff]
    %v3806 = vld [vmem:[%s3786 + $0x98] sm:$0xff]
    %v3807 = vld [vmem:[%s3786 + $0xa0] sm:$0xff]
    %v3808 = vld [vmem:[%s3786 + $0xa8] sm:$0xff]
    %v3809 = vld [vmem:[%s3786 + $0xb0] sm:$0xff]
    %v3810 = vld [vmem:[%s3786 + $0xb8] sm:$0xff]
    %v3811 = vld [vmem:[%s3786 + $0xc0] sm:$0xff]
    %v3812 = vld [vmem:[%s3786 + $0xc8] sm:$0xff]
    %v3813 = vld [vmem:[%s3786 + $0xd0] sm:$0xff]
    %v3814 = vld [vmem:[%s3786 + $0xd8] sm:$0xff]
    %v3815 = vld [vmem:[%s3786 + $0xe0] sm:$0xff]
    %v3816 = vld [vmem:[%s3786 + $0xe8] sm:$0xff]
    %v3817 = vld [vmem:[%s3786 + $0xf0] sm:$0xff]
    %v3818 = vld [vmem:[%s3786 + $0xf8] sm:$0xff]
    %v3819 = vld [vmem:[%s3786 + $0x100] sm:$0xff]
    %v3820 = vld [vmem:[%s3786 + $0x108] sm:$0xff]
    %v3821 = vld [vmem:[%s3786 + $0x110] sm:$0xff]
    %v3822 = vld [vmem:[%s3786 + $0x118] sm:$0xff]
    %v3823 = vld [vmem:[%s3786 + $0x120] sm:$0xff]
    %v3824 = vld [vmem:[%s3786 + $0x128] sm:$0xff]
    %v3825 = vld [vmem:[%s3786 + $0x130] sm:$0xff]
    %v3826 = vld [vmem:[%s3786 + $0x138] sm:$0xff]
    %v3827 = vld [vmem:[%s3786 + $0x140] sm:$0xff]
    %v3828 = vld [vmem:[%s3786 + $0x148] sm:$0xff]
    %v3829 = vld [vmem:[%s3786 + $0x150] sm:$0xff]
    %v3830 = vld [vmem:[%s3786 + $0x158] sm:$0xff]
    %v3831 = vld [vmem:[%s3786 + $0x160] sm:$0xff]
    %v3832 = vld [vmem:[%s3786 + $0x168] sm:$0xff]
    %v3833 = vld [vmem:[%s3786 + $0x170] sm:$0xff]
    %v3834 = vld [vmem:[%s3786 + $0x178] sm:$0xff]
    %v3835 = vld [vmem:[%s3786 + $0x180] sm:$0xff]
    %v3836 = vld [vmem:[%s3786 + $0x188] sm:$0xff]
    %v3837 = vld [vmem:[%s3786 + $0x190] sm:$0xff]
    %v3838 = vld [vmem:[%s3786 + $0x198] sm:$0xff]
    %v3839 = vld [vmem:[%s3786 + $0x1a0] sm:$0xff]
    %v3840 = vld [vmem:[%s3786 + $0x1a8] sm:$0xff]
    %v3841 = vld [vmem:[%s3786 + $0x1b0] sm:$0xff]
    %v3842 = vld [vmem:[%s3786 + $0x1b8] sm:$0xff]
    %v3843 = vld [vmem:[%s3786 + $0x1c0] sm:$0xff]
    %v3844 = vld [vmem:[%s3786 + $0x1c8] sm:$0xff]
    %v3845 = vld [vmem:[%s3786 + $0x1d0] sm:$0xff]
    %v3846 = vld [vmem:[%s3786 + $0x1d8] sm:$0xff]
    %v3847 = vld [vmem:[%s3786 + $0x1e0] sm:$0xff]
    %v3848 = vld [vmem:[%s3786 + $0x1e8] sm:$0xff]
    %v3849 = vld [vmem:[%s3786 + $0x1f0] sm:$0xff]
    %v3850 = vld [vmem:[%s3786 + $0x1f8] sm:$0xff]
    %v3851 = vrot.slane %v1682, 6
    %3853 = vmatpush.msra.mxu0 %v3847
    %3854 = vmatpush.msra.mxu0 %v3843
    %3855 = vmatpush.msra.mxu0 %v3839
    %3856 = vmatpush.msra.mxu0 %v3835
    %3857 = vmatpush.msra.mxu0 %v3831
    %3858 = vmatpush.msra.mxu0 %v3827
    %3859 = vmatpush.msra.mxu0 %v3823
    %3860 = vmatpush.msra.mxu0 %v3819
    %3861 = vmatpush.msra.mxu0 %v3815
    %3862 = vmatpush.msra.mxu0 %v3811
    %3863 = vmatpush.msra.mxu0 %v3807
    %3864 = vmatpush.msra.mxu0 %v3803
    %3865 = vmatpush.msra.mxu0 %v3799
    %3866 = vmatpush.msra.mxu0 %v3795
    %3867 = vmatpush.msra.mxu0 %v3791
    %3868 = vmatpush.msra.mxu0 %v3787
    %3869 = vmatmul.f32.gmra.mxu0 %v3851
    %v3870 = vpop.f32.mrf.mxu0
    %v3871 = vadd.f32 0.0, %v3870
    %3872 = vdwg.mxu0
    %3873 = vmatpush.msra.mxu0 %v3848
    %3874 = vmatpush.msra.mxu0 %v3844
    %3875 = vmatpush.msra.mxu0 %v3840
    %3876 = vmatpush.msra.mxu0 %v3836
    %3877 = vmatpush.msra.mxu0 %v3832
    %3878 = vmatpush.msra.mxu0 %v3828
    %3879 = vmatpush.msra.mxu0 %v3824
    %3880 = vmatpush.msra.mxu0 %v3820
    %3881 = vmatpush.msra.mxu0 %v3816
    %3882 = vmatpush.msra.mxu0 %v3812
    %3883 = vmatpush.msra.mxu0 %v3808
    %3884 = vmatpush.msra.mxu0 %v3804
    %3885 = vmatpush.msra.mxu0 %v3800
    %3886 = vmatpush.msra.mxu0 %v3796
    %3887 = vmatpush.msra.mxu0 %v3792
    %3888 = vmatpush.msra.mxu0 %v3788
    %3889 = vmatmul.f32.gmra.mxu0 %v3851
    %v3890 = vpop.f32.mrf.mxu0
    %v3891 = vadd.f32 0.0, %v3890
    %3892 = vdwg.mxu0
    %3893 = vmatpush.msra.mxu0 %v3849
    %3894 = vmatpush.msra.mxu0 %v3845
    %3895 = vmatpush.msra.mxu0 %v3841
    %3896 = vmatpush.msra.mxu0 %v3837
    %3897 = vmatpush.msra.mxu0 %v3833
    %3898 = vmatpush.msra.mxu0 %v3829
    %3899 = vmatpush.msra.mxu0 %v3825
    %3900 = vmatpush.msra.mxu0 %v3821
    %3901 = vmatpush.msra.mxu0 %v3817
    %3902 = vmatpush.msra.mxu0 %v3813
    %3903 = vmatpush.msra.mxu0 %v3809
    %3904 = vmatpush.msra.mxu0 %v3805
    %3905 = vmatpush.msra.mxu0 %v3801
    %3906 = vmatpush.msra.mxu0 %v3797
    %3907 = vmatpush.msra.mxu0 %v3793
    %3908 = vmatpush.msra.mxu0 %v3789
    %3909 = vmatmul.f32.gmra.mxu0 %v3851
    %v3910 = vpop.f32.mrf.mxu0
    %v3911 = vadd.f32 0.0, %v3910
    %3912 = vdwg.mxu0
    %3913 = vmatpush.msra.mxu0 %v3850
    %3914 = vmatpush.msra.mxu0 %v3846
    %3915 = vmatpush.msra.mxu0 %v3842
    %3916 = vmatpush.msra.mxu0 %v3838
    %3917 = vmatpush.msra.mxu0 %v3834
    %3918 = vmatpush.msra.mxu0 %v3830
    %3919 = vmatpush.msra.mxu0 %v3826
    %3920 = vmatpush.msra.mxu0 %v3822
    %3921 = vmatpush.msra.mxu0 %v3818
    %3922 = vmatpush.msra.mxu0 %v3814
    %3923 = vmatpush.msra.mxu0 %v3810
    %3924 = vmatpush.msra.mxu0 %v3806
    %3925 = vmatpush.msra.mxu0 %v3802
    %3926 = vmatpush.msra.mxu0 %v3798
    %3927 = vmatpush.msra.mxu0 %v3794
    %3928 = vmatpush.msra.mxu0 %v3790
    %3929 = vmatmul.f32.gmra.mxu0 %v3851
    %v3930 = vpop.f32.mrf.mxu0
    %v3931 = vadd.f32 0.0, %v3930
    %3932 = vdwg.mxu0
    %v3933 = vadd.f32 %v3782, %v3871
    %v3934 = vadd.f32 %v3783, %v3891
    %v3935 = vadd.f32 %v3784, %v3911
    %v3936 = vadd.f32 %v3785, %v3931
    %s3937 = scalar_lea.vmem %s0, 40
    %v3938 = vld [vmem:[%s3937] sm:$0xff]
    %v3939 = vld [vmem:[%s3937 + $0x8] sm:$0xff]
    %v3940 = vld [vmem:[%s3937 + $0x10] sm:$0xff]
    %v3941 = vld [vmem:[%s3937 + $0x18] sm:$0xff]
    %v3942 = vld [vmem:[%s3937 + $0x20] sm:$0xff]
    %v3948 = vrot.slane %v3938, 1
    %v3949 = vrot.slane %v3939, 1
    %v3950 = vsel %vm242, %v3948, %v3949
    %v3951 = vrot.slane %v3940, 1
    %v3952 = vsel %vm242, %v3949, %v3951
    %v3953 = vrot.slane %v3941, 1
    %v3954 = vsel %vm242, %v3951, %v3953
    %v3955 = vrot.slane %v3942, 1
    %v3956 = vsel %vm242, %v3953, %v3955
    %v3957 = vsel %vm252, %v3950, 0
    %v3959 = vsel %vm252, %v3952, 0
    %v3961 = vsel %vm252, %v3954, 0
    %v3963 = vsel %vm252, %v3956, 0
    %3965 = vmatpush.msra.mxu0 0.0
    %3966 = vmatpush.msra.mxu0 0.0
    %3967 = vmatpush.msra.mxu0 0.0
    %3968 = vmatpush.msra.mxu0 0.0
    %3969 = vmatpush.msra.mxu0 0.0
    %3970 = vmatpush.msra.mxu0 0.0
    %3971 = vmatpush.msra.mxu0 0.0
    %3972 = vmatpush.msra.mxu0 0.0
    %3973 = vmatpush.msra.mxu0 0.0
    %3974 = vmatpush.msra.mxu0 0.0
    %3975 = vmatpush.msra.mxu0 0.0
    %3976 = vmatpush.msra.mxu0 0.0
    %3977 = vmatpush.msra.mxu0 %v236
    %3978 = vmatpush.msra.mxu0 %v235
    %3979 = vmatpush.msra.mxu0 %v234
    %3980 = vmatpush.msra.mxu0 %v233
    %3981 = vmatmul.f32.gmra.mxu0 %v3957
    %v3982 = vpop.f32.mrf.mxu0
    %v3983 = vadd.f32 0.0, %v3982
    %3984 = vmatmul.f32.gmra.mxu0 %v3959
    %v3985 = vpop.f32.mrf.mxu0
    %v3986 = vadd.f32 0.0, %v3985
    %3987 = vmatmul.f32.gmra.mxu0 %v3961
    %v3988 = vpop.f32.mrf.mxu0
    %v3989 = vadd.f32 0.0, %v3988
    %3990 = vmatmul.f32.gmra.mxu0 %v3963
    %v3991 = vpop.f32.mrf.mxu0
    %v3992 = vadd.f32 0.0, %v3991
    %3993 = vdwg.mxu0
    %v3994 = vsel %vm252, %v3938, 0
    %v3996 = vsel %vm252, %v3939, 0
    %v3998 = vsel %vm252, %v3940, 0
    %v4000 = vsel %vm252, %v3941, 0
    %4002 = vmatpush.msra.mxu0 0.0
    %4003 = vmatpush.msra.mxu0 0.0
    %4004 = vmatpush.msra.mxu0 0.0
    %4005 = vmatpush.msra.mxu0 0.0
    %4006 = vmatpush.msra.mxu0 0.0
    %4007 = vmatpush.msra.mxu0 0.0
    %4008 = vmatpush.msra.mxu0 0.0
    %4009 = vmatpush.msra.mxu0 0.0
    %4010 = vmatpush.msra.mxu0 0.0
    %4011 = vmatpush.msra.mxu0 0.0
    %4012 = vmatpush.msra.mxu0 0.0
    %4013 = vmatpush.msra.mxu0 0.0
    %4014 = vmatpush.msra.mxu0 %v231
    %4015 = vmatpush.msra.mxu0 %v230
    %4016 = vmatpush.msra.mxu0 %v229
    %4017 = vmatpush.msra.mxu0 %v228
    %4018 = vmatmul.f32.gmra.mxu0 %v3994
    %v4019 = vpop.f32.mrf.mxu0
    %v4020 = vadd.f32 %v3983, %v4019
    %4021 = vmatmul.f32.gmra.mxu0 %v3996
    %v4022 = vpop.f32.mrf.mxu0
    %v4023 = vadd.f32 %v3986, %v4022
    %4024 = vmatmul.f32.gmra.mxu0 %v3998
    %v4025 = vpop.f32.mrf.mxu0
    %v4026 = vadd.f32 %v3989, %v4025
    %4027 = vmatmul.f32.gmra.mxu0 %v4000
    %v4028 = vpop.f32.mrf.mxu0
    %v4029 = vadd.f32 %v3992, %v4028
    %4030 = vdwg.mxu0
    %v4031 = vrot.slane %v3938, 2
    %v4032 = vrot.slane %v3939, 2
    %v4033 = vsel %vm332, %v4031, %v4032
    %v4034 = vrot.slane %v3940, 2
    %v4035 = vsel %vm332, %v4032, %v4034
    %v4036 = vrot.slane %v3941, 2
    %v4037 = vsel %vm332, %v4034, %v4036
    %v4038 = vrot.slane %v3942, 2
    %v4039 = vsel %vm332, %v4036, %v4038
    %v4040 = vsel %vm252, %v4033, 0
    %v4042 = vsel %vm252, %v4035, 0
    %v4044 = vsel %vm252, %v4037, 0
    %v4046 = vsel %vm252, %v4039, 0
    %4048 = vmatpush.msra.mxu0 0.0
    %4049 = vmatpush.msra.mxu0 0.0
    %4050 = vmatpush.msra.mxu0 0.0
    %4051 = vmatpush.msra.mxu0 0.0
    %4052 = vmatpush.msra.mxu0 0.0
    %4053 = vmatpush.msra.mxu0 0.0
    %4054 = vmatpush.msra.mxu0 0.0
    %4055 = vmatpush.msra.mxu0 0.0
    %4056 = vmatpush.msra.mxu0 0.0
    %4057 = vmatpush.msra.mxu0 0.0
    %4058 = vmatpush.msra.mxu0 0.0
    %4059 = vmatpush.msra.mxu0 0.0
    %4060 = vmatpush.msra.mxu0 %v331
    %4061 = vmatpush.msra.mxu0 %v330
    %4062 = vmatpush.msra.mxu0 %v329
    %4063 = vmatpush.msra.mxu0 %v328
    %4064 = vmatmul.f32.gmra.mxu0 %v4040
    %v4065 = vpop.f32.mrf.mxu0
    %v4066 = vadd.f32 0.0, %v4065
    %4067 = vmatmul.f32.gmra.mxu0 %v4042
    %v4068 = vpop.f32.mrf.mxu0
    %v4069 = vadd.f32 0.0, %v4068
    %4070 = vmatmul.f32.gmra.mxu0 %v4044
    %v4071 = vpop.f32.mrf.mxu0
    %v4072 = vadd.f32 0.0, %v4071
    %4073 = vmatmul.f32.gmra.mxu0 %v4046
    %v4074 = vpop.f32.mrf.mxu0
    %v4075 = vadd.f32 0.0, %v4074
    %4076 = vdwg.mxu0
    %v4077 = vadd.f32 %v4020, %v4066
    %v4078 = vadd.f32 %v4023, %v4069
    %v4079 = vadd.f32 %v4026, %v4072
    %v4080 = vadd.f32 %v4029, %v4075
    %v4081 = vrot.slane %v3938, 3
    %v4082 = vrot.slane %v3939, 3
    %v4083 = vsel %vm388, %v4081, %v4082
    %v4084 = vrot.slane %v3940, 3
    %v4085 = vsel %vm388, %v4082, %v4084
    %v4086 = vrot.slane %v3941, 3
    %v4087 = vsel %vm388, %v4084, %v4086
    %v4088 = vrot.slane %v3942, 3
    %v4089 = vsel %vm388, %v4086, %v4088
    %v4090 = vsel %vm252, %v4083, 0
    %v4092 = vsel %vm252, %v4085, 0
    %v4094 = vsel %vm252, %v4087, 0
    %v4096 = vsel %vm252, %v4089, 0
    %4098 = vmatpush.msra.mxu0 0.0
    %4099 = vmatpush.msra.mxu0 0.0
    %4100 = vmatpush.msra.mxu0 0.0
    %4101 = vmatpush.msra.mxu0 0.0
    %4102 = vmatpush.msra.mxu0 0.0
    %4103 = vmatpush.msra.mxu0 0.0
    %4104 = vmatpush.msra.mxu0 0.0
    %4105 = vmatpush.msra.mxu0 0.0
    %4106 = vmatpush.msra.mxu0 0.0
    %4107 = vmatpush.msra.mxu0 0.0
    %4108 = vmatpush.msra.mxu0 0.0
    %4109 = vmatpush.msra.mxu0 0.0
    %4110 = vmatpush.msra.mxu0 %v387
    %4111 = vmatpush.msra.mxu0 %v386
    %4112 = vmatpush.msra.mxu0 %v385
    %4113 = vmatpush.msra.mxu0 %v384
    %4114 = vmatmul.f32.gmra.mxu0 %v4090
    %v4115 = vpop.f32.mrf.mxu0
    %v4116 = vadd.f32 0.0, %v4115
    %4117 = vmatmul.f32.gmra.mxu0 %v4092
    %v4118 = vpop.f32.mrf.mxu0
    %v4119 = vadd.f32 0.0, %v4118
    %4120 = vmatmul.f32.gmra.mxu0 %v4094
    %v4121 = vpop.f32.mrf.mxu0
    %v4122 = vadd.f32 0.0, %v4121
    %4123 = vmatmul.f32.gmra.mxu0 %v4096
    %v4124 = vpop.f32.mrf.mxu0
    %v4125 = vadd.f32 0.0, %v4124
    %4126 = vdwg.mxu0
    %v4127 = vadd.f32 %v4077, %v4116
    %v4128 = vadd.f32 %v4078, %v4119
    %v4129 = vadd.f32 %v4079, %v4122
    %v4130 = vadd.f32 %v4080, %v4125
    %v4131 = vrot.slane %v3938, 4
    %v4132 = vrot.slane %v3939, 4
    %v4133 = vsel %vm444, %v4131, %v4132
    %v4134 = vrot.slane %v3940, 4
    %v4135 = vsel %vm444, %v4132, %v4134
    %v4136 = vrot.slane %v3941, 4
    %v4137 = vsel %vm444, %v4134, %v4136
    %v4138 = vrot.slane %v3942, 4
    %v4139 = vsel %vm444, %v4136, %v4138
    %v4140 = vsel %vm252, %v4133, 0
    %v4142 = vsel %vm252, %v4135, 0
    %v4144 = vsel %vm252, %v4137, 0
    %v4146 = vsel %vm252, %v4139, 0
    %4148 = vmatpush.msra.mxu0 0.0
    %4149 = vmatpush.msra.mxu0 0.0
    %4150 = vmatpush.msra.mxu0 0.0
    %4151 = vmatpush.msra.mxu0 0.0
    %4152 = vmatpush.msra.mxu0 0.0
    %4153 = vmatpush.msra.mxu0 0.0
    %4154 = vmatpush.msra.mxu0 0.0
    %4155 = vmatpush.msra.mxu0 0.0
    %4156 = vmatpush.msra.mxu0 0.0
    %4157 = vmatpush.msra.mxu0 0.0
    %4158 = vmatpush.msra.mxu0 0.0
    %4159 = vmatpush.msra.mxu0 0.0
    %4160 = vmatpush.msra.mxu0 %v443
    %4161 = vmatpush.msra.mxu0 %v442
    %4162 = vmatpush.msra.mxu0 %v441
    %4163 = vmatpush.msra.mxu0 %v440
    %4164 = vmatmul.f32.gmra.mxu0 %v4140
    %v4165 = vpop.f32.mrf.mxu0
    %v4166 = vadd.f32 0.0, %v4165
    %4167 = vmatmul.f32.gmra.mxu0 %v4142
    %v4168 = vpop.f32.mrf.mxu0
    %v4169 = vadd.f32 0.0, %v4168
    %4170 = vmatmul.f32.gmra.mxu0 %v4144
    %v4171 = vpop.f32.mrf.mxu0
    %v4172 = vadd.f32 0.0, %v4171
    %4173 = vmatmul.f32.gmra.mxu0 %v4146
    %v4174 = vpop.f32.mrf.mxu0
    %v4175 = vadd.f32 0.0, %v4174
    %4176 = vdwg.mxu0
    %v4177 = vadd.f32 %v4127, %v4166
    %v4178 = vadd.f32 %v4128, %v4169
    %v4179 = vadd.f32 %v4129, %v4172
    %v4180 = vadd.f32 %v4130, %v4175
    %v4181 = vrot.slane %v3938, 5
    %v4182 = vrot.slane %v3939, 5
    %v4183 = vsel %vm500, %v4181, %v4182
    %v4184 = vrot.slane %v3940, 5
    %v4185 = vsel %vm500, %v4182, %v4184
    %v4186 = vrot.slane %v3941, 5
    %v4187 = vsel %vm500, %v4184, %v4186
    %v4188 = vrot.slane %v3942, 5
    %v4189 = vsel %vm500, %v4186, %v4188
    %v4190 = vsel %vm252, %v4183, 0
    %v4192 = vsel %vm252, %v4185, 0
    %v4194 = vsel %vm252, %v4187, 0
    %v4196 = vsel %vm252, %v4189, 0
    %4198 = vmatpush.msra.mxu0 0.0
    %4199 = vmatpush.msra.mxu0 0.0
    %4200 = vmatpush.msra.mxu0 0.0
    %4201 = vmatpush.msra.mxu0 0.0
    %4202 = vmatpush.msra.mxu0 0.0
    %4203 = vmatpush.msra.mxu0 0.0
    %4204 = vmatpush.msra.mxu0 0.0
    %4205 = vmatpush.msra.mxu0 0.0
    %4206 = vmatpush.msra.mxu0 0.0
    %4207 = vmatpush.msra.mxu0 0.0
    %4208 = vmatpush.msra.mxu0 0.0
    %4209 = vmatpush.msra.mxu0 0.0
    %4210 = vmatpush.msra.mxu0 %v499
    %4211 = vmatpush.msra.mxu0 %v498
    %4212 = vmatpush.msra.mxu0 %v497
    %4213 = vmatpush.msra.mxu0 %v496
    %4214 = vmatmul.f32.gmra.mxu0 %v4190
    %v4215 = vpop.f32.mrf.mxu0
    %v4216 = vadd.f32 0.0, %v4215
    %4217 = vmatmul.f32.gmra.mxu0 %v4192
    %v4218 = vpop.f32.mrf.mxu0
    %v4219 = vadd.f32 0.0, %v4218
    %4220 = vmatmul.f32.gmra.mxu0 %v4194
    %v4221 = vpop.f32.mrf.mxu0
    %v4222 = vadd.f32 0.0, %v4221
    %4223 = vmatmul.f32.gmra.mxu0 %v4196
    %v4224 = vpop.f32.mrf.mxu0
    %v4225 = vadd.f32 0.0, %v4224
    %4226 = vdwg.mxu0
    %v4227 = vadd.f32 %v4177, %v4216
    %v4228 = vadd.f32 %v4178, %v4219
    %v4229 = vadd.f32 %v4179, %v4222
    %v4230 = vadd.f32 %v4180, %v4225
    %v4231 = vrot.slane %v3938, 6
    %v4232 = vrot.slane %v3939, 6
    %v4233 = vsel %vm556, %v4231, %v4232
    %v4234 = vrot.slane %v3940, 6
    %v4235 = vsel %vm556, %v4232, %v4234
    %v4236 = vrot.slane %v3941, 6
    %v4237 = vsel %vm556, %v4234, %v4236
    %v4238 = vrot.slane %v3942, 6
    %v4239 = vsel %vm556, %v4236, %v4238
    %v4240 = vsel %vm252, %v4233, 0
    %v4242 = vsel %vm252, %v4235, 0
    %v4244 = vsel %vm252, %v4237, 0
    %v4246 = vsel %vm252, %v4239, 0
    %4248 = vmatpush.msra.mxu0 0.0
    %4249 = vmatpush.msra.mxu0 0.0
    %4250 = vmatpush.msra.mxu0 0.0
    %4251 = vmatpush.msra.mxu0 0.0
    %4252 = vmatpush.msra.mxu0 0.0
    %4253 = vmatpush.msra.mxu0 0.0
    %4254 = vmatpush.msra.mxu0 0.0
    %4255 = vmatpush.msra.mxu0 0.0
    %4256 = vmatpush.msra.mxu0 0.0
    %4257 = vmatpush.msra.mxu0 0.0
    %4258 = vmatpush.msra.mxu0 0.0
    %4259 = vmatpush.msra.mxu0 0.0
    %4260 = vmatpush.msra.mxu0 %v555
    %4261 = vmatpush.msra.mxu0 %v554
    %4262 = vmatpush.msra.mxu0 %v553
    %4263 = vmatpush.msra.mxu0 %v552
    %4264 = vmatmul.f32.gmra.mxu0 %v4240
    %v4265 = vpop.f32.mrf.mxu0
    %v4266 = vadd.f32 0.0, %v4265
    %4267 = vmatmul.f32.gmra.mxu0 %v4242
    %v4268 = vpop.f32.mrf.mxu0
    %v4269 = vadd.f32 0.0, %v4268
    %4270 = vmatmul.f32.gmra.mxu0 %v4244
    %v4271 = vpop.f32.mrf.mxu0
    %v4272 = vadd.f32 0.0, %v4271
    %4273 = vmatmul.f32.gmra.mxu0 %v4246
    %v4274 = vpop.f32.mrf.mxu0
    %v4275 = vadd.f32 0.0, %v4274
    %4276 = vdwg.mxu0
    %v4277 = vadd.f32 %v4227, %v4266
    %v4278 = vadd.f32 %v4228, %v4269
    %v4279 = vadd.f32 %v4229, %v4272
    %v4280 = vadd.f32 %v4230, %v4275
    %v4281 = vrot.slane %v3938, 7
    %v4282 = vrot.slane %v3939, 7
    %v4283 = vsel %vm612, %v4281, %v4282
    %v4284 = vrot.slane %v3940, 7
    %v4285 = vsel %vm612, %v4282, %v4284
    %v4286 = vrot.slane %v3941, 7
    %v4287 = vsel %vm612, %v4284, %v4286
    %v4288 = vrot.slane %v3942, 7
    %v4289 = vsel %vm612, %v4286, %v4288
    %v4290 = vsel %vm252, %v4283, 0
    %v4292 = vsel %vm252, %v4285, 0
    %v4294 = vsel %vm252, %v4287, 0
    %v4296 = vsel %vm252, %v4289, 0
    %4298 = vmatpush.msra.mxu0 0.0
    %4299 = vmatpush.msra.mxu0 0.0
    %4300 = vmatpush.msra.mxu0 0.0
    %4301 = vmatpush.msra.mxu0 0.0
    %4302 = vmatpush.msra.mxu0 0.0
    %4303 = vmatpush.msra.mxu0 0.0
    %4304 = vmatpush.msra.mxu0 0.0
    %4305 = vmatpush.msra.mxu0 0.0
    %4306 = vmatpush.msra.mxu0 0.0
    %4307 = vmatpush.msra.mxu0 0.0
    %4308 = vmatpush.msra.mxu0 0.0
    %4309 = vmatpush.msra.mxu0 0.0
    %4310 = vmatpush.msra.mxu0 %v611
    %4311 = vmatpush.msra.mxu0 %v610
    %4312 = vmatpush.msra.mxu0 %v609
    %4313 = vmatpush.msra.mxu0 %v608
    %4314 = vmatmul.f32.gmra.mxu0 %v4290
    %v4315 = vpop.f32.mrf.mxu0
    %v4316 = vadd.f32 0.0, %v4315
    %4317 = vmatmul.f32.gmra.mxu0 %v4292
    %v4318 = vpop.f32.mrf.mxu0
    %v4319 = vadd.f32 0.0, %v4318
    %4320 = vmatmul.f32.gmra.mxu0 %v4294
    %v4321 = vpop.f32.mrf.mxu0
    %v4322 = vadd.f32 0.0, %v4321
    %4323 = vmatmul.f32.gmra.mxu0 %v4296
    %v4324 = vpop.f32.mrf.mxu0
    %v4325 = vadd.f32 0.0, %v4324
    %4326 = vdwg.mxu0
    %v4327 = vadd.f32 %v4277, %v4316
    %v4328 = vadd.f32 %v4278, %v4319
    %v4329 = vadd.f32 %v4279, %v4322
    %v4330 = vadd.f32 %v4280, %v4325
    %v4331 = vsel %vm252, %v3942, 0
    %4333 = vmatpush.msra.mxu0 0.0
    %4334 = vmatpush.msra.mxu0 0.0
    %4335 = vmatpush.msra.mxu0 0.0
    %4336 = vmatpush.msra.mxu0 0.0
    %4337 = vmatpush.msra.mxu0 0.0
    %4338 = vmatpush.msra.mxu0 0.0
    %4339 = vmatpush.msra.mxu0 0.0
    %4340 = vmatpush.msra.mxu0 0.0
    %4341 = vmatpush.msra.mxu0 0.0
    %4342 = vmatpush.msra.mxu0 0.0
    %4343 = vmatpush.msra.mxu0 0.0
    %4344 = vmatpush.msra.mxu0 0.0
    %4345 = vmatpush.msra.mxu0 %v667
    %4346 = vmatpush.msra.mxu0 %v666
    %4347 = vmatpush.msra.mxu0 %v665
    %4348 = vmatpush.msra.mxu0 %v664
    %4349 = vmatmul.f32.gmra.mxu0 %v3996
    %v4350 = vpop.f32.mrf.mxu0
    %v4351 = vadd.f32 0.0, %v4350
    %4352 = vmatmul.f32.gmra.mxu0 %v3998
    %v4353 = vpop.f32.mrf.mxu0
    %v4354 = vadd.f32 0.0, %v4353
    %4355 = vmatmul.f32.gmra.mxu0 %v4000
    %v4356 = vpop.f32.mrf.mxu0
    %v4357 = vadd.f32 0.0, %v4356
    %4358 = vmatmul.f32.gmra.mxu0 %v4331
    %v4359 = vpop.f32.mrf.mxu0
    %v4360 = vadd.f32 0.0, %v4359
    %4361 = vdwg.mxu0
    %v4362 = vadd.f32 %v4327, %v4351
    %v4363 = vadd.f32 %v4328, %v4354
    %v4364 = vadd.f32 %v4329, %v4357
    %v4365 = vadd.f32 %v4330, %v4360
    %v4366 = vadd.f32 %v4362, %v705
    %v4367 = vadd.f32 %v4363, %v705
    %v4368 = vadd.f32 %v4364, %v705
    %v4369 = vadd.f32 %v4365, %v705
    %v4370 = vmax.f32 %v4366, 0.0
    %v4371 = vmax.f32 %v4367, 0.0
    %v4372 = vmax.f32 %v4368, 0.0
    %v4373 = vmax.f32 %v4369, 0.0
    %v4378 = vrot.slane %v4370, 1
    %v4379 = vrot.slane %v4371, 1
    %v4380 = vsel %vm242, %v4378, %v4379
    %v4381 = vrot.slane %v4372, 1
    %v4382 = vsel %vm242, %v4379, %v4381
    %v4383 = vrot.slane %v4373, 1
    %v4384 = vsel %vm242, %v4381, %v4383
    %4388 = vmatpush.msra.mxu0 %v747
    %4389 = vmatpush.msra.mxu0 %v746
    %4390 = vmatpush.msra.mxu0 %v745
    %4391 = vmatpush.msra.mxu0 %v744
    %4392 = vmatpush.msra.mxu0 %v743
    %4393 = vmatpush.msra.mxu0 %v742
    %4394 = vmatpush.msra.mxu0 %v741
    %4395 = vmatpush.msra.mxu0 %v740
    %4396 = vmatpush.msra.mxu0 %v739
    %4397 = vmatpush.msra.mxu0 %v738
    %4398 = vmatpush.msra.mxu0 %v737
    %4399 = vmatpush.msra.mxu0 %v736
    %4400 = vmatpush.msra.mxu0 %v735
    %4401 = vmatpush.msra.mxu0 %v734
    %4402 = vmatpush.msra.mxu0 %v733
    %4403 = vmatpush.msra.mxu0 %v732
    %4404 = vmatmul.f32.gmra.mxu0 %v4380
    %v4405 = vpop.f32.mrf.mxu0
    %v4406 = vadd.f32 0.0, %v4405
    %4407 = vmatmul.f32.gmra.mxu0 %v4382
    %v4408 = vpop.f32.mrf.mxu0
    %v4409 = vadd.f32 0.0, %v4408
    %4410 = vmatmul.f32.gmra.mxu0 %v4384
    %v4411 = vpop.f32.mrf.mxu0
    %v4412 = vadd.f32 0.0, %v4411
    %4413 = vdwg.mxu0
    %4414 = vmatpush.msra.mxu0 %v730
    %4415 = vmatpush.msra.mxu0 %v729
    %4416 = vmatpush.msra.mxu0 %v728
    %4417 = vmatpush.msra.mxu0 %v727
    %4418 = vmatpush.msra.mxu0 %v726
    %4419 = vmatpush.msra.mxu0 %v725
    %4420 = vmatpush.msra.mxu0 %v724
    %4421 = vmatpush.msra.mxu0 %v723
    %4422 = vmatpush.msra.mxu0 %v722
    %4423 = vmatpush.msra.mxu0 %v721
    %4424 = vmatpush.msra.mxu0 %v720
    %4425 = vmatpush.msra.mxu0 %v719
    %4426 = vmatpush.msra.mxu0 %v718
    %4427 = vmatpush.msra.mxu0 %v717
    %4428 = vmatpush.msra.mxu0 %v716
    %4429 = vmatpush.msra.mxu0 %v715
    %4430 = vmatmul.f32.gmra.mxu0 %v4370
    %v4431 = vpop.f32.mrf.mxu0
    %v4432 = vadd.f32 %v4406, %v4431
    %4433 = vmatmul.f32.gmra.mxu0 %v4371
    %v4434 = vpop.f32.mrf.mxu0
    %v4435 = vadd.f32 %v4409, %v4434
    %4436 = vmatmul.f32.gmra.mxu0 %v4372
    %v4437 = vpop.f32.mrf.mxu0
    %v4438 = vadd.f32 %v4412, %v4437
    %4439 = vdwg.mxu0
    %v4440 = vrot.slane %v4370, 2
    %v4441 = vrot.slane %v4371, 2
    %v4442 = vsel %vm332, %v4440, %v4441
    %v4443 = vrot.slane %v4372, 2
    %v4444 = vsel %vm332, %v4441, %v4443
    %v4445 = vrot.slane %v4373, 2
    %v4446 = vsel %vm332, %v4443, %v4445
    %4450 = vmatpush.msra.mxu0 %v830
    %4451 = vmatpush.msra.mxu0 %v829
    %4452 = vmatpush.msra.mxu0 %v828
    %4453 = vmatpush.msra.mxu0 %v827
    %4454 = vmatpush.msra.mxu0 %v826
    %4455 = vmatpush.msra.mxu0 %v825
    %4456 = vmatpush.msra.mxu0 %v824
    %4457 = vmatpush.msra.mxu0 %v823
    %4458 = vmatpush.msra.mxu0 %v822
    %4459 = vmatpush.msra.mxu0 %v821
    %4460 = vmatpush.msra.mxu0 %v820
    %4461 = vmatpush.msra.mxu0 %v819
    %4462 = vmatpush.msra.mxu0 %v818
    %4463 = vmatpush.msra.mxu0 %v817
    %4464 = vmatpush.msra.mxu0 %v816
    %4465 = vmatpush.msra.mxu0 %v815
    %4466 = vmatmul.f32.gmra.mxu0 %v4442
    %v4467 = vpop.f32.mrf.mxu0
    %v4468 = vadd.f32 0.0, %v4467
    %4469 = vmatmul.f32.gmra.mxu0 %v4444
    %v4470 = vpop.f32.mrf.mxu0
    %v4471 = vadd.f32 0.0, %v4470
    %4472 = vmatmul.f32.gmra.mxu0 %v4446
    %v4473 = vpop.f32.mrf.mxu0
    %v4474 = vadd.f32 0.0, %v4473
    %4475 = vdwg.mxu0
    %v4476 = vadd.f32 %v4432, %v4468
    %v4477 = vadd.f32 %v4435, %v4471
    %v4478 = vadd.f32 %v4438, %v4474
    %v4479 = vrot.slane %v4370, 3
    %v4480 = vrot.slane %v4371, 3
    %v4481 = vsel %vm388, %v4479, %v4480
    %v4482 = vrot.slane %v4372, 3
    %v4483 = vsel %vm388, %v4480, %v4482
    %v4484 = vrot.slane %v4373, 3
    %v4485 = vsel %vm388, %v4482, %v4484
    %4489 = vmatpush.msra.mxu0 %v886
    %4490 = vmatpush.msra.mxu0 %v885
    %4491 = vmatpush.msra.mxu0 %v884
    %4492 = vmatpush.msra.mxu0 %v883
    %4493 = vmatpush.msra.mxu0 %v882
    %4494 = vmatpush.msra.mxu0 %v881
    %4495 = vmatpush.msra.mxu0 %v880
    %4496 = vmatpush.msra.mxu0 %v879
    %4497 = vmatpush.msra.mxu0 %v878
    %4498 = vmatpush.msra.mxu0 %v877
    %4499 = vmatpush.msra.mxu0 %v876
    %4500 = vmatpush.msra.mxu0 %v875
    %4501 = vmatpush.msra.mxu0 %v874
    %4502 = vmatpush.msra.mxu0 %v873
    %4503 = vmatpush.msra.mxu0 %v872
    %4504 = vmatpush.msra.mxu0 %v871
    %4505 = vmatmul.f32.gmra.mxu0 %v4481
    %v4506 = vpop.f32.mrf.mxu0
    %v4507 = vadd.f32 0.0, %v4506
    %4508 = vmatmul.f32.gmra.mxu0 %v4483
    %v4509 = vpop.f32.mrf.mxu0
    %v4510 = vadd.f32 0.0, %v4509
    %4511 = vmatmul.f32.gmra.mxu0 %v4485
    %v4512 = vpop.f32.mrf.mxu0
    %v4513 = vadd.f32 0.0, %v4512
    %4514 = vdwg.mxu0
    %v4515 = vadd.f32 %v4476, %v4507
    %v4516 = vadd.f32 %v4477, %v4510
    %v4517 = vadd.f32 %v4478, %v4513
    %v4518 = vrot.slane %v4370, 4
    %v4519 = vrot.slane %v4371, 4
    %v4520 = vsel %vm444, %v4518, %v4519
    %v4521 = vrot.slane %v4372, 4
    %v4522 = vsel %vm444, %v4519, %v4521
    %v4523 = vrot.slane %v4373, 4
    %v4524 = vsel %vm444, %v4521, %v4523
    %4528 = vmatpush.msra.mxu0 %v942
    %4529 = vmatpush.msra.mxu0 %v941
    %4530 = vmatpush.msra.mxu0 %v940
    %4531 = vmatpush.msra.mxu0 %v939
    %4532 = vmatpush.msra.mxu0 %v938
    %4533 = vmatpush.msra.mxu0 %v937
    %4534 = vmatpush.msra.mxu0 %v936
    %4535 = vmatpush.msra.mxu0 %v935
    %4536 = vmatpush.msra.mxu0 %v934
    %4537 = vmatpush.msra.mxu0 %v933
    %4538 = vmatpush.msra.mxu0 %v932
    %4539 = vmatpush.msra.mxu0 %v931
    %4540 = vmatpush.msra.mxu0 %v930
    %4541 = vmatpush.msra.mxu0 %v929
    %4542 = vmatpush.msra.mxu0 %v928
    %4543 = vmatpush.msra.mxu0 %v927
    %4544 = vmatmul.f32.gmra.mxu0 %v4520
    %v4545 = vpop.f32.mrf.mxu0
    %v4546 = vadd.f32 0.0, %v4545
    %4547 = vmatmul.f32.gmra.mxu0 %v4522
    %v4548 = vpop.f32.mrf.mxu0
    %v4549 = vadd.f32 0.0, %v4548
    %4550 = vmatmul.f32.gmra.mxu0 %v4524
    %v4551 = vpop.f32.mrf.mxu0
    %v4552 = vadd.f32 0.0, %v4551
    %4553 = vdwg.mxu0
    %v4554 = vadd.f32 %v4515, %v4546
    %v4555 = vadd.f32 %v4516, %v4549
    %v4556 = vadd.f32 %v4517, %v4552
    %v4557 = vrot.slane %v4370, 5
    %v4558 = vrot.slane %v4371, 5
    %v4559 = vsel %vm500, %v4557, %v4558
    %v4560 = vrot.slane %v4372, 5
    %v4561 = vsel %vm500, %v4558, %v4560
    %v4562 = vrot.slane %v4373, 5
    %v4563 = vsel %vm500, %v4560, %v4562
    %4567 = vmatpush.msra.mxu0 %v998
    %4568 = vmatpush.msra.mxu0 %v997
    %4569 = vmatpush.msra.mxu0 %v996
    %4570 = vmatpush.msra.mxu0 %v995
    %4571 = vmatpush.msra.mxu0 %v994
    %4572 = vmatpush.msra.mxu0 %v993
    %4573 = vmatpush.msra.mxu0 %v992
    %4574 = vmatpush.msra.mxu0 %v991
    %4575 = vmatpush.msra.mxu0 %v990
    %4576 = vmatpush.msra.mxu0 %v989
    %4577 = vmatpush.msra.mxu0 %v988
    %4578 = vmatpush.msra.mxu0 %v987
    %4579 = vmatpush.msra.mxu0 %v986
    %4580 = vmatpush.msra.mxu0 %v985
    %4581 = vmatpush.msra.mxu0 %v984
    %4582 = vmatpush.msra.mxu0 %v983
    %4583 = vmatmul.f32.gmra.mxu0 %v4559
    %v4584 = vpop.f32.mrf.mxu0
    %v4585 = vadd.f32 0.0, %v4584
    %4586 = vmatmul.f32.gmra.mxu0 %v4561
    %v4587 = vpop.f32.mrf.mxu0
    %v4588 = vadd.f32 0.0, %v4587
    %4589 = vmatmul.f32.gmra.mxu0 %v4563
    %v4590 = vpop.f32.mrf.mxu0
    %v4591 = vadd.f32 0.0, %v4590
    %4592 = vdwg.mxu0
    %v4593 = vadd.f32 %v4554, %v4585
    %v4594 = vadd.f32 %v4555, %v4588
    %v4595 = vadd.f32 %v4556, %v4591
    %v4596 = vrot.slane %v4370, 6
    %v4597 = vrot.slane %v4371, 6
    %v4598 = vsel %vm556, %v4596, %v4597
    %v4599 = vrot.slane %v4372, 6
    %v4600 = vsel %vm556, %v4597, %v4599
    %v4601 = vrot.slane %v4373, 6
    %v4602 = vsel %vm556, %v4599, %v4601
    %4606 = vmatpush.msra.mxu0 %v1054
    %4607 = vmatpush.msra.mxu0 %v1053
    %4608 = vmatpush.msra.mxu0 %v1052
    %4609 = vmatpush.msra.mxu0 %v1051
    %4610 = vmatpush.msra.mxu0 %v1050
    %4611 = vmatpush.msra.mxu0 %v1049
    %4612 = vmatpush.msra.mxu0 %v1048
    %4613 = vmatpush.msra.mxu0 %v1047
    %4614 = vmatpush.msra.mxu0 %v1046
    %4615 = vmatpush.msra.mxu0 %v1045
    %4616 = vmatpush.msra.mxu0 %v1044
    %4617 = vmatpush.msra.mxu0 %v1043
    %4618 = vmatpush.msra.mxu0 %v1042
    %4619 = vmatpush.msra.mxu0 %v1041
    %4620 = vmatpush.msra.mxu0 %v1040
    %4621 = vmatpush.msra.mxu0 %v1039
    %4622 = vmatmul.f32.gmra.mxu0 %v4598
    %v4623 = vpop.f32.mrf.mxu0
    %v4624 = vadd.f32 0.0, %v4623
    %4625 = vmatmul.f32.gmra.mxu0 %v4600
    %v4626 = vpop.f32.mrf.mxu0
    %v4627 = vadd.f32 0.0, %v4626
    %4628 = vmatmul.f32.gmra.mxu0 %v4602
    %v4629 = vpop.f32.mrf.mxu0
    %v4630 = vadd.f32 0.0, %v4629
    %4631 = vdwg.mxu0
    %v4632 = vadd.f32 %v4593, %v4624
    %v4633 = vadd.f32 %v4594, %v4627
    %v4634 = vadd.f32 %v4595, %v4630
    %v4635 = vrot.slane %v4370, 7
    %v4636 = vrot.slane %v4371, 7
    %v4637 = vsel %vm612, %v4635, %v4636
    %v4638 = vrot.slane %v4372, 7
    %v4639 = vsel %vm612, %v4636, %v4638
    %v4640 = vrot.slane %v4373, 7
    %v4641 = vsel %vm612, %v4638, %v4640
    %4645 = vmatpush.msra.mxu0 %v1110
    %4646 = vmatpush.msra.mxu0 %v1109
    %4647 = vmatpush.msra.mxu0 %v1108
    %4648 = vmatpush.msra.mxu0 %v1107
    %4649 = vmatpush.msra.mxu0 %v1106
    %4650 = vmatpush.msra.mxu0 %v1105
    %4651 = vmatpush.msra.mxu0 %v1104
    %4652 = vmatpush.msra.mxu0 %v1103
    %4653 = vmatpush.msra.mxu0 %v1102
    %4654 = vmatpush.msra.mxu0 %v1101
    %4655 = vmatpush.msra.mxu0 %v1100
    %4656 = vmatpush.msra.mxu0 %v1099
    %4657 = vmatpush.msra.mxu0 %v1098
    %4658 = vmatpush.msra.mxu0 %v1097
    %4659 = vmatpush.msra.mxu0 %v1096
    %4660 = vmatpush.msra.mxu0 %v1095
    %4661 = vmatmul.f32.gmra.mxu0 %v4637
    %v4662 = vpop.f32.mrf.mxu0
    %v4663 = vadd.f32 0.0, %v4662
    %4664 = vmatmul.f32.gmra.mxu0 %v4639
    %v4665 = vpop.f32.mrf.mxu0
    %v4666 = vadd.f32 0.0, %v4665
    %4667 = vmatmul.f32.gmra.mxu0 %v4641
    %v4668 = vpop.f32.mrf.mxu0
    %v4669 = vadd.f32 0.0, %v4668
    %4670 = vdwg.mxu0
    %v4671 = vadd.f32 %v4632, %v4663
    %v4672 = vadd.f32 %v4633, %v4666
    %v4673 = vadd.f32 %v4634, %v4669
    %4674 = vmatpush.msra.mxu0 %v1166
    %4675 = vmatpush.msra.mxu0 %v1165
    %4676 = vmatpush.msra.mxu0 %v1164
    %4677 = vmatpush.msra.mxu0 %v1163
    %4678 = vmatpush.msra.mxu0 %v1162
    %4679 = vmatpush.msra.mxu0 %v1161
    %4680 = vmatpush.msra.mxu0 %v1160
    %4681 = vmatpush.msra.mxu0 %v1159
    %4682 = vmatpush.msra.mxu0 %v1158
    %4683 = vmatpush.msra.mxu0 %v1157
    %4684 = vmatpush.msra.mxu0 %v1156
    %4685 = vmatpush.msra.mxu0 %v1155
    %4686 = vmatpush.msra.mxu0 %v1154
    %4687 = vmatpush.msra.mxu0 %v1153
    %4688 = vmatpush.msra.mxu0 %v1152
    %4689 = vmatpush.msra.mxu0 %v1151
    %4690 = vmatmul.f32.gmra.mxu0 %v4371
    %v4691 = vpop.f32.mrf.mxu0
    %v4692 = vadd.f32 0.0, %v4691
    %4693 = vmatmul.f32.gmra.mxu0 %v4372
    %v4694 = vpop.f32.mrf.mxu0
    %v4695 = vadd.f32 0.0, %v4694
    %4696 = vmatmul.f32.gmra.mxu0 %v4373
    %v4697 = vpop.f32.mrf.mxu0
    %v4698 = vadd.f32 0.0, %v4697
    %4699 = vdwg.mxu0
    %v4700 = vadd.f32 %v4671, %v4692
    %v4701 = vadd.f32 %v4672, %v4695
    %v4702 = vadd.f32 %v4673, %v4698
    %v4703 = vadd.f32 %v4700, %v1198
    %v4704 = vadd.f32 %v4701, %v1198
    %v4705 = vadd.f32 %v4702, %v1198
    %v4706 = vmax.f32 %v4703, 0.0
    %v4707 = vmax.f32 %v4704, 0.0
    %v4708 = vmax.f32 %v4705, 0.0
    %v4711 = vrot.slane %v4706, 1
    %v4712 = vrot.slane %v4707, 1
    %v4713 = vsel %vm242, %v4711, %v4712
    %4716 = vmatpush.msra.mxu0 %v1238
    %4717 = vmatpush.msra.mxu0 %v1237
    %4718 = vmatpush.msra.mxu0 %v1236
    %4719 = vmatpush.msra.mxu0 %v1235
    %4720 = vmatpush.msra.mxu0 %v1234
    %4721 = vmatpush.msra.mxu0 %v1233
    %4722 = vmatpush.msra.mxu0 %v1232
    %4723 = vmatpush.msra.mxu0 %v1231
    %4724 = vmatpush.msra.mxu0 %v1230
    %4725 = vmatpush.msra.mxu0 %v1229
    %4726 = vmatpush.msra.mxu0 %v1228
    %4727 = vmatpush.msra.mxu0 %v1227
    %4728 = vmatpush.msra.mxu0 %v1226
    %4729 = vmatpush.msra.mxu0 %v1225
    %4730 = vmatpush.msra.mxu0 %v1224
    %4731 = vmatpush.msra.mxu0 %v1223
    %4732 = vmatmul.f32.gmra.mxu0 %v4713
    %v4733 = vpop.f32.mrf.mxu0
    %v4734 = vadd.f32 0.0, %v4733
    %4735 = vmatmul.f32.gmra.mxu0 %v4712
    %v4736 = vpop.f32.mrf.mxu0
    %v4737 = vadd.f32 0.0, %v4736
    %4738 = vdwg.mxu0
    %4739 = vmatpush.msra.mxu0 %v1221
    %4740 = vmatpush.msra.mxu0 %v1220
    %4741 = vmatpush.msra.mxu0 %v1219
    %4742 = vmatpush.msra.mxu0 %v1218
    %4743 = vmatpush.msra.mxu0 %v1217
    %4744 = vmatpush.msra.mxu0 %v1216
    %4745 = vmatpush.msra.mxu0 %v1215
    %4746 = vmatpush.msra.mxu0 %v1214
    %4747 = vmatpush.msra.mxu0 %v1213
    %4748 = vmatpush.msra.mxu0 %v1212
    %4749 = vmatpush.msra.mxu0 %v1211
    %4750 = vmatpush.msra.mxu0 %v1210
    %4751 = vmatpush.msra.mxu0 %v1209
    %4752 = vmatpush.msra.mxu0 %v1208
    %4753 = vmatpush.msra.mxu0 %v1207
    %4754 = vmatpush.msra.mxu0 %v1206
    %4755 = vmatmul.f32.gmra.mxu0 %v4706
    %v4756 = vpop.f32.mrf.mxu0
    %v4757 = vadd.f32 %v4734, %v4756
    %4758 = vmatmul.f32.gmra.mxu0 %v4707
    %v4759 = vpop.f32.mrf.mxu0
    %v4760 = vadd.f32 %v4737, %v4759
    %4761 = vdwg.mxu0
    %v4763 = vrot.slane %v4706, 2
    %v4764 = vrot.slane %v4707, 2
    %v4765 = vsel %vm332, %v4763, %v4764
    %v4766 = vrot.slane %v4708, 2
    %v4767 = vsel %vm332, %v4764, %v4766
    %4770 = vmatpush.msra.mxu0 %v1308
    %4771 = vmatpush.msra.mxu0 %v1307
    %4772 = vmatpush.msra.mxu0 %v1306
    %4773 = vmatpush.msra.mxu0 %v1305
    %4774 = vmatpush.msra.mxu0 %v1304
    %4775 = vmatpush.msra.mxu0 %v1303
    %4776 = vmatpush.msra.mxu0 %v1302
    %4777 = vmatpush.msra.mxu0 %v1301
    %4778 = vmatpush.msra.mxu0 %v1300
    %4779 = vmatpush.msra.mxu0 %v1299
    %4780 = vmatpush.msra.mxu0 %v1298
    %4781 = vmatpush.msra.mxu0 %v1297
    %4782 = vmatpush.msra.mxu0 %v1296
    %4783 = vmatpush.msra.mxu0 %v1295
    %4784 = vmatpush.msra.mxu0 %v1294
    %4785 = vmatpush.msra.mxu0 %v1293
    %4786 = vmatmul.f32.gmra.mxu0 %v4765
    %v4787 = vpop.f32.mrf.mxu0
    %v4788 = vadd.f32 0.0, %v4787
    %4789 = vmatmul.f32.gmra.mxu0 %v4767
    %v4790 = vpop.f32.mrf.mxu0
    %v4791 = vadd.f32 0.0, %v4790
    %4792 = vdwg.mxu0
    %v4793 = vadd.f32 %v4757, %v4788
    %v4794 = vadd.f32 %v4760, %v4791
    %v4795 = vrot.slane %v4706, 3
    %v4796 = vrot.slane %v4707, 3
    %v4797 = vsel %vm388, %v4795, %v4796
    %v4798 = vrot.slane %v4708, 3
    %v4799 = vsel %vm388, %v4796, %v4798
    %4802 = vmatpush.msra.mxu0 %v1358
    %4803 = vmatpush.msra.mxu0 %v1357
    %4804 = vmatpush.msra.mxu0 %v1356
    %4805 = vmatpush.msra.mxu0 %v1355
    %4806 = vmatpush.msra.mxu0 %v1354
    %4807 = vmatpush.msra.mxu0 %v1353
    %4808 = vmatpush.msra.mxu0 %v1352
    %4809 = vmatpush.msra.mxu0 %v1351
    %4810 = vmatpush.msra.mxu0 %v1350
    %4811 = vmatpush.msra.mxu0 %v1349
    %4812 = vmatpush.msra.mxu0 %v1348
    %4813 = vmatpush.msra.mxu0 %v1347
    %4814 = vmatpush.msra.mxu0 %v1346
    %4815 = vmatpush.msra.mxu0 %v1345
    %4816 = vmatpush.msra.mxu0 %v1344
    %4817 = vmatpush.msra.mxu0 %v1343
    %4818 = vmatmul.f32.gmra.mxu0 %v4797
    %v4819 = vpop.f32.mrf.mxu0
    %v4820 = vadd.f32 0.0, %v4819
    %4821 = vmatmul.f32.gmra.mxu0 %v4799
    %v4822 = vpop.f32.mrf.mxu0
    %v4823 = vadd.f32 0.0, %v4822
    %4824 = vdwg.mxu0
    %v4825 = vadd.f32 %v4793, %v4820
    %v4826 = vadd.f32 %v4794, %v4823
    %v4827 = vrot.slane %v4706, 4
    %v4828 = vrot.slane %v4707, 4
    %v4829 = vsel %vm444, %v4827, %v4828
    %v4830 = vrot.slane %v4708, 4
    %v4831 = vsel %vm444, %v4828, %v4830
    %4834 = vmatpush.msra.mxu0 %v1407
    %4835 = vmatpush.msra.mxu0 %v1406
    %4836 = vmatpush.msra.mxu0 %v1405
    %4837 = vmatpush.msra.mxu0 %v1404
    %4838 = vmatpush.msra.mxu0 %v1403
    %4839 = vmatpush.msra.mxu0 %v1402
    %4840 = vmatpush.msra.mxu0 %v1401
    %4841 = vmatpush.msra.mxu0 %v1400
    %4842 = vmatpush.msra.mxu0 %v1399
    %4843 = vmatpush.msra.mxu0 %v1398
    %4844 = vmatpush.msra.mxu0 %v1397
    %4845 = vmatpush.msra.mxu0 %v1396
    %4846 = vmatpush.msra.mxu0 %v1395
    %4847 = vmatpush.msra.mxu0 %v1394
    %4848 = vmatpush.msra.mxu0 %v1393
    %4849 = vmatpush.msra.mxu0 %v1392
    %4850 = vmatmul.f32.gmra.mxu0 %v4829
    %v4851 = vpop.f32.mrf.mxu0
    %v4852 = vadd.f32 0.0, %v4851
    %4853 = vmatmul.f32.gmra.mxu0 %v4831
    %v4854 = vpop.f32.mrf.mxu0
    %v4855 = vadd.f32 0.0, %v4854
    %4856 = vdwg.mxu0
    %v4857 = vadd.f32 %v4825, %v4852
    %v4858 = vadd.f32 %v4826, %v4855
    %v4859 = vrot.slane %v4706, 5
    %v4860 = vrot.slane %v4707, 5
    %v4861 = vsel %vm500, %v4859, %v4860
    %v4862 = vrot.slane %v4708, 5
    %v4863 = vsel %vm500, %v4860, %v4862
    %4866 = vmatpush.msra.mxu0 %v1456
    %4867 = vmatpush.msra.mxu0 %v1455
    %4868 = vmatpush.msra.mxu0 %v1454
    %4869 = vmatpush.msra.mxu0 %v1453
    %4870 = vmatpush.msra.mxu0 %v1452
    %4871 = vmatpush.msra.mxu0 %v1451
    %4872 = vmatpush.msra.mxu0 %v1450
    %4873 = vmatpush.msra.mxu0 %v1449
    %4874 = vmatpush.msra.mxu0 %v1448
    %4875 = vmatpush.msra.mxu0 %v1447
    %4876 = vmatpush.msra.mxu0 %v1446
    %4877 = vmatpush.msra.mxu0 %v1445
    %4878 = vmatpush.msra.mxu0 %v1444
    %4879 = vmatpush.msra.mxu0 %v1443
    %4880 = vmatpush.msra.mxu0 %v1442
    %4881 = vmatpush.msra.mxu0 %v1441
    %4882 = vmatmul.f32.gmra.mxu0 %v4861
    %v4883 = vpop.f32.mrf.mxu0
    %v4884 = vadd.f32 0.0, %v4883
    %4885 = vmatmul.f32.gmra.mxu0 %v4863
    %v4886 = vpop.f32.mrf.mxu0
    %v4887 = vadd.f32 0.0, %v4886
    %4888 = vdwg.mxu0
    %v4889 = vadd.f32 %v4857, %v4884
    %v4890 = vadd.f32 %v4858, %v4887
    %v4891 = vrot.slane %v4706, 6
    %v4892 = vrot.slane %v4707, 6
    %v4893 = vsel %vm556, %v4891, %v4892
    %v4894 = vrot.slane %v4708, 6
    %v4895 = vsel %vm556, %v4892, %v4894
    %4898 = vmatpush.msra.mxu0 %v1505
    %4899 = vmatpush.msra.mxu0 %v1504
    %4900 = vmatpush.msra.mxu0 %v1503
    %4901 = vmatpush.msra.mxu0 %v1502
    %4902 = vmatpush.msra.mxu0 %v1501
    %4903 = vmatpush.msra.mxu0 %v1500
    %4904 = vmatpush.msra.mxu0 %v1499
    %4905 = vmatpush.msra.mxu0 %v1498
    %4906 = vmatpush.msra.mxu0 %v1497
    %4907 = vmatpush.msra.mxu0 %v1496
    %4908 = vmatpush.msra.mxu0 %v1495
    %4909 = vmatpush.msra.mxu0 %v1494
    %4910 = vmatpush.msra.mxu0 %v1493
    %4911 = vmatpush.msra.mxu0 %v1492
    %4912 = vmatpush.msra.mxu0 %v1491
    %4913 = vmatpush.msra.mxu0 %v1490
    %4914 = vmatmul.f32.gmra.mxu0 %v4893
    %v4915 = vpop.f32.mrf.mxu0
    %v4916 = vadd.f32 0.0, %v4915
    %4917 = vmatmul.f32.gmra.mxu0 %v4895
    %v4918 = vpop.f32.mrf.mxu0
    %v4919 = vadd.f32 0.0, %v4918
    %4920 = vdwg.mxu0
    %v4921 = vadd.f32 %v4889, %v4916
    %v4922 = vadd.f32 %v4890, %v4919
    %v4923 = vrot.slane %v4706, 7
    %v4924 = vrot.slane %v4707, 7
    %v4925 = vsel %vm612, %v4923, %v4924
    %v4926 = vrot.slane %v4708, 7
    %v4927 = vsel %vm612, %v4924, %v4926
    %4930 = vmatpush.msra.mxu0 %v1554
    %4931 = vmatpush.msra.mxu0 %v1553
    %4932 = vmatpush.msra.mxu0 %v1552
    %4933 = vmatpush.msra.mxu0 %v1551
    %4934 = vmatpush.msra.mxu0 %v1550
    %4935 = vmatpush.msra.mxu0 %v1549
    %4936 = vmatpush.msra.mxu0 %v1548
    %4937 = vmatpush.msra.mxu0 %v1547
    %4938 = vmatpush.msra.mxu0 %v1546
    %4939 = vmatpush.msra.mxu0 %v1545
    %4940 = vmatpush.msra.mxu0 %v1544
    %4941 = vmatpush.msra.mxu0 %v1543
    %4942 = vmatpush.msra.mxu0 %v1542
    %4943 = vmatpush.msra.mxu0 %v1541
    %4944 = vmatpush.msra.mxu0 %v1540
    %4945 = vmatpush.msra.mxu0 %v1539
    %4946 = vmatmul.f32.gmra.mxu0 %v4925
    %v4947 = vpop.f32.mrf.mxu0
    %v4948 = vadd.f32 0.0, %v4947
    %4949 = vmatmul.f32.gmra.mxu0 %v4927
    %v4950 = vpop.f32.mrf.mxu0
    %v4951 = vadd.f32 0.0, %v4950
    %4952 = vdwg.mxu0
    %v4953 = vadd.f32 %v4921, %v4948
    %v4954 = vadd.f32 %v4922, %v4951
    %4955 = vmatpush.msra.mxu0 %v1603
    %4956 = vmatpush.msra.mxu0 %v1602
    %4957 = vmatpush.msra.mxu0 %v1601
    %4958 = vmatpush.msra.mxu0 %v1600
    %4959 = vmatpush.msra.mxu0 %v1599
    %4960 = vmatpush.msra.mxu0 %v1598
    %4961 = vmatpush.msra.mxu0 %v1597
    %4962 = vmatpush.msra.mxu0 %v1596
    %4963 = vmatpush.msra.mxu0 %v1595
    %4964 = vmatpush.msra.mxu0 %v1594
    %4965 = vmatpush.msra.mxu0 %v1593
    %4966 = vmatpush.msra.mxu0 %v1592
    %4967 = vmatpush.msra.mxu0 %v1591
    %4968 = vmatpush.msra.mxu0 %v1590
    %4969 = vmatpush.msra.mxu0 %v1589
    %4970 = vmatpush.msra.mxu0 %v1588
    %4971 = vmatmul.f32.gmra.mxu0 %v4707
    %v4972 = vpop.f32.mrf.mxu0
    %v4973 = vadd.f32 0.0, %v4972
    %4974 = vmatmul.f32.gmra.mxu0 %v4708
    %v4975 = vpop.f32.mrf.mxu0
    %v4976 = vadd.f32 0.0, %v4975
    %4977 = vdwg.mxu0
    %v4978 = vadd.f32 %v4953, %v4973
    %v4979 = vadd.f32 %v4954, %v4976
    %v4980 = vrot.slane %v4708, 1
    %v4981 = vsel %vm242, %v4712, %v4980
    %4984 = vmatpush.msra.mxu0 %v1645
    %4985 = vmatpush.msra.mxu0 %v1644
    %4986 = vmatpush.msra.mxu0 %v1643
    %4987 = vmatpush.msra.mxu0 %v1642
    %4988 = vmatpush.msra.mxu0 %v1641
    %4989 = vmatpush.msra.mxu0 %v1640
    %4990 = vmatpush.msra.mxu0 %v1639
    %4991 = vmatpush.msra.mxu0 %v1638
    %4992 = vmatpush.msra.mxu0 %v1637
    %4993 = vmatpush.msra.mxu0 %v1636
    %4994 = vmatpush.msra.mxu0 %v1635
    %4995 = vmatpush.msra.mxu0 %v1634
    %4996 = vmatpush.msra.mxu0 %v1633
    %4997 = vmatpush.msra.mxu0 %v1632
    %4998 = vmatpush.msra.mxu0 %v1631
    %4999 = vmatpush.msra.mxu0 %v1630
    %5000 = vmatmul.f32.gmra.mxu0 %v4981
    %v5001 = vpop.f32.mrf.mxu0
    %v5002 = vadd.f32 0.0, %v5001
    %5003 = vmatmul.f32.gmra.mxu0 %v4980
    %v5004 = vpop.f32.mrf.mxu0
    %v5005 = vadd.f32 0.0, %v5004
    %5006 = vdwg.mxu0
    %v5007 = vadd.f32 %v4978, %v5002
    %v5008 = vadd.f32 %v4979, %v5005
    %v5009 = vadd.f32 %v5007, %v1677
    %v5010 = vadd.f32 %v5008, %v1677
    %v5011 = vmax.f32 %v5009, 0.0
    %v5012 = vmax.f32 %v5010, 0.0
    %v5014 = vrot.slane %v5011, 1
    %5016 = vmatpush.msra.mxu0 %v1808
    %5017 = vmatpush.msra.mxu0 %v1804
    %5018 = vmatpush.msra.mxu0 %v1800
    %5019 = vmatpush.msra.mxu0 %v1796
    %5020 = vmatpush.msra.mxu0 %v1792
    %5021 = vmatpush.msra.mxu0 %v1788
    %5022 = vmatpush.msra.mxu0 %v1784
    %5023 = vmatpush.msra.mxu0 %v1780
    %5024 = vmatpush.msra.mxu0 %v1776
    %5025 = vmatpush.msra.mxu0 %v1772
    %5026 = vmatpush.msra.mxu0 %v1768
    %5027 = vmatpush.msra.mxu0 %v1764
    %5028 = vmatpush.msra.mxu0 %v1760
    %5029 = vmatpush.msra.mxu0 %v1756
    %5030 = vmatpush.msra.mxu0 %v1752
    %5031 = vmatpush.msra.mxu0 %v1748
    %5032 = vmatmul.f32.gmra.mxu0 %v5014
    %v5033 = vpop.f32.mrf.mxu0
    %v5034 = vadd.f32 0.0, %v5033
    %5035 = vdwg.mxu0
    %5036 = vmatpush.msra.mxu0 %v1809
    %5037 = vmatpush.msra.mxu0 %v1805
    %5038 = vmatpush.msra.mxu0 %v1801
    %5039 = vmatpush.msra.mxu0 %v1797
    %5040 = vmatpush.msra.mxu0 %v1793
    %5041 = vmatpush.msra.mxu0 %v1789
    %5042 = vmatpush.msra.mxu0 %v1785
    %5043 = vmatpush.msra.mxu0 %v1781
    %5044 = vmatpush.msra.mxu0 %v1777
    %5045 = vmatpush.msra.mxu0 %v1773
    %5046 = vmatpush.msra.mxu0 %v1769
    %5047 = vmatpush.msra.mxu0 %v1765
    %5048 = vmatpush.msra.mxu0 %v1761
    %5049 = vmatpush.msra.mxu0 %v1757
    %5050 = vmatpush.msra.mxu0 %v1753
    %5051 = vmatpush.msra.mxu0 %v1749
    %5052 = vmatmul.f32.gmra.mxu0 %v5014
    %v5053 = vpop.f32.mrf.mxu0
    %v5054 = vadd.f32 0.0, %v5053
    %5055 = vdwg.mxu0
    %5056 = vmatpush.msra.mxu0 %v1810
    %5057 = vmatpush.msra.mxu0 %v1806
    %5058 = vmatpush.msra.mxu0 %v1802
    %5059 = vmatpush.msra.mxu0 %v1798
    %5060 = vmatpush.msra.mxu0 %v1794
    %5061 = vmatpush.msra.mxu0 %v1790
    %5062 = vmatpush.msra.mxu0 %v1786
    %5063 = vmatpush.msra.mxu0 %v1782
    %5064 = vmatpush.msra.mxu0 %v1778
    %5065 = vmatpush.msra.mxu0 %v1774
    %5066 = vmatpush.msra.mxu0 %v1770
    %5067 = vmatpush.msra.mxu0 %v1766
    %5068 = vmatpush.msra.mxu0 %v1762
    %5069 = vmatpush.msra.mxu0 %v1758
    %5070 = vmatpush.msra.mxu0 %v1754
    %5071 = vmatpush.msra.mxu0 %v1750
    %5072 = vmatmul.f32.gmra.mxu0 %v5014
    %v5073 = vpop.f32.mrf.mxu0
    %v5074 = vadd.f32 0.0, %v5073
    %5075 = vdwg.mxu0
    %5076 = vmatpush.msra.mxu0 %v1811
    %5077 = vmatpush.msra.mxu0 %v1807
    %5078 = vmatpush.msra.mxu0 %v1803
    %5079 = vmatpush.msra.mxu0 %v1799
    %5080 = vmatpush.msra.mxu0 %v1795
    %5081 = vmatpush.msra.mxu0 %v1791
    %5082 = vmatpush.msra.mxu0 %v1787
    %5083 = vmatpush.msra.mxu0 %v1783
    %5084 = vmatpush.msra.mxu0 %v1779
    %5085 = vmatpush.msra.mxu0 %v1775
    %5086 = vmatpush.msra.mxu0 %v1771
    %5087 = vmatpush.msra.mxu0 %v1767
    %5088 = vmatpush.msra.mxu0 %v1763
    %5089 = vmatpush.msra.mxu0 %v1759
    %5090 = vmatpush.msra.mxu0 %v1755
    %5091 = vmatpush.msra.mxu0 %v1751
    %5092 = vmatmul.f32.gmra.mxu0 %v5014
    %v5093 = vpop.f32.mrf.mxu0
    %v5094 = vadd.f32 0.0, %v5093
    %5095 = vdwg.mxu0
    %5096 = vmatpush.msra.mxu0 %v1743
    %5097 = vmatpush.msra.mxu0 %v1739
    %5098 = vmatpush.msra.mxu0 %v1735
    %5099 = vmatpush.msra.mxu0 %v1731
    %5100 = vmatpush.msra.mxu0 %v1727
    %5101 = vmatpush.msra.mxu0 %v1723
    %5102 = vmatpush.msra.mxu0 %v1719
    %5103 = vmatpush.msra.mxu0 %v1715
    %5104 = vmatpush.msra.mxu0 %v1711
    %5105 = vmatpush.msra.mxu0 %v1707
    %5106 = vmatpush.msra.mxu0 %v1703
    %5107 = vmatpush.msra.mxu0 %v1699
    %5108 = vmatpush.msra.mxu0 %v1695
    %5109 = vmatpush.msra.mxu0 %v1691
    %5110 = vmatpush.msra.mxu0 %v1687
    %5111 = vmatpush.msra.mxu0 %v1683
    %5112 = vmatmul.f32.gmra.mxu0 %v5011
    %v5113 = vpop.f32.mrf.mxu0
    %v5114 = vadd.f32 %v5034, %v5113
    %5115 = vdwg.mxu0
    %5116 = vmatpush.msra.mxu0 %v1744
    %5117 = vmatpush.msra.mxu0 %v1740
    %5118 = vmatpush.msra.mxu0 %v1736
    %5119 = vmatpush.msra.mxu0 %v1732
    %5120 = vmatpush.msra.mxu0 %v1728
    %5121 = vmatpush.msra.mxu0 %v1724
    %5122 = vmatpush.msra.mxu0 %v1720
    %5123 = vmatpush.msra.mxu0 %v1716
    %5124 = vmatpush.msra.mxu0 %v1712
    %5125 = vmatpush.msra.mxu0 %v1708
    %5126 = vmatpush.msra.mxu0 %v1704
    %5127 = vmatpush.msra.mxu0 %v1700
    %5128 = vmatpush.msra.mxu0 %v1696
    %5129 = vmatpush.msra.mxu0 %v1692
    %5130 = vmatpush.msra.mxu0 %v1688
    %5131 = vmatpush.msra.mxu0 %v1684
    %5132 = vmatmul.f32.gmra.mxu0 %v5011
    %v5133 = vpop.f32.mrf.mxu0
    %v5134 = vadd.f32 %v5054, %v5133
    %5135 = vdwg.mxu0
    %5136 = vmatpush.msra.mxu0 %v1745
    %5137 = vmatpush.msra.mxu0 %v1741
    %5138 = vmatpush.msra.mxu0 %v1737
    %5139 = vmatpush.msra.mxu0 %v1733
    %5140 = vmatpush.msra.mxu0 %v1729
    %5141 = vmatpush.msra.mxu0 %v1725
    %5142 = vmatpush.msra.mxu0 %v1721
    %5143 = vmatpush.msra.mxu0 %v1717
    %5144 = vmatpush.msra.mxu0 %v1713
    %5145 = vmatpush.msra.mxu0 %v1709
    %5146 = vmatpush.msra.mxu0 %v1705
    %5147 = vmatpush.msra.mxu0 %v1701
    %5148 = vmatpush.msra.mxu0 %v1697
    %5149 = vmatpush.msra.mxu0 %v1693
    %5150 = vmatpush.msra.mxu0 %v1689
    %5151 = vmatpush.msra.mxu0 %v1685
    %5152 = vmatmul.f32.gmra.mxu0 %v5011
    %v5153 = vpop.f32.mrf.mxu0
    %v5154 = vadd.f32 %v5074, %v5153
    %5155 = vdwg.mxu0
    %5156 = vmatpush.msra.mxu0 %v1746
    %5157 = vmatpush.msra.mxu0 %v1742
    %5158 = vmatpush.msra.mxu0 %v1738
    %5159 = vmatpush.msra.mxu0 %v1734
    %5160 = vmatpush.msra.mxu0 %v1730
    %5161 = vmatpush.msra.mxu0 %v1726
    %5162 = vmatpush.msra.mxu0 %v1722
    %5163 = vmatpush.msra.mxu0 %v1718
    %5164 = vmatpush.msra.mxu0 %v1714
    %5165 = vmatpush.msra.mxu0 %v1710
    %5166 = vmatpush.msra.mxu0 %v1706
    %5167 = vmatpush.msra.mxu0 %v1702
    %5168 = vmatpush.msra.mxu0 %v1698
    %5169 = vmatpush.msra.mxu0 %v1694
    %5170 = vmatpush.msra.mxu0 %v1690
    %5171 = vmatpush.msra.mxu0 %v1686
    %5172 = vmatmul.f32.gmra.mxu0 %v5011
    %v5173 = vpop.f32.mrf.mxu0
    %v5174 = vadd.f32 %v5094, %v5173
    %5175 = vdwg.mxu0
    %v5176 = vrot.slane %v5011, 2
    %5178 = vmatpush.msra.mxu0 %v2036
    %5179 = vmatpush.msra.mxu0 %v2032
    %5180 = vmatpush.msra.mxu0 %v2028
    %5181 = vmatpush.msra.mxu0 %v2024
    %5182 = vmatpush.msra.mxu0 %v2020
    %5183 = vmatpush.msra.mxu0 %v2016
    %5184 = vmatpush.msra.mxu0 %v2012
    %5185 = vmatpush.msra.mxu0 %v2008
    %5186 = vmatpush.msra.mxu0 %v2004
    %5187 = vmatpush.msra.mxu0 %v2000
    %5188 = vmatpush.msra.mxu0 %v1996
    %5189 = vmatpush.msra.mxu0 %v1992
    %5190 = vmatpush.msra.mxu0 %v1988
    %5191 = vmatpush.msra.mxu0 %v1984
    %5192 = vmatpush.msra.mxu0 %v1980
    %5193 = vmatpush.msra.mxu0 %v1976
    %5194 = vmatmul.f32.gmra.mxu0 %v5176
    %v5195 = vpop.f32.mrf.mxu0
    %v5196 = vadd.f32 0.0, %v5195
    %5197 = vdwg.mxu0
    %5198 = vmatpush.msra.mxu0 %v2037
    %5199 = vmatpush.msra.mxu0 %v2033
    %5200 = vmatpush.msra.mxu0 %v2029
    %5201 = vmatpush.msra.mxu0 %v2025
    %5202 = vmatpush.msra.mxu0 %v2021
    %5203 = vmatpush.msra.mxu0 %v2017
    %5204 = vmatpush.msra.mxu0 %v2013
    %5205 = vmatpush.msra.mxu0 %v2009
    %5206 = vmatpush.msra.mxu0 %v2005
    %5207 = vmatpush.msra.mxu0 %v2001
    %5208 = vmatpush.msra.mxu0 %v1997
    %5209 = vmatpush.msra.mxu0 %v1993
    %5210 = vmatpush.msra.mxu0 %v1989
    %5211 = vmatpush.msra.mxu0 %v1985
    %5212 = vmatpush.msra.mxu0 %v1981
    %5213 = vmatpush.msra.mxu0 %v1977
    %5214 = vmatmul.f32.gmra.mxu0 %v5176
    %v5215 = vpop.f32.mrf.mxu0
    %v5216 = vadd.f32 0.0, %v5215
    %5217 = vdwg.mxu0
    %5218 = vmatpush.msra.mxu0 %v2038
    %5219 = vmatpush.msra.mxu0 %v2034
    %5220 = vmatpush.msra.mxu0 %v2030
    %5221 = vmatpush.msra.mxu0 %v2026
    %5222 = vmatpush.msra.mxu0 %v2022
    %5223 = vmatpush.msra.mxu0 %v2018
    %5224 = vmatpush.msra.mxu0 %v2014
    %5225 = vmatpush.msra.mxu0 %v2010
    %5226 = vmatpush.msra.mxu0 %v2006
    %5227 = vmatpush.msra.mxu0 %v2002
    %5228 = vmatpush.msra.mxu0 %v1998
    %5229 = vmatpush.msra.mxu0 %v1994
    %5230 = vmatpush.msra.mxu0 %v1990
    %5231 = vmatpush.msra.mxu0 %v1986
    %5232 = vmatpush.msra.mxu0 %v1982
    %5233 = vmatpush.msra.mxu0 %v1978
    %5234 = vmatmul.f32.gmra.mxu0 %v5176
    %v5235 = vpop.f32.mrf.mxu0
    %v5236 = vadd.f32 0.0, %v5235
    %5237 = vdwg.mxu0
    %5238 = vmatpush.msra.mxu0 %v2039
    %5239 = vmatpush.msra.mxu0 %v2035
    %5240 = vmatpush.msra.mxu0 %v2031
    %5241 = vmatpush.msra.mxu0 %v2027
    %5242 = vmatpush.msra.mxu0 %v2023
    %5243 = vmatpush.msra.mxu0 %v2019
    %5244 = vmatpush.msra.mxu0 %v2015
    %5245 = vmatpush.msra.mxu0 %v2011
    %5246 = vmatpush.msra.mxu0 %v2007
    %5247 = vmatpush.msra.mxu0 %v2003
    %5248 = vmatpush.msra.mxu0 %v1999
    %5249 = vmatpush.msra.mxu0 %v1995
    %5250 = vmatpush.msra.mxu0 %v1991
    %5251 = vmatpush.msra.mxu0 %v1987
    %5252 = vmatpush.msra.mxu0 %v1983
    %5253 = vmatpush.msra.mxu0 %v1979
    %5254 = vmatmul.f32.gmra.mxu0 %v5176
    %v5255 = vpop.f32.mrf.mxu0
    %v5256 = vadd.f32 0.0, %v5255
    %5257 = vdwg.mxu0
    %v5258 = vadd.f32 %v5114, %v5196
    %v5259 = vadd.f32 %v5134, %v5216
    %v5260 = vadd.f32 %v5154, %v5236
    %v5261 = vadd.f32 %v5174, %v5256
    %v5262 = vrot.slane %v5011, 3
    %5264 = vmatpush.msra.mxu0 %v2187
    %5265 = vmatpush.msra.mxu0 %v2183
    %5266 = vmatpush.msra.mxu0 %v2179
    %5267 = vmatpush.msra.mxu0 %v2175
    %5268 = vmatpush.msra.mxu0 %v2171
    %5269 = vmatpush.msra.mxu0 %v2167
    %5270 = vmatpush.msra.mxu0 %v2163
    %5271 = vmatpush.msra.mxu0 %v2159
    %5272 = vmatpush.msra.mxu0 %v2155
    %5273 = vmatpush.msra.mxu0 %v2151
    %5274 = vmatpush.msra.mxu0 %v2147
    %5275 = vmatpush.msra.mxu0 %v2143
    %5276 = vmatpush.msra.mxu0 %v2139
    %5277 = vmatpush.msra.mxu0 %v2135
    %5278 = vmatpush.msra.mxu0 %v2131
    %5279 = vmatpush.msra.mxu0 %v2127
    %5280 = vmatmul.f32.gmra.mxu0 %v5262
    %v5281 = vpop.f32.mrf.mxu0
    %v5282 = vadd.f32 0.0, %v5281
    %5283 = vdwg.mxu0
    %5284 = vmatpush.msra.mxu0 %v2188
    %5285 = vmatpush.msra.mxu0 %v2184
    %5286 = vmatpush.msra.mxu0 %v2180
    %5287 = vmatpush.msra.mxu0 %v2176
    %5288 = vmatpush.msra.mxu0 %v2172
    %5289 = vmatpush.msra.mxu0 %v2168
    %5290 = vmatpush.msra.mxu0 %v2164
    %5291 = vmatpush.msra.mxu0 %v2160
    %5292 = vmatpush.msra.mxu0 %v2156
    %5293 = vmatpush.msra.mxu0 %v2152
    %5294 = vmatpush.msra.mxu0 %v2148
    %5295 = vmatpush.msra.mxu0 %v2144
    %5296 = vmatpush.msra.mxu0 %v2140
    %5297 = vmatpush.msra.mxu0 %v2136
    %5298 = vmatpush.msra.mxu0 %v2132
    %5299 = vmatpush.msra.mxu0 %v2128
    %5300 = vmatmul.f32.gmra.mxu0 %v5262
    %v5301 = vpop.f32.mrf.mxu0
    %v5302 = vadd.f32 0.0, %v5301
    %5303 = vdwg.mxu0
    %5304 = vmatpush.msra.mxu0 %v2189
    %5305 = vmatpush.msra.mxu0 %v2185
    %5306 = vmatpush.msra.mxu0 %v2181
    %5307 = vmatpush.msra.mxu0 %v2177
    %5308 = vmatpush.msra.mxu0 %v2173
    %5309 = vmatpush.msra.mxu0 %v2169
    %5310 = vmatpush.msra.mxu0 %v2165
    %5311 = vmatpush.msra.mxu0 %v2161
    %5312 = vmatpush.msra.mxu0 %v2157
    %5313 = vmatpush.msra.mxu0 %v2153
    %5314 = vmatpush.msra.mxu0 %v2149
    %5315 = vmatpush.msra.mxu0 %v2145
    %5316 = vmatpush.msra.mxu0 %v2141
    %5317 = vmatpush.msra.mxu0 %v2137
    %5318 = vmatpush.msra.mxu0 %v2133
    %5319 = vmatpush.msra.mxu0 %v2129
    %5320 = vmatmul.f32.gmra.mxu0 %v5262
    %v5321 = vpop.f32.mrf.mxu0
    %v5322 = vadd.f32 0.0, %v5321
    %5323 = vdwg.mxu0
    %5324 = vmatpush.msra.mxu0 %v2190
    %5325 = vmatpush.msra.mxu0 %v2186
    %5326 = vmatpush.msra.mxu0 %v2182
    %5327 = vmatpush.msra.mxu0 %v2178
    %5328 = vmatpush.msra.mxu0 %v2174
    %5329 = vmatpush.msra.mxu0 %v2170
    %5330 = vmatpush.msra.mxu0 %v2166
    %5331 = vmatpush.msra.mxu0 %v2162
    %5332 = vmatpush.msra.mxu0 %v2158
    %5333 = vmatpush.msra.mxu0 %v2154
    %5334 = vmatpush.msra.mxu0 %v2150
    %5335 = vmatpush.msra.mxu0 %v2146
    %5336 = vmatpush.msra.mxu0 %v2142
    %5337 = vmatpush.msra.mxu0 %v2138
    %5338 = vmatpush.msra.mxu0 %v2134
    %5339 = vmatpush.msra.mxu0 %v2130
    %5340 = vmatmul.f32.gmra.mxu0 %v5262
    %v5341 = vpop.f32.mrf.mxu0
    %v5342 = vadd.f32 0.0, %v5341
    %5343 = vdwg.mxu0
    %v5344 = vadd.f32 %v5258, %v5282
    %v5345 = vadd.f32 %v5259, %v5302
    %v5346 = vadd.f32 %v5260, %v5322
    %v5347 = vadd.f32 %v5261, %v5342
    %v5348 = vrot.slane %v5011, 4
    %5350 = vmatpush.msra.mxu0 %v2338
    %5351 = vmatpush.msra.mxu0 %v2334
    %5352 = vmatpush.msra.mxu0 %v2330
    %5353 = vmatpush.msra.mxu0 %v2326
    %5354 = vmatpush.msra.mxu0 %v2322
    %5355 = vmatpush.msra.mxu0 %v2318
    %5356 = vmatpush.msra.mxu0 %v2314
    %5357 = vmatpush.msra.mxu0 %v2310
    %5358 = vmatpush.msra.mxu0 %v2306
    %5359 = vmatpush.msra.mxu0 %v2302
    %5360 = vmatpush.msra.mxu0 %v2298
    %5361 = vmatpush.msra.mxu0 %v2294
    %5362 = vmatpush.msra.mxu0 %v2290
    %5363 = vmatpush.msra.mxu0 %v2286
    %5364 = vmatpush.msra.mxu0 %v2282
    %5365 = vmatpush.msra.mxu0 %v2278
    %5366 = vmatmul.f32.gmra.mxu0 %v5348
    %v5367 = vpop.f32.mrf.mxu0
    %v5368 = vadd.f32 0.0, %v5367
    %5369 = vdwg.mxu0
    %5370 = vmatpush.msra.mxu0 %v2339
    %5371 = vmatpush.msra.mxu0 %v2335
    %5372 = vmatpush.msra.mxu0 %v2331
    %5373 = vmatpush.msra.mxu0 %v2327
    %5374 = vmatpush.msra.mxu0 %v2323
    %5375 = vmatpush.msra.mxu0 %v2319
    %5376 = vmatpush.msra.mxu0 %v2315
    %5377 = vmatpush.msra.mxu0 %v2311
    %5378 = vmatpush.msra.mxu0 %v2307
    %5379 = vmatpush.msra.mxu0 %v2303
    %5380 = vmatpush.msra.mxu0 %v2299
    %5381 = vmatpush.msra.mxu0 %v2295
    %5382 = vmatpush.msra.mxu0 %v2291
    %5383 = vmatpush.msra.mxu0 %v2287
    %5384 = vmatpush.msra.mxu0 %v2283
    %5385 = vmatpush.msra.mxu0 %v2279
    %5386 = vmatmul.f32.gmra.mxu0 %v5348
    %v5387 = vpop.f32.mrf.mxu0
    %v5388 = vadd.f32 0.0, %v5387
    %5389 = vdwg.mxu0
    %5390 = vmatpush.msra.mxu0 %v2340
    %5391 = vmatpush.msra.mxu0 %v2336
    %5392 = vmatpush.msra.mxu0 %v2332
    %5393 = vmatpush.msra.mxu0 %v2328
    %5394 = vmatpush.msra.mxu0 %v2324
    %5395 = vmatpush.msra.mxu0 %v2320
    %5396 = vmatpush.msra.mxu0 %v2316
    %5397 = vmatpush.msra.mxu0 %v2312
    %5398 = vmatpush.msra.mxu0 %v2308
    %5399 = vmatpush.msra.mxu0 %v2304
    %5400 = vmatpush.msra.mxu0 %v2300
    %5401 = vmatpush.msra.mxu0 %v2296
    %5402 = vmatpush.msra.mxu0 %v2292
    %5403 = vmatpush.msra.mxu0 %v2288
    %5404 = vmatpush.msra.mxu0 %v2284
    %5405 = vmatpush.msra.mxu0 %v2280
    %5406 = vmatmul.f32.gmra.mxu0 %v5348
    %v5407 = vpop.f32.mrf.mxu0
    %v5408 = vadd.f32 0.0, %v5407
    %5409 = vdwg.mxu0
    %5410 = vmatpush.msra.mxu0 %v2341
    %5411 = vmatpush.msra.mxu0 %v2337
    %5412 = vmatpush.msra.mxu0 %v2333
    %5413 = vmatpush.msra.mxu0 %v2329
    %5414 = vmatpush.msra.mxu0 %v2325
    %5415 = vmatpush.msra.mxu0 %v2321
    %5416 = vmatpush.msra.mxu0 %v2317
    %5417 = vmatpush.msra.mxu0 %v2313
    %5418 = vmatpush.msra.mxu0 %v2309
    %5419 = vmatpush.msra.mxu0 %v2305
    %5420 = vmatpush.msra.mxu0 %v2301
    %5421 = vmatpush.msra.mxu0 %v2297
    %5422 = vmatpush.msra.mxu0 %v2293
    %5423 = vmatpush.msra.mxu0 %v2289
    %5424 = vmatpush.msra.mxu0 %v2285
    %5425 = vmatpush.msra.mxu0 %v2281
    %5426 = vmatmul.f32.gmra.mxu0 %v5348
    %v5427 = vpop.f32.mrf.mxu0
    %v5428 = vadd.f32 0.0, %v5427
    %5429 = vdwg.mxu0
    %v5430 = vadd.f32 %v5344, %v5368
    %v5431 = vadd.f32 %v5345, %v5388
    %v5432 = vadd.f32 %v5346, %v5408
    %v5433 = vadd.f32 %v5347, %v5428
    %v5434 = vrot.slane %v5011, 5
    %5436 = vmatpush.msra.mxu0 %v2489
    %5437 = vmatpush.msra.mxu0 %v2485
    %5438 = vmatpush.msra.mxu0 %v2481
    %5439 = vmatpush.msra.mxu0 %v2477
    %5440 = vmatpush.msra.mxu0 %v2473
    %5441 = vmatpush.msra.mxu0 %v2469
    %5442 = vmatpush.msra.mxu0 %v2465
    %5443 = vmatpush.msra.mxu0 %v2461
    %5444 = vmatpush.msra.mxu0 %v2457
    %5445 = vmatpush.msra.mxu0 %v2453
    %5446 = vmatpush.msra.mxu0 %v2449
    %5447 = vmatpush.msra.mxu0 %v2445
    %5448 = vmatpush.msra.mxu0 %v2441
    %5449 = vmatpush.msra.mxu0 %v2437
    %5450 = vmatpush.msra.mxu0 %v2433
    %5451 = vmatpush.msra.mxu0 %v2429
    %5452 = vmatmul.f32.gmra.mxu0 %v5434
    %v5453 = vpop.f32.mrf.mxu0
    %v5454 = vadd.f32 0.0, %v5453
    %5455 = vdwg.mxu0
    %5456 = vmatpush.msra.mxu0 %v2490
    %5457 = vmatpush.msra.mxu0 %v2486
    %5458 = vmatpush.msra.mxu0 %v2482
    %5459 = vmatpush.msra.mxu0 %v2478
    %5460 = vmatpush.msra.mxu0 %v2474
    %5461 = vmatpush.msra.mxu0 %v2470
    %5462 = vmatpush.msra.mxu0 %v2466
    %5463 = vmatpush.msra.mxu0 %v2462
    %5464 = vmatpush.msra.mxu0 %v2458
    %5465 = vmatpush.msra.mxu0 %v2454
    %5466 = vmatpush.msra.mxu0 %v2450
    %5467 = vmatpush.msra.mxu0 %v2446
    %5468 = vmatpush.msra.mxu0 %v2442
    %5469 = vmatpush.msra.mxu0 %v2438
    %5470 = vmatpush.msra.mxu0 %v2434
    %5471 = vmatpush.msra.mxu0 %v2430
    %5472 = vmatmul.f32.gmra.mxu0 %v5434
    %v5473 = vpop.f32.mrf.mxu0
    %v5474 = vadd.f32 0.0, %v5473
    %5475 = vdwg.mxu0
    %5476 = vmatpush.msra.mxu0 %v2491
    %5477 = vmatpush.msra.mxu0 %v2487
    %5478 = vmatpush.msra.mxu0 %v2483
    %5479 = vmatpush.msra.mxu0 %v2479
    %5480 = vmatpush.msra.mxu0 %v2475
    %5481 = vmatpush.msra.mxu0 %v2471
    %5482 = vmatpush.msra.mxu0 %v2467
    %5483 = vmatpush.msra.mxu0 %v2463
    %5484 = vmatpush.msra.mxu0 %v2459
    %5485 = vmatpush.msra.mxu0 %v2455
    %5486 = vmatpush.msra.mxu0 %v2451
    %5487 = vmatpush.msra.mxu0 %v2447
    %5488 = vmatpush.msra.mxu0 %v2443
    %5489 = vmatpush.msra.mxu0 %v2439
    %5490 = vmatpush.msra.mxu0 %v2435
    %5491 = vmatpush.msra.mxu0 %v2431
    %5492 = vmatmul.f32.gmra.mxu0 %v5434
    %v5493 = vpop.f32.mrf.mxu0
    %v5494 = vadd.f32 0.0, %v5493
    %5495 = vdwg.mxu0
    %5496 = vmatpush.msra.mxu0 %v2492
    %5497 = vmatpush.msra.mxu0 %v2488
    %5498 = vmatpush.msra.mxu0 %v2484
    %5499 = vmatpush.msra.mxu0 %v2480
    %5500 = vmatpush.msra.mxu0 %v2476
    %5501 = vmatpush.msra.mxu0 %v2472
    %5502 = vmatpush.msra.mxu0 %v2468
    %5503 = vmatpush.msra.mxu0 %v2464
    %5504 = vmatpush.msra.mxu0 %v2460
    %5505 = vmatpush.msra.mxu0 %v2456
    %5506 = vmatpush.msra.mxu0 %v2452
    %5507 = vmatpush.msra.mxu0 %v2448
    %5508 = vmatpush.msra.mxu0 %v2444
    %5509 = vmatpush.msra.mxu0 %v2440
    %5510 = vmatpush.msra.mxu0 %v2436
    %5511 = vmatpush.msra.mxu0 %v2432
    %5512 = vmatmul.f32.gmra.mxu0 %v5434
    %v5513 = vpop.f32.mrf.mxu0
    %v5514 = vadd.f32 0.0, %v5513
    %5515 = vdwg.mxu0
    %v5516 = vadd.f32 %v5430, %v5454
    %v5517 = vadd.f32 %v5431, %v5474
    %v5518 = vadd.f32 %v5432, %v5494
    %v5519 = vadd.f32 %v5433, %v5514
    %v5520 = vrot.slane %v5011, 6
    %5522 = vmatpush.msra.mxu0 %v2640
    %5523 = vmatpush.msra.mxu0 %v2636
    %5524 = vmatpush.msra.mxu0 %v2632
    %5525 = vmatpush.msra.mxu0 %v2628
    %5526 = vmatpush.msra.mxu0 %v2624
    %5527 = vmatpush.msra.mxu0 %v2620
    %5528 = vmatpush.msra.mxu0 %v2616
    %5529 = vmatpush.msra.mxu0 %v2612
    %5530 = vmatpush.msra.mxu0 %v2608
    %5531 = vmatpush.msra.mxu0 %v2604
    %5532 = vmatpush.msra.mxu0 %v2600
    %5533 = vmatpush.msra.mxu0 %v2596
    %5534 = vmatpush.msra.mxu0 %v2592
    %5535 = vmatpush.msra.mxu0 %v2588
    %5536 = vmatpush.msra.mxu0 %v2584
    %5537 = vmatpush.msra.mxu0 %v2580
    %5538 = vmatmul.f32.gmra.mxu0 %v5520
    %v5539 = vpop.f32.mrf.mxu0
    %v5540 = vadd.f32 0.0, %v5539
    %5541 = vdwg.mxu0
    %5542 = vmatpush.msra.mxu0 %v2641
    %5543 = vmatpush.msra.mxu0 %v2637
    %5544 = vmatpush.msra.mxu0 %v2633
    %5545 = vmatpush.msra.mxu0 %v2629
    %5546 = vmatpush.msra.mxu0 %v2625
    %5547 = vmatpush.msra.mxu0 %v2621
    %5548 = vmatpush.msra.mxu0 %v2617
    %5549 = vmatpush.msra.mxu0 %v2613
    %5550 = vmatpush.msra.mxu0 %v2609
    %5551 = vmatpush.msra.mxu0 %v2605
    %5552 = vmatpush.msra.mxu0 %v2601
    %5553 = vmatpush.msra.mxu0 %v2597
    %5554 = vmatpush.msra.mxu0 %v2593
    %5555 = vmatpush.msra.mxu0 %v2589
    %5556 = vmatpush.msra.mxu0 %v2585
    %5557 = vmatpush.msra.mxu0 %v2581
    %5558 = vmatmul.f32.gmra.mxu0 %v5520
    %v5559 = vpop.f32.mrf.mxu0
    %v5560 = vadd.f32 0.0, %v5559
    %5561 = vdwg.mxu0
    %5562 = vmatpush.msra.mxu0 %v2642
    %5563 = vmatpush.msra.mxu0 %v2638
    %5564 = vmatpush.msra.mxu0 %v2634
    %5565 = vmatpush.msra.mxu0 %v2630
    %5566 = vmatpush.msra.mxu0 %v2626
    %5567 = vmatpush.msra.mxu0 %v2622
    %5568 = vmatpush.msra.mxu0 %v2618
    %5569 = vmatpush.msra.mxu0 %v2614
    %5570 = vmatpush.msra.mxu0 %v2610
    %5571 = vmatpush.msra.mxu0 %v2606
    %5572 = vmatpush.msra.mxu0 %v2602
    %5573 = vmatpush.msra.mxu0 %v2598
    %5574 = vmatpush.msra.mxu0 %v2594
    %5575 = vmatpush.msra.mxu0 %v2590
    %5576 = vmatpush.msra.mxu0 %v2586
    %5577 = vmatpush.msra.mxu0 %v2582
    %5578 = vmatmul.f32.gmra.mxu0 %v5520
    %v5579 = vpop.f32.mrf.mxu0
    %v5580 = vadd.f32 0.0, %v5579
    %5581 = vdwg.mxu0
    %5582 = vmatpush.msra.mxu0 %v2643
    %5583 = vmatpush.msra.mxu0 %v2639
    %5584 = vmatpush.msra.mxu0 %v2635
    %5585 = vmatpush.msra.mxu0 %v2631
    %5586 = vmatpush.msra.mxu0 %v2627
    %5587 = vmatpush.msra.mxu0 %v2623
    %5588 = vmatpush.msra.mxu0 %v2619
    %5589 = vmatpush.msra.mxu0 %v2615
    %5590 = vmatpush.msra.mxu0 %v2611
    %5591 = vmatpush.msra.mxu0 %v2607
    %5592 = vmatpush.msra.mxu0 %v2603
    %5593 = vmatpush.msra.mxu0 %v2599
    %5594 = vmatpush.msra.mxu0 %v2595
    %5595 = vmatpush.msra.mxu0 %v2591
    %5596 = vmatpush.msra.mxu0 %v2587
    %5597 = vmatpush.msra.mxu0 %v2583
    %5598 = vmatmul.f32.gmra.mxu0 %v5520
    %v5599 = vpop.f32.mrf.mxu0
    %v5600 = vadd.f32 0.0, %v5599
    %5601 = vdwg.mxu0
    %v5602 = vadd.f32 %v5516, %v5540
    %v5603 = vadd.f32 %v5517, %v5560
    %v5604 = vadd.f32 %v5518, %v5580
    %v5605 = vadd.f32 %v5519, %v5600
    %v5606 = vrot.slane %v5011, 7
    %5608 = vmatpush.msra.mxu0 %v2791
    %5609 = vmatpush.msra.mxu0 %v2787
    %5610 = vmatpush.msra.mxu0 %v2783
    %5611 = vmatpush.msra.mxu0 %v2779
    %5612 = vmatpush.msra.mxu0 %v2775
    %5613 = vmatpush.msra.mxu0 %v2771
    %5614 = vmatpush.msra.mxu0 %v2767
    %5615 = vmatpush.msra.mxu0 %v2763
    %5616 = vmatpush.msra.mxu0 %v2759
    %5617 = vmatpush.msra.mxu0 %v2755
    %5618 = vmatpush.msra.mxu0 %v2751
    %5619 = vmatpush.msra.mxu0 %v2747
    %5620 = vmatpush.msra.mxu0 %v2743
    %5621 = vmatpush.msra.mxu0 %v2739
    %5622 = vmatpush.msra.mxu0 %v2735
    %5623 = vmatpush.msra.mxu0 %v2731
    %5624 = vmatmul.f32.gmra.mxu0 %v5606
    %v5625 = vpop.f32.mrf.mxu0
    %v5626 = vadd.f32 0.0, %v5625
    %5627 = vdwg.mxu0
    %5628 = vmatpush.msra.mxu0 %v2792
    %5629 = vmatpush.msra.mxu0 %v2788
    %5630 = vmatpush.msra.mxu0 %v2784
    %5631 = vmatpush.msra.mxu0 %v2780
    %5632 = vmatpush.msra.mxu0 %v2776
    %5633 = vmatpush.msra.mxu0 %v2772
    %5634 = vmatpush.msra.mxu0 %v2768
    %5635 = vmatpush.msra.mxu0 %v2764
    %5636 = vmatpush.msra.mxu0 %v2760
    %5637 = vmatpush.msra.mxu0 %v2756
    %5638 = vmatpush.msra.mxu0 %v2752
    %5639 = vmatpush.msra.mxu0 %v2748
    %5640 = vmatpush.msra.mxu0 %v2744
    %5641 = vmatpush.msra.mxu0 %v2740
    %5642 = vmatpush.msra.mxu0 %v2736
    %5643 = vmatpush.msra.mxu0 %v2732
    %5644 = vmatmul.f32.gmra.mxu0 %v5606
    %v5645 = vpop.f32.mrf.mxu0
    %v5646 = vadd.f32 0.0, %v5645
    %5647 = vdwg.mxu0
    %5648 = vmatpush.msra.mxu0 %v2793
    %5649 = vmatpush.msra.mxu0 %v2789
    %5650 = vmatpush.msra.mxu0 %v2785
    %5651 = vmatpush.msra.mxu0 %v2781
    %5652 = vmatpush.msra.mxu0 %v2777
    %5653 = vmatpush.msra.mxu0 %v2773
    %5654 = vmatpush.msra.mxu0 %v2769
    %5655 = vmatpush.msra.mxu0 %v2765
    %5656 = vmatpush.msra.mxu0 %v2761
    %5657 = vmatpush.msra.mxu0 %v2757
    %5658 = vmatpush.msra.mxu0 %v2753
    %5659 = vmatpush.msra.mxu0 %v2749
    %5660 = vmatpush.msra.mxu0 %v2745
    %5661 = vmatpush.msra.mxu0 %v2741
    %5662 = vmatpush.msra.mxu0 %v2737
    %5663 = vmatpush.msra.mxu0 %v2733
    %5664 = vmatmul.f32.gmra.mxu0 %v5606
    %v5665 = vpop.f32.mrf.mxu0
    %v5666 = vadd.f32 0.0, %v5665
    %5667 = vdwg.mxu0
    %5668 = vmatpush.msra.mxu0 %v2794
    %5669 = vmatpush.msra.mxu0 %v2790
    %5670 = vmatpush.msra.mxu0 %v2786
    %5671 = vmatpush.msra.mxu0 %v2782
    %5672 = vmatpush.msra.mxu0 %v2778
    %5673 = vmatpush.msra.mxu0 %v2774
    %5674 = vmatpush.msra.mxu0 %v2770
    %5675 = vmatpush.msra.mxu0 %v2766
    %5676 = vmatpush.msra.mxu0 %v2762
    %5677 = vmatpush.msra.mxu0 %v2758
    %5678 = vmatpush.msra.mxu0 %v2754
    %5679 = vmatpush.msra.mxu0 %v2750
    %5680 = vmatpush.msra.mxu0 %v2746
    %5681 = vmatpush.msra.mxu0 %v2742
    %5682 = vmatpush.msra.mxu0 %v2738
    %5683 = vmatpush.msra.mxu0 %v2734
    %5684 = vmatmul.f32.gmra.mxu0 %v5606
    %v5685 = vpop.f32.mrf.mxu0
    %v5686 = vadd.f32 0.0, %v5685
    %5687 = vdwg.mxu0
    %v5688 = vadd.f32 %v5602, %v5626
    %v5689 = vadd.f32 %v5603, %v5646
    %v5690 = vadd.f32 %v5604, %v5666
    %v5691 = vadd.f32 %v5605, %v5686
    %5692 = vmatpush.msra.mxu0 %v2942
    %5693 = vmatpush.msra.mxu0 %v2938
    %5694 = vmatpush.msra.mxu0 %v2934
    %5695 = vmatpush.msra.mxu0 %v2930
    %5696 = vmatpush.msra.mxu0 %v2926
    %5697 = vmatpush.msra.mxu0 %v2922
    %5698 = vmatpush.msra.mxu0 %v2918
    %5699 = vmatpush.msra.mxu0 %v2914
    %5700 = vmatpush.msra.mxu0 %v2910
    %5701 = vmatpush.msra.mxu0 %v2906
    %5702 = vmatpush.msra.mxu0 %v2902
    %5703 = vmatpush.msra.mxu0 %v2898
    %5704 = vmatpush.msra.mxu0 %v2894
    %5705 = vmatpush.msra.mxu0 %v2890
    %5706 = vmatpush.msra.mxu0 %v2886
    %5707 = vmatpush.msra.mxu0 %v2882
    %5708 = vmatmul.f32.gmra.mxu0 %v5012
    %v5709 = vpop.f32.mrf.mxu0
    %v5710 = vadd.f32 0.0, %v5709
    %5711 = vdwg.mxu0
    %5712 = vmatpush.msra.mxu0 %v2943
    %5713 = vmatpush.msra.mxu0 %v2939
    %5714 = vmatpush.msra.mxu0 %v2935
    %5715 = vmatpush.msra.mxu0 %v2931
    %5716 = vmatpush.msra.mxu0 %v2927
    %5717 = vmatpush.msra.mxu0 %v2923
    %5718 = vmatpush.msra.mxu0 %v2919
    %5719 = vmatpush.msra.mxu0 %v2915
    %5720 = vmatpush.msra.mxu0 %v2911
    %5721 = vmatpush.msra.mxu0 %v2907
    %5722 = vmatpush.msra.mxu0 %v2903
    %5723 = vmatpush.msra.mxu0 %v2899
    %5724 = vmatpush.msra.mxu0 %v2895
    %5725 = vmatpush.msra.mxu0 %v2891
    %5726 = vmatpush.msra.mxu0 %v2887
    %5727 = vmatpush.msra.mxu0 %v2883
    %5728 = vmatmul.f32.gmra.mxu0 %v5012
    %v5729 = vpop.f32.mrf.mxu0
    %v5730 = vadd.f32 0.0, %v5729
    %5731 = vdwg.mxu0
    %5732 = vmatpush.msra.mxu0 %v2944
    %5733 = vmatpush.msra.mxu0 %v2940
    %5734 = vmatpush.msra.mxu0 %v2936
    %5735 = vmatpush.msra.mxu0 %v2932
    %5736 = vmatpush.msra.mxu0 %v2928
    %5737 = vmatpush.msra.mxu0 %v2924
    %5738 = vmatpush.msra.mxu0 %v2920
    %5739 = vmatpush.msra.mxu0 %v2916
    %5740 = vmatpush.msra.mxu0 %v2912
    %5741 = vmatpush.msra.mxu0 %v2908
    %5742 = vmatpush.msra.mxu0 %v2904
    %5743 = vmatpush.msra.mxu0 %v2900
    %5744 = vmatpush.msra.mxu0 %v2896
    %5745 = vmatpush.msra.mxu0 %v2892
    %5746 = vmatpush.msra.mxu0 %v2888
    %5747 = vmatpush.msra.mxu0 %v2884
    %5748 = vmatmul.f32.gmra.mxu0 %v5012
    %v5749 = vpop.f32.mrf.mxu0
    %v5750 = vadd.f32 0.0, %v5749
    %5751 = vdwg.mxu0
    %5752 = vmatpush.msra.mxu0 %v2945
    %5753 = vmatpush.msra.mxu0 %v2941
    %5754 = vmatpush.msra.mxu0 %v2937
    %5755 = vmatpush.msra.mxu0 %v2933
    %5756 = vmatpush.msra.mxu0 %v2929
    %5757 = vmatpush.msra.mxu0 %v2925
    %5758 = vmatpush.msra.mxu0 %v2921
    %5759 = vmatpush.msra.mxu0 %v2917
    %5760 = vmatpush.msra.mxu0 %v2913
    %5761 = vmatpush.msra.mxu0 %v2909
    %5762 = vmatpush.msra.mxu0 %v2905
    %5763 = vmatpush.msra.mxu0 %v2901
    %5764 = vmatpush.msra.mxu0 %v2897
    %5765 = vmatpush.msra.mxu0 %v2893
    %5766 = vmatpush.msra.mxu0 %v2889
    %5767 = vmatpush.msra.mxu0 %v2885
    %5768 = vmatmul.f32.gmra.mxu0 %v5012
    %v5769 = vpop.f32.mrf.mxu0
    %v5770 = vadd.f32 0.0, %v5769
    %5771 = vdwg.mxu0
    %v5772 = vadd.f32 %v5688, %v5710
    %v5773 = vadd.f32 %v5689, %v5730
    %v5774 = vadd.f32 %v5690, %v5750
    %v5775 = vadd.f32 %v5691, %v5770
    %v5777 = vrot.slane %v5012, 1
    %5779 = vmatpush.msra.mxu0 %v3091
    %5780 = vmatpush.msra.mxu0 %v3087
    %5781 = vmatpush.msra.mxu0 %v3083
    %5782 = vmatpush.msra.mxu0 %v3079
    %5783 = vmatpush.msra.mxu0 %v3075
    %5784 = vmatpush.msra.mxu0 %v3071
    %5785 = vmatpush.msra.mxu0 %v3067
    %5786 = vmatpush.msra.mxu0 %v3063
    %5787 = vmatpush.msra.mxu0 %v3059
    %5788 = vmatpush.msra.mxu0 %v3055
    %5789 = vmatpush.msra.mxu0 %v3051
    %5790 = vmatpush.msra.mxu0 %v3047
    %5791 = vmatpush.msra.mxu0 %v3043
    %5792 = vmatpush.msra.mxu0 %v3039
    %5793 = vmatpush.msra.mxu0 %v3035
    %5794 = vmatpush.msra.mxu0 %v3031
    %5795 = vmatmul.f32.gmra.mxu0 %v5777
    %v5796 = vpop.f32.mrf.mxu0
    %v5797 = vadd.f32 0.0, %v5796
    %5798 = vdwg.mxu0
    %5799 = vmatpush.msra.mxu0 %v3092
    %5800 = vmatpush.msra.mxu0 %v3088
    %5801 = vmatpush.msra.mxu0 %v3084
    %5802 = vmatpush.msra.mxu0 %v3080
    %5803 = vmatpush.msra.mxu0 %v3076
    %5804 = vmatpush.msra.mxu0 %v3072
    %5805 = vmatpush.msra.mxu0 %v3068
    %5806 = vmatpush.msra.mxu0 %v3064
    %5807 = vmatpush.msra.mxu0 %v3060
    %5808 = vmatpush.msra.mxu0 %v3056
    %5809 = vmatpush.msra.mxu0 %v3052
    %5810 = vmatpush.msra.mxu0 %v3048
    %5811 = vmatpush.msra.mxu0 %v3044
    %5812 = vmatpush.msra.mxu0 %v3040
    %5813 = vmatpush.msra.mxu0 %v3036
    %5814 = vmatpush.msra.mxu0 %v3032
    %5815 = vmatmul.f32.gmra.mxu0 %v5777
    %v5816 = vpop.f32.mrf.mxu0
    %v5817 = vadd.f32 0.0, %v5816
    %5818 = vdwg.mxu0
    %5819 = vmatpush.msra.mxu0 %v3093
    %5820 = vmatpush.msra.mxu0 %v3089
    %5821 = vmatpush.msra.mxu0 %v3085
    %5822 = vmatpush.msra.mxu0 %v3081
    %5823 = vmatpush.msra.mxu0 %v3077
    %5824 = vmatpush.msra.mxu0 %v3073
    %5825 = vmatpush.msra.mxu0 %v3069
    %5826 = vmatpush.msra.mxu0 %v3065
    %5827 = vmatpush.msra.mxu0 %v3061
    %5828 = vmatpush.msra.mxu0 %v3057
    %5829 = vmatpush.msra.mxu0 %v3053
    %5830 = vmatpush.msra.mxu0 %v3049
    %5831 = vmatpush.msra.mxu0 %v3045
    %5832 = vmatpush.msra.mxu0 %v3041
    %5833 = vmatpush.msra.mxu0 %v3037
    %5834 = vmatpush.msra.mxu0 %v3033
    %5835 = vmatmul.f32.gmra.mxu0 %v5777
    %v5836 = vpop.f32.mrf.mxu0
    %v5837 = vadd.f32 0.0, %v5836
    %5838 = vdwg.mxu0
    %5839 = vmatpush.msra.mxu0 %v3094
    %5840 = vmatpush.msra.mxu0 %v3090
    %5841 = vmatpush.msra.mxu0 %v3086
    %5842 = vmatpush.msra.mxu0 %v3082
    %5843 = vmatpush.msra.mxu0 %v3078
    %5844 = vmatpush.msra.mxu0 %v3074
    %5845 = vmatpush.msra.mxu0 %v3070
    %5846 = vmatpush.msra.mxu0 %v3066
    %5847 = vmatpush.msra.mxu0 %v3062
    %5848 = vmatpush.msra.mxu0 %v3058
    %5849 = vmatpush.msra.mxu0 %v3054
    %5850 = vmatpush.msra.mxu0 %v3050
    %5851 = vmatpush.msra.mxu0 %v3046
    %5852 = vmatpush.msra.mxu0 %v3042
    %5853 = vmatpush.msra.mxu0 %v3038
    %5854 = vmatpush.msra.mxu0 %v3034
    %5855 = vmatmul.f32.gmra.mxu0 %v5777
    %v5856 = vpop.f32.mrf.mxu0
    %v5857 = vadd.f32 0.0, %v5856
    %5858 = vdwg.mxu0
    %v5859 = vadd.f32 %v5772, %v5797
    %v5860 = vadd.f32 %v5773, %v5817
    %v5861 = vadd.f32 %v5774, %v5837
    %v5862 = vadd.f32 %v5775, %v5857
    %v5863 = vrot.slane %v5012, 2
    %5865 = vmatpush.msra.mxu0 %v3243
    %5866 = vmatpush.msra.mxu0 %v3239
    %5867 = vmatpush.msra.mxu0 %v3235
    %5868 = vmatpush.msra.mxu0 %v3231
    %5869 = vmatpush.msra.mxu0 %v3227
    %5870 = vmatpush.msra.mxu0 %v3223
    %5871 = vmatpush.msra.mxu0 %v3219
    %5872 = vmatpush.msra.mxu0 %v3215
    %5873 = vmatpush.msra.mxu0 %v3211
    %5874 = vmatpush.msra.mxu0 %v3207
    %5875 = vmatpush.msra.mxu0 %v3203
    %5876 = vmatpush.msra.mxu0 %v3199
    %5877 = vmatpush.msra.mxu0 %v3195
    %5878 = vmatpush.msra.mxu0 %v3191
    %5879 = vmatpush.msra.mxu0 %v3187
    %5880 = vmatpush.msra.mxu0 %v3183
    %5881 = vmatmul.f32.gmra.mxu0 %v5863
    %v5882 = vpop.f32.mrf.mxu0
    %v5883 = vadd.f32 0.0, %v5882
    %5884 = vdwg.mxu0
    %5885 = vmatpush.msra.mxu0 %v3244
    %5886 = vmatpush.msra.mxu0 %v3240
    %5887 = vmatpush.msra.mxu0 %v3236
    %5888 = vmatpush.msra.mxu0 %v3232
    %5889 = vmatpush.msra.mxu0 %v3228
    %5890 = vmatpush.msra.mxu0 %v3224
    %5891 = vmatpush.msra.mxu0 %v3220
    %5892 = vmatpush.msra.mxu0 %v3216
    %5893 = vmatpush.msra.mxu0 %v3212
    %5894 = vmatpush.msra.mxu0 %v3208
    %5895 = vmatpush.msra.mxu0 %v3204
    %5896 = vmatpush.msra.mxu0 %v3200
    %5897 = vmatpush.msra.mxu0 %v3196
    %5898 = vmatpush.msra.mxu0 %v3192
    %5899 = vmatpush.msra.mxu0 %v3188
    %5900 = vmatpush.msra.mxu0 %v3184
    %5901 = vmatmul.f32.gmra.mxu0 %v5863
    %v5902 = vpop.f32.mrf.mxu0
    %v5903 = vadd.f32 0.0, %v5902
    %5904 = vdwg.mxu0
    %5905 = vmatpush.msra.mxu0 %v3245
    %5906 = vmatpush.msra.mxu0 %v3241
    %5907 = vmatpush.msra.mxu0 %v3237
    %5908 = vmatpush.msra.mxu0 %v3233
    %5909 = vmatpush.msra.mxu0 %v3229
    %5910 = vmatpush.msra.mxu0 %v3225
    %5911 = vmatpush.msra.mxu0 %v3221
    %5912 = vmatpush.msra.mxu0 %v3217
    %5913 = vmatpush.msra.mxu0 %v3213
    %5914 = vmatpush.msra.mxu0 %v3209
    %5915 = vmatpush.msra.mxu0 %v3205
    %5916 = vmatpush.msra.mxu0 %v3201
    %5917 = vmatpush.msra.mxu0 %v3197
    %5918 = vmatpush.msra.mxu0 %v3193
    %5919 = vmatpush.msra.mxu0 %v3189
    %5920 = vmatpush.msra.mxu0 %v3185
    %5921 = vmatmul.f32.gmra.mxu0 %v5863
    %v5922 = vpop.f32.mrf.mxu0
    %v5923 = vadd.f32 0.0, %v5922
    %5924 = vdwg.mxu0
    %5925 = vmatpush.msra.mxu0 %v3246
    %5926 = vmatpush.msra.mxu0 %v3242
    %5927 = vmatpush.msra.mxu0 %v3238
    %5928 = vmatpush.msra.mxu0 %v3234
    %5929 = vmatpush.msra.mxu0 %v3230
    %5930 = vmatpush.msra.mxu0 %v3226
    %5931 = vmatpush.msra.mxu0 %v3222
    %5932 = vmatpush.msra.mxu0 %v3218
    %5933 = vmatpush.msra.mxu0 %v3214
    %5934 = vmatpush.msra.mxu0 %v3210
    %5935 = vmatpush.msra.mxu0 %v3206
    %5936 = vmatpush.msra.mxu0 %v3202
    %5937 = vmatpush.msra.mxu0 %v3198
    %5938 = vmatpush.msra.mxu0 %v3194
    %5939 = vmatpush.msra.mxu0 %v3190
    %5940 = vmatpush.msra.mxu0 %v3186
    %5941 = vmatmul.f32.gmra.mxu0 %v5863
    %v5942 = vpop.f32.mrf.mxu0
    %v5943 = vadd.f32 0.0, %v5942
    %5944 = vdwg.mxu0
    %v5945 = vadd.f32 %v5859, %v5883
    %v5946 = vadd.f32 %v5860, %v5903
    %v5947 = vadd.f32 %v5861, %v5923
    %v5948 = vadd.f32 %v5862, %v5943
    %v5949 = vrot.slane %v5012, 3
    %5951 = vmatpush.msra.mxu0 %v3394
    %5952 = vmatpush.msra.mxu0 %v3390
    %5953 = vmatpush.msra.mxu0 %v3386
    %5954 = vmatpush.msra.mxu0 %v3382
    %5955 = vmatpush.msra.mxu0 %v3378
    %5956 = vmatpush.msra.mxu0 %v3374
    %5957 = vmatpush.msra.mxu0 %v3370
    %5958 = vmatpush.msra.mxu0 %v3366
    %5959 = vmatpush.msra.mxu0 %v3362
    %5960 = vmatpush.msra.mxu0 %v3358
    %5961 = vmatpush.msra.mxu0 %v3354
    %5962 = vmatpush.msra.mxu0 %v3350
    %5963 = vmatpush.msra.mxu0 %v3346
    %5964 = vmatpush.msra.mxu0 %v3342
    %5965 = vmatpush.msra.mxu0 %v3338
    %5966 = vmatpush.msra.mxu0 %v3334
    %5967 = vmatmul.f32.gmra.mxu0 %v5949
    %v5968 = vpop.f32.mrf.mxu0
    %v5969 = vadd.f32 0.0, %v5968
    %5970 = vdwg.mxu0
    %5971 = vmatpush.msra.mxu0 %v3395
    %5972 = vmatpush.msra.mxu0 %v3391
    %5973 = vmatpush.msra.mxu0 %v3387
    %5974 = vmatpush.msra.mxu0 %v3383
    %5975 = vmatpush.msra.mxu0 %v3379
    %5976 = vmatpush.msra.mxu0 %v3375
    %5977 = vmatpush.msra.mxu0 %v3371
    %5978 = vmatpush.msra.mxu0 %v3367
    %5979 = vmatpush.msra.mxu0 %v3363
    %5980 = vmatpush.msra.mxu0 %v3359
    %5981 = vmatpush.msra.mxu0 %v3355
    %5982 = vmatpush.msra.mxu0 %v3351
    %5983 = vmatpush.msra.mxu0 %v3347
    %5984 = vmatpush.msra.mxu0 %v3343
    %5985 = vmatpush.msra.mxu0 %v3339
    %5986 = vmatpush.msra.mxu0 %v3335
    %5987 = vmatmul.f32.gmra.mxu0 %v5949
    %v5988 = vpop.f32.mrf.mxu0
    %v5989 = vadd.f32 0.0, %v5988
    %5990 = vdwg.mxu0
    %5991 = vmatpush.msra.mxu0 %v3396
    %5992 = vmatpush.msra.mxu0 %v3392
    %5993 = vmatpush.msra.mxu0 %v3388
    %5994 = vmatpush.msra.mxu0 %v3384
    %5995 = vmatpush.msra.mxu0 %v3380
    %5996 = vmatpush.msra.mxu0 %v3376
    %5997 = vmatpush.msra.mxu0 %v3372
    %5998 = vmatpush.msra.mxu0 %v3368
    %5999 = vmatpush.msra.mxu0 %v3364
    %6000 = vmatpush.msra.mxu0 %v3360
    %6001 = vmatpush.msra.mxu0 %v3356
    %6002 = vmatpush.msra.mxu0 %v3352
    %6003 = vmatpush.msra.mxu0 %v3348
    %6004 = vmatpush.msra.mxu0 %v3344
    %6005 = vmatpush.msra.mxu0 %v3340
    %6006 = vmatpush.msra.mxu0 %v3336
    %6007 = vmatmul.f32.gmra.mxu0 %v5949
    %v6008 = vpop.f32.mrf.mxu0
    %v6009 = vadd.f32 0.0, %v6008
    %6010 = vdwg.mxu0
    %6011 = vmatpush.msra.mxu0 %v3397
    %6012 = vmatpush.msra.mxu0 %v3393
    %6013 = vmatpush.msra.mxu0 %v3389
    %6014 = vmatpush.msra.mxu0 %v3385
    %6015 = vmatpush.msra.mxu0 %v3381
    %6016 = vmatpush.msra.mxu0 %v3377
    %6017 = vmatpush.msra.mxu0 %v3373
    %6018 = vmatpush.msra.mxu0 %v3369
    %6019 = vmatpush.msra.mxu0 %v3365
    %6020 = vmatpush.msra.mxu0 %v3361
    %6021 = vmatpush.msra.mxu0 %v3357
    %6022 = vmatpush.msra.mxu0 %v3353
    %6023 = vmatpush.msra.mxu0 %v3349
    %6024 = vmatpush.msra.mxu0 %v3345
    %6025 = vmatpush.msra.mxu0 %v3341
    %6026 = vmatpush.msra.mxu0 %v3337
    %6027 = vmatmul.f32.gmra.mxu0 %v5949
    %v6028 = vpop.f32.mrf.mxu0
    %v6029 = vadd.f32 0.0, %v6028
    %6030 = vdwg.mxu0
    %v6031 = vadd.f32 %v5945, %v5969
    %v6032 = vadd.f32 %v5946, %v5989
    %v6033 = vadd.f32 %v5947, %v6009
    %v6034 = vadd.f32 %v5948, %v6029
    %v6035 = vrot.slane %v5012, 4
    %6037 = vmatpush.msra.mxu0 %v3545
    %6038 = vmatpush.msra.mxu0 %v3541
    %6039 = vmatpush.msra.mxu0 %v3537
    %6040 = vmatpush.msra.mxu0 %v3533
    %6041 = vmatpush.msra.mxu0 %v3529
    %6042 = vmatpush.msra.mxu0 %v3525
    %6043 = vmatpush.msra.mxu0 %v3521
    %6044 = vmatpush.msra.mxu0 %v3517
    %6045 = vmatpush.msra.mxu0 %v3513
    %6046 = vmatpush.msra.mxu0 %v3509
    %6047 = vmatpush.msra.mxu0 %v3505
    %6048 = vmatpush.msra.mxu0 %v3501
    %6049 = vmatpush.msra.mxu0 %v3497
    %6050 = vmatpush.msra.mxu0 %v3493
    %6051 = vmatpush.msra.mxu0 %v3489
    %6052 = vmatpush.msra.mxu0 %v3485
    %6053 = vmatmul.f32.gmra.mxu0 %v6035
    %v6054 = vpop.f32.mrf.mxu0
    %v6055 = vadd.f32 0.0, %v6054
    %6056 = vdwg.mxu0
    %6057 = vmatpush.msra.mxu0 %v3546
    %6058 = vmatpush.msra.mxu0 %v3542
    %6059 = vmatpush.msra.mxu0 %v3538
    %6060 = vmatpush.msra.mxu0 %v3534
    %6061 = vmatpush.msra.mxu0 %v3530
    %6062 = vmatpush.msra.mxu0 %v3526
    %6063 = vmatpush.msra.mxu0 %v3522
    %6064 = vmatpush.msra.mxu0 %v3518
    %6065 = vmatpush.msra.mxu0 %v3514
    %6066 = vmatpush.msra.mxu0 %v3510
    %6067 = vmatpush.msra.mxu0 %v3506
    %6068 = vmatpush.msra.mxu0 %v3502
    %6069 = vmatpush.msra.mxu0 %v3498
    %6070 = vmatpush.msra.mxu0 %v3494
    %6071 = vmatpush.msra.mxu0 %v3490
    %6072 = vmatpush.msra.mxu0 %v3486
    %6073 = vmatmul.f32.gmra.mxu0 %v6035
    %v6074 = vpop.f32.mrf.mxu0
    %v6075 = vadd.f32 0.0, %v6074
    %6076 = vdwg.mxu0
    %6077 = vmatpush.msra.mxu0 %v3547
    %6078 = vmatpush.msra.mxu0 %v3543
    %6079 = vmatpush.msra.mxu0 %v3539
    %6080 = vmatpush.msra.mxu0 %v3535
    %6081 = vmatpush.msra.mxu0 %v3531
    %6082 = vmatpush.msra.mxu0 %v3527
    %6083 = vmatpush.msra.mxu0 %v3523
    %6084 = vmatpush.msra.mxu0 %v3519
    %6085 = vmatpush.msra.mxu0 %v3515
    %6086 = vmatpush.msra.mxu0 %v3511
    %6087 = vmatpush.msra.mxu0 %v3507
    %6088 = vmatpush.msra.mxu0 %v3503
    %6089 = vmatpush.msra.mxu0 %v3499
    %6090 = vmatpush.msra.mxu0 %v3495
    %6091 = vmatpush.msra.mxu0 %v3491
    %6092 = vmatpush.msra.mxu0 %v3487
    %6093 = vmatmul.f32.gmra.mxu0 %v6035
    %v6094 = vpop.f32.mrf.mxu0
    %v6095 = vadd.f32 0.0, %v6094
    %6096 = vdwg.mxu0
    %6097 = vmatpush.msra.mxu0 %v3548
    %6098 = vmatpush.msra.mxu0 %v3544
    %6099 = vmatpush.msra.mxu0 %v3540
    %6100 = vmatpush.msra.mxu0 %v3536
    %6101 = vmatpush.msra.mxu0 %v3532
    %6102 = vmatpush.msra.mxu0 %v3528
    %6103 = vmatpush.msra.mxu0 %v3524
    %6104 = vmatpush.msra.mxu0 %v3520
    %6105 = vmatpush.msra.mxu0 %v3516
    %6106 = vmatpush.msra.mxu0 %v3512
    %6107 = vmatpush.msra.mxu0 %v3508
    %6108 = vmatpush.msra.mxu0 %v3504
    %6109 = vmatpush.msra.mxu0 %v3500
    %6110 = vmatpush.msra.mxu0 %v3496
    %6111 = vmatpush.msra.mxu0 %v3492
    %6112 = vmatpush.msra.mxu0 %v3488
    %6113 = vmatmul.f32.gmra.mxu0 %v6035
    %v6114 = vpop.f32.mrf.mxu0
    %v6115 = vadd.f32 0.0, %v6114
    %6116 = vdwg.mxu0
    %v6117 = vadd.f32 %v6031, %v6055
    %v6118 = vadd.f32 %v6032, %v6075
    %v6119 = vadd.f32 %v6033, %v6095
    %v6120 = vadd.f32 %v6034, %v6115
    %v6121 = vrot.slane %v5012, 5
    %6123 = vmatpush.msra.mxu0 %v3696
    %6124 = vmatpush.msra.mxu0 %v3692
    %6125 = vmatpush.msra.mxu0 %v3688
    %6126 = vmatpush.msra.mxu0 %v3684
    %6127 = vmatpush.msra.mxu0 %v3680
    %6128 = vmatpush.msra.mxu0 %v3676
    %6129 = vmatpush.msra.mxu0 %v3672
    %6130 = vmatpush.msra.mxu0 %v3668
    %6131 = vmatpush.msra.mxu0 %v3664
    %6132 = vmatpush.msra.mxu0 %v3660
    %6133 = vmatpush.msra.mxu0 %v3656
    %6134 = vmatpush.msra.mxu0 %v3652
    %6135 = vmatpush.msra.mxu0 %v3648
    %6136 = vmatpush.msra.mxu0 %v3644
    %6137 = vmatpush.msra.mxu0 %v3640
    %6138 = vmatpush.msra.mxu0 %v3636
    %6139 = vmatmul.f32.gmra.mxu0 %v6121
    %v6140 = vpop.f32.mrf.mxu0
    %v6141 = vadd.f32 0.0, %v6140
    %6142 = vdwg.mxu0
    %6143 = vmatpush.msra.mxu0 %v3697
    %6144 = vmatpush.msra.mxu0 %v3693
    %6145 = vmatpush.msra.mxu0 %v3689
    %6146 = vmatpush.msra.mxu0 %v3685
    %6147 = vmatpush.msra.mxu0 %v3681
    %6148 = vmatpush.msra.mxu0 %v3677
    %6149 = vmatpush.msra.mxu0 %v3673
    %6150 = vmatpush.msra.mxu0 %v3669
    %6151 = vmatpush.msra.mxu0 %v3665
    %6152 = vmatpush.msra.mxu0 %v3661
    %6153 = vmatpush.msra.mxu0 %v3657
    %6154 = vmatpush.msra.mxu0 %v3653
    %6155 = vmatpush.msra.mxu0 %v3649
    %6156 = vmatpush.msra.mxu0 %v3645
    %6157 = vmatpush.msra.mxu0 %v3641
    %6158 = vmatpush.msra.mxu0 %v3637
    %6159 = vmatmul.f32.gmra.mxu0 %v6121
    %v6160 = vpop.f32.mrf.mxu0
    %v6161 = vadd.f32 0.0, %v6160
    %6162 = vdwg.mxu0
    %6163 = vmatpush.msra.mxu0 %v3698
    %6164 = vmatpush.msra.mxu0 %v3694
    %6165 = vmatpush.msra.mxu0 %v3690
    %6166 = vmatpush.msra.mxu0 %v3686
    %6167 = vmatpush.msra.mxu0 %v3682
    %6168 = vmatpush.msra.mxu0 %v3678
    %6169 = vmatpush.msra.mxu0 %v3674
    %6170 = vmatpush.msra.mxu0 %v3670
    %6171 = vmatpush.msra.mxu0 %v3666
    %6172 = vmatpush.msra.mxu0 %v3662
    %6173 = vmatpush.msra.mxu0 %v3658
    %6174 = vmatpush.msra.mxu0 %v3654
    %6175 = vmatpush.msra.mxu0 %v3650
    %6176 = vmatpush.msra.mxu0 %v3646
    %6177 = vmatpush.msra.mxu0 %v3642
    %6178 = vmatpush.msra.mxu0 %v3638
    %6179 = vmatmul.f32.gmra.mxu0 %v6121
    %v6180 = vpop.f32.mrf.mxu0
    %v6181 = vadd.f32 0.0, %v6180
    %6182 = vdwg.mxu0
    %6183 = vmatpush.msra.mxu0 %v3699
    %6184 = vmatpush.msra.mxu0 %v3695
    %6185 = vmatpush.msra.mxu0 %v3691
    %6186 = vmatpush.msra.mxu0 %v3687
    %6187 = vmatpush.msra.mxu0 %v3683
    %6188 = vmatpush.msra.mxu0 %v3679
    %6189 = vmatpush.msra.mxu0 %v3675
    %6190 = vmatpush.msra.mxu0 %v3671
    %6191 = vmatpush.msra.mxu0 %v3667
    %6192 = vmatpush.msra.mxu0 %v3663
    %6193 = vmatpush.msra.mxu0 %v3659
    %6194 = vmatpush.msra.mxu0 %v3655
    %6195 = vmatpush.msra.mxu0 %v3651
    %6196 = vmatpush.msra.mxu0 %v3647
    %6197 = vmatpush.msra.mxu0 %v3643
    %6198 = vmatpush.msra.mxu0 %v3639
    %6199 = vmatmul.f32.gmra.mxu0 %v6121
    %v6200 = vpop.f32.mrf.mxu0
    %v6201 = vadd.f32 0.0, %v6200
    %6202 = vdwg.mxu0
    %v6203 = vadd.f32 %v6117, %v6141
    %v6204 = vadd.f32 %v6118, %v6161
    %v6205 = vadd.f32 %v6119, %v6181
    %v6206 = vadd.f32 %v6120, %v6201
    %v6207 = vrot.slane %v5012, 6
    %6209 = vmatpush.msra.mxu0 %v3847
    %6210 = vmatpush.msra.mxu0 %v3843
    %6211 = vmatpush.msra.mxu0 %v3839
    %6212 = vmatpush.msra.mxu0 %v3835
    %6213 = vmatpush.msra.mxu0 %v3831
    %6214 = vmatpush.msra.mxu0 %v3827
    %6215 = vmatpush.msra.mxu0 %v3823
    %6216 = vmatpush.msra.mxu0 %v3819
    %6217 = vmatpush.msra.mxu0 %v3815
    %6218 = vmatpush.msra.mxu0 %v3811
    %6219 = vmatpush.msra.mxu0 %v3807
    %6220 = vmatpush.msra.mxu0 %v3803
    %6221 = vmatpush.msra.mxu0 %v3799
    %6222 = vmatpush.msra.mxu0 %v3795
    %6223 = vmatpush.msra.mxu0 %v3791
    %6224 = vmatpush.msra.mxu0 %v3787
    %6225 = vmatmul.f32.gmra.mxu0 %v6207
    %v6226 = vpop.f32.mrf.mxu0
    %v6227 = vadd.f32 0.0, %v6226
    %6228 = vdwg.mxu0
    %6229 = vmatpush.msra.mxu0 %v3848
    %6230 = vmatpush.msra.mxu0 %v3844
    %6231 = vmatpush.msra.mxu0 %v3840
    %6232 = vmatpush.msra.mxu0 %v3836
    %6233 = vmatpush.msra.mxu0 %v3832
    %6234 = vmatpush.msra.mxu0 %v3828
    %6235 = vmatpush.msra.mxu0 %v3824
    %6236 = vmatpush.msra.mxu0 %v3820
    %6237 = vmatpush.msra.mxu0 %v3816
    %6238 = vmatpush.msra.mxu0 %v3812
    %6239 = vmatpush.msra.mxu0 %v3808
    %6240 = vmatpush.msra.mxu0 %v3804
    %6241 = vmatpush.msra.mxu0 %v3800
    %6242 = vmatpush.msra.mxu0 %v3796
    %6243 = vmatpush.msra.mxu0 %v3792
    %6244 = vmatpush.msra.mxu0 %v3788
    %6245 = vmatmul.f32.gmra.mxu0 %v6207
    %v6246 = vpop.f32.mrf.mxu0
    %v6247 = vadd.f32 0.0, %v6246
    %6248 = vdwg.mxu0
    %6249 = vmatpush.msra.mxu0 %v3849
    %6250 = vmatpush.msra.mxu0 %v3845
    %6251 = vmatpush.msra.mxu0 %v3841
    %6252 = vmatpush.msra.mxu0 %v3837
    %6253 = vmatpush.msra.mxu0 %v3833
    %6254 = vmatpush.msra.mxu0 %v3829
    %6255 = vmatpush.msra.mxu0 %v3825
    %6256 = vmatpush.msra.mxu0 %v3821
    %6257 = vmatpush.msra.mxu0 %v3817
    %6258 = vmatpush.msra.mxu0 %v3813
    %6259 = vmatpush.msra.mxu0 %v3809
    %6260 = vmatpush.msra.mxu0 %v3805
    %6261 = vmatpush.msra.mxu0 %v3801
    %6262 = vmatpush.msra.mxu0 %v3797
    %6263 = vmatpush.msra.mxu0 %v3793
    %6264 = vmatpush.msra.mxu0 %v3789
    %6265 = vmatmul.f32.gmra.mxu0 %v6207
    %v6266 = vpop.f32.mrf.mxu0
    %v6267 = vadd.f32 0.0, %v6266
    %6268 = vdwg.mxu0
    %6269 = vmatpush.msra.mxu0 %v3850
    %6270 = vmatpush.msra.mxu0 %v3846
    %6271 = vmatpush.msra.mxu0 %v3842
    %6272 = vmatpush.msra.mxu0 %v3838
    %6273 = vmatpush.msra.mxu0 %v3834
    %6274 = vmatpush.msra.mxu0 %v3830
    %6275 = vmatpush.msra.mxu0 %v3826
    %6276 = vmatpush.msra.mxu0 %v3822
    %6277 = vmatpush.msra.mxu0 %v3818
    %6278 = vmatpush.msra.mxu0 %v3814
    %6279 = vmatpush.msra.mxu0 %v3810
    %6280 = vmatpush.msra.mxu0 %v3806
    %6281 = vmatpush.msra.mxu0 %v3802
    %6282 = vmatpush.msra.mxu0 %v3798
    %6283 = vmatpush.msra.mxu0 %v3794
    %6284 = vmatpush.msra.mxu0 %v3790
    %6285 = vmatmul.f32.gmra.mxu0 %v6207
    %v6286 = vpop.f32.mrf.mxu0
    %v6287 = vadd.f32 0.0, %v6286
    %6288 = vdwg.mxu0
    %v6289 = vadd.f32 %v6203, %v6227
    %v6290 = vadd.f32 %v6204, %v6247
    %v6291 = vadd.f32 %v6205, %v6267
    %v6292 = vadd.f32 %v6206, %v6287
    %v6297 = vrot.slane %v6289, 7
    %v6298 = vrot.slane %v6290, 7
    %v6299 = vrot.slane %v6291, 7
    %v6300 = vrot.slane %v6292, 7
    %v6305 = vsel %vm612, %v3933, %v6297
    %v6306 = vsel %vm612, %v3934, %v6298
    %v6307 = vsel %vm612, %v3935, %v6299
    %v6308 = vsel %vm612, %v3936, %v6300
    %v6309 = vld [vmem:[#allocation14] sm:$0xf]
    %v6311 = vperm.slane %v6309, 0
    %v6312 = vperm.slane %v6309, 1
    %v6313 = vperm.slane %v6309, 2
    %v6314 = vperm.slane %v6309, 3
    %v6319 = vadd.f32 %v6305, %v6311
    %v6320 = vadd.f32 %v6306, %v6312
    %v6321 = vadd.f32 %v6307, %v6313
    %v6322 = vadd.f32 %v6308, %v6314
    %v6323 = vmax.f32 %v6319, 0.0
    %v6324 = vmax.f32 %v6320, 0.0
    %v6325 = vmax.f32 %v6321, 0.0
    %v6326 = vmax.f32 %v6322, 0.0
    %v6327 = vsel %vm556, %v6323, 0.0
    %v6328 = vrot.slane %v6327, 4
    %v6329 = vadd.f32 %v6327, %v6328
    %v6330 = vrot.slane %v6329, 2
    %v6331 = vadd.f32 %v6329, %v6330
    %v6332 = vrot.slane %v6331, 1
    %v6333 = vadd.f32 %v6331, %v6332
    %v6334 = vsel %vm556, %v6324, 0.0
    %v6335 = vrot.slane %v6334, 4
    %v6336 = vadd.f32 %v6334, %v6335
    %v6337 = vrot.slane %v6336, 2
    %v6338 = vadd.f32 %v6336, %v6337
    %v6339 = vrot.slane %v6338, 1
    %v6340 = vadd.f32 %v6338, %v6339
    %v6341 = vsel %vm556, %v6325, 0.0
    %v6342 = vrot.slane %v6341, 4
    %v6343 = vadd.f32 %v6341, %v6342
    %v6344 = vrot.slane %v6343, 2
    %v6345 = vadd.f32 %v6343, %v6344
    %v6346 = vrot.slane %v6345, 1
    %v6347 = vadd.f32 %v6345, %v6346
    %v6348 = vsel %vm556, %v6326, 0.0
    %v6349 = vrot.slane %v6348, 4
    %v6350 = vadd.f32 %v6348, %v6349
    %v6351 = vrot.slane %v6350, 2
    %v6352 = vadd.f32 %v6350, %v6351
    %v6353 = vrot.slane %v6352, 1
    %v6354 = vadd.f32 %v6352, %v6353
    %v6355 = vrcp.pop 2.0
    %v6356 = vmul.f32 2.0, %v6355
    %v6357 = vsub.f32 1.0, %v6356
    %v6358 = vmul.f32 %v6355, %v6357
    %v6359 = vadd.f32 %v6355, %v6358
    %vm6360 = vweird.f32 %v6355
    %v6361 = vsel %vm6360, %v6355, %v6359
    %v6362 = vmul.f32 %v6333, %v6361
    %v6363 = vmul.f32 %v6340, %v6361
    %v6364 = vmul.f32 %v6347, %v6361
    %v6365 = vmul.f32 %v6354, %v6361
    %v6366 = vsub.f32 %v6323, %v6362
    %v6367 = vsub.f32 %v6324, %v6363
    %v6368 = vsub.f32 %v6325, %v6364
    %v6369 = vsub.f32 %v6326, %v6365
    %v6370 = vmul.f32 %v6366, %v6366
    %v6371 = vmul.f32 %v6367, %v6367
    %v6372 = vmul.f32 %v6368, %v6368
    %v6373 = vmul.f32 %v6369, %v6369
    %v6374 = vsel %vm556, %v6370, 0.0
    %v6375 = vrot.slane %v6374, 4
    %v6376 = vadd.f32 %v6374, %v6375
    %v6377 = vrot.slane %v6376, 2
    %v6378 = vadd.f32 %v6376, %v6377
    %v6379 = vrot.slane %v6378, 1
    %v6380 = vadd.f32 %v6378, %v6379
    %v6381 = vsel %vm556, %v6371, 0.0
    %v6382 = vrot.slane %v6381, 4
    %v6383 = vadd.f32 %v6381, %v6382
    %v6384 = vrot.slane %v6383, 2
    %v6385 = vadd.f32 %v6383, %v6384
    %v6386 = vrot.slane %v6385, 1
    %v6387 = vadd.f32 %v6385, %v6386
    %v6388 = vsel %vm556, %v6372, 0.0
    %v6389 = vrot.slane %v6388, 4
    %v6390 = vadd.f32 %v6388, %v6389
    %v6391 = vrot.slane %v6390, 2
    %v6392 = vadd.f32 %v6390, %v6391
    %v6393 = vrot.slane %v6392, 1
    %v6394 = vadd.f32 %v6392, %v6393
    %v6395 = vsel %vm556, %v6373, 0.0
    %v6396 = vrot.slane %v6395, 4
    %v6397 = vadd.f32 %v6395, %v6396
    %v6398 = vrot.slane %v6397, 2
    %v6399 = vadd.f32 %v6397, %v6398
    %v6400 = vrot.slane %v6399, 1
    %v6401 = vadd.f32 %v6399, %v6400
    %v6402 = vmul.f32 %v6380, %v6361
    %v6403 = vmul.f32 %v6387, %v6361
    %v6404 = vmul.f32 %v6394, %v6361
    %v6405 = vmul.f32 %v6401, %v6361
    %v6406 = vadd.f32 %v6402, 1e-05
    %v6407 = vadd.f32 %v6403, 1e-05
    %v6408 = vadd.f32 %v6404, 1e-05
    %v6409 = vadd.f32 %v6405, 1e-05
    %v6410 = vrsqrt.pop %v6406
    %v6411 = vmul.f32 %v6410, %v6406
    %v6412 = vmul.f32 %v6411, %v6410
    %v6413 = vmul.f32 0.5, %v6412
    %v6414 = vsub.f32 1.5, %v6413
    %v6415 = vmul.f32 %v6410, %v6414
    %vm6416 = vweird.f32 %v6406
    %vm6417 = vweird.f32 %v6410
    %vm6418 = vmor %vm6416, %vm6417
    %v6419 = vsel %vm6418, %v6410, %v6415
    %v6420 = vrsqrt.pop %v6407
    %v6421 = vmul.f32 %v6420, %v6407
    %v6422 = vmul.f32 %v6421, %v6420
    %v6423 = vmul.f32 0.5, %v6422
    %v6424 = vsub.f32 1.5, %v6423
    %v6425 = vmul.f32 %v6420, %v6424
    %vm6426 = vweird.f32 %v6407
    %vm6427 = vweird.f32 %v6420
    %vm6428 = vmor %vm6426, %vm6427
    %v6429 = vsel %vm6428, %v6420, %v6425
    %v6430 = vrsqrt.pop %v6408
    %v6431 = vmul.f32 %v6430, %v6408
    %v6432 = vmul.f32 %v6431, %v6430
    %v6433 = vmul.f32 0.5, %v6432
    %v6434 = vsub.f32 1.5, %v6433
    %v6435 = vmul.f32 %v6430, %v6434
    %vm6436 = vweird.f32 %v6408
    %vm6437 = vweird.f32 %v6430
    %vm6438 = vmor %vm6436, %vm6437
    %v6439 = vsel %vm6438, %v6430, %v6435
    %v6440 = vrsqrt.pop %v6409
    %v6441 = vmul.f32 %v6440, %v6409
    %v6442 = vmul.f32 %v6441, %v6440
    %v6443 = vmul.f32 0.5, %v6442
    %v6444 = vsub.f32 1.5, %v6443
    %v6445 = vmul.f32 %v6440, %v6444
    %vm6446 = vweird.f32 %v6409
    %vm6447 = vweird.f32 %v6440
    %vm6448 = vmor %vm6446, %vm6447
    %v6449 = vsel %vm6448, %v6440, %v6445
    %v6450 = vmul.f32 %v6366, %v6419
    %v6451 = vmul.f32 %v6367, %v6429
    %v6452 = vmul.f32 %v6368, %v6439
    %v6453 = vmul.f32 %v6369, %v6449
    %v6454 = vld [vmem:[#allocation16] sm:$0xf]
    %v6456 = vperm.slane %v6454, 0
    %v6457 = vperm.slane %v6454, 1
    %v6458 = vperm.slane %v6454, 2
    %v6459 = vperm.slane %v6454, 3
    %v6464 = vmul.f32 %v6450, %v6456
    %v6465 = vmul.f32 %v6451, %v6457
    %v6466 = vmul.f32 %v6452, %v6458
    %v6467 = vmul.f32 %v6453, %v6459
    %v6468 = vld [vmem:[#allocation17] sm:$0xf]
    %v6470 = vperm.slane %v6468, 0
    %v6471 = vperm.slane %v6468, 1
    %v6472 = vperm.slane %v6468, 2
    %v6473 = vperm.slane %v6468, 3
    %v6478 = vadd.f32 %v6464, %v6470
    %v6479 = vadd.f32 %v6465, %v6471
    %v6480 = vadd.f32 %v6466, %v6472
    %v6481 = vadd.f32 %v6467, %v6473
    %v6482 = vld [vmem:[%s11] sm:$0xff]
    %v6483 = vld [vmem:[%s11 + $0x8] sm:$0xff]
    %v6484 = vld [vmem:[%s11 + $0x10] sm:$0xff]
    %v6485 = vld [vmem:[%s11 + $0x18] sm:$0xff]
    %v6486 = vld [vmem:[%s11 + $0x20] sm:$0xff]
    %v6487 = vld [vmem:[%s11 + $0x28] sm:$0xff]
    %v6488 = vld [vmem:[%s11 + $0x30] sm:$0xff]
    %v6489 = vld [vmem:[%s11 + $0x38] sm:$0xff]
    %v6490 = vld [vmem:[%s11 + $0x40] sm:$0xff]
    %v6491 = vld [vmem:[%s11 + $0x48] sm:$0xff]
    %v6492 = vld [vmem:[%s11 + $0x50] sm:$0xff]
    %v6493 = vld [vmem:[%s11 + $0x58] sm:$0xff]
    %v6494 = vld [vmem:[%s11 + $0x60] sm:$0xff]
    %v6495 = vld [vmem:[%s11 + $0x68] sm:$0xff]
    %v6496 = vld [vmem:[%s11 + $0x70] sm:$0xff]
    %v6497 = vld [vmem:[%s11 + $0x78] sm:$0xff]
    %v6498 = vld [vmem:[%s11 + $0x80] sm:$0xff]
    %v6499 = vld [vmem:[%s11 + $0x88] sm:$0xff]
    %v6500 = vld [vmem:[%s11 + $0x90] sm:$0xff]
    %v6501 = vld [vmem:[%s11 + $0x98] sm:$0xff]
    %v6502 = vld [vmem:[%s11 + $0xa0] sm:$0xff]
    %v6503 = vld [vmem:[%s11 + $0xa8] sm:$0xff]
    %v6504 = vld [vmem:[%s11 + $0xb0] sm:$0xff]
    %v6505 = vld [vmem:[%s11 + $0xb8] sm:$0xff]
    %v6506 = vld [vmem:[%s11 + $0xc0] sm:$0xff]
    %v6507 = vld [vmem:[%s11 + $0xc8] sm:$0xff]
    %v6508 = vld [vmem:[%s11 + $0xd0] sm:$0xff]
    %v6509 = vld [vmem:[%s11 + $0xd8] sm:$0xff]
    %v6510 = vld [vmem:[%s11 + $0xe0] sm:$0xff]
    %v6511 = vld [vmem:[%s11 + $0xe8] sm:$0xff]
    %v6512 = vld [vmem:[%s11 + $0xf0] sm:$0xff]
    %v6513 = vld [vmem:[%s11 + $0xf8] sm:$0xff]
    %v6514 = vld [vmem:[%s11 + $0x100] sm:$0xff]
    %v6515 = vld [vmem:[%s11 + $0x108] sm:$0xff]
    %v6516 = vld [vmem:[%s11 + $0x110] sm:$0xff]
    %v6517 = vld [vmem:[%s11 + $0x118] sm:$0xff]
    %v6518 = vld [vmem:[%s11 + $0x120] sm:$0xff]
    %v6519 = vld [vmem:[%s11 + $0x128] sm:$0xff]
    %v6520 = vld [vmem:[%s11 + $0x130] sm:$0xff]
    %v6521 = vld [vmem:[%s11 + $0x138] sm:$0xff]
    %v6522 = vld [vmem:[%s11 + $0x140] sm:$0xff]
    %v6523 = vld [vmem:[%s11 + $0x148] sm:$0xff]
    %v6524 = vld [vmem:[%s11 + $0x150] sm:$0xff]
    %v6525 = vld [vmem:[%s11 + $0x158] sm:$0xff]
    %v6526 = vld [vmem:[%s11 + $0x160] sm:$0xff]
    %v6527 = vld [vmem:[%s11 + $0x168] sm:$0xff]
    %v6528 = vld [vmem:[%s11 + $0x170] sm:$0xff]
    %v6529 = vld [vmem:[%s11 + $0x178] sm:$0xff]
    %v6530 = vld [vmem:[%s11 + $0x180] sm:$0xff]
    %v6531 = vld [vmem:[%s11 + $0x188] sm:$0xff]
    %v6532 = vld [vmem:[%s11 + $0x190] sm:$0xff]
    %v6533 = vld [vmem:[%s11 + $0x198] sm:$0xff]
    %v6534 = vld [vmem:[%s11 + $0x1a0] sm:$0xff]
    %v6535 = vld [vmem:[%s11 + $0x1a8] sm:$0xff]
    %v6536 = vld [vmem:[%s11 + $0x1b0] sm:$0xff]
    %v6537 = vld [vmem:[%s11 + $0x1b8] sm:$0xff]
    %v6538 = vld [vmem:[%s11 + $0x1c0] sm:$0xff]
    %v6539 = vld [vmem:[%s11 + $0x1c8] sm:$0xff]
    %v6540 = vld [vmem:[%s11 + $0x1d0] sm:$0xff]
    %v6541 = vld [vmem:[%s11 + $0x1d8] sm:$0xff]
    %v6542 = vld [vmem:[%s11 + $0x1e0] sm:$0xff]
    %v6543 = vld [vmem:[%s11 + $0x1e8] sm:$0xff]
    %v6544 = vld [vmem:[%s11 + $0x1f0] sm:$0xff]
    %v6545 = vld [vmem:[%s11 + $0x1f8] sm:$0xff]
    %v6546 = vld [vmem:[#allocation19] sm:$0x1]
    %v6548 = vperm.slane %v6546, 0
    %6550 = vmatpush.msra.mxu0 %v6497
    %6551 = vmatpush.msra.mxu0 %v6496
    %6552 = vmatpush.msra.mxu0 %v6495
    %6553 = vmatpush.msra.mxu0 %v6494
    %6554 = vmatpush.msra.mxu0 %v6493
    %6555 = vmatpush.msra.mxu0 %v6492
    %6556 = vmatpush.msra.mxu0 %v6491
    %6557 = vmatpush.msra.mxu0 %v6490
    %6558 = vmatpush.msra.mxu0 %v6489
    %6559 = vmatpush.msra.mxu0 %v6488
    %6560 = vmatpush.msra.mxu0 %v6487
    %6561 = vmatpush.msra.mxu0 %v6486
    %6562 = vmatpush.msra.mxu0 %v6485
    %6563 = vmatpush.msra.mxu0 %v6484
    %6564 = vmatpush.msra.mxu0 %v6483
    %6565 = vmatpush.msra.mxu0 %v6482
    %6566 = vmatmul.f32.gmra.mxu0 %v6478
    %v6567 = vpop.f32.mrf.mxu0
    %v6568 = vadd.f32 %v6548, %v6567
    %6569 = vdwg.mxu0
    %6570 = vmatpush.msra.mxu0 %v6513
    %6571 = vmatpush.msra.mxu0 %v6512
    %6572 = vmatpush.msra.mxu0 %v6511
    %6573 = vmatpush.msra.mxu0 %v6510
    %6574 = vmatpush.msra.mxu0 %v6509
    %6575 = vmatpush.msra.mxu0 %v6508
    %6576 = vmatpush.msra.mxu0 %v6507
    %6577 = vmatpush.msra.mxu0 %v6506
    %6578 = vmatpush.msra.mxu0 %v6505
    %6579 = vmatpush.msra.mxu0 %v6504
    %6580 = vmatpush.msra.mxu0 %v6503
    %6581 = vmatpush.msra.mxu0 %v6502
    %6582 = vmatpush.msra.mxu0 %v6501
    %6583 = vmatpush.msra.mxu0 %v6500
    %6584 = vmatpush.msra.mxu0 %v6499
    %6585 = vmatpush.msra.mxu0 %v6498
    %6586 = vmatmul.f32.gmra.mxu0 %v6479
    %v6587 = vpop.f32.mrf.mxu0
    %v6588 = vadd.f32 %v6568, %v6587
    %6589 = vdwg.mxu0
    %6590 = vmatpush.msra.mxu0 %v6529
    %6591 = vmatpush.msra.mxu0 %v6528
    %6592 = vmatpush.msra.mxu0 %v6527
    %6593 = vmatpush.msra.mxu0 %v6526
    %6594 = vmatpush.msra.mxu0 %v6525
    %6595 = vmatpush.msra.mxu0 %v6524
    %6596 = vmatpush.msra.mxu0 %v6523
    %6597 = vmatpush.msra.mxu0 %v6522
    %6598 = vmatpush.msra.mxu0 %v6521
    %6599 = vmatpush.msra.mxu0 %v6520
    %6600 = vmatpush.msra.mxu0 %v6519
    %6601 = vmatpush.msra.mxu0 %v6518
    %6602 = vmatpush.msra.mxu0 %v6517
    %6603 = vmatpush.msra.mxu0 %v6516
    %6604 = vmatpush.msra.mxu0 %v6515
    %6605 = vmatpush.msra.mxu0 %v6514
    %6606 = vmatmul.f32.gmra.mxu0 %v6480
    %v6607 = vpop.f32.mrf.mxu0
    %v6608 = vadd.f32 %v6588, %v6607
    %6609 = vdwg.mxu0
    %6610 = vmatpush.msra.mxu0 %v6545
    %6611 = vmatpush.msra.mxu0 %v6544
    %6612 = vmatpush.msra.mxu0 %v6543
    %6613 = vmatpush.msra.mxu0 %v6542
    %6614 = vmatpush.msra.mxu0 %v6541
    %6615 = vmatpush.msra.mxu0 %v6540
    %6616 = vmatpush.msra.mxu0 %v6539
    %6617 = vmatpush.msra.mxu0 %v6538
    %6618 = vmatpush.msra.mxu0 %v6537
    %6619 = vmatpush.msra.mxu0 %v6536
    %6620 = vmatpush.msra.mxu0 %v6535
    %6621 = vmatpush.msra.mxu0 %v6534
    %6622 = vmatpush.msra.mxu0 %v6533
    %6623 = vmatpush.msra.mxu0 %v6532
    %6624 = vmatpush.msra.mxu0 %v6531
    %6625 = vmatpush.msra.mxu0 %v6530
    %6626 = vmatmul.f32.gmra.mxu0 %v6481
    %v6627 = vpop.f32.mrf.mxu0
    %v6628 = vadd.f32 %v6608, %v6627
    %6629 = vdwg.mxu0
    %v6630 = vmul.f32 %v6628, 0.5
    %v6631 = vmul.f32 %v6630, 1.442695
    %v6632 = vpow.pop %v6631
    %v6633 = vld [vmem:[#allocation20] sm:$0x3]
    %v6634 = vmul.f32 %v6628, %v6633
    %6636 = vrot.lane.b32.xlu0 %v6632, 96
    %v6637 = vpop.permute.xlu0 %6636
    %v6639 = vmul.f32 %v6634, %v6637
    %vm6640 = vcmask 254976
    %6641 = vst.msk [vmem:[#allocation22] sm:$0x3] %vm6640, %v6639
    %6642 = vst.msk [vmem:[#allocation23] sm:$0x3] %vm6640, %v6628
    %6644 = vrot.lane.b32.xlu0 %v6628, 96
    %v6645 = vpop.permute.xlu0 %6644
    %6647 = vst.msk [vmem:[#allocation25] sm:$0x3] %vm6640, %v6645
    // Predicated region
    $region106: #{conv_encoder_forward.1} parent=1 // pred_check
      _
    $region107: #{conv_encoder_forward.1} parent=1 // pred_check_branch
      %6649 = sbr.rel (0) target = $region109
    $region108: #{conv_encoder_forward.1} parent=1 // pred_region
      %6651 = vsyncadd [#allocation4], 0
      %s6653 = sshll.u32 [#allocation22], 4
      %s6654 = int_to_ptr.vmem [resolvable:$true] %s6653
      %s6655 = sshll.u32 %s14, 4
      %s6656 = int_to_ptr.hbm [resolvable:$true] %s6655
      %6658 = dma.vmem_to_hbm [thread:$0]  %s6654, 32, %s6656, [#allocation4]
    $region109: #{conv_encoder_forward.1} parent=1 // pred_fallthru
      _
    // Predicated region
    $region110: #{conv_encoder_forward.1} parent=1 // pred_check
      _
    $region111: #{conv_encoder_forward.1} parent=1 // pred_check_branch
      %6660 = sbr.rel (0) target = $region113
    $region112: #{conv_encoder_forward.1} parent=1 // pred_region
      %6662 = vsyncadd [#allocation24], 0
      %s6664 = sshll.u32 [#allocation23], 4
      %s6665 = int_to_ptr.vmem [resolvable:$true] %s6664
      %s6666 = sshll.u32 %s15, 4
      %s6667 = int_to_ptr.hbm [resolvable:$true] %s6666
      %6669 = dma.vmem_to_hbm [thread:$0]  %s6665, 32, %s6667, [#allocation24]
    $region113: #{conv_encoder_forward.1} parent=1 // pred_fallthru
      _
    // Predicated region
    $region114: #{conv_encoder_forward.1} parent=1 // pred_check
      _
    $region115: #{conv_encoder_forward.1} parent=1 // pred_check_branch
      %6671 = sbr.rel (0) target = $region117
    $region116: #{conv_encoder_forward.1} parent=1 // pred_region
      %6673 = vsyncadd [#allocation24], 0
      %s6675 = sshll.u32 [#allocation25], 4
      %s6676 = int_to_ptr.vmem [resolvable:$true] %s6675
      %s6677 = sshll.u32 %s16, 4
      %s6678 = int_to_ptr.hbm [resolvable:$true] %s6677
      %6680 = dma.vmem_to_hbm [thread:$0]  %s6676, 32, %s6678, [#allocation24]
    $region117: #{conv_encoder_forward.1} parent=1 // pred_fallthru
      _
    // Predicated region
    $region118: #{conv_encoder_forward.1} parent=1 // pred_check
      _
    $region119: #{conv_encoder_forward.1} parent=1 // pred_check_branch
      %6682 = sbr.rel (0) target = $region121
    $region120: #{conv_encoder_forward.1} parent=1 // pred_region
      %6684 = dma.done [#allocation4], 32
    $region121: #{conv_encoder_forward.1} parent=1 // pred_fallthru
      _
    // Predicated region
    $region122: #{conv_encoder_forward.1} parent=1 // pred_check
      _
    $region123: #{conv_encoder_forward.1} parent=1 // pred_check_branch
      %6686 = sbr.rel (0) target = $region125
    $region124: #{conv_encoder_forward.1} parent=1 // pred_region
      %6688 = dma.done [#allocation24], 32
    $region125: #{conv_encoder_forward.1} parent=1 // pred_fallthru
      _
    // Predicated region
    $region126: #{conv_encoder_forward.1} parent=1 // pred_check
      _
    $region127: #{conv_encoder_forward.1} parent=1 // pred_check_branch
      %6690 = sbr.rel (0) target = $region129
    $region128: #{conv_encoder_forward.1} parent=1 // pred_region
      %6692 = dma.done [#allocation24], 32
    $region129: #{conv_encoder_forward.1} parent=1 // pred_fallthru
      _
    %6693 = vsyncpa [#allocation3], 1
    %6694 = vsyncpa [#allocation6], 1
    %6695 = vsyncpa [#allocation9], 1
    %6696 = vsyncpa [#allocation12], 1
    %6697 = vsyncpa [#allocation15], 1
    %6698 = vsyncpa [#allocation18], 1
    %6699 = vsyncpa [#allocation21], 1
    %6700 = vsyncpa [#allocation4], 1
    %6701 = vsyncpa [#allocation24], 1

</llo_original>
